<compile_context>
chip_gen: v6e
topology: v6e:2x2x1
jax: 0.10.0
libtpu: 0.0.40
codegen_flags: <defaults>
</compile_context>

<pallas_src>
import functools

import jax
import jax.numpy as jnp
from jax import lax
from jax.experimental import pallas as pl
from jax.experimental.pallas import tpu as pltpu


def _round_up(a, m):
    return -(-a // m) * m


def _bayar_direct_kernel(x_ref, w_ref, o_ref, *, k, cin, cout, stride, tho, wo):
    """Direct (VPU) convolution for one (batch, output-row-band) grid point.

    x_ref : (1, Cin, h_blk, w_in)  whole padded image of this batch element
                                   (lane axis = image width, dense).
    w_ref : (Cout*Cin*k*k,)        constrained Bayar weights (SMEM scalars).
    o_ref : (1, Cout, tho, wo)     one NCHW band of the output.
    """
    rt = pl.program_id(1)
    r0 = pl.multiple_of(rt * (tho * stride), tho * stride)

    acc = [jnp.zeros((tho, wo), jnp.float32) for _ in range(cout)]
    for c in range(cin):
        for di in range(k):
            if stride == 1:
                rows = x_ref[0, c, pl.ds(r0 + di, tho), :]          # (tho, w_in)
            else:
                # TODO(synk): strided dynamic row slice is only lightly tested;
                # the module default (and the test below) uses stride == 1.
                rows = x_ref[0, c, pl.ds(r0 + di, tho, stride), :]
            for dj in range(k):
                if stride == 1:
                    win = rows[:, dj:dj + wo]                       # lane shift
                else:
                    win = lax.slice(rows, (0, dj),
                                    (tho, dj + (wo - 1) * stride + 1),
                                    (1, stride))
                for o in range(cout):
                    w = w_ref[((o * cin + c) * k + di) * k + dj]    # SMEM scalar
                    acc[o] = acc[o] + w * win
    for o in range(cout):
        o_ref[0, o, :, :] = acc[o].astype(o_ref.dtype)


def bayar_real_kernel(kernel_param, kernel_size):
    """Reproduce BayarConv2d.bayarConstraint() exactly (functional form)."""
    cin, cout, _ = kernel_param.shape
    k = kernel_size
    # in-place .data normalization in PyTorch -> functional normalization here
    kp = kernel_param / jnp.sum(kernel_param, axis=-1, keepdims=True)
    minus1 = -jnp.ones((cin, cout, 1), kp.dtype)
    ctr = (k * k) // 2
    real = jnp.concatenate([kp[:, :, :ctr], minus1, kp[:, :, ctr:]], axis=2)
    # NOTE: raw row-major reshape (Cin, Cout, k*k) -> (Cout, Cin, k, k) is the
    # verbatim PyTorch quirk (only self-consistent when Cin == Cout); kept
    # as-is so the forward matches the module exactly.
    return real.reshape(cout, cin, k, k)


def bayar_conv2d(x_nchw, kernel_param, *, kernel_size=5, stride=1, padding=0,
                 band_rows=32):
    cin, cout, _ = kernel_param.shape
    k = kernel_size

    real = bayar_real_kernel(kernel_param, k)             # (Cout, Cin, k, k)
    w_flat = real.reshape(cout * cin * k * k)             # SMEM scalar table

    x = x_nchw
    if padding:
        x = jnp.pad(x, ((0, 0), (0, 0), (padding, padding), (padding, padding)))
    n, _, h_in, w_in = x.shape
    ho = (h_in - k) // stride + 1
    wo = (w_in - k) // stride + 1

    # Row-band tiling of the output; tho is a multiple of 8 so output blocks
    # are sublane-aligned.  Width is left untiled (full lane axis).
    tho = min(_round_up(max(band_rows, 8), 8), _round_up(ho, 8))
    ho_p = _round_up(ho, tho)
    h_blk = max((ho_p - 1) * stride + k, h_in)
    if h_blk > h_in:
        x = jnp.pad(x, ((0, 0), (0, 0), (0, h_blk - h_in), (0, 0)))

    grid = (n, ho_p // tho)
    kernel = functools.partial(_bayar_direct_kernel, k=k, cin=cin, cout=cout,
                               stride=stride, tho=tho, wo=wo)

    # Rough VMEM budget (tile-padded, double-buffered) + headroom, capped.
    in_vmem = cin * _round_up(h_blk, 8) * _round_up(w_in, 128) * 4
    out_vmem = cout * tho * _round_up(wo, 128) * 4
    vmem_limit = int(min(max(2 * (in_vmem + out_vmem) + (4 << 20), 16 << 20),
                         48 << 20))

    cost = pl.CostEstimate(
        flops=2 * n * ho * wo * k * k * cin * cout,
        transcendentals=0,
        bytes_accessed=(x.size + n * cout * ho * wo + w_flat.size) * 4)

    out = pl.pallas_call(
        kernel,
        out_shape=jax.ShapeDtypeStruct((n, cout, ho_p, wo), x_nchw.dtype),
        grid_spec=pltpu.PrefetchScalarGridSpec(
            num_scalar_prefetch=0,
            grid=grid,
            in_specs=[
                # Whole (padded) image of one batch element; the block index
                # ignores the band axis so it stays VMEM-resident across bands.
                pl.BlockSpec((1, cin, h_blk, w_in), lambda b, rt: (b, 0, 0, 0)),
                # Constrained weights as SMEM scalars.
                pl.BlockSpec(memory_space=pltpu.MemorySpace.SMEM),
            ],
            out_specs=pl.BlockSpec((1, cout, tho, wo),
                                   lambda b, rt: (b, 0, rt, 0)),
        ),
        compiler_params=pltpu.CompilerParams(
            dimension_semantics=("parallel", "parallel"),
            vmem_limit_bytes=vmem_limit),
        cost_estimate=cost,
    )(x, w_flat)

    return out[:, :, :ho, :]                               # drop row-band padding


if __name__ == "__main__":
    in_channels, out_channels, ksize = 4, 4, 5
    stride, padding = 1, 0

    key = jax.random.PRNGKey(0)
    k_key, x_key = jax.random.split(key)
    # torch.rand equivalent init: uniform [0, 1), shape (Cin, Cout, k*k - 1)
    kernel_param = jax.random.uniform(
        k_key, (in_channels, out_channels, ksize * ksize - 1), jnp.float32)
    x = jax.random.normal(x_key, (2, in_channels, 16, 16), jnp.float32)

    fwd = jax.jit(functools.partial(
        bayar_conv2d, kernel_size=ksize, stride=stride, padding=padding))
    y = jax.block_until_ready(fwd(x, kernel_param))

    # Reference check against XLA's conv with the same constrained weight.
    real = bayar_real_kernel(kernel_param, ksize)
    y_ref = lax.conv_general_dilated(
        x, real, window_strides=(stride, stride),
        padding=[(padding, padding), (padding, padding)],
        dimension_numbers=("NCHW", "OIHW", "NCHW"))

    assert y.shape == (2, out_channels, 12, 12), y.shape
    assert jnp.allclose(y, y_ref, rtol=1e-5, atol=1e-4), \
        float(jnp.max(jnp.abs(y - y_ref)))
    print("KERNEL_OK")
</pallas_src>

<mosaic_0001>
module attributes {stable_mosaic.version = 11 : i64} {
  func.func @_bayar_direct_kernel(%arg0: i32, %arg1: i32, %arg2: memref<1x4x20x16xf32, #tpu.memory_space<vmem>>, %arg3: memref<400xf32, #tpu.memory_space<smem>>, %arg4: memref<1x4x16x12xf32, #tpu.memory_space<vmem>>) attributes {dimension_semantics = [#tpu.dimension_semantics<parallel>, #tpu.dimension_semantics<parallel>], iteration_bounds = array<i64: 2, 1>, scalar_prefetch = 0 : i64, scratch_operands = 0 : i64, tpu.core_type = #tpu.core_type<tc>, window_params = [{transform_indices = @transform_0, window_bounds = array<i64: 1, 4, 20, 16>}, {transform_indices = @transform_1, window_bounds = array<i64: 400>}, {transform_indices = @transform_2, window_bounds = array<i64: 1, 4, 16, 12>}]} {
    %c16_i32 = arith.constant 16 : i32
    %0 = arith.muli %arg1, %c16_i32 : i32
    %1 = tpu.assume_multiple %0, 16 : i32
    %cst = arith.constant 0.000000e+00 : f32
    %2 = vector.broadcast %cst : f32 to vector<16x12xf32>
    %cst_0 = arith.constant 0.000000e+00 : f32
    %3 = vector.broadcast %cst_0 : f32 to vector<16x12xf32>
    %cst_1 = arith.constant 0.000000e+00 : f32
    %4 = vector.broadcast %cst_1 : f32 to vector<16x12xf32>
    %cst_2 = arith.constant 0.000000e+00 : f32
    %5 = vector.broadcast %cst_2 : f32 to vector<16x12xf32>
    %c0_i32 = arith.constant 0 : i32
    %6 = arith.addi %1, %c0_i32 : i32
    %c0 = arith.constant 0 : index
    %c0_3 = arith.constant 0 : index
    %7 = arith.index_cast %6 : i32 to index
    %c0_4 = arith.constant 0 : index
    %8 = vector.load %arg2[%c0, %c0_3, %7, %c0_4] : memref<1x4x20x16xf32, #tpu.memory_space<vmem>>, vector<1x1x16x16xf32>
    %9 = vector.shape_cast %8 : vector<1x1x16x16xf32> to vector<16x16xf32>
    %10 = vector.extract_strided_slice %9 {offsets = [0, 0], sizes = [16, 12], strides = [1, 1]} : vector<16x16xf32> to vector<16x12xf32>
    %c0_5 = arith.constant 0 : index
    %11 = memref.load %arg3[%c0_5] : memref<400xf32, #tpu.memory_space<smem>>
    %12 = vector.broadcast %11 : f32 to vector<16x12xf32>
    %13 = arith.mulf %12, %10 : vector<16x12xf32>
    %14 = arith.addf %2, %13 : vector<16x12xf32>
    %c100 = arith.constant 100 : index
    %15 = memref.load %arg3[%c100] : memref<400xf32, #tpu.memory_space<smem>>
    %16 = vector.broadcast %15 : f32 to vector<16x12xf32>
    %17 = arith.mulf %16, %10 : vector<16x12xf32>
    %18 = arith.addf %3, %17 : vector<16x12xf32>
    %c200 = arith.constant 200 : index
    %19 = memref.load %arg3[%c200] : memref<400xf32, #tpu.memory_space<smem>>
    %20 = vector.broadcast %19 : f32 to vector<16x12xf32>
    %21 = arith.mulf %20, %10 : vector<16x12xf32>
    %22 = arith.addf %4, %21 : vector<16x12xf32>
    %c300 = arith.constant 300 : index
    %23 = memref.load %arg3[%c300] : memref<400xf32, #tpu.memory_space<smem>>
    %24 = vector.broadcast %23 : f32 to vector<16x12xf32>
    %25 = arith.mulf %24, %10 : vector<16x12xf32>
    %26 = arith.addf %5, %25 : vector<16x12xf32>
    %27 = vector.extract_strided_slice %9 {offsets = [0, 1], sizes = [16, 12], strides = [1, 1]} : vector<16x16xf32> to vector<16x12xf32>
    %c1 = arith.constant 1 : index
    %28 = memref.load %arg3[%c1] : memref<400xf32, #tpu.memory_space<smem>>
    %29 = vector.broadcast %28 : f32 to vector<16x12xf32>
    %30 = arith.mulf %29, %27 : vector<16x12xf32>
    %31 = arith.addf %14, %30 : vector<16x12xf32>
    %c101 = arith.constant 101 : index
    %32 = memref.load %arg3[%c101] : memref<400xf32, #tpu.memory_space<smem>>
    %33 = vector.broadcast %32 : f32 to vector<16x12xf32>
    %34 = arith.mulf %33, %27 : vector<16x12xf32>
    %35 = arith.addf %18, %34 : vector<16x12xf32>
    %c201 = arith.constant 201 : index
    %36 = memref.load %arg3[%c201] : memref<400xf32, #tpu.memory_space<smem>>
    %37 = vector.broadcast %36 : f32 to vector<16x12xf32>
    %38 = arith.mulf %37, %27 : vector<16x12xf32>
    %39 = arith.addf %22, %38 : vector<16x12xf32>
    %c301 = arith.constant 301 : index
    %40 = memref.load %arg3[%c301] : memref<400xf32, #tpu.memory_space<smem>>
    %41 = vector.broadcast %40 : f32 to vector<16x12xf32>
    %42 = arith.mulf %41, %27 : vector<16x12xf32>
    %43 = arith.addf %26, %42 : vector<16x12xf32>
    %44 = vector.extract_strided_slice %9 {offsets = [0, 2], sizes = [16, 12], strides = [1, 1]} : vector<16x16xf32> to vector<16x12xf32>
    %c2 = arith.constant 2 : index
    %45 = memref.load %arg3[%c2] : memref<400xf32, #tpu.memory_space<smem>>
    %46 = vector.broadcast %45 : f32 to vector<16x12xf32>
    %47 = arith.mulf %46, %44 : vector<16x12xf32>
    %48 = arith.addf %31, %47 : vector<16x12xf32>
    %c102 = arith.constant 102 : index
    %49 = memref.load %arg3[%c102] : memref<400xf32, #tpu.memory_space<smem>>
    %50 = vector.broadcast %49 : f32 to vector<16x12xf32>
    %51 = arith.mulf %50, %44 : vector<16x12xf32>
    %52 = arith.addf %35, %51 : vector<16x12xf32>
    %c202 = arith.constant 202 : index
    %53 = memref.load %arg3[%c202] : memref<400xf32, #tpu.memory_space<smem>>
    %54 = vector.broadcast %53 : f32 to vector<16x12xf32>
    %55 = arith.mulf %54, %44 : vector<16x12xf32>
    %56 = arith.addf %39, %55 : vector<16x12xf32>
    %c302 = arith.constant 302 : index
    %57 = memref.load %arg3[%c302] : memref<400xf32, #tpu.memory_space<smem>>
    %58 = vector.broadcast %57 : f32 to vector<16x12xf32>
    %59 = arith.mulf %58, %44 : vector<16x12xf32>
    %60 = arith.addf %43, %59 : vector<16x12xf32>
    %61 = vector.extract_strided_slice %9 {offsets = [0, 3], sizes = [16, 12], strides = [1, 1]} : vector<16x16xf32> to vector<16x12xf32>
    %c3 = arith.constant 3 : index
    %62 = memref.load %arg3[%c3] : memref<400xf32, #tpu.memory_space<smem>>
    %63 = vector.broadcast %62 : f32 to vector<16x12xf32>
    %64 = arith.mulf %63, %61 : vector<16x12xf32>
    %65 = arith.addf %48, %64 : vector<16x12xf32>
    %c103 = arith.constant 103 : index
    %66 = memref.load %arg3[%c103] : memref<400xf32, #tpu.memory_space<smem>>
    %67 = vector.broadcast %66 : f32 to vector<16x12xf32>
    %68 = arith.mulf %67, %61 : vector<16x12xf32>
    %69 = arith.addf %52, %68 : vector<16x12xf32>
    %c203 = arith.constant 203 : index
    %70 = memref.load %arg3[%c203] : memref<400xf32, #tpu.memory_space<smem>>
    %71 = vector.broadcast %70 : f32 to vector<16x12xf32>
    %72 = arith.mulf %71, %61 : vector<16x12xf32>
    %73 = arith.addf %56, %72 : vector<16x12xf32>
    %c303 = arith.constant 303 : index
    %74 = memref.load %arg3[%c303] : memref<400xf32, #tpu.memory_space<smem>>
    %75 = vector.broadcast %74 : f32 to vector<16x12xf32>
    %76 = arith.mulf %75, %61 : vector<16x12xf32>
    %77 = arith.addf %60, %76 : vector<16x12xf32>
    %78 = vector.extract_strided_slice %9 {offsets = [0, 4], sizes = [16, 12], strides = [1, 1]} : vector<16x16xf32> to vector<16x12xf32>
    %c4 = arith.constant 4 : index
    %79 = memref.load %arg3[%c4] : memref<400xf32, #tpu.memory_space<smem>>
    %80 = vector.broadcast %79 : f32 to vector<16x12xf32>
    %81 = arith.mulf %80, %78 : vector<16x12xf32>
    %82 = arith.addf %65, %81 : vector<16x12xf32>
    %c104 = arith.constant 104 : index
    %83 = memref.load %arg3[%c104] : memref<400xf32, #tpu.memory_space<smem>>
    %84 = vector.broadcast %83 : f32 to vector<16x12xf32>
    %85 = arith.mulf %84, %78 : vector<16x12xf32>
    %86 = arith.addf %69, %85 : vector<16x12xf32>
    %c204 = arith.constant 204 : index
    %87 = memref.load %arg3[%c204] : memref<400xf32, #tpu.memory_space<smem>>
    %88 = vector.broadcast %87 : f32 to vector<16x12xf32>
    %89 = arith.mulf %88, %78 : vector<16x12xf32>
    %90 = arith.addf %73, %89 : vector<16x12xf32>
    %c304 = arith.constant 304 : index
    %91 = memref.load %arg3[%c304] : memref<400xf32, #tpu.memory_space<smem>>
    %92 = vector.broadcast %91 : f32 to vector<16x12xf32>
    %93 = arith.mulf %92, %78 : vector<16x12xf32>
    %94 = arith.addf %77, %93 : vector<16x12xf32>
    %c1_i32 = arith.constant 1 : i32
    %95 = arith.addi %1, %c1_i32 : i32
    %c0_6 = arith.constant 0 : index
    %c0_7 = arith.constant 0 : index
    %96 = arith.index_cast %95 : i32 to index
    %c0_8 = arith.constant 0 : index
    %97 = vector.load %arg2[%c0_6, %c0_7, %96, %c0_8] : memref<1x4x20x16xf32, #tpu.memory_space<vmem>>, vector<1x1x16x16xf32>
    %98 = vector.shape_cast %97 : vector<1x1x16x16xf32> to vector<16x16xf32>
    %99 = vector.extract_strided_slice %98 {offsets = [0, 0], sizes = [16, 12], strides = [1, 1]} : vector<16x16xf32> to vector<16x12xf32>
    %c5 = arith.constant 5 : index
    %100 = memref.load %arg3[%c5] : memref<400xf32, #tpu.memory_space<smem>>
    %101 = vector.broadcast %100 : f32 to vector<16x12xf32>
    %102 = arith.mulf %101, %99 : vector<16x12xf32>
    %103 = arith.addf %82, %102 : vector<16x12xf32>
    %c105 = arith.constant 105 : index
    %104 = memref.load %arg3[%c105] : memref<400xf32, #tpu.memory_space<smem>>
    %105 = vector.broadcast %104 : f32 to vector<16x12xf32>
    %106 = arith.mulf %105, %99 : vector<16x12xf32>
    %107 = arith.addf %86, %106 : vector<16x12xf32>
    %c205 = arith.constant 205 : index
    %108 = memref.load %arg3[%c205] : memref<400xf32, #tpu.memory_space<smem>>
    %109 = vector.broadcast %108 : f32 to vector<16x12xf32>
    %110 = arith.mulf %109, %99 : vector<16x12xf32>
    %111 = arith.addf %90, %110 : vector<16x12xf32>
    %c305 = arith.constant 305 : index
    %112 = memref.load %arg3[%c305] : memref<400xf32, #tpu.memory_space<smem>>
    %113 = vector.broadcast %112 : f32 to vector<16x12xf32>
    %114 = arith.mulf %113, %99 : vector<16x12xf32>
    %115 = arith.addf %94, %114 : vector<16x12xf32>
    %116 = vector.extract_strided_slice %98 {offsets = [0, 1], sizes = [16, 12], strides = [1, 1]} : vector<16x16xf32> to vector<16x12xf32>
    %c6 = arith.constant 6 : index
    %117 = memref.load %arg3[%c6] : memref<400xf32, #tpu.memory_space<smem>>
    %118 = vector.broadcast %117 : f32 to vector<16x12xf32>
    %119 = arith.mulf %118, %116 : vector<16x12xf32>
    %120 = arith.addf %103, %119 : vector<16x12xf32>
    %c106 = arith.constant 106 : index
    %121 = memref.load %arg3[%c106] : memref<400xf32, #tpu.memory_space<smem>>
    %122 = vector.broadcast %121 : f32 to vector<16x12xf32>
    %123 = arith.mulf %122, %116 : vector<16x12xf32>
    %124 = arith.addf %107, %123 : vector<16x12xf32>
    %c206 = arith.constant 206 : index
    %125 = memref.load %arg3[%c206] : memref<400xf32, #tpu.memory_space<smem>>
    %126 = vector.broadcast %125 : f32 to vector<16x12xf32>
    %127 = arith.mulf %126, %116 : vector<16x12xf32>
    %128 = arith.addf %111, %127 : vector<16x12xf32>
    %c306 = arith.constant 306 : index
    %129 = memref.load %arg3[%c306] : memref<400xf32, #tpu.memory_space<smem>>
    %130 = vector.broadcast %129 : f32 to vector<16x12xf32>
    %131 = arith.mulf %130, %116 : vector<16x12xf32>
    %132 = arith.addf %115, %131 : vector<16x12xf32>
    %133 = vector.extract_strided_slice %98 {offsets = [0, 2], sizes = [16, 12], strides = [1, 1]} : vector<16x16xf32> to vector<16x12xf32>
    %c7 = arith.constant 7 : index
    %134 = memref.load %arg3[%c7] : memref<400xf32, #tpu.memory_space<smem>>
    %135 = vector.broadcast %134 : f32 to vector<16x12xf32>
    %136 = arith.mulf %135, %133 : vector<16x12xf32>
    %137 = arith.addf %120, %136 : vector<16x12xf32>
    %c107 = arith.constant 107 : index
    %138 = memref.load %arg3[%c107] : memref<400xf32, #tpu.memory_space<smem>>
    %139 = vector.broadcast %138 : f32 to vector<16x12xf32>
    %140 = arith.mulf %139, %133 : vector<16x12xf32>
    %141 = arith.addf %124, %140 : vector<16x12xf32>
    %c207 = arith.constant 207 : index
    %142 = memref.load %arg3[%c207] : memref<400xf32, #tpu.memory_space<smem>>
    %143 = vector.broadcast %142 : f32 to vector<16x12xf32>
    %144 = arith.mulf %143, %133 : vector<16x12xf32>
    %145 = arith.addf %128, %144 : vector<16x12xf32>
    %c307 = arith.constant 307 : index
    %146 = memref.load %arg3[%c307] : memref<400xf32, #tpu.memory_space<smem>>
    %147 = vector.broadcast %146 : f32 to vector<16x12xf32>
    %148 = arith.mulf %147, %133 : vector<16x12xf32>
    %149 = arith.addf %132, %148 : vector<16x12xf32>
    %150 = vector.extract_strided_slice %98 {offsets = [0, 3], sizes = [16, 12], strides = [1, 1]} : vector<16x16xf32> to vector<16x12xf32>
    %c8 = arith.constant 8 : index
    %151 = memref.load %arg3[%c8] : memref<400xf32, #tpu.memory_space<smem>>
    %152 = vector.broadcast %151 : f32 to vector<16x12xf32>
    %153 = arith.mulf %152, %150 : vector<16x12xf32>
    %154 = arith.addf %137, %153 : vector<16x12xf32>
    %c108 = arith.constant 108 : index
    %155 = memref.load %arg3[%c108] : memref<400xf32, #tpu.memory_space<smem>>
    %156 = vector.broadcast %155 : f32 to vector<16x12xf32>
    %157 = arith.mulf %156, %150 : vector<16x12xf32>
    %158 = arith.addf %141, %157 : vector<16x12xf32>
    %c208 = arith.constant 208 : index
    %159 = memref.load %arg3[%c208] : memref<400xf32, #tpu.memory_space<smem>>
    %160 = vector.broadcast %159 : f32 to vector<16x12xf32>
    %161 = arith.mulf %160, %150 : vector<16x12xf32>
    %162 = arith.addf %145, %161 : vector<16x12xf32>
    %c308 = arith.constant 308 : index
    %163 = memref.load %arg3[%c308] : memref<400xf32, #tpu.memory_space<smem>>
    %164 = vector.broadcast %163 : f32 to vector<16x12xf32>
    %165 = arith.mulf %164, %150 : vector<16x12xf32>
    %166 = arith.addf %149, %165 : vector<16x12xf32>
    %167 = vector.extract_strided_slice %98 {offsets = [0, 4], sizes = [16, 12], strides = [1, 1]} : vector<16x16xf32> to vector<16x12xf32>
    %c9 = arith.constant 9 : index
    %168 = memref.load %arg3[%c9] : memref<400xf32, #tpu.memory_space<smem>>
    %169 = vector.broadcast %168 : f32 to vector<16x12xf32>
    %170 = arith.mulf %169, %167 : vector<16x12xf32>
    %171 = arith.addf %154, %170 : vector<16x12xf32>
    %c109 = arith.constant 109 : index
    %172 = memref.load %arg3[%c109] : memref<400xf32, #tpu.memory_space<smem>>
    %173 = vector.broadcast %172 : f32 to vector<16x12xf32>
    %174 = arith.mulf %173, %167 : vector<16x12xf32>
    %175 = arith.addf %158, %174 : vector<16x12xf32>
    %c209 = arith.constant 209 : index
    %176 = memref.load %arg3[%c209] : memref<400xf32, #tpu.memory_space<smem>>
    %177 = vector.broadcast %176 : f32 to vector<16x12xf32>
    %178 = arith.mulf %177, %167 : vector<16x12xf32>
    %179 = arith.addf %162, %178 : vector<16x12xf32>
    %c309 = arith.constant 309 : index
    %180 = memref.load %arg3[%c309] : memref<400xf32, #tpu.memory_space<smem>>
    %181 = vector.broadcast %180 : f32 to vector<16x12xf32>
    %182 = arith.mulf %181, %167 : vector<16x12xf32>
    %183 = arith.addf %166, %182 : vector<16x12xf32>
    %c2_i32 = arith.constant 2 : i32
    %184 = arith.addi %1, %c2_i32 : i32
    %c0_9 = arith.constant 0 : index
    %c0_10 = arith.constant 0 : index
    %185 = arith.index_cast %184 : i32 to index
    %c0_11 = arith.constant 0 : index
    %186 = vector.load %arg2[%c0_9, %c0_10, %185, %c0_11] : memref<1x4x20x16xf32, #tpu.memory_space<vmem>>, vector<1x1x16x16xf32>
    %187 = vector.shape_cast %186 : vector<1x1x16x16xf32> to vector<16x16xf32>
    %188 = vector.extract_strided_slice %187 {offsets = [0, 0], sizes = [16, 12], strides = [1, 1]} : vector<16x16xf32> to vector<16x12xf32>
    %c10 = arith.constant 10 : index
    %189 = memref.load %arg3[%c10] : memref<400xf32, #tpu.memory_space<smem>>
    %190 = vector.broadcast %189 : f32 to vector<16x12xf32>
    %191 = arith.mulf %190, %188 : vector<16x12xf32>
    %192 = arith.addf %171, %191 : vector<16x12xf32>
    %c110 = arith.constant 110 : index
    %193 = memref.load %arg3[%c110] : memref<400xf32, #tpu.memory_space<smem>>
    %194 = vector.broadcast %193 : f32 to vector<16x12xf32>
    %195 = arith.mulf %194, %188 : vector<16x12xf32>
    %196 = arith.addf %175, %195 : vector<16x12xf32>
    %c210 = arith.constant 210 : index
    %197 = memref.load %arg3[%c210] : memref<400xf32, #tpu.memory_space<smem>>
    %198 = vector.broadcast %197 : f32 to vector<16x12xf32>
    %199 = arith.mulf %198, %188 : vector<16x12xf32>
    %200 = arith.addf %179, %199 : vector<16x12xf32>
    %c310 = arith.constant 310 : index
    %201 = memref.load %arg3[%c310] : memref<400xf32, #tpu.memory_space<smem>>
    %202 = vector.broadcast %201 : f32 to vector<16x12xf32>
    %203 = arith.mulf %202, %188 : vector<16x12xf32>
    %204 = arith.addf %183, %203 : vector<16x12xf32>
    %205 = vector.extract_strided_slice %187 {offsets = [0, 1], sizes = [16, 12], strides = [1, 1]} : vector<16x16xf32> to vector<16x12xf32>
    %c11 = arith.constant 11 : index
    %206 = memref.load %arg3[%c11] : memref<400xf32, #tpu.memory_space<smem>>
    %207 = vector.broadcast %206 : f32 to vector<16x12xf32>
    %208 = arith.mulf %207, %205 : vector<16x12xf32>
    %209 = arith.addf %192, %208 : vector<16x12xf32>
    %c111 = arith.constant 111 : index
    %210 = memref.load %arg3[%c111] : memref<400xf32, #tpu.memory_space<smem>>
    %211 = vector.broadcast %210 : f32 to vector<16x12xf32>
    %212 = arith.mulf %211, %205 : vector<16x12xf32>
    %213 = arith.addf %196, %212 : vector<16x12xf32>
    %c211 = arith.constant 211 : index
    %214 = memref.load %arg3[%c211] : memref<400xf32, #tpu.memory_space<smem>>
    %215 = vector.broadcast %214 : f32 to vector<16x12xf32>
    %216 = arith.mulf %215, %205 : vector<16x12xf32>
    %217 = arith.addf %200, %216 : vector<16x12xf32>
    %c311 = arith.constant 311 : index
    %218 = memref.load %arg3[%c311] : memref<400xf32, #tpu.memory_space<smem>>
    %219 = vector.broadcast %218 : f32 to vector<16x12xf32>
    %220 = arith.mulf %219, %205 : vector<16x12xf32>
    %221 = arith.addf %204, %220 : vector<16x12xf32>
    %222 = vector.extract_strided_slice %187 {offsets = [0, 2], sizes = [16, 12], strides = [1, 1]} : vector<16x16xf32> to vector<16x12xf32>
    %c12 = arith.constant 12 : index
    %223 = memref.load %arg3[%c12] : memref<400xf32, #tpu.memory_space<smem>>
    %224 = vector.broadcast %223 : f32 to vector<16x12xf32>
    %225 = arith.mulf %224, %222 : vector<16x12xf32>
    %226 = arith.addf %209, %225 : vector<16x12xf32>
    %c112 = arith.constant 112 : index
    %227 = memref.load %arg3[%c112] : memref<400xf32, #tpu.memory_space<smem>>
    %228 = vector.broadcast %227 : f32 to vector<16x12xf32>
    %229 = arith.mulf %228, %222 : vector<16x12xf32>
    %230 = arith.addf %213, %229 : vector<16x12xf32>
    %c212 = arith.constant 212 : index
    %231 = memref.load %arg3[%c212] : memref<400xf32, #tpu.memory_space<smem>>
    %232 = vector.broadcast %231 : f32 to vector<16x12xf32>
    %233 = arith.mulf %232, %222 : vector<16x12xf32>
    %234 = arith.addf %217, %233 : vector<16x12xf32>
    %c312 = arith.constant 312 : index
    %235 = memref.load %arg3[%c312] : memref<400xf32, #tpu.memory_space<smem>>
    %236 = vector.broadcast %235 : f32 to vector<16x12xf32>
    %237 = arith.mulf %236, %222 : vector<16x12xf32>
    %238 = arith.addf %221, %237 : vector<16x12xf32>
    %239 = vector.extract_strided_slice %187 {offsets = [0, 3], sizes = [16, 12], strides = [1, 1]} : vector<16x16xf32> to vector<16x12xf32>
    %c13 = arith.constant 13 : index
    %240 = memref.load %arg3[%c13] : memref<400xf32, #tpu.memory_space<smem>>
    %241 = vector.broadcast %240 : f32 to vector<16x12xf32>
    %242 = arith.mulf %241, %239 : vector<16x12xf32>
    %243 = arith.addf %226, %242 : vector<16x12xf32>
    %c113 = arith.constant 113 : index
    %244 = memref.load %arg3[%c113] : memref<400xf32, #tpu.memory_space<smem>>
    %245 = vector.broadcast %244 : f32 to vector<16x12xf32>
    %246 = arith.mulf %245, %239 : vector<16x12xf32>
    %247 = arith.addf %230, %246 : vector<16x12xf32>
    %c213 = arith.constant 213 : index
    %248 = memref.load %arg3[%c213] : memref<400xf32, #tpu.memory_space<smem>>
    %249 = vector.broadcast %248 : f32 to vector<16x12xf32>
    %250 = arith.mulf %249, %239 : vector<16x12xf32>
    %251 = arith.addf %234, %250 : vector<16x12xf32>
    %c313 = arith.constant 313 : index
    %252 = memref.load %arg3[%c313] : memref<400xf32, #tpu.memory_space<smem>>
    %253 = vector.broadcast %252 : f32 to vector<16x12xf32>
    %254 = arith.mulf %253, %239 : vector<16x12xf32>
    %255 = arith.addf %238, %254 : vector<16x12xf32>
    %256 = vector.extract_strided_slice %187 {offsets = [0, 4], sizes = [16, 12], strides = [1, 1]} : vector<16x16xf32> to vector<16x12xf32>
    %c14 = arith.constant 14 : index
    %257 = memref.load %arg3[%c14] : memref<400xf32, #tpu.memory_space<smem>>
    %258 = vector.broadcast %257 : f32 to vector<16x12xf32>
    %259 = arith.mulf %258, %256 : vector<16x12xf32>
    %260 = arith.addf %243, %259 : vector<16x12xf32>
    %c114 = arith.constant 114 : index
    %261 = memref.load %arg3[%c114] : memref<400xf32, #tpu.memory_space<smem>>
    %262 = vector.broadcast %261 : f32 to vector<16x12xf32>
    %263 = arith.mulf %262, %256 : vector<16x12xf32>
    %264 = arith.addf %247, %263 : vector<16x12xf32>
    %c214 = arith.constant 214 : index
    %265 = memref.load %arg3[%c214] : memref<400xf32, #tpu.memory_space<smem>>
    %266 = vector.broadcast %265 : f32 to vector<16x12xf32>
    %267 = arith.mulf %266, %256 : vector<16x12xf32>
    %268 = arith.addf %251, %267 : vector<16x12xf32>
    %c314 = arith.constant 314 : index
    %269 = memref.load %arg3[%c314] : memref<400xf32, #tpu.memory_space<smem>>
    %270 = vector.broadcast %269 : f32 to vector<16x12xf32>
    %271 = arith.mulf %270, %256 : vector<16x12xf32>
    %272 = arith.addf %255, %271 : vector<16x12xf32>
    %c3_i32 = arith.constant 3 : i32
    %273 = arith.addi %1, %c3_i32 : i32
    %c0_12 = arith.constant 0 : index
    %c0_13 = arith.constant 0 : index
    %274 = arith.index_cast %273 : i32 to index
    %c0_14 = arith.constant 0 : index
    %275 = vector.load %arg2[%c0_12, %c0_13, %274, %c0_14] : memref<1x4x20x16xf32, #tpu.memory_space<vmem>>, vector<1x1x16x16xf32>
    %276 = vector.shape_cast %275 : vector<1x1x16x16xf32> to vector<16x16xf32>
    %277 = vector.extract_strided_slice %276 {offsets = [0, 0], sizes = [16, 12], strides = [1, 1]} : vector<16x16xf32> to vector<16x12xf32>
    %c15 = arith.constant 15 : index
    %278 = memref.load %arg3[%c15] : memref<400xf32, #tpu.memory_space<smem>>
    %279 = vector.broadcast %278 : f32 to vector<16x12xf32>
    %280 = arith.mulf %279, %277 : vector<16x12xf32>
    %281 = arith.addf %260, %280 : vector<16x12xf32>
    %c115 = arith.constant 115 : index
    %282 = memref.load %arg3[%c115] : memref<400xf32, #tpu.memory_space<smem>>
    %283 = vector.broadcast %282 : f32 to vector<16x12xf32>
    %284 = arith.mulf %283, %277 : vector<16x12xf32>
    %285 = arith.addf %264, %284 : vector<16x12xf32>
    %c215 = arith.constant 215 : index
    %286 = memref.load %arg3[%c215] : memref<400xf32, #tpu.memory_space<smem>>
    %287 = vector.broadcast %286 : f32 to vector<16x12xf32>
    %288 = arith.mulf %287, %277 : vector<16x12xf32>
    %289 = arith.addf %268, %288 : vector<16x12xf32>
    %c315 = arith.constant 315 : index
    %290 = memref.load %arg3[%c315] : memref<400xf32, #tpu.memory_space<smem>>
    %291 = vector.broadcast %290 : f32 to vector<16x12xf32>
    %292 = arith.mulf %291, %277 : vector<16x12xf32>
    %293 = arith.addf %272, %292 : vector<16x12xf32>
    %294 = vector.extract_strided_slice %276 {offsets = [0, 1], sizes = [16, 12], strides = [1, 1]} : vector<16x16xf32> to vector<16x12xf32>
    %c16 = arith.constant 16 : index
    %295 = memref.load %arg3[%c16] : memref<400xf32, #tpu.memory_space<smem>>
    %296 = vector.broadcast %295 : f32 to vector<16x12xf32>
    %297 = arith.mulf %296, %294 : vector<16x12xf32>
    %298 = arith.addf %281, %297 : vector<16x12xf32>
    %c116 = arith.constant 116 : index
    %299 = memref.load %arg3[%c116] : memref<400xf32, #tpu.memory_space<smem>>
    %300 = vector.broadcast %299 : f32 to vector<16x12xf32>
    %301 = arith.mulf %300, %294 : vector<16x12xf32>
    %302 = arith.addf %285, %301 : vector<16x12xf32>
    %c216 = arith.constant 216 : index
    %303 = memref.load %arg3[%c216] : memref<400xf32, #tpu.memory_space<smem>>
    %304 = vector.broadcast %303 : f32 to vector<16x12xf32>
    %305 = arith.mulf %304, %294 : vector<16x12xf32>
    %306 = arith.addf %289, %305 : vector<16x12xf32>
    %c316 = arith.constant 316 : index
    %307 = memref.load %arg3[%c316] : memref<400xf32, #tpu.memory_space<smem>>
    %308 = vector.broadcast %307 : f32 to vector<16x12xf32>
    %309 = arith.mulf %308, %294 : vector<16x12xf32>
    %310 = arith.addf %293, %309 : vector<16x12xf32>
    %311 = vector.extract_strided_slice %276 {offsets = [0, 2], sizes = [16, 12], strides = [1, 1]} : vector<16x16xf32> to vector<16x12xf32>
    %c17 = arith.constant 17 : index
    %312 = memref.load %arg3[%c17] : memref<400xf32, #tpu.memory_space<smem>>
    %313 = vector.broadcast %312 : f32 to vector<16x12xf32>
    %314 = arith.mulf %313, %311 : vector<16x12xf32>
    %315 = arith.addf %298, %314 : vector<16x12xf32>
    %c117 = arith.constant 117 : index
    %316 = memref.load %arg3[%c117] : memref<400xf32, #tpu.memory_space<smem>>
    %317 = vector.broadcast %316 : f32 to vector<16x12xf32>
    %318 = arith.mulf %317, %311 : vector<16x12xf32>
    %319 = arith.addf %302, %318 : vector<16x12xf32>
    %c217 = arith.constant 217 : index
    %320 = memref.load %arg3[%c217] : memref<400xf32, #tpu.memory_space<smem>>
    %321 = vector.broadcast %320 : f32 to vector<16x12xf32>
    %322 = arith.mulf %321, %311 : vector<16x12xf32>
    %323 = arith.addf %306, %322 : vector<16x12xf32>
    %c317 = arith.constant 317 : index
    %324 = memref.load %arg3[%c317] : memref<400xf32, #tpu.memory_space<smem>>
    %325 = vector.broadcast %324 : f32 to vector<16x12xf32>
    %326 = arith.mulf %325, %311 : vector<16x12xf32>
    %327 = arith.addf %310, %326 : vector<16x12xf32>
    %328 = vector.extract_strided_slice %276 {offsets = [0, 3], sizes = [16, 12], strides = [1, 1]} : vector<16x16xf32> to vector<16x12xf32>
    %c18 = arith.constant 18 : index
    %329 = memref.load %arg3[%c18] : memref<400xf32, #tpu.memory_space<smem>>
    %330 = vector.broadcast %329 : f32 to vector<16x12xf32>
    %331 = arith.mulf %330, %328 : vector<16x12xf32>
    %332 = arith.addf %315, %331 : vector<16x12xf32>
    %c118 = arith.constant 118 : index
    %333 = memref.load %arg3[%c118] : memref<400xf32, #tpu.memory_space<smem>>
    %334 = vector.broadcast %333 : f32 to vector<16x12xf32>
    %335 = arith.mulf %334, %328 : vector<16x12xf32>
    %336 = arith.addf %319, %335 : vector<16x12xf32>
    %c218 = arith.constant 218 : index
    %337 = memref.load %arg3[%c218] : memref<400xf32, #tpu.memory_space<smem>>
    %338 = vector.broadcast %337 : f32 to vector<16x12xf32>
    %339 = arith.mulf %338, %328 : vector<16x12xf32>
    %340 = arith.addf %323, %339 : vector<16x12xf32>
    %c318 = arith.constant 318 : index
    %341 = memref.load %arg3[%c318] : memref<400xf32, #tpu.memory_space<smem>>
    %342 = vector.broadcast %341 : f32 to vector<16x12xf32>
    %343 = arith.mulf %342, %328 : vector<16x12xf32>
    %344 = arith.addf %327, %343 : vector<16x12xf32>
    %345 = vector.extract_strided_slice %276 {offsets = [0, 4], sizes = [16, 12], strides = [1, 1]} : vector<16x16xf32> to vector<16x12xf32>
    %c19 = arith.constant 19 : index
    %346 = memref.load %arg3[%c19] : memref<400xf32, #tpu.memory_space<smem>>
    %347 = vector.broadcast %346 : f32 to vector<16x12xf32>
    %348 = arith.mulf %347, %345 : vector<16x12xf32>
    %349 = arith.addf %332, %348 : vector<16x12xf32>
    %c119 = arith.constant 119 : index
    %350 = memref.load %arg3[%c119] : memref<400xf32, #tpu.memory_space<smem>>
    %351 = vector.broadcast %350 : f32 to vector<16x12xf32>
    %352 = arith.mulf %351, %345 : vector<16x12xf32>
    %353 = arith.addf %336, %352 : vector<16x12xf32>
    %c219 = arith.constant 219 : index
    %354 = memref.load %arg3[%c219] : memref<400xf32, #tpu.memory_space<smem>>
    %355 = vector.broadcast %354 : f32 to vector<16x12xf32>
    %356 = arith.mulf %355, %345 : vector<16x12xf32>
    %357 = arith.addf %340, %356 : vector<16x12xf32>
    %c319 = arith.constant 319 : index
    %358 = memref.load %arg3[%c319] : memref<400xf32, #tpu.memory_space<smem>>
    %359 = vector.broadcast %358 : f32 to vector<16x12xf32>
    %360 = arith.mulf %359, %345 : vector<16x12xf32>
    %361 = arith.addf %344, %360 : vector<16x12xf32>
    %c4_i32 = arith.constant 4 : i32
    %362 = arith.addi %1, %c4_i32 : i32
    %c0_15 = arith.constant 0 : index
    %c0_16 = arith.constant 0 : index
    %363 = arith.index_cast %362 : i32 to index
    %c0_17 = arith.constant 0 : index
    %364 = vector.load %arg2[%c0_15, %c0_16, %363, %c0_17] : memref<1x4x20x16xf32, #tpu.memory_space<vmem>>, vector<1x1x16x16xf32>
    %365 = vector.shape_cast %364 : vector<1x1x16x16xf32> to vector<16x16xf32>
    %366 = vector.extract_strided_slice %365 {offsets = [0, 0], sizes = [16, 12], strides = [1, 1]} : vector<16x16xf32> to vector<16x12xf32>
    %c20 = arith.constant 20 : index
    %367 = memref.load %arg3[%c20] : memref<400xf32, #tpu.memory_space<smem>>
    %368 = vector.broadcast %367 : f32 to vector<16x12xf32>
    %369 = arith.mulf %368, %366 : vector<16x12xf32>
    %370 = arith.addf %349, %369 : vector<16x12xf32>
    %c120 = arith.constant 120 : index
    %371 = memref.load %arg3[%c120] : memref<400xf32, #tpu.memory_space<smem>>
    %372 = vector.broadcast %371 : f32 to vector<16x12xf32>
    %373 = arith.mulf %372, %366 : vector<16x12xf32>
    %374 = arith.addf %353, %373 : vector<16x12xf32>
    %c220 = arith.constant 220 : index
    %375 = memref.load %arg3[%c220] : memref<400xf32, #tpu.memory_space<smem>>
    %376 = vector.broadcast %375 : f32 to vector<16x12xf32>
    %377 = arith.mulf %376, %366 : vector<16x12xf32>
    %378 = arith.addf %357, %377 : vector<16x12xf32>
    %c320 = arith.constant 320 : index
    %379 = memref.load %arg3[%c320] : memref<400xf32, #tpu.memory_space<smem>>
    %380 = vector.broadcast %379 : f32 to vector<16x12xf32>
    %381 = arith.mulf %380, %366 : vector<16x12xf32>
    %382 = arith.addf %361, %381 : vector<16x12xf32>
    %383 = vector.extract_strided_slice %365 {offsets = [0, 1], sizes = [16, 12], strides = [1, 1]} : vector<16x16xf32> to vector<16x12xf32>
    %c21 = arith.constant 21 : index
    %384 = memref.load %arg3[%c21] : memref<400xf32, #tpu.memory_space<smem>>
    %385 = vector.broadcast %384 : f32 to vector<16x12xf32>
    %386 = arith.mulf %385, %383 : vector<16x12xf32>
    %387 = arith.addf %370, %386 : vector<16x12xf32>
    %c121 = arith.constant 121 : index
    %388 = memref.load %arg3[%c121] : memref<400xf32, #tpu.memory_space<smem>>
    %389 = vector.broadcast %388 : f32 to vector<16x12xf32>
    %390 = arith.mulf %389, %383 : vector<16x12xf32>
    %391 = arith.addf %374, %390 : vector<16x12xf32>
    %c221 = arith.constant 221 : index
    %392 = memref.load %arg3[%c221] : memref<400xf32, #tpu.memory_space<smem>>
    %393 = vector.broadcast %392 : f32 to vector<16x12xf32>
    %394 = arith.mulf %393, %383 : vector<16x12xf32>
    %395 = arith.addf %378, %394 : vector<16x12xf32>
    %c321 = arith.constant 321 : index
    %396 = memref.load %arg3[%c321] : memref<400xf32, #tpu.memory_space<smem>>
    %397 = vector.broadcast %396 : f32 to vector<16x12xf32>
    %398 = arith.mulf %397, %383 : vector<16x12xf32>
    %399 = arith.addf %382, %398 : vector<16x12xf32>
    %400 = vector.extract_strided_slice %365 {offsets = [0, 2], sizes = [16, 12], strides = [1, 1]} : vector<16x16xf32> to vector<16x12xf32>
    %c22 = arith.constant 22 : index
    %401 = memref.load %arg3[%c22] : memref<400xf32, #tpu.memory_space<smem>>
    %402 = vector.broadcast %401 : f32 to vector<16x12xf32>
    %403 = arith.mulf %402, %400 : vector<16x12xf32>
    %404 = arith.addf %387, %403 : vector<16x12xf32>
    %c122 = arith.constant 122 : index
    %405 = memref.load %arg3[%c122] : memref<400xf32, #tpu.memory_space<smem>>
    %406 = vector.broadcast %405 : f32 to vector<16x12xf32>
    %407 = arith.mulf %406, %400 : vector<16x12xf32>
    %408 = arith.addf %391, %407 : vector<16x12xf32>
    %c222 = arith.constant 222 : index
    %409 = memref.load %arg3[%c222] : memref<400xf32, #tpu.memory_space<smem>>
    %410 = vector.broadcast %409 : f32 to vector<16x12xf32>
    %411 = arith.mulf %410, %400 : vector<16x12xf32>
    %412 = arith.addf %395, %411 : vector<16x12xf32>
    %c322 = arith.constant 322 : index
    %413 = memref.load %arg3[%c322] : memref<400xf32, #tpu.memory_space<smem>>
    %414 = vector.broadcast %413 : f32 to vector<16x12xf32>
    %415 = arith.mulf %414, %400 : vector<16x12xf32>
    %416 = arith.addf %399, %415 : vector<16x12xf32>
    %417 = vector.extract_strided_slice %365 {offsets = [0, 3], sizes = [16, 12], strides = [1, 1]} : vector<16x16xf32> to vector<16x12xf32>
    %c23 = arith.constant 23 : index
    %418 = memref.load %arg3[%c23] : memref<400xf32, #tpu.memory_space<smem>>
    %419 = vector.broadcast %418 : f32 to vector<16x12xf32>
    %420 = arith.mulf %419, %417 : vector<16x12xf32>
    %421 = arith.addf %404, %420 : vector<16x12xf32>
    %c123 = arith.constant 123 : index
    %422 = memref.load %arg3[%c123] : memref<400xf32, #tpu.memory_space<smem>>
    %423 = vector.broadcast %422 : f32 to vector<16x12xf32>
    %424 = arith.mulf %423, %417 : vector<16x12xf32>
    %425 = arith.addf %408, %424 : vector<16x12xf32>
    %c223 = arith.constant 223 : index
    %426 = memref.load %arg3[%c223] : memref<400xf32, #tpu.memory_space<smem>>
    %427 = vector.broadcast %426 : f32 to vector<16x12xf32>
    %428 = arith.mulf %427, %417 : vector<16x12xf32>
    %429 = arith.addf %412, %428 : vector<16x12xf32>
    %c323 = arith.constant 323 : index
    %430 = memref.load %arg3[%c323] : memref<400xf32, #tpu.memory_space<smem>>
    %431 = vector.broadcast %430 : f32 to vector<16x12xf32>
    %432 = arith.mulf %431, %417 : vector<16x12xf32>
    %433 = arith.addf %416, %432 : vector<16x12xf32>
    %434 = vector.extract_strided_slice %365 {offsets = [0, 4], sizes = [16, 12], strides = [1, 1]} : vector<16x16xf32> to vector<16x12xf32>
    %c24 = arith.constant 24 : index
    %435 = memref.load %arg3[%c24] : memref<400xf32, #tpu.memory_space<smem>>
    %436 = vector.broadcast %435 : f32 to vector<16x12xf32>
    %437 = arith.mulf %436, %434 : vector<16x12xf32>
    %438 = arith.addf %421, %437 : vector<16x12xf32>
    %c124 = arith.constant 124 : index
    %439 = memref.load %arg3[%c124] : memref<400xf32, #tpu.memory_space<smem>>
    %440 = vector.broadcast %439 : f32 to vector<16x12xf32>
    %441 = arith.mulf %440, %434 : vector<16x12xf32>
    %442 = arith.addf %425, %441 : vector<16x12xf32>
    %c224 = arith.constant 224 : index
    %443 = memref.load %arg3[%c224] : memref<400xf32, #tpu.memory_space<smem>>
    %444 = vector.broadcast %443 : f32 to vector<16x12xf32>
    %445 = arith.mulf %444, %434 : vector<16x12xf32>
    %446 = arith.addf %429, %445 : vector<16x12xf32>
    %c324 = arith.constant 324 : index
    %447 = memref.load %arg3[%c324] : memref<400xf32, #tpu.memory_space<smem>>
    %448 = vector.broadcast %447 : f32 to vector<16x12xf32>
    %449 = arith.mulf %448, %434 : vector<16x12xf32>
    %450 = arith.addf %433, %449 : vector<16x12xf32>
    %c0_i32_18 = arith.constant 0 : i32
    %451 = arith.addi %1, %c0_i32_18 : i32
    %c0_19 = arith.constant 0 : index
    %c1_20 = arith.constant 1 : index
    %452 = arith.index_cast %451 : i32 to index
    %c0_21 = arith.constant 0 : index
    %453 = vector.load %arg2[%c0_19, %c1_20, %452, %c0_21] : memref<1x4x20x16xf32, #tpu.memory_space<vmem>>, vector<1x1x16x16xf32>
    %454 = vector.shape_cast %453 : vector<1x1x16x16xf32> to vector<16x16xf32>
    %455 = vector.extract_strided_slice %454 {offsets = [0, 0], sizes = [16, 12], strides = [1, 1]} : vector<16x16xf32> to vector<16x12xf32>
    %c25 = arith.constant 25 : index
    %456 = memref.load %arg3[%c25] : memref<400xf32, #tpu.memory_space<smem>>
    %457 = vector.broadcast %456 : f32 to vector<16x12xf32>
    %458 = arith.mulf %457, %455 : vector<16x12xf32>
    %459 = arith.addf %438, %458 : vector<16x12xf32>
    %c125 = arith.constant 125 : index
    %460 = memref.load %arg3[%c125] : memref<400xf32, #tpu.memory_space<smem>>
    %461 = vector.broadcast %460 : f32 to vector<16x12xf32>
    %462 = arith.mulf %461, %455 : vector<16x12xf32>
    %463 = arith.addf %442, %462 : vector<16x12xf32>
    %c225 = arith.constant 225 : index
    %464 = memref.load %arg3[%c225] : memref<400xf32, #tpu.memory_space<smem>>
    %465 = vector.broadcast %464 : f32 to vector<16x12xf32>
    %466 = arith.mulf %465, %455 : vector<16x12xf32>
    %467 = arith.addf %446, %466 : vector<16x12xf32>
    %c325 = arith.constant 325 : index
    %468 = memref.load %arg3[%c325] : memref<400xf32, #tpu.memory_space<smem>>
    %469 = vector.broadcast %468 : f32 to vector<16x12xf32>
    %470 = arith.mulf %469, %455 : vector<16x12xf32>
    %471 = arith.addf %450, %470 : vector<16x12xf32>
    %472 = vector.extract_strided_slice %454 {offsets = [0, 1], sizes = [16, 12], strides = [1, 1]} : vector<16x16xf32> to vector<16x12xf32>
    %c26 = arith.constant 26 : index
    %473 = memref.load %arg3[%c26] : memref<400xf32, #tpu.memory_space<smem>>
    %474 = vector.broadcast %473 : f32 to vector<16x12xf32>
    %475 = arith.mulf %474, %472 : vector<16x12xf32>
    %476 = arith.addf %459, %475 : vector<16x12xf32>
    %c126 = arith.constant 126 : index
    %477 = memref.load %arg3[%c126] : memref<400xf32, #tpu.memory_space<smem>>
    %478 = vector.broadcast %477 : f32 to vector<16x12xf32>
    %479 = arith.mulf %478, %472 : vector<16x12xf32>
    %480 = arith.addf %463, %479 : vector<16x12xf32>
    %c226 = arith.constant 226 : index
    %481 = memref.load %arg3[%c226] : memref<400xf32, #tpu.memory_space<smem>>
    %482 = vector.broadcast %481 : f32 to vector<16x12xf32>
    %483 = arith.mulf %482, %472 : vector<16x12xf32>
    %484 = arith.addf %467, %483 : vector<16x12xf32>
    %c326 = arith.constant 326 : index
    %485 = memref.load %arg3[%c326] : memref<400xf32, #tpu.memory_space<smem>>
    %486 = vector.broadcast %485 : f32 to vector<16x12xf32>
    %487 = arith.mulf %486, %472 : vector<16x12xf32>
    %488 = arith.addf %471, %487 : vector<16x12xf32>
    %489 = vector.extract_strided_slice %454 {offsets = [0, 2], sizes = [16, 12], strides = [1, 1]} : vector<16x16xf32> to vector<16x12xf32>
    %c27 = arith.constant 27 : index
    %490 = memref.load %arg3[%c27] : memref<400xf32, #tpu.memory_space<smem>>
    %491 = vector.broadcast %490 : f32 to vector<16x12xf32>
    %492 = arith.mulf %491, %489 : vector<16x12xf32>
    %493 = arith.addf %476, %492 : vector<16x12xf32>
    %c127 = arith.constant 127 : index
    %494 = memref.load %arg3[%c127] : memref<400xf32, #tpu.memory_space<smem>>
    %495 = vector.broadcast %494 : f32 to vector<16x12xf32>
    %496 = arith.mulf %495, %489 : vector<16x12xf32>
    %497 = arith.addf %480, %496 : vector<16x12xf32>
    %c227 = arith.constant 227 : index
    %498 = memref.load %arg3[%c227] : memref<400xf32, #tpu.memory_space<smem>>
    %499 = vector.broadcast %498 : f32 to vector<16x12xf32>
    %500 = arith.mulf %499, %489 : vector<16x12xf32>
    %501 = arith.addf %484, %500 : vector<16x12xf32>
    %c327 = arith.constant 327 : index
    %502 = memref.load %arg3[%c327] : memref<400xf32, #tpu.memory_space<smem>>
    %503 = vector.broadcast %502 : f32 to vector<16x12xf32>
    %504 = arith.mulf %503, %489 : vector<16x12xf32>
    %505 = arith.addf %488, %504 : vector<16x12xf32>
    %506 = vector.extract_strided_slice %454 {offsets = [0, 3], sizes = [16, 12], strides = [1, 1]} : vector<16x16xf32> to vector<16x12xf32>
    %c28 = arith.constant 28 : index
    %507 = memref.load %arg3[%c28] : memref<400xf32, #tpu.memory_space<smem>>
    %508 = vector.broadcast %507 : f32 to vector<16x12xf32>
    %509 = arith.mulf %508, %506 : vector<16x12xf32>
    %510 = arith.addf %493, %509 : vector<16x12xf32>
    %c128 = arith.constant 128 : index
    %511 = memref.load %arg3[%c128] : memref<400xf32, #tpu.memory_space<smem>>
    %512 = vector.broadcast %511 : f32 to vector<16x12xf32>
    %513 = arith.mulf %512, %506 : vector<16x12xf32>
    %514 = arith.addf %497, %513 : vector<16x12xf32>
    %c228 = arith.constant 228 : index
    %515 = memref.load %arg3[%c228] : memref<400xf32, #tpu.memory_space<smem>>
    %516 = vector.broadcast %515 : f32 to vector<16x12xf32>
    %517 = arith.mulf %516, %506 : vector<16x12xf32>
    %518 = arith.addf %501, %517 : vector<16x12xf32>
    %c328 = arith.constant 328 : index
    %519 = memref.load %arg3[%c328] : memref<400xf32, #tpu.memory_space<smem>>
    %520 = vector.broadcast %519 : f32 to vector<16x12xf32>
    %521 = arith.mulf %520, %506 : vector<16x12xf32>
    %522 = arith.addf %505, %521 : vector<16x12xf32>
    %523 = vector.extract_strided_slice %454 {offsets = [0, 4], sizes = [16, 12], strides = [1, 1]} : vector<16x16xf32> to vector<16x12xf32>
    %c29 = arith.constant 29 : index
    %524 = memref.load %arg3[%c29] : memref<400xf32, #tpu.memory_space<smem>>
    %525 = vector.broadcast %524 : f32 to vector<16x12xf32>
    %526 = arith.mulf %525, %523 : vector<16x12xf32>
    %527 = arith.addf %510, %526 : vector<16x12xf32>
    %c129 = arith.constant 129 : index
    %528 = memref.load %arg3[%c129] : memref<400xf32, #tpu.memory_space<smem>>
    %529 = vector.broadcast %528 : f32 to vector<16x12xf32>
    %530 = arith.mulf %529, %523 : vector<16x12xf32>
    %531 = arith.addf %514, %530 : vector<16x12xf32>
    %c229 = arith.constant 229 : index
    %532 = memref.load %arg3[%c229] : memref<400xf32, #tpu.memory_space<smem>>
    %533 = vector.broadcast %532 : f32 to vector<16x12xf32>
    %534 = arith.mulf %533, %523 : vector<16x12xf32>
    %535 = arith.addf %518, %534 : vector<16x12xf32>
    %c329 = arith.constant 329 : index
    %536 = memref.load %arg3[%c329] : memref<400xf32, #tpu.memory_space<smem>>
    %537 = vector.broadcast %536 : f32 to vector<16x12xf32>
    %538 = arith.mulf %537, %523 : vector<16x12xf32>
    %539 = arith.addf %522, %538 : vector<16x12xf32>
    %c1_i32_22 = arith.constant 1 : i32
    %540 = arith.addi %1, %c1_i32_22 : i32
    %c0_23 = arith.constant 0 : index
    %c1_24 = arith.constant 1 : index
    %541 = arith.index_cast %540 : i32 to index
    %c0_25 = arith.constant 0 : index
    %542 = vector.load %arg2[%c0_23, %c1_24, %541, %c0_25] : memref<1x4x20x16xf32, #tpu.memory_space<vmem>>, vector<1x1x16x16xf32>
    %543 = vector.shape_cast %542 : vector<1x1x16x16xf32> to vector<16x16xf32>
    %544 = vector.extract_strided_slice %543 {offsets = [0, 0], sizes = [16, 12], strides = [1, 1]} : vector<16x16xf32> to vector<16x12xf32>
    %c30 = arith.constant 30 : index
    %545 = memref.load %arg3[%c30] : memref<400xf32, #tpu.memory_space<smem>>
    %546 = vector.broadcast %545 : f32 to vector<16x12xf32>
    %547 = arith.mulf %546, %544 : vector<16x12xf32>
    %548 = arith.addf %527, %547 : vector<16x12xf32>
    %c130 = arith.constant 130 : index
    %549 = memref.load %arg3[%c130] : memref<400xf32, #tpu.memory_space<smem>>
    %550 = vector.broadcast %549 : f32 to vector<16x12xf32>
    %551 = arith.mulf %550, %544 : vector<16x12xf32>
    %552 = arith.addf %531, %551 : vector<16x12xf32>
    %c230 = arith.constant 230 : index
    %553 = memref.load %arg3[%c230] : memref<400xf32, #tpu.memory_space<smem>>
    %554 = vector.broadcast %553 : f32 to vector<16x12xf32>
    %555 = arith.mulf %554, %544 : vector<16x12xf32>
    %556 = arith.addf %535, %555 : vector<16x12xf32>
    %c330 = arith.constant 330 : index
    %557 = memref.load %arg3[%c330] : memref<400xf32, #tpu.memory_space<smem>>
    %558 = vector.broadcast %557 : f32 to vector<16x12xf32>
    %559 = arith.mulf %558, %544 : vector<16x12xf32>
    %560 = arith.addf %539, %559 : vector<16x12xf32>
    %561 = vector.extract_strided_slice %543 {offsets = [0, 1], sizes = [16, 12], strides = [1, 1]} : vector<16x16xf32> to vector<16x12xf32>
    %c31 = arith.constant 31 : index
    %562 = memref.load %arg3[%c31] : memref<400xf32, #tpu.memory_space<smem>>
    %563 = vector.broadcast %562 : f32 to vector<16x12xf32>
    %564 = arith.mulf %563, %561 : vector<16x12xf32>
    %565 = arith.addf %548, %564 : vector<16x12xf32>
    %c131 = arith.constant 131 : index
    %566 = memref.load %arg3[%c131] : memref<400xf32, #tpu.memory_space<smem>>
    %567 = vector.broadcast %566 : f32 to vector<16x12xf32>
    %568 = arith.mulf %567, %561 : vector<16x12xf32>
    %569 = arith.addf %552, %568 : vector<16x12xf32>
    %c231 = arith.constant 231 : index
    %570 = memref.load %arg3[%c231] : memref<400xf32, #tpu.memory_space<smem>>
    %571 = vector.broadcast %570 : f32 to vector<16x12xf32>
    %572 = arith.mulf %571, %561 : vector<16x12xf32>
    %573 = arith.addf %556, %572 : vector<16x12xf32>
    %c331 = arith.constant 331 : index
    %574 = memref.load %arg3[%c331] : memref<400xf32, #tpu.memory_space<smem>>
    %575 = vector.broadcast %574 : f32 to vector<16x12xf32>
    %576 = arith.mulf %575, %561 : vector<16x12xf32>
    %577 = arith.addf %560, %576 : vector<16x12xf32>
    %578 = vector.extract_strided_slice %543 {offsets = [0, 2], sizes = [16, 12], strides = [1, 1]} : vector<16x16xf32> to vector<16x12xf32>
    %c32 = arith.constant 32 : index
    %579 = memref.load %arg3[%c32] : memref<400xf32, #tpu.memory_space<smem>>
    %580 = vector.broadcast %579 : f32 to vector<16x12xf32>
    %581 = arith.mulf %580, %578 : vector<16x12xf32>
    %582 = arith.addf %565, %581 : vector<16x12xf32>
    %c132 = arith.constant 132 : index
    %583 = memref.load %arg3[%c132] : memref<400xf32, #tpu.memory_space<smem>>
    %584 = vector.broadcast %583 : f32 to vector<16x12xf32>
    %585 = arith.mulf %584, %578 : vector<16x12xf32>
    %586 = arith.addf %569, %585 : vector<16x12xf32>
    %c232 = arith.constant 232 : index
    %587 = memref.load %arg3[%c232] : memref<400xf32, #tpu.memory_space<smem>>
    %588 = vector.broadcast %587 : f32 to vector<16x12xf32>
    %589 = arith.mulf %588, %578 : vector<16x12xf32>
    %590 = arith.addf %573, %589 : vector<16x12xf32>
    %c332 = arith.constant 332 : index
    %591 = memref.load %arg3[%c332] : memref<400xf32, #tpu.memory_space<smem>>
    %592 = vector.broadcast %591 : f32 to vector<16x12xf32>
    %593 = arith.mulf %592, %578 : vector<16x12xf32>
    %594 = arith.addf %577, %593 : vector<16x12xf32>
    %595 = vector.extract_strided_slice %543 {offsets = [0, 3], sizes = [16, 12], strides = [1, 1]} : vector<16x16xf32> to vector<16x12xf32>
    %c33 = arith.constant 33 : index
    %596 = memref.load %arg3[%c33] : memref<400xf32, #tpu.memory_space<smem>>
    %597 = vector.broadcast %596 : f32 to vector<16x12xf32>
    %598 = arith.mulf %597, %595 : vector<16x12xf32>
    %599 = arith.addf %582, %598 : vector<16x12xf32>
    %c133 = arith.constant 133 : index
    %600 = memref.load %arg3[%c133] : memref<400xf32, #tpu.memory_space<smem>>
    %601 = vector.broadcast %600 : f32 to vector<16x12xf32>
    %602 = arith.mulf %601, %595 : vector<16x12xf32>
    %603 = arith.addf %586, %602 : vector<16x12xf32>
    %c233 = arith.constant 233 : index
    %604 = memref.load %arg3[%c233] : memref<400xf32, #tpu.memory_space<smem>>
    %605 = vector.broadcast %604 : f32 to vector<16x12xf32>
    %606 = arith.mulf %605, %595 : vector<16x12xf32>
    %607 = arith.addf %590, %606 : vector<16x12xf32>
    %c333 = arith.constant 333 : index
    %608 = memref.load %arg3[%c333] : memref<400xf32, #tpu.memory_space<smem>>
    %609 = vector.broadcast %608 : f32 to vector<16x12xf32>
    %610 = arith.mulf %609, %595 : vector<16x12xf32>
    %611 = arith.addf %594, %610 : vector<16x12xf32>
    %612 = vector.extract_strided_slice %543 {offsets = [0, 4], sizes = [16, 12], strides = [1, 1]} : vector<16x16xf32> to vector<16x12xf32>
    %c34 = arith.constant 34 : index
    %613 = memref.load %arg3[%c34] : memref<400xf32, #tpu.memory_space<smem>>
    %614 = vector.broadcast %613 : f32 to vector<16x12xf32>
    %615 = arith.mulf %614, %612 : vector<16x12xf32>
    %616 = arith.addf %599, %615 : vector<16x12xf32>
    %c134 = arith.constant 134 : index
    %617 = memref.load %arg3[%c134] : memref<400xf32, #tpu.memory_space<smem>>
    %618 = vector.broadcast %617 : f32 to vector<16x12xf32>
    %619 = arith.mulf %618, %612 : vector<16x12xf32>
    %620 = arith.addf %603, %619 : vector<16x12xf32>
    %c234 = arith.constant 234 : index
    %621 = memref.load %arg3[%c234] : memref<400xf32, #tpu.memory_space<smem>>
    %622 = vector.broadcast %621 : f32 to vector<16x12xf32>
    %623 = arith.mulf %622, %612 : vector<16x12xf32>
    %624 = arith.addf %607, %623 : vector<16x12xf32>
    %c334 = arith.constant 334 : index
    %625 = memref.load %arg3[%c334] : memref<400xf32, #tpu.memory_space<smem>>
    %626 = vector.broadcast %625 : f32 to vector<16x12xf32>
    %627 = arith.mulf %626, %612 : vector<16x12xf32>
    %628 = arith.addf %611, %627 : vector<16x12xf32>
    %c2_i32_26 = arith.constant 2 : i32
    %629 = arith.addi %1, %c2_i32_26 : i32
    %c0_27 = arith.constant 0 : index
    %c1_28 = arith.constant 1 : index
    %630 = arith.index_cast %629 : i32 to index
    %c0_29 = arith.constant 0 : index
    %631 = vector.load %arg2[%c0_27, %c1_28, %630, %c0_29] : memref<1x4x20x16xf32, #tpu.memory_space<vmem>>, vector<1x1x16x16xf32>
    %632 = vector.shape_cast %631 : vector<1x1x16x16xf32> to vector<16x16xf32>
    %633 = vector.extract_strided_slice %632 {offsets = [0, 0], sizes = [16, 12], strides = [1, 1]} : vector<16x16xf32> to vector<16x12xf32>
    %c35 = arith.constant 35 : index
    %634 = memref.load %arg3[%c35] : memref<400xf32, #tpu.memory_space<smem>>
    %635 = vector.broadcast %634 : f32 to vector<16x12xf32>
    %636 = arith.mulf %635, %633 : vector<16x12xf32>
    %637 = arith.addf %616, %636 : vector<16x12xf32>
    %c135 = arith.constant 135 : index
    %638 = memref.load %arg3[%c135] : memref<400xf32, #tpu.memory_space<smem>>
    %639 = vector.broadcast %638 : f32 to vector<16x12xf32>
    %640 = arith.mulf %639, %633 : vector<16x12xf32>
    %641 = arith.addf %620, %640 : vector<16x12xf32>
    %c235 = arith.constant 235 : index
    %642 = memref.load %arg3[%c235] : memref<400xf32, #tpu.memory_space<smem>>
    %643 = vector.broadcast %642 : f32 to vector<16x12xf32>
    %644 = arith.mulf %643, %633 : vector<16x12xf32>
    %645 = arith.addf %624, %644 : vector<16x12xf32>
    %c335 = arith.constant 335 : index
    %646 = memref.load %arg3[%c335] : memref<400xf32, #tpu.memory_space<smem>>
    %647 = vector.broadcast %646 : f32 to vector<16x12xf32>
    %648 = arith.mulf %647, %633 : vector<16x12xf32>
    %649 = arith.addf %628, %648 : vector<16x12xf32>
    %650 = vector.extract_strided_slice %632 {offsets = [0, 1], sizes = [16, 12], strides = [1, 1]} : vector<16x16xf32> to vector<16x12xf32>
    %c36 = arith.constant 36 : index
    %651 = memref.load %arg3[%c36] : memref<400xf32, #tpu.memory_space<smem>>
    %652 = vector.broadcast %651 : f32 to vector<16x12xf32>
    %653 = arith.mulf %652, %650 : vector<16x12xf32>
    %654 = arith.addf %637, %653 : vector<16x12xf32>
    %c136 = arith.constant 136 : index
    %655 = memref.load %arg3[%c136] : memref<400xf32, #tpu.memory_space<smem>>
    %656 = vector.broadcast %655 : f32 to vector<16x12xf32>
    %657 = arith.mulf %656, %650 : vector<16x12xf32>
    %658 = arith.addf %641, %657 : vector<16x12xf32>
    %c236 = arith.constant 236 : index
    %659 = memref.load %arg3[%c236] : memref<400xf32, #tpu.memory_space<smem>>
    %660 = vector.broadcast %659 : f32 to vector<16x12xf32>
    %661 = arith.mulf %660, %650 : vector<16x12xf32>
    %662 = arith.addf %645, %661 : vector<16x12xf32>
    %c336 = arith.constant 336 : index
    %663 = memref.load %arg3[%c336] : memref<400xf32, #tpu.memory_space<smem>>
    %664 = vector.broadcast %663 : f32 to vector<16x12xf32>
    %665 = arith.mulf %664, %650 : vector<16x12xf32>
    %666 = arith.addf %649, %665 : vector<16x12xf32>
    %667 = vector.extract_strided_slice %632 {offsets = [0, 2], sizes = [16, 12], strides = [1, 1]} : vector<16x16xf32> to vector<16x12xf32>
    %c37 = arith.constant 37 : index
    %668 = memref.load %arg3[%c37] : memref<400xf32, #tpu.memory_space<smem>>
    %669 = vector.broadcast %668 : f32 to vector<16x12xf32>
    %670 = arith.mulf %669, %667 : vector<16x12xf32>
    %671 = arith.addf %654, %670 : vector<16x12xf32>
    %c137 = arith.constant 137 : index
    %672 = memref.load %arg3[%c137] : memref<400xf32, #tpu.memory_space<smem>>
    %673 = vector.broadcast %672 : f32 to vector<16x12xf32>
    %674 = arith.mulf %673, %667 : vector<16x12xf32>
    %675 = arith.addf %658, %674 : vector<16x12xf32>
    %c237 = arith.constant 237 : index
    %676 = memref.load %arg3[%c237] : memref<400xf32, #tpu.memory_space<smem>>
    %677 = vector.broadcast %676 : f32 to vector<16x12xf32>
    %678 = arith.mulf %677, %667 : vector<16x12xf32>
    %679 = arith.addf %662, %678 : vector<16x12xf32>
    %c337 = arith.constant 337 : index
    %680 = memref.load %arg3[%c337] : memref<400xf32, #tpu.memory_space<smem>>
    %681 = vector.broadcast %680 : f32 to vector<16x12xf32>
    %682 = arith.mulf %681, %667 : vector<16x12xf32>
    %683 = arith.addf %666, %682 : vector<16x12xf32>
    %684 = vector.extract_strided_slice %632 {offsets = [0, 3], sizes = [16, 12], strides = [1, 1]} : vector<16x16xf32> to vector<16x12xf32>
    %c38 = arith.constant 38 : index
    %685 = memref.load %arg3[%c38] : memref<400xf32, #tpu.memory_space<smem>>
    %686 = vector.broadcast %685 : f32 to vector<16x12xf32>
    %687 = arith.mulf %686, %684 : vector<16x12xf32>
    %688 = arith.addf %671, %687 : vector<16x12xf32>
    %c138 = arith.constant 138 : index
    %689 = memref.load %arg3[%c138] : memref<400xf32, #tpu.memory_space<smem>>
    %690 = vector.broadcast %689 : f32 to vector<16x12xf32>
    %691 = arith.mulf %690, %684 : vector<16x12xf32>
    %692 = arith.addf %675, %691 : vector<16x12xf32>
    %c238 = arith.constant 238 : index
    %693 = memref.load %arg3[%c238] : memref<400xf32, #tpu.memory_space<smem>>
    %694 = vector.broadcast %693 : f32 to vector<16x12xf32>
    %695 = arith.mulf %694, %684 : vector<16x12xf32>
    %696 = arith.addf %679, %695 : vector<16x12xf32>
    %c338 = arith.constant 338 : index
    %697 = memref.load %arg3[%c338] : memref<400xf32, #tpu.memory_space<smem>>
    %698 = vector.broadcast %697 : f32 to vector<16x12xf32>
    %699 = arith.mulf %698, %684 : vector<16x12xf32>
    %700 = arith.addf %683, %699 : vector<16x12xf32>
    %701 = vector.extract_strided_slice %632 {offsets = [0, 4], sizes = [16, 12], strides = [1, 1]} : vector<16x16xf32> to vector<16x12xf32>
    %c39 = arith.constant 39 : index
    %702 = memref.load %arg3[%c39] : memref<400xf32, #tpu.memory_space<smem>>
    %703 = vector.broadcast %702 : f32 to vector<16x12xf32>
    %704 = arith.mulf %703, %701 : vector<16x12xf32>
    %705 = arith.addf %688, %704 : vector<16x12xf32>
    %c139 = arith.constant 139 : index
    %706 = memref.load %arg3[%c139] : memref<400xf32, #tpu.memory_space<smem>>
    %707 = vector.broadcast %706 : f32 to vector<16x12xf32>
    %708 = arith.mulf %707, %701 : vector<16x12xf32>
    %709 = arith.addf %692, %708 : vector<16x12xf32>
    %c239 = arith.constant 239 : index
    %710 = memref.load %arg3[%c239] : memref<400xf32, #tpu.memory_space<smem>>
    %711 = vector.broadcast %710 : f32 to vector<16x12xf32>
    %712 = arith.mulf %711, %701 : vector<16x12xf32>
    %713 = arith.addf %696, %712 : vector<16x12xf32>
    %c339 = arith.constant 339 : index
    %714 = memref.load %arg3[%c339] : memref<400xf32, #tpu.memory_space<smem>>
    %715 = vector.broadcast %714 : f32 to vector<16x12xf32>
    %716 = arith.mulf %715, %701 : vector<16x12xf32>
    %717 = arith.addf %700, %716 : vector<16x12xf32>
    %c3_i32_30 = arith.constant 3 : i32
    %718 = arith.addi %1, %c3_i32_30 : i32
    %c0_31 = arith.constant 0 : index
    %c1_32 = arith.constant 1 : index
    %719 = arith.index_cast %718 : i32 to index
    %c0_33 = arith.constant 0 : index
    %720 = vector.load %arg2[%c0_31, %c1_32, %719, %c0_33] : memref<1x4x20x16xf32, #tpu.memory_space<vmem>>, vector<1x1x16x16xf32>
    %721 = vector.shape_cast %720 : vector<1x1x16x16xf32> to vector<16x16xf32>
    %722 = vector.extract_strided_slice %721 {offsets = [0, 0], sizes = [16, 12], strides = [1, 1]} : vector<16x16xf32> to vector<16x12xf32>
    %c40 = arith.constant 40 : index
    %723 = memref.load %arg3[%c40] : memref<400xf32, #tpu.memory_space<smem>>
    %724 = vector.broadcast %723 : f32 to vector<16x12xf32>
    %725 = arith.mulf %724, %722 : vector<16x12xf32>
    %726 = arith.addf %705, %725 : vector<16x12xf32>
    %c140 = arith.constant 140 : index
    %727 = memref.load %arg3[%c140] : memref<400xf32, #tpu.memory_space<smem>>
    %728 = vector.broadcast %727 : f32 to vector<16x12xf32>
    %729 = arith.mulf %728, %722 : vector<16x12xf32>
    %730 = arith.addf %709, %729 : vector<16x12xf32>
    %c240 = arith.constant 240 : index
    %731 = memref.load %arg3[%c240] : memref<400xf32, #tpu.memory_space<smem>>
    %732 = vector.broadcast %731 : f32 to vector<16x12xf32>
    %733 = arith.mulf %732, %722 : vector<16x12xf32>
    %734 = arith.addf %713, %733 : vector<16x12xf32>
    %c340 = arith.constant 340 : index
    %735 = memref.load %arg3[%c340] : memref<400xf32, #tpu.memory_space<smem>>
    %736 = vector.broadcast %735 : f32 to vector<16x12xf32>
    %737 = arith.mulf %736, %722 : vector<16x12xf32>
    %738 = arith.addf %717, %737 : vector<16x12xf32>
    %739 = vector.extract_strided_slice %721 {offsets = [0, 1], sizes = [16, 12], strides = [1, 1]} : vector<16x16xf32> to vector<16x12xf32>
    %c41 = arith.constant 41 : index
    %740 = memref.load %arg3[%c41] : memref<400xf32, #tpu.memory_space<smem>>
    %741 = vector.broadcast %740 : f32 to vector<16x12xf32>
    %742 = arith.mulf %741, %739 : vector<16x12xf32>
    %743 = arith.addf %726, %742 : vector<16x12xf32>
    %c141 = arith.constant 141 : index
    %744 = memref.load %arg3[%c141] : memref<400xf32, #tpu.memory_space<smem>>
    %745 = vector.broadcast %744 : f32 to vector<16x12xf32>
    %746 = arith.mulf %745, %739 : vector<16x12xf32>
    %747 = arith.addf %730, %746 : vector<16x12xf32>
    %c241 = arith.constant 241 : index
    %748 = memref.load %arg3[%c241] : memref<400xf32, #tpu.memory_space<smem>>
    %749 = vector.broadcast %748 : f32 to vector<16x12xf32>
    %750 = arith.mulf %749, %739 : vector<16x12xf32>
    %751 = arith.addf %734, %750 : vector<16x12xf32>
    %c341 = arith.constant 341 : index
    %752 = memref.load %arg3[%c341] : memref<400xf32, #tpu.memory_space<smem>>
    %753 = vector.broadcast %752 : f32 to vector<16x12xf32>
    %754 = arith.mulf %753, %739 : vector<16x12xf32>
    %755 = arith.addf %738, %754 : vector<16x12xf32>
    %756 = vector.extract_strided_slice %721 {offsets = [0, 2], sizes = [16, 12], strides = [1, 1]} : vector<16x16xf32> to vector<16x12xf32>
    %c42 = arith.constant 42 : index
    %757 = memref.load %arg3[%c42] : memref<400xf32, #tpu.memory_space<smem>>
    %758 = vector.broadcast %757 : f32 to vector<16x12xf32>
    %759 = arith.mulf %758, %756 : vector<16x12xf32>
    %760 = arith.addf %743, %759 : vector<16x12xf32>
    %c142 = arith.constant 142 : index
    %761 = memref.load %arg3[%c142] : memref<400xf32, #tpu.memory_space<smem>>
    %762 = vector.broadcast %761 : f32 to vector<16x12xf32>
    %763 = arith.mulf %762, %756 : vector<16x12xf32>
    %764 = arith.addf %747, %763 : vector<16x12xf32>
    %c242 = arith.constant 242 : index
    %765 = memref.load %arg3[%c242] : memref<400xf32, #tpu.memory_space<smem>>
    %766 = vector.broadcast %765 : f32 to vector<16x12xf32>
    %767 = arith.mulf %766, %756 : vector<16x12xf32>
    %768 = arith.addf %751, %767 : vector<16x12xf32>
    %c342 = arith.constant 342 : index
    %769 = memref.load %arg3[%c342] : memref<400xf32, #tpu.memory_space<smem>>
    %770 = vector.broadcast %769 : f32 to vector<16x12xf32>
    %771 = arith.mulf %770, %756 : vector<16x12xf32>
    %772 = arith.addf %755, %771 : vector<16x12xf32>
    %773 = vector.extract_strided_slice %721 {offsets = [0, 3], sizes = [16, 12], strides = [1, 1]} : vector<16x16xf32> to vector<16x12xf32>
    %c43 = arith.constant 43 : index
    %774 = memref.load %arg3[%c43] : memref<400xf32, #tpu.memory_space<smem>>
    %775 = vector.broadcast %774 : f32 to vector<16x12xf32>
    %776 = arith.mulf %775, %773 : vector<16x12xf32>
    %777 = arith.addf %760, %776 : vector<16x12xf32>
    %c143 = arith.constant 143 : index
    %778 = memref.load %arg3[%c143] : memref<400xf32, #tpu.memory_space<smem>>
    %779 = vector.broadcast %778 : f32 to vector<16x12xf32>
    %780 = arith.mulf %779, %773 : vector<16x12xf32>
    %781 = arith.addf %764, %780 : vector<16x12xf32>
    %c243 = arith.constant 243 : index
    %782 = memref.load %arg3[%c243] : memref<400xf32, #tpu.memory_space<smem>>
    %783 = vector.broadcast %782 : f32 to vector<16x12xf32>
    %784 = arith.mulf %783, %773 : vector<16x12xf32>
    %785 = arith.addf %768, %784 : vector<16x12xf32>
    %c343 = arith.constant 343 : index
    %786 = memref.load %arg3[%c343] : memref<400xf32, #tpu.memory_space<smem>>
    %787 = vector.broadcast %786 : f32 to vector<16x12xf32>
    %788 = arith.mulf %787, %773 : vector<16x12xf32>
    %789 = arith.addf %772, %788 : vector<16x12xf32>
    %790 = vector.extract_strided_slice %721 {offsets = [0, 4], sizes = [16, 12], strides = [1, 1]} : vector<16x16xf32> to vector<16x12xf32>
    %c44 = arith.constant 44 : index
    %791 = memref.load %arg3[%c44] : memref<400xf32, #tpu.memory_space<smem>>
    %792 = vector.broadcast %791 : f32 to vector<16x12xf32>
    %793 = arith.mulf %792, %790 : vector<16x12xf32>
    %794 = arith.addf %777, %793 : vector<16x12xf32>
    %c144 = arith.constant 144 : index
    %795 = memref.load %arg3[%c144] : memref<400xf32, #tpu.memory_space<smem>>
    %796 = vector.broadcast %795 : f32 to vector<16x12xf32>
    %797 = arith.mulf %796, %790 : vector<16x12xf32>
    %798 = arith.addf %781, %797 : vector<16x12xf32>
    %c244 = arith.constant 244 : index
    %799 = memref.load %arg3[%c244] : memref<400xf32, #tpu.memory_space<smem>>
    %800 = vector.broadcast %799 : f32 to vector<16x12xf32>
    %801 = arith.mulf %800, %790 : vector<16x12xf32>
    %802 = arith.addf %785, %801 : vector<16x12xf32>
    %c344 = arith.constant 344 : index
    %803 = memref.load %arg3[%c344] : memref<400xf32, #tpu.memory_space<smem>>
    %804 = vector.broadcast %803 : f32 to vector<16x12xf32>
    %805 = arith.mulf %804, %790 : vector<16x12xf32>
    %806 = arith.addf %789, %805 : vector<16x12xf32>
    %c4_i32_34 = arith.constant 4 : i32
    %807 = arith.addi %1, %c4_i32_34 : i32
    %c0_35 = arith.constant 0 : index
    %c1_36 = arith.constant 1 : index
    %808 = arith.index_cast %807 : i32 to index
    %c0_37 = arith.constant 0 : index
    %809 = vector.load %arg2[%c0_35, %c1_36, %808, %c0_37] : memref<1x4x20x16xf32, #tpu.memory_space<vmem>>, vector<1x1x16x16xf32>
    %810 = vector.shape_cast %809 : vector<1x1x16x16xf32> to vector<16x16xf32>
    %811 = vector.extract_strided_slice %810 {offsets = [0, 0], sizes = [16, 12], strides = [1, 1]} : vector<16x16xf32> to vector<16x12xf32>
    %c45 = arith.constant 45 : index
    %812 = memref.load %arg3[%c45] : memref<400xf32, #tpu.memory_space<smem>>
    %813 = vector.broadcast %812 : f32 to vector<16x12xf32>
    %814 = arith.mulf %813, %811 : vector<16x12xf32>
    %815 = arith.addf %794, %814 : vector<16x12xf32>
    %c145 = arith.constant 145 : index
    %816 = memref.load %arg3[%c145] : memref<400xf32, #tpu.memory_space<smem>>
    %817 = vector.broadcast %816 : f32 to vector<16x12xf32>
    %818 = arith.mulf %817, %811 : vector<16x12xf32>
    %819 = arith.addf %798, %818 : vector<16x12xf32>
    %c245 = arith.constant 245 : index
    %820 = memref.load %arg3[%c245] : memref<400xf32, #tpu.memory_space<smem>>
    %821 = vector.broadcast %820 : f32 to vector<16x12xf32>
    %822 = arith.mulf %821, %811 : vector<16x12xf32>
    %823 = arith.addf %802, %822 : vector<16x12xf32>
    %c345 = arith.constant 345 : index
    %824 = memref.load %arg3[%c345] : memref<400xf32, #tpu.memory_space<smem>>
    %825 = vector.broadcast %824 : f32 to vector<16x12xf32>
    %826 = arith.mulf %825, %811 : vector<16x12xf32>
    %827 = arith.addf %806, %826 : vector<16x12xf32>
    %828 = vector.extract_strided_slice %810 {offsets = [0, 1], sizes = [16, 12], strides = [1, 1]} : vector<16x16xf32> to vector<16x12xf32>
    %c46 = arith.constant 46 : index
    %829 = memref.load %arg3[%c46] : memref<400xf32, #tpu.memory_space<smem>>
    %830 = vector.broadcast %829 : f32 to vector<16x12xf32>
    %831 = arith.mulf %830, %828 : vector<16x12xf32>
    %832 = arith.addf %815, %831 : vector<16x12xf32>
    %c146 = arith.constant 146 : index
    %833 = memref.load %arg3[%c146] : memref<400xf32, #tpu.memory_space<smem>>
    %834 = vector.broadcast %833 : f32 to vector<16x12xf32>
    %835 = arith.mulf %834, %828 : vector<16x12xf32>
    %836 = arith.addf %819, %835 : vector<16x12xf32>
    %c246 = arith.constant 246 : index
    %837 = memref.load %arg3[%c246] : memref<400xf32, #tpu.memory_space<smem>>
    %838 = vector.broadcast %837 : f32 to vector<16x12xf32>
    %839 = arith.mulf %838, %828 : vector<16x12xf32>
    %840 = arith.addf %823, %839 : vector<16x12xf32>
    %c346 = arith.constant 346 : index
    %841 = memref.load %arg3[%c346] : memref<400xf32, #tpu.memory_space<smem>>
    %842 = vector.broadcast %841 : f32 to vector<16x12xf32>
    %843 = arith.mulf %842, %828 : vector<16x12xf32>
    %844 = arith.addf %827, %843 : vector<16x12xf32>
    %845 = vector.extract_strided_slice %810 {offsets = [0, 2], sizes = [16, 12], strides = [1, 1]} : vector<16x16xf32> to vector<16x12xf32>
    %c47 = arith.constant 47 : index
    %846 = memref.load %arg3[%c47] : memref<400xf32, #tpu.memory_space<smem>>
    %847 = vector.broadcast %846 : f32 to vector<16x12xf32>
    %848 = arith.mulf %847, %845 : vector<16x12xf32>
    %849 = arith.addf %832, %848 : vector<16x12xf32>
    %c147 = arith.constant 147 : index
    %850 = memref.load %arg3[%c147] : memref<400xf32, #tpu.memory_space<smem>>
    %851 = vector.broadcast %850 : f32 to vector<16x12xf32>
    %852 = arith.mulf %851, %845 : vector<16x12xf32>
    %853 = arith.addf %836, %852 : vector<16x12xf32>
    %c247 = arith.constant 247 : index
    %854 = memref.load %arg3[%c247] : memref<400xf32, #tpu.memory_space<smem>>
    %855 = vector.broadcast %854 : f32 to vector<16x12xf32>
    %856 = arith.mulf %855, %845 : vector<16x12xf32>
    %857 = arith.addf %840, %856 : vector<16x12xf32>
    %c347 = arith.constant 347 : index
    %858 = memref.load %arg3[%c347] : memref<400xf32, #tpu.memory_space<smem>>
    %859 = vector.broadcast %858 : f32 to vector<16x12xf32>
    %860 = arith.mulf %859, %845 : vector<16x12xf32>
    %861 = arith.addf %844, %860 : vector<16x12xf32>
    %862 = vector.extract_strided_slice %810 {offsets = [0, 3], sizes = [16, 12], strides = [1, 1]} : vector<16x16xf32> to vector<16x12xf32>
    %c48 = arith.constant 48 : index
    %863 = memref.load %arg3[%c48] : memref<400xf32, #tpu.memory_space<smem>>
    %864 = vector.broadcast %863 : f32 to vector<16x12xf32>
    %865 = arith.mulf %864, %862 : vector<16x12xf32>
    %866 = arith.addf %849, %865 : vector<16x12xf32>
    %c148 = arith.constant 148 : index
    %867 = memref.load %arg3[%c148] : memref<400xf32, #tpu.memory_space<smem>>
    %868 = vector.broadcast %867 : f32 to vector<16x12xf32>
    %869 = arith.mulf %868, %862 : vector<16x12xf32>
    %870 = arith.addf %853, %869 : vector<16x12xf32>
    %c248 = arith.constant 248 : index
    %871 = memref.load %arg3[%c248] : memref<400xf32, #tpu.memory_space<smem>>
    %872 = vector.broadcast %871 : f32 to vector<16x12xf32>
    %873 = arith.mulf %872, %862 : vector<16x12xf32>
    %874 = arith.addf %857, %873 : vector<16x12xf32>
    %c348 = arith.constant 348 : index
    %875 = memref.load %arg3[%c348] : memref<400xf32, #tpu.memory_space<smem>>
    %876 = vector.broadcast %875 : f32 to vector<16x12xf32>
    %877 = arith.mulf %876, %862 : vector<16x12xf32>
    %878 = arith.addf %861, %877 : vector<16x12xf32>
    %879 = vector.extract_strided_slice %810 {offsets = [0, 4], sizes = [16, 12], strides = [1, 1]} : vector<16x16xf32> to vector<16x12xf32>
    %c49 = arith.constant 49 : index
    %880 = memref.load %arg3[%c49] : memref<400xf32, #tpu.memory_space<smem>>
    %881 = vector.broadcast %880 : f32 to vector<16x12xf32>
    %882 = arith.mulf %881, %879 : vector<16x12xf32>
    %883 = arith.addf %866, %882 : vector<16x12xf32>
    %c149 = arith.constant 149 : index
    %884 = memref.load %arg3[%c149] : memref<400xf32, #tpu.memory_space<smem>>
    %885 = vector.broadcast %884 : f32 to vector<16x12xf32>
    %886 = arith.mulf %885, %879 : vector<16x12xf32>
    %887 = arith.addf %870, %886 : vector<16x12xf32>
    %c249 = arith.constant 249 : index
    %888 = memref.load %arg3[%c249] : memref<400xf32, #tpu.memory_space<smem>>
    %889 = vector.broadcast %888 : f32 to vector<16x12xf32>
    %890 = arith.mulf %889, %879 : vector<16x12xf32>
    %891 = arith.addf %874, %890 : vector<16x12xf32>
    %c349 = arith.constant 349 : index
    %892 = memref.load %arg3[%c349] : memref<400xf32, #tpu.memory_space<smem>>
    %893 = vector.broadcast %892 : f32 to vector<16x12xf32>
    %894 = arith.mulf %893, %879 : vector<16x12xf32>
    %895 = arith.addf %878, %894 : vector<16x12xf32>
    %c0_i32_38 = arith.constant 0 : i32
    %896 = arith.addi %1, %c0_i32_38 : i32
    %c0_39 = arith.constant 0 : index
    %c2_40 = arith.constant 2 : index
    %897 = arith.index_cast %896 : i32 to index
    %c0_41 = arith.constant 0 : index
    %898 = vector.load %arg2[%c0_39, %c2_40, %897, %c0_41] : memref<1x4x20x16xf32, #tpu.memory_space<vmem>>, vector<1x1x16x16xf32>
    %899 = vector.shape_cast %898 : vector<1x1x16x16xf32> to vector<16x16xf32>
    %900 = vector.extract_strided_slice %899 {offsets = [0, 0], sizes = [16, 12], strides = [1, 1]} : vector<16x16xf32> to vector<16x12xf32>
    %c50 = arith.constant 50 : index
    %901 = memref.load %arg3[%c50] : memref<400xf32, #tpu.memory_space<smem>>
    %902 = vector.broadcast %901 : f32 to vector<16x12xf32>
    %903 = arith.mulf %902, %900 : vector<16x12xf32>
    %904 = arith.addf %883, %903 : vector<16x12xf32>
    %c150 = arith.constant 150 : index
    %905 = memref.load %arg3[%c150] : memref<400xf32, #tpu.memory_space<smem>>
    %906 = vector.broadcast %905 : f32 to vector<16x12xf32>
    %907 = arith.mulf %906, %900 : vector<16x12xf32>
    %908 = arith.addf %887, %907 : vector<16x12xf32>
    %c250 = arith.constant 250 : index
    %909 = memref.load %arg3[%c250] : memref<400xf32, #tpu.memory_space<smem>>
    %910 = vector.broadcast %909 : f32 to vector<16x12xf32>
    %911 = arith.mulf %910, %900 : vector<16x12xf32>
    %912 = arith.addf %891, %911 : vector<16x12xf32>
    %c350 = arith.constant 350 : index
    %913 = memref.load %arg3[%c350] : memref<400xf32, #tpu.memory_space<smem>>
    %914 = vector.broadcast %913 : f32 to vector<16x12xf32>
    %915 = arith.mulf %914, %900 : vector<16x12xf32>
    %916 = arith.addf %895, %915 : vector<16x12xf32>
    %917 = vector.extract_strided_slice %899 {offsets = [0, 1], sizes = [16, 12], strides = [1, 1]} : vector<16x16xf32> to vector<16x12xf32>
    %c51 = arith.constant 51 : index
    %918 = memref.load %arg3[%c51] : memref<400xf32, #tpu.memory_space<smem>>
    %919 = vector.broadcast %918 : f32 to vector<16x12xf32>
    %920 = arith.mulf %919, %917 : vector<16x12xf32>
    %921 = arith.addf %904, %920 : vector<16x12xf32>
    %c151 = arith.constant 151 : index
    %922 = memref.load %arg3[%c151] : memref<400xf32, #tpu.memory_space<smem>>
    %923 = vector.broadcast %922 : f32 to vector<16x12xf32>
    %924 = arith.mulf %923, %917 : vector<16x12xf32>
    %925 = arith.addf %908, %924 : vector<16x12xf32>
    %c251 = arith.constant 251 : index
    %926 = memref.load %arg3[%c251] : memref<400xf32, #tpu.memory_space<smem>>
    %927 = vector.broadcast %926 : f32 to vector<16x12xf32>
    %928 = arith.mulf %927, %917 : vector<16x12xf32>
    %929 = arith.addf %912, %928 : vector<16x12xf32>
    %c351 = arith.constant 351 : index
    %930 = memref.load %arg3[%c351] : memref<400xf32, #tpu.memory_space<smem>>
    %931 = vector.broadcast %930 : f32 to vector<16x12xf32>
    %932 = arith.mulf %931, %917 : vector<16x12xf32>
    %933 = arith.addf %916, %932 : vector<16x12xf32>
    %934 = vector.extract_strided_slice %899 {offsets = [0, 2], sizes = [16, 12], strides = [1, 1]} : vector<16x16xf32> to vector<16x12xf32>
    %c52 = arith.constant 52 : index
    %935 = memref.load %arg3[%c52] : memref<400xf32, #tpu.memory_space<smem>>
    %936 = vector.broadcast %935 : f32 to vector<16x12xf32>
    %937 = arith.mulf %936, %934 : vector<16x12xf32>
    %938 = arith.addf %921, %937 : vector<16x12xf32>
    %c152 = arith.constant 152 : index
    %939 = memref.load %arg3[%c152] : memref<400xf32, #tpu.memory_space<smem>>
    %940 = vector.broadcast %939 : f32 to vector<16x12xf32>
    %941 = arith.mulf %940, %934 : vector<16x12xf32>
    %942 = arith.addf %925, %941 : vector<16x12xf32>
    %c252 = arith.constant 252 : index
    %943 = memref.load %arg3[%c252] : memref<400xf32, #tpu.memory_space<smem>>
    %944 = vector.broadcast %943 : f32 to vector<16x12xf32>
    %945 = arith.mulf %944, %934 : vector<16x12xf32>
    %946 = arith.addf %929, %945 : vector<16x12xf32>
    %c352 = arith.constant 352 : index
    %947 = memref.load %arg3[%c352] : memref<400xf32, #tpu.memory_space<smem>>
    %948 = vector.broadcast %947 : f32 to vector<16x12xf32>
    %949 = arith.mulf %948, %934 : vector<16x12xf32>
    %950 = arith.addf %933, %949 : vector<16x12xf32>
    %951 = vector.extract_strided_slice %899 {offsets = [0, 3], sizes = [16, 12], strides = [1, 1]} : vector<16x16xf32> to vector<16x12xf32>
    %c53 = arith.constant 53 : index
    %952 = memref.load %arg3[%c53] : memref<400xf32, #tpu.memory_space<smem>>
    %953 = vector.broadcast %952 : f32 to vector<16x12xf32>
    %954 = arith.mulf %953, %951 : vector<16x12xf32>
    %955 = arith.addf %938, %954 : vector<16x12xf32>
    %c153 = arith.constant 153 : index
    %956 = memref.load %arg3[%c153] : memref<400xf32, #tpu.memory_space<smem>>
    %957 = vector.broadcast %956 : f32 to vector<16x12xf32>
    %958 = arith.mulf %957, %951 : vector<16x12xf32>
    %959 = arith.addf %942, %958 : vector<16x12xf32>
    %c253 = arith.constant 253 : index
    %960 = memref.load %arg3[%c253] : memref<400xf32, #tpu.memory_space<smem>>
    %961 = vector.broadcast %960 : f32 to vector<16x12xf32>
    %962 = arith.mulf %961, %951 : vector<16x12xf32>
    %963 = arith.addf %946, %962 : vector<16x12xf32>
    %c353 = arith.constant 353 : index
    %964 = memref.load %arg3[%c353] : memref<400xf32, #tpu.memory_space<smem>>
    %965 = vector.broadcast %964 : f32 to vector<16x12xf32>
    %966 = arith.mulf %965, %951 : vector<16x12xf32>
    %967 = arith.addf %950, %966 : vector<16x12xf32>
    %968 = vector.extract_strided_slice %899 {offsets = [0, 4], sizes = [16, 12], strides = [1, 1]} : vector<16x16xf32> to vector<16x12xf32>
    %c54 = arith.constant 54 : index
    %969 = memref.load %arg3[%c54] : memref<400xf32, #tpu.memory_space<smem>>
    %970 = vector.broadcast %969 : f32 to vector<16x12xf32>
    %971 = arith.mulf %970, %968 : vector<16x12xf32>
    %972 = arith.addf %955, %971 : vector<16x12xf32>
    %c154 = arith.constant 154 : index
    %973 = memref.load %arg3[%c154] : memref<400xf32, #tpu.memory_space<smem>>
    %974 = vector.broadcast %973 : f32 to vector<16x12xf32>
    %975 = arith.mulf %974, %968 : vector<16x12xf32>
    %976 = arith.addf %959, %975 : vector<16x12xf32>
    %c254 = arith.constant 254 : index
    %977 = memref.load %arg3[%c254] : memref<400xf32, #tpu.memory_space<smem>>
    %978 = vector.broadcast %977 : f32 to vector<16x12xf32>
    %979 = arith.mulf %978, %968 : vector<16x12xf32>
    %980 = arith.addf %963, %979 : vector<16x12xf32>
    %c354 = arith.constant 354 : index
    %981 = memref.load %arg3[%c354] : memref<400xf32, #tpu.memory_space<smem>>
    %982 = vector.broadcast %981 : f32 to vector<16x12xf32>
    %983 = arith.mulf %982, %968 : vector<16x12xf32>
    %984 = arith.addf %967, %983 : vector<16x12xf32>
    %c1_i32_42 = arith.constant 1 : i32
    %985 = arith.addi %1, %c1_i32_42 : i32
    %c0_43 = arith.constant 0 : index
    %c2_44 = arith.constant 2 : index
    %986 = arith.index_cast %985 : i32 to index
    %c0_45 = arith.constant 0 : index
    %987 = vector.load %arg2[%c0_43, %c2_44, %986, %c0_45] : memref<1x4x20x16xf32, #tpu.memory_space<vmem>>, vector<1x1x16x16xf32>
    %988 = vector.shape_cast %987 : vector<1x1x16x16xf32> to vector<16x16xf32>
    %989 = vector.extract_strided_slice %988 {offsets = [0, 0], sizes = [16, 12], strides = [1, 1]} : vector<16x16xf32> to vector<16x12xf32>
    %c55 = arith.constant 55 : index
    %990 = memref.load %arg3[%c55] : memref<400xf32, #tpu.memory_space<smem>>
    %991 = vector.broadcast %990 : f32 to vector<16x12xf32>
    %992 = arith.mulf %991, %989 : vector<16x12xf32>
    %993 = arith.addf %972, %992 : vector<16x12xf32>
    %c155 = arith.constant 155 : index
    %994 = memref.load %arg3[%c155] : memref<400xf32, #tpu.memory_space<smem>>
    %995 = vector.broadcast %994 : f32 to vector<16x12xf32>
    %996 = arith.mulf %995, %989 : vector<16x12xf32>
    %997 = arith.addf %976, %996 : vector<16x12xf32>
    %c255 = arith.constant 255 : index
    %998 = memref.load %arg3[%c255] : memref<400xf32, #tpu.memory_space<smem>>
    %999 = vector.broadcast %998 : f32 to vector<16x12xf32>
    %1000 = arith.mulf %999, %989 : vector<16x12xf32>
    %1001 = arith.addf %980, %1000 : vector<16x12xf32>
    %c355 = arith.constant 355 : index
    %1002 = memref.load %arg3[%c355] : memref<400xf32, #tpu.memory_space<smem>>
    %1003 = vector.broadcast %1002 : f32 to vector<16x12xf32>
    %1004 = arith.mulf %1003, %989 : vector<16x12xf32>
    %1005 = arith.addf %984, %1004 : vector<16x12xf32>
    %1006 = vector.extract_strided_slice %988 {offsets = [0, 1], sizes = [16, 12], strides = [1, 1]} : vector<16x16xf32> to vector<16x12xf32>
    %c56 = arith.constant 56 : index
    %1007 = memref.load %arg3[%c56] : memref<400xf32, #tpu.memory_space<smem>>
    %1008 = vector.broadcast %1007 : f32 to vector<16x12xf32>
    %1009 = arith.mulf %1008, %1006 : vector<16x12xf32>
    %1010 = arith.addf %993, %1009 : vector<16x12xf32>
    %c156 = arith.constant 156 : index
    %1011 = memref.load %arg3[%c156] : memref<400xf32, #tpu.memory_space<smem>>
    %1012 = vector.broadcast %1011 : f32 to vector<16x12xf32>
    %1013 = arith.mulf %1012, %1006 : vector<16x12xf32>
    %1014 = arith.addf %997, %1013 : vector<16x12xf32>
    %c256 = arith.constant 256 : index
    %1015 = memref.load %arg3[%c256] : memref<400xf32, #tpu.memory_space<smem>>
    %1016 = vector.broadcast %1015 : f32 to vector<16x12xf32>
    %1017 = arith.mulf %1016, %1006 : vector<16x12xf32>
    %1018 = arith.addf %1001, %1017 : vector<16x12xf32>
    %c356 = arith.constant 356 : index
    %1019 = memref.load %arg3[%c356] : memref<400xf32, #tpu.memory_space<smem>>
    %1020 = vector.broadcast %1019 : f32 to vector<16x12xf32>
    %1021 = arith.mulf %1020, %1006 : vector<16x12xf32>
    %1022 = arith.addf %1005, %1021 : vector<16x12xf32>
    %1023 = vector.extract_strided_slice %988 {offsets = [0, 2], sizes = [16, 12], strides = [1, 1]} : vector<16x16xf32> to vector<16x12xf32>
    %c57 = arith.constant 57 : index
    %1024 = memref.load %arg3[%c57] : memref<400xf32, #tpu.memory_space<smem>>
    %1025 = vector.broadcast %1024 : f32 to vector<16x12xf32>
    %1026 = arith.mulf %1025, %1023 : vector<16x12xf32>
    %1027 = arith.addf %1010, %1026 : vector<16x12xf32>
    %c157 = arith.constant 157 : index
    %1028 = memref.load %arg3[%c157] : memref<400xf32, #tpu.memory_space<smem>>
    %1029 = vector.broadcast %1028 : f32 to vector<16x12xf32>
    %1030 = arith.mulf %1029, %1023 : vector<16x12xf32>
    %1031 = arith.addf %1014, %1030 : vector<16x12xf32>
    %c257 = arith.constant 257 : index
    %1032 = memref.load %arg3[%c257] : memref<400xf32, #tpu.memory_space<smem>>
    %1033 = vector.broadcast %1032 : f32 to vector<16x12xf32>
    %1034 = arith.mulf %1033, %1023 : vector<16x12xf32>
    %1035 = arith.addf %1018, %1034 : vector<16x12xf32>
    %c357 = arith.constant 357 : index
    %1036 = memref.load %arg3[%c357] : memref<400xf32, #tpu.memory_space<smem>>
    %1037 = vector.broadcast %1036 : f32 to vector<16x12xf32>
    %1038 = arith.mulf %1037, %1023 : vector<16x12xf32>
    %1039 = arith.addf %1022, %1038 : vector<16x12xf32>
    %1040 = vector.extract_strided_slice %988 {offsets = [0, 3], sizes = [16, 12], strides = [1, 1]} : vector<16x16xf32> to vector<16x12xf32>
    %c58 = arith.constant 58 : index
    %1041 = memref.load %arg3[%c58] : memref<400xf32, #tpu.memory_space<smem>>
    %1042 = vector.broadcast %1041 : f32 to vector<16x12xf32>
    %1043 = arith.mulf %1042, %1040 : vector<16x12xf32>
    %1044 = arith.addf %1027, %1043 : vector<16x12xf32>
    %c158 = arith.constant 158 : index
    %1045 = memref.load %arg3[%c158] : memref<400xf32, #tpu.memory_space<smem>>
    %1046 = vector.broadcast %1045 : f32 to vector<16x12xf32>
    %1047 = arith.mulf %1046, %1040 : vector<16x12xf32>
    %1048 = arith.addf %1031, %1047 : vector<16x12xf32>
    %c258 = arith.constant 258 : index
    %1049 = memref.load %arg3[%c258] : memref<400xf32, #tpu.memory_space<smem>>
    %1050 = vector.broadcast %1049 : f32 to vector<16x12xf32>
    %1051 = arith.mulf %1050, %1040 : vector<16x12xf32>
    %1052 = arith.addf %1035, %1051 : vector<16x12xf32>
    %c358 = arith.constant 358 : index
    %1053 = memref.load %arg3[%c358] : memref<400xf32, #tpu.memory_space<smem>>
    %1054 = vector.broadcast %1053 : f32 to vector<16x12xf32>
    %1055 = arith.mulf %1054, %1040 : vector<16x12xf32>
    %1056 = arith.addf %1039, %1055 : vector<16x12xf32>
    %1057 = vector.extract_strided_slice %988 {offsets = [0, 4], sizes = [16, 12], strides = [1, 1]} : vector<16x16xf32> to vector<16x12xf32>
    %c59 = arith.constant 59 : index
    %1058 = memref.load %arg3[%c59] : memref<400xf32, #tpu.memory_space<smem>>
    %1059 = vector.broadcast %1058 : f32 to vector<16x12xf32>
    %1060 = arith.mulf %1059, %1057 : vector<16x12xf32>
    %1061 = arith.addf %1044, %1060 : vector<16x12xf32>
    %c159 = arith.constant 159 : index
    %1062 = memref.load %arg3[%c159] : memref<400xf32, #tpu.memory_space<smem>>
    %1063 = vector.broadcast %1062 : f32 to vector<16x12xf32>
    %1064 = arith.mulf %1063, %1057 : vector<16x12xf32>
    %1065 = arith.addf %1048, %1064 : vector<16x12xf32>
    %c259 = arith.constant 259 : index
    %1066 = memref.load %arg3[%c259] : memref<400xf32, #tpu.memory_space<smem>>
    %1067 = vector.broadcast %1066 : f32 to vector<16x12xf32>
    %1068 = arith.mulf %1067, %1057 : vector<16x12xf32>
    %1069 = arith.addf %1052, %1068 : vector<16x12xf32>
    %c359 = arith.constant 359 : index
    %1070 = memref.load %arg3[%c359] : memref<400xf32, #tpu.memory_space<smem>>
    %1071 = vector.broadcast %1070 : f32 to vector<16x12xf32>
    %1072 = arith.mulf %1071, %1057 : vector<16x12xf32>
    %1073 = arith.addf %1056, %1072 : vector<16x12xf32>
    %c2_i32_46 = arith.constant 2 : i32
    %1074 = arith.addi %1, %c2_i32_46 : i32
    %c0_47 = arith.constant 0 : index
    %c2_48 = arith.constant 2 : index
    %1075 = arith.index_cast %1074 : i32 to index
    %c0_49 = arith.constant 0 : index
    %1076 = vector.load %arg2[%c0_47, %c2_48, %1075, %c0_49] : memref<1x4x20x16xf32, #tpu.memory_space<vmem>>, vector<1x1x16x16xf32>
    %1077 = vector.shape_cast %1076 : vector<1x1x16x16xf32> to vector<16x16xf32>
    %1078 = vector.extract_strided_slice %1077 {offsets = [0, 0], sizes = [16, 12], strides = [1, 1]} : vector<16x16xf32> to vector<16x12xf32>
    %c60 = arith.constant 60 : index
    %1079 = memref.load %arg3[%c60] : memref<400xf32, #tpu.memory_space<smem>>
    %1080 = vector.broadcast %1079 : f32 to vector<16x12xf32>
    %1081 = arith.mulf %1080, %1078 : vector<16x12xf32>
    %1082 = arith.addf %1061, %1081 : vector<16x12xf32>
    %c160 = arith.constant 160 : index
    %1083 = memref.load %arg3[%c160] : memref<400xf32, #tpu.memory_space<smem>>
    %1084 = vector.broadcast %1083 : f32 to vector<16x12xf32>
    %1085 = arith.mulf %1084, %1078 : vector<16x12xf32>
    %1086 = arith.addf %1065, %1085 : vector<16x12xf32>
    %c260 = arith.constant 260 : index
    %1087 = memref.load %arg3[%c260] : memref<400xf32, #tpu.memory_space<smem>>
    %1088 = vector.broadcast %1087 : f32 to vector<16x12xf32>
    %1089 = arith.mulf %1088, %1078 : vector<16x12xf32>
    %1090 = arith.addf %1069, %1089 : vector<16x12xf32>
    %c360 = arith.constant 360 : index
    %1091 = memref.load %arg3[%c360] : memref<400xf32, #tpu.memory_space<smem>>
    %1092 = vector.broadcast %1091 : f32 to vector<16x12xf32>
    %1093 = arith.mulf %1092, %1078 : vector<16x12xf32>
    %1094 = arith.addf %1073, %1093 : vector<16x12xf32>
    %1095 = vector.extract_strided_slice %1077 {offsets = [0, 1], sizes = [16, 12], strides = [1, 1]} : vector<16x16xf32> to vector<16x12xf32>
    %c61 = arith.constant 61 : index
    %1096 = memref.load %arg3[%c61] : memref<400xf32, #tpu.memory_space<smem>>
    %1097 = vector.broadcast %1096 : f32 to vector<16x12xf32>
    %1098 = arith.mulf %1097, %1095 : vector<16x12xf32>
    %1099 = arith.addf %1082, %1098 : vector<16x12xf32>
    %c161 = arith.constant 161 : index
    %1100 = memref.load %arg3[%c161] : memref<400xf32, #tpu.memory_space<smem>>
    %1101 = vector.broadcast %1100 : f32 to vector<16x12xf32>
    %1102 = arith.mulf %1101, %1095 : vector<16x12xf32>
    %1103 = arith.addf %1086, %1102 : vector<16x12xf32>
    %c261 = arith.constant 261 : index
    %1104 = memref.load %arg3[%c261] : memref<400xf32, #tpu.memory_space<smem>>
    %1105 = vector.broadcast %1104 : f32 to vector<16x12xf32>
    %1106 = arith.mulf %1105, %1095 : vector<16x12xf32>
    %1107 = arith.addf %1090, %1106 : vector<16x12xf32>
    %c361 = arith.constant 361 : index
    %1108 = memref.load %arg3[%c361] : memref<400xf32, #tpu.memory_space<smem>>
    %1109 = vector.broadcast %1108 : f32 to vector<16x12xf32>
    %1110 = arith.mulf %1109, %1095 : vector<16x12xf32>
    %1111 = arith.addf %1094, %1110 : vector<16x12xf32>
    %1112 = vector.extract_strided_slice %1077 {offsets = [0, 2], sizes = [16, 12], strides = [1, 1]} : vector<16x16xf32> to vector<16x12xf32>
    %c62 = arith.constant 62 : index
    %1113 = memref.load %arg3[%c62] : memref<400xf32, #tpu.memory_space<smem>>
    %1114 = vector.broadcast %1113 : f32 to vector<16x12xf32>
    %1115 = arith.mulf %1114, %1112 : vector<16x12xf32>
    %1116 = arith.addf %1099, %1115 : vector<16x12xf32>
    %c162 = arith.constant 162 : index
    %1117 = memref.load %arg3[%c162] : memref<400xf32, #tpu.memory_space<smem>>
    %1118 = vector.broadcast %1117 : f32 to vector<16x12xf32>
    %1119 = arith.mulf %1118, %1112 : vector<16x12xf32>
    %1120 = arith.addf %1103, %1119 : vector<16x12xf32>
    %c262 = arith.constant 262 : index
    %1121 = memref.load %arg3[%c262] : memref<400xf32, #tpu.memory_space<smem>>
    %1122 = vector.broadcast %1121 : f32 to vector<16x12xf32>
    %1123 = arith.mulf %1122, %1112 : vector<16x12xf32>
    %1124 = arith.addf %1107, %1123 : vector<16x12xf32>
    %c362 = arith.constant 362 : index
    %1125 = memref.load %arg3[%c362] : memref<400xf32, #tpu.memory_space<smem>>
    %1126 = vector.broadcast %1125 : f32 to vector<16x12xf32>
    %1127 = arith.mulf %1126, %1112 : vector<16x12xf32>
    %1128 = arith.addf %1111, %1127 : vector<16x12xf32>
    %1129 = vector.extract_strided_slice %1077 {offsets = [0, 3], sizes = [16, 12], strides = [1, 1]} : vector<16x16xf32> to vector<16x12xf32>
    %c63 = arith.constant 63 : index
    %1130 = memref.load %arg3[%c63] : memref<400xf32, #tpu.memory_space<smem>>
    %1131 = vector.broadcast %1130 : f32 to vector<16x12xf32>
    %1132 = arith.mulf %1131, %1129 : vector<16x12xf32>
    %1133 = arith.addf %1116, %1132 : vector<16x12xf32>
    %c163 = arith.constant 163 : index
    %1134 = memref.load %arg3[%c163] : memref<400xf32, #tpu.memory_space<smem>>
    %1135 = vector.broadcast %1134 : f32 to vector<16x12xf32>
    %1136 = arith.mulf %1135, %1129 : vector<16x12xf32>
    %1137 = arith.addf %1120, %1136 : vector<16x12xf32>
    %c263 = arith.constant 263 : index
    %1138 = memref.load %arg3[%c263] : memref<400xf32, #tpu.memory_space<smem>>
    %1139 = vector.broadcast %1138 : f32 to vector<16x12xf32>
    %1140 = arith.mulf %1139, %1129 : vector<16x12xf32>
    %1141 = arith.addf %1124, %1140 : vector<16x12xf32>
    %c363 = arith.constant 363 : index
    %1142 = memref.load %arg3[%c363] : memref<400xf32, #tpu.memory_space<smem>>
    %1143 = vector.broadcast %1142 : f32 to vector<16x12xf32>
    %1144 = arith.mulf %1143, %1129 : vector<16x12xf32>
    %1145 = arith.addf %1128, %1144 : vector<16x12xf32>
    %1146 = vector.extract_strided_slice %1077 {offsets = [0, 4], sizes = [16, 12], strides = [1, 1]} : vector<16x16xf32> to vector<16x12xf32>
    %c64 = arith.constant 64 : index
    %1147 = memref.load %arg3[%c64] : memref<400xf32, #tpu.memory_space<smem>>
    %1148 = vector.broadcast %1147 : f32 to vector<16x12xf32>
    %1149 = arith.mulf %1148, %1146 : vector<16x12xf32>
    %1150 = arith.addf %1133, %1149 : vector<16x12xf32>
    %c164 = arith.constant 164 : index
    %1151 = memref.load %arg3[%c164] : memref<400xf32, #tpu.memory_space<smem>>
    %1152 = vector.broadcast %1151 : f32 to vector<16x12xf32>
    %1153 = arith.mulf %1152, %1146 : vector<16x12xf32>
    %1154 = arith.addf %1137, %1153 : vector<16x12xf32>
    %c264 = arith.constant 264 : index
    %1155 = memref.load %arg3[%c264] : memref<400xf32, #tpu.memory_space<smem>>
    %1156 = vector.broadcast %1155 : f32 to vector<16x12xf32>
    %1157 = arith.mulf %1156, %1146 : vector<16x12xf32>
    %1158 = arith.addf %1141, %1157 : vector<16x12xf32>
    %c364 = arith.constant 364 : index
    %1159 = memref.load %arg3[%c364] : memref<400xf32, #tpu.memory_space<smem>>
    %1160 = vector.broadcast %1159 : f32 to vector<16x12xf32>
    %1161 = arith.mulf %1160, %1146 : vector<16x12xf32>
    %1162 = arith.addf %1145, %1161 : vector<16x12xf32>
    %c3_i32_50 = arith.constant 3 : i32
    %1163 = arith.addi %1, %c3_i32_50 : i32
    %c0_51 = arith.constant 0 : index
    %c2_52 = arith.constant 2 : index
    %1164 = arith.index_cast %1163 : i32 to index
    %c0_53 = arith.constant 0 : index
    %1165 = vector.load %arg2[%c0_51, %c2_52, %1164, %c0_53] : memref<1x4x20x16xf32, #tpu.memory_space<vmem>>, vector<1x1x16x16xf32>
    %1166 = vector.shape_cast %1165 : vector<1x1x16x16xf32> to vector<16x16xf32>
    %1167 = vector.extract_strided_slice %1166 {offsets = [0, 0], sizes = [16, 12], strides = [1, 1]} : vector<16x16xf32> to vector<16x12xf32>
    %c65 = arith.constant 65 : index
    %1168 = memref.load %arg3[%c65] : memref<400xf32, #tpu.memory_space<smem>>
    %1169 = vector.broadcast %1168 : f32 to vector<16x12xf32>
    %1170 = arith.mulf %1169, %1167 : vector<16x12xf32>
    %1171 = arith.addf %1150, %1170 : vector<16x12xf32>
    %c165 = arith.constant 165 : index
    %1172 = memref.load %arg3[%c165] : memref<400xf32, #tpu.memory_space<smem>>
    %1173 = vector.broadcast %1172 : f32 to vector<16x12xf32>
    %1174 = arith.mulf %1173, %1167 : vector<16x12xf32>
    %1175 = arith.addf %1154, %1174 : vector<16x12xf32>
    %c265 = arith.constant 265 : index
    %1176 = memref.load %arg3[%c265] : memref<400xf32, #tpu.memory_space<smem>>
    %1177 = vector.broadcast %1176 : f32 to vector<16x12xf32>
    %1178 = arith.mulf %1177, %1167 : vector<16x12xf32>
    %1179 = arith.addf %1158, %1178 : vector<16x12xf32>
    %c365 = arith.constant 365 : index
    %1180 = memref.load %arg3[%c365] : memref<400xf32, #tpu.memory_space<smem>>
    %1181 = vector.broadcast %1180 : f32 to vector<16x12xf32>
    %1182 = arith.mulf %1181, %1167 : vector<16x12xf32>
    %1183 = arith.addf %1162, %1182 : vector<16x12xf32>
    %1184 = vector.extract_strided_slice %1166 {offsets = [0, 1], sizes = [16, 12], strides = [1, 1]} : vector<16x16xf32> to vector<16x12xf32>
    %c66 = arith.constant 66 : index
    %1185 = memref.load %arg3[%c66] : memref<400xf32, #tpu.memory_space<smem>>
    %1186 = vector.broadcast %1185 : f32 to vector<16x12xf32>
    %1187 = arith.mulf %1186, %1184 : vector<16x12xf32>
    %1188 = arith.addf %1171, %1187 : vector<16x12xf32>
    %c166 = arith.constant 166 : index
    %1189 = memref.load %arg3[%c166] : memref<400xf32, #tpu.memory_space<smem>>
    %1190 = vector.broadcast %1189 : f32 to vector<16x12xf32>
    %1191 = arith.mulf %1190, %1184 : vector<16x12xf32>
    %1192 = arith.addf %1175, %1191 : vector<16x12xf32>
    %c266 = arith.constant 266 : index
    %1193 = memref.load %arg3[%c266] : memref<400xf32, #tpu.memory_space<smem>>
    %1194 = vector.broadcast %1193 : f32 to vector<16x12xf32>
    %1195 = arith.mulf %1194, %1184 : vector<16x12xf32>
    %1196 = arith.addf %1179, %1195 : vector<16x12xf32>
    %c366 = arith.constant 366 : index
    %1197 = memref.load %arg3[%c366] : memref<400xf32, #tpu.memory_space<smem>>
    %1198 = vector.broadcast %1197 : f32 to vector<16x12xf32>
    %1199 = arith.mulf %1198, %1184 : vector<16x12xf32>
    %1200 = arith.addf %1183, %1199 : vector<16x12xf32>
    %1201 = vector.extract_strided_slice %1166 {offsets = [0, 2], sizes = [16, 12], strides = [1, 1]} : vector<16x16xf32> to vector<16x12xf32>
    %c67 = arith.constant 67 : index
    %1202 = memref.load %arg3[%c67] : memref<400xf32, #tpu.memory_space<smem>>
    %1203 = vector.broadcast %1202 : f32 to vector<16x12xf32>
    %1204 = arith.mulf %1203, %1201 : vector<16x12xf32>
    %1205 = arith.addf %1188, %1204 : vector<16x12xf32>
    %c167 = arith.constant 167 : index
    %1206 = memref.load %arg3[%c167] : memref<400xf32, #tpu.memory_space<smem>>
    %1207 = vector.broadcast %1206 : f32 to vector<16x12xf32>
    %1208 = arith.mulf %1207, %1201 : vector<16x12xf32>
    %1209 = arith.addf %1192, %1208 : vector<16x12xf32>
    %c267 = arith.constant 267 : index
    %1210 = memref.load %arg3[%c267] : memref<400xf32, #tpu.memory_space<smem>>
    %1211 = vector.broadcast %1210 : f32 to vector<16x12xf32>
    %1212 = arith.mulf %1211, %1201 : vector<16x12xf32>
    %1213 = arith.addf %1196, %1212 : vector<16x12xf32>
    %c367 = arith.constant 367 : index
    %1214 = memref.load %arg3[%c367] : memref<400xf32, #tpu.memory_space<smem>>
    %1215 = vector.broadcast %1214 : f32 to vector<16x12xf32>
    %1216 = arith.mulf %1215, %1201 : vector<16x12xf32>
    %1217 = arith.addf %1200, %1216 : vector<16x12xf32>
    %1218 = vector.extract_strided_slice %1166 {offsets = [0, 3], sizes = [16, 12], strides = [1, 1]} : vector<16x16xf32> to vector<16x12xf32>
    %c68 = arith.constant 68 : index
    %1219 = memref.load %arg3[%c68] : memref<400xf32, #tpu.memory_space<smem>>
    %1220 = vector.broadcast %1219 : f32 to vector<16x12xf32>
    %1221 = arith.mulf %1220, %1218 : vector<16x12xf32>
    %1222 = arith.addf %1205, %1221 : vector<16x12xf32>
    %c168 = arith.constant 168 : index
    %1223 = memref.load %arg3[%c168] : memref<400xf32, #tpu.memory_space<smem>>
    %1224 = vector.broadcast %1223 : f32 to vector<16x12xf32>
    %1225 = arith.mulf %1224, %1218 : vector<16x12xf32>
    %1226 = arith.addf %1209, %1225 : vector<16x12xf32>
    %c268 = arith.constant 268 : index
    %1227 = memref.load %arg3[%c268] : memref<400xf32, #tpu.memory_space<smem>>
    %1228 = vector.broadcast %1227 : f32 to vector<16x12xf32>
    %1229 = arith.mulf %1228, %1218 : vector<16x12xf32>
    %1230 = arith.addf %1213, %1229 : vector<16x12xf32>
    %c368 = arith.constant 368 : index
    %1231 = memref.load %arg3[%c368] : memref<400xf32, #tpu.memory_space<smem>>
    %1232 = vector.broadcast %1231 : f32 to vector<16x12xf32>
    %1233 = arith.mulf %1232, %1218 : vector<16x12xf32>
    %1234 = arith.addf %1217, %1233 : vector<16x12xf32>
    %1235 = vector.extract_strided_slice %1166 {offsets = [0, 4], sizes = [16, 12], strides = [1, 1]} : vector<16x16xf32> to vector<16x12xf32>
    %c69 = arith.constant 69 : index
    %1236 = memref.load %arg3[%c69] : memref<400xf32, #tpu.memory_space<smem>>
    %1237 = vector.broadcast %1236 : f32 to vector<16x12xf32>
    %1238 = arith.mulf %1237, %1235 : vector<16x12xf32>
    %1239 = arith.addf %1222, %1238 : vector<16x12xf32>
    %c169 = arith.constant 169 : index
    %1240 = memref.load %arg3[%c169] : memref<400xf32, #tpu.memory_space<smem>>
    %1241 = vector.broadcast %1240 : f32 to vector<16x12xf32>
    %1242 = arith.mulf %1241, %1235 : vector<16x12xf32>
    %1243 = arith.addf %1226, %1242 : vector<16x12xf32>
    %c269 = arith.constant 269 : index
    %1244 = memref.load %arg3[%c269] : memref<400xf32, #tpu.memory_space<smem>>
    %1245 = vector.broadcast %1244 : f32 to vector<16x12xf32>
    %1246 = arith.mulf %1245, %1235 : vector<16x12xf32>
    %1247 = arith.addf %1230, %1246 : vector<16x12xf32>
    %c369 = arith.constant 369 : index
    %1248 = memref.load %arg3[%c369] : memref<400xf32, #tpu.memory_space<smem>>
    %1249 = vector.broadcast %1248 : f32 to vector<16x12xf32>
    %1250 = arith.mulf %1249, %1235 : vector<16x12xf32>
    %1251 = arith.addf %1234, %1250 : vector<16x12xf32>
    %c4_i32_54 = arith.constant 4 : i32
    %1252 = arith.addi %1, %c4_i32_54 : i32
    %c0_55 = arith.constant 0 : index
    %c2_56 = arith.constant 2 : index
    %1253 = arith.index_cast %1252 : i32 to index
    %c0_57 = arith.constant 0 : index
    %1254 = vector.load %arg2[%c0_55, %c2_56, %1253, %c0_57] : memref<1x4x20x16xf32, #tpu.memory_space<vmem>>, vector<1x1x16x16xf32>
    %1255 = vector.shape_cast %1254 : vector<1x1x16x16xf32> to vector<16x16xf32>
    %1256 = vector.extract_strided_slice %1255 {offsets = [0, 0], sizes = [16, 12], strides = [1, 1]} : vector<16x16xf32> to vector<16x12xf32>
    %c70 = arith.constant 70 : index
    %1257 = memref.load %arg3[%c70] : memref<400xf32, #tpu.memory_space<smem>>
    %1258 = vector.broadcast %1257 : f32 to vector<16x12xf32>
    %1259 = arith.mulf %1258, %1256 : vector<16x12xf32>
    %1260 = arith.addf %1239, %1259 : vector<16x12xf32>
    %c170 = arith.constant 170 : index
    %1261 = memref.load %arg3[%c170] : memref<400xf32, #tpu.memory_space<smem>>
    %1262 = vector.broadcast %1261 : f32 to vector<16x12xf32>
    %1263 = arith.mulf %1262, %1256 : vector<16x12xf32>
    %1264 = arith.addf %1243, %1263 : vector<16x12xf32>
    %c270 = arith.constant 270 : index
    %1265 = memref.load %arg3[%c270] : memref<400xf32, #tpu.memory_space<smem>>
    %1266 = vector.broadcast %1265 : f32 to vector<16x12xf32>
    %1267 = arith.mulf %1266, %1256 : vector<16x12xf32>
    %1268 = arith.addf %1247, %1267 : vector<16x12xf32>
    %c370 = arith.constant 370 : index
    %1269 = memref.load %arg3[%c370] : memref<400xf32, #tpu.memory_space<smem>>
    %1270 = vector.broadcast %1269 : f32 to vector<16x12xf32>
    %1271 = arith.mulf %1270, %1256 : vector<16x12xf32>
    %1272 = arith.addf %1251, %1271 : vector<16x12xf32>
    %1273 = vector.extract_strided_slice %1255 {offsets = [0, 1], sizes = [16, 12], strides = [1, 1]} : vector<16x16xf32> to vector<16x12xf32>
    %c71 = arith.constant 71 : index
    %1274 = memref.load %arg3[%c71] : memref<400xf32, #tpu.memory_space<smem>>
    %1275 = vector.broadcast %1274 : f32 to vector<16x12xf32>
    %1276 = arith.mulf %1275, %1273 : vector<16x12xf32>
    %1277 = arith.addf %1260, %1276 : vector<16x12xf32>
    %c171 = arith.constant 171 : index
    %1278 = memref.load %arg3[%c171] : memref<400xf32, #tpu.memory_space<smem>>
    %1279 = vector.broadcast %1278 : f32 to vector<16x12xf32>
    %1280 = arith.mulf %1279, %1273 : vector<16x12xf32>
    %1281 = arith.addf %1264, %1280 : vector<16x12xf32>
    %c271 = arith.constant 271 : index
    %1282 = memref.load %arg3[%c271] : memref<400xf32, #tpu.memory_space<smem>>
    %1283 = vector.broadcast %1282 : f32 to vector<16x12xf32>
    %1284 = arith.mulf %1283, %1273 : vector<16x12xf32>
    %1285 = arith.addf %1268, %1284 : vector<16x12xf32>
    %c371 = arith.constant 371 : index
    %1286 = memref.load %arg3[%c371] : memref<400xf32, #tpu.memory_space<smem>>
    %1287 = vector.broadcast %1286 : f32 to vector<16x12xf32>
    %1288 = arith.mulf %1287, %1273 : vector<16x12xf32>
    %1289 = arith.addf %1272, %1288 : vector<16x12xf32>
    %1290 = vector.extract_strided_slice %1255 {offsets = [0, 2], sizes = [16, 12], strides = [1, 1]} : vector<16x16xf32> to vector<16x12xf32>
    %c72 = arith.constant 72 : index
    %1291 = memref.load %arg3[%c72] : memref<400xf32, #tpu.memory_space<smem>>
    %1292 = vector.broadcast %1291 : f32 to vector<16x12xf32>
    %1293 = arith.mulf %1292, %1290 : vector<16x12xf32>
    %1294 = arith.addf %1277, %1293 : vector<16x12xf32>
    %c172 = arith.constant 172 : index
    %1295 = memref.load %arg3[%c172] : memref<400xf32, #tpu.memory_space<smem>>
    %1296 = vector.broadcast %1295 : f32 to vector<16x12xf32>
    %1297 = arith.mulf %1296, %1290 : vector<16x12xf32>
    %1298 = arith.addf %1281, %1297 : vector<16x12xf32>
    %c272 = arith.constant 272 : index
    %1299 = memref.load %arg3[%c272] : memref<400xf32, #tpu.memory_space<smem>>
    %1300 = vector.broadcast %1299 : f32 to vector<16x12xf32>
    %1301 = arith.mulf %1300, %1290 : vector<16x12xf32>
    %1302 = arith.addf %1285, %1301 : vector<16x12xf32>
    %c372 = arith.constant 372 : index
    %1303 = memref.load %arg3[%c372] : memref<400xf32, #tpu.memory_space<smem>>
    %1304 = vector.broadcast %1303 : f32 to vector<16x12xf32>
    %1305 = arith.mulf %1304, %1290 : vector<16x12xf32>
    %1306 = arith.addf %1289, %1305 : vector<16x12xf32>
    %1307 = vector.extract_strided_slice %1255 {offsets = [0, 3], sizes = [16, 12], strides = [1, 1]} : vector<16x16xf32> to vector<16x12xf32>
    %c73 = arith.constant 73 : index
    %1308 = memref.load %arg3[%c73] : memref<400xf32, #tpu.memory_space<smem>>
    %1309 = vector.broadcast %1308 : f32 to vector<16x12xf32>
    %1310 = arith.mulf %1309, %1307 : vector<16x12xf32>
    %1311 = arith.addf %1294, %1310 : vector<16x12xf32>
    %c173 = arith.constant 173 : index
    %1312 = memref.load %arg3[%c173] : memref<400xf32, #tpu.memory_space<smem>>
    %1313 = vector.broadcast %1312 : f32 to vector<16x12xf32>
    %1314 = arith.mulf %1313, %1307 : vector<16x12xf32>
    %1315 = arith.addf %1298, %1314 : vector<16x12xf32>
    %c273 = arith.constant 273 : index
    %1316 = memref.load %arg3[%c273] : memref<400xf32, #tpu.memory_space<smem>>
    %1317 = vector.broadcast %1316 : f32 to vector<16x12xf32>
    %1318 = arith.mulf %1317, %1307 : vector<16x12xf32>
    %1319 = arith.addf %1302, %1318 : vector<16x12xf32>
    %c373 = arith.constant 373 : index
    %1320 = memref.load %arg3[%c373] : memref<400xf32, #tpu.memory_space<smem>>
    %1321 = vector.broadcast %1320 : f32 to vector<16x12xf32>
    %1322 = arith.mulf %1321, %1307 : vector<16x12xf32>
    %1323 = arith.addf %1306, %1322 : vector<16x12xf32>
    %1324 = vector.extract_strided_slice %1255 {offsets = [0, 4], sizes = [16, 12], strides = [1, 1]} : vector<16x16xf32> to vector<16x12xf32>
    %c74 = arith.constant 74 : index
    %1325 = memref.load %arg3[%c74] : memref<400xf32, #tpu.memory_space<smem>>
    %1326 = vector.broadcast %1325 : f32 to vector<16x12xf32>
    %1327 = arith.mulf %1326, %1324 : vector<16x12xf32>
    %1328 = arith.addf %1311, %1327 : vector<16x12xf32>
    %c174 = arith.constant 174 : index
    %1329 = memref.load %arg3[%c174] : memref<400xf32, #tpu.memory_space<smem>>
    %1330 = vector.broadcast %1329 : f32 to vector<16x12xf32>
    %1331 = arith.mulf %1330, %1324 : vector<16x12xf32>
    %1332 = arith.addf %1315, %1331 : vector<16x12xf32>
    %c274 = arith.constant 274 : index
    %1333 = memref.load %arg3[%c274] : memref<400xf32, #tpu.memory_space<smem>>
    %1334 = vector.broadcast %1333 : f32 to vector<16x12xf32>
    %1335 = arith.mulf %1334, %1324 : vector<16x12xf32>
    %1336 = arith.addf %1319, %1335 : vector<16x12xf32>
    %c374 = arith.constant 374 : index
    %1337 = memref.load %arg3[%c374] : memref<400xf32, #tpu.memory_space<smem>>
    %1338 = vector.broadcast %1337 : f32 to vector<16x12xf32>
    %1339 = arith.mulf %1338, %1324 : vector<16x12xf32>
    %1340 = arith.addf %1323, %1339 : vector<16x12xf32>
    %c0_i32_58 = arith.constant 0 : i32
    %1341 = arith.addi %1, %c0_i32_58 : i32
    %c0_59 = arith.constant 0 : index
    %c3_60 = arith.constant 3 : index
    %1342 = arith.index_cast %1341 : i32 to index
    %c0_61 = arith.constant 0 : index
    %1343 = vector.load %arg2[%c0_59, %c3_60, %1342, %c0_61] : memref<1x4x20x16xf32, #tpu.memory_space<vmem>>, vector<1x1x16x16xf32>
    %1344 = vector.shape_cast %1343 : vector<1x1x16x16xf32> to vector<16x16xf32>
    %1345 = vector.extract_strided_slice %1344 {offsets = [0, 0], sizes = [16, 12], strides = [1, 1]} : vector<16x16xf32> to vector<16x12xf32>
    %c75 = arith.constant 75 : index
    %1346 = memref.load %arg3[%c75] : memref<400xf32, #tpu.memory_space<smem>>
    %1347 = vector.broadcast %1346 : f32 to vector<16x12xf32>
    %1348 = arith.mulf %1347, %1345 : vector<16x12xf32>
    %1349 = arith.addf %1328, %1348 : vector<16x12xf32>
    %c175 = arith.constant 175 : index
    %1350 = memref.load %arg3[%c175] : memref<400xf32, #tpu.memory_space<smem>>
    %1351 = vector.broadcast %1350 : f32 to vector<16x12xf32>
    %1352 = arith.mulf %1351, %1345 : vector<16x12xf32>
    %1353 = arith.addf %1332, %1352 : vector<16x12xf32>
    %c275 = arith.constant 275 : index
    %1354 = memref.load %arg3[%c275] : memref<400xf32, #tpu.memory_space<smem>>
    %1355 = vector.broadcast %1354 : f32 to vector<16x12xf32>
    %1356 = arith.mulf %1355, %1345 : vector<16x12xf32>
    %1357 = arith.addf %1336, %1356 : vector<16x12xf32>
    %c375 = arith.constant 375 : index
    %1358 = memref.load %arg3[%c375] : memref<400xf32, #tpu.memory_space<smem>>
    %1359 = vector.broadcast %1358 : f32 to vector<16x12xf32>
    %1360 = arith.mulf %1359, %1345 : vector<16x12xf32>
    %1361 = arith.addf %1340, %1360 : vector<16x12xf32>
    %1362 = vector.extract_strided_slice %1344 {offsets = [0, 1], sizes = [16, 12], strides = [1, 1]} : vector<16x16xf32> to vector<16x12xf32>
    %c76 = arith.constant 76 : index
    %1363 = memref.load %arg3[%c76] : memref<400xf32, #tpu.memory_space<smem>>
    %1364 = vector.broadcast %1363 : f32 to vector<16x12xf32>
    %1365 = arith.mulf %1364, %1362 : vector<16x12xf32>
    %1366 = arith.addf %1349, %1365 : vector<16x12xf32>
    %c176 = arith.constant 176 : index
    %1367 = memref.load %arg3[%c176] : memref<400xf32, #tpu.memory_space<smem>>
    %1368 = vector.broadcast %1367 : f32 to vector<16x12xf32>
    %1369 = arith.mulf %1368, %1362 : vector<16x12xf32>
    %1370 = arith.addf %1353, %1369 : vector<16x12xf32>
    %c276 = arith.constant 276 : index
    %1371 = memref.load %arg3[%c276] : memref<400xf32, #tpu.memory_space<smem>>
    %1372 = vector.broadcast %1371 : f32 to vector<16x12xf32>
    %1373 = arith.mulf %1372, %1362 : vector<16x12xf32>
    %1374 = arith.addf %1357, %1373 : vector<16x12xf32>
    %c376 = arith.constant 376 : index
    %1375 = memref.load %arg3[%c376] : memref<400xf32, #tpu.memory_space<smem>>
    %1376 = vector.broadcast %1375 : f32 to vector<16x12xf32>
    %1377 = arith.mulf %1376, %1362 : vector<16x12xf32>
    %1378 = arith.addf %1361, %1377 : vector<16x12xf32>
    %1379 = vector.extract_strided_slice %1344 {offsets = [0, 2], sizes = [16, 12], strides = [1, 1]} : vector<16x16xf32> to vector<16x12xf32>
    %c77 = arith.constant 77 : index
    %1380 = memref.load %arg3[%c77] : memref<400xf32, #tpu.memory_space<smem>>
    %1381 = vector.broadcast %1380 : f32 to vector<16x12xf32>
    %1382 = arith.mulf %1381, %1379 : vector<16x12xf32>
    %1383 = arith.addf %1366, %1382 : vector<16x12xf32>
    %c177 = arith.constant 177 : index
    %1384 = memref.load %arg3[%c177] : memref<400xf32, #tpu.memory_space<smem>>
    %1385 = vector.broadcast %1384 : f32 to vector<16x12xf32>
    %1386 = arith.mulf %1385, %1379 : vector<16x12xf32>
    %1387 = arith.addf %1370, %1386 : vector<16x12xf32>
    %c277 = arith.constant 277 : index
    %1388 = memref.load %arg3[%c277] : memref<400xf32, #tpu.memory_space<smem>>
    %1389 = vector.broadcast %1388 : f32 to vector<16x12xf32>
    %1390 = arith.mulf %1389, %1379 : vector<16x12xf32>
    %1391 = arith.addf %1374, %1390 : vector<16x12xf32>
    %c377 = arith.constant 377 : index
    %1392 = memref.load %arg3[%c377] : memref<400xf32, #tpu.memory_space<smem>>
    %1393 = vector.broadcast %1392 : f32 to vector<16x12xf32>
    %1394 = arith.mulf %1393, %1379 : vector<16x12xf32>
    %1395 = arith.addf %1378, %1394 : vector<16x12xf32>
    %1396 = vector.extract_strided_slice %1344 {offsets = [0, 3], sizes = [16, 12], strides = [1, 1]} : vector<16x16xf32> to vector<16x12xf32>
    %c78 = arith.constant 78 : index
    %1397 = memref.load %arg3[%c78] : memref<400xf32, #tpu.memory_space<smem>>
    %1398 = vector.broadcast %1397 : f32 to vector<16x12xf32>
    %1399 = arith.mulf %1398, %1396 : vector<16x12xf32>
    %1400 = arith.addf %1383, %1399 : vector<16x12xf32>
    %c178 = arith.constant 178 : index
    %1401 = memref.load %arg3[%c178] : memref<400xf32, #tpu.memory_space<smem>>
    %1402 = vector.broadcast %1401 : f32 to vector<16x12xf32>
    %1403 = arith.mulf %1402, %1396 : vector<16x12xf32>
    %1404 = arith.addf %1387, %1403 : vector<16x12xf32>
    %c278 = arith.constant 278 : index
    %1405 = memref.load %arg3[%c278] : memref<400xf32, #tpu.memory_space<smem>>
    %1406 = vector.broadcast %1405 : f32 to vector<16x12xf32>
    %1407 = arith.mulf %1406, %1396 : vector<16x12xf32>
    %1408 = arith.addf %1391, %1407 : vector<16x12xf32>
    %c378 = arith.constant 378 : index
    %1409 = memref.load %arg3[%c378] : memref<400xf32, #tpu.memory_space<smem>>
    %1410 = vector.broadcast %1409 : f32 to vector<16x12xf32>
    %1411 = arith.mulf %1410, %1396 : vector<16x12xf32>
    %1412 = arith.addf %1395, %1411 : vector<16x12xf32>
    %1413 = vector.extract_strided_slice %1344 {offsets = [0, 4], sizes = [16, 12], strides = [1, 1]} : vector<16x16xf32> to vector<16x12xf32>
    %c79 = arith.constant 79 : index
    %1414 = memref.load %arg3[%c79] : memref<400xf32, #tpu.memory_space<smem>>
    %1415 = vector.broadcast %1414 : f32 to vector<16x12xf32>
    %1416 = arith.mulf %1415, %1413 : vector<16x12xf32>
    %1417 = arith.addf %1400, %1416 : vector<16x12xf32>
    %c179 = arith.constant 179 : index
    %1418 = memref.load %arg3[%c179] : memref<400xf32, #tpu.memory_space<smem>>
    %1419 = vector.broadcast %1418 : f32 to vector<16x12xf32>
    %1420 = arith.mulf %1419, %1413 : vector<16x12xf32>
    %1421 = arith.addf %1404, %1420 : vector<16x12xf32>
    %c279 = arith.constant 279 : index
    %1422 = memref.load %arg3[%c279] : memref<400xf32, #tpu.memory_space<smem>>
    %1423 = vector.broadcast %1422 : f32 to vector<16x12xf32>
    %1424 = arith.mulf %1423, %1413 : vector<16x12xf32>
    %1425 = arith.addf %1408, %1424 : vector<16x12xf32>
    %c379 = arith.constant 379 : index
    %1426 = memref.load %arg3[%c379] : memref<400xf32, #tpu.memory_space<smem>>
    %1427 = vector.broadcast %1426 : f32 to vector<16x12xf32>
    %1428 = arith.mulf %1427, %1413 : vector<16x12xf32>
    %1429 = arith.addf %1412, %1428 : vector<16x12xf32>
    %c1_i32_62 = arith.constant 1 : i32
    %1430 = arith.addi %1, %c1_i32_62 : i32
    %c0_63 = arith.constant 0 : index
    %c3_64 = arith.constant 3 : index
    %1431 = arith.index_cast %1430 : i32 to index
    %c0_65 = arith.constant 0 : index
    %1432 = vector.load %arg2[%c0_63, %c3_64, %1431, %c0_65] : memref<1x4x20x16xf32, #tpu.memory_space<vmem>>, vector<1x1x16x16xf32>
    %1433 = vector.shape_cast %1432 : vector<1x1x16x16xf32> to vector<16x16xf32>
    %1434 = vector.extract_strided_slice %1433 {offsets = [0, 0], sizes = [16, 12], strides = [1, 1]} : vector<16x16xf32> to vector<16x12xf32>
    %c80 = arith.constant 80 : index
    %1435 = memref.load %arg3[%c80] : memref<400xf32, #tpu.memory_space<smem>>
    %1436 = vector.broadcast %1435 : f32 to vector<16x12xf32>
    %1437 = arith.mulf %1436, %1434 : vector<16x12xf32>
    %1438 = arith.addf %1417, %1437 : vector<16x12xf32>
    %c180 = arith.constant 180 : index
    %1439 = memref.load %arg3[%c180] : memref<400xf32, #tpu.memory_space<smem>>
    %1440 = vector.broadcast %1439 : f32 to vector<16x12xf32>
    %1441 = arith.mulf %1440, %1434 : vector<16x12xf32>
    %1442 = arith.addf %1421, %1441 : vector<16x12xf32>
    %c280 = arith.constant 280 : index
    %1443 = memref.load %arg3[%c280] : memref<400xf32, #tpu.memory_space<smem>>
    %1444 = vector.broadcast %1443 : f32 to vector<16x12xf32>
    %1445 = arith.mulf %1444, %1434 : vector<16x12xf32>
    %1446 = arith.addf %1425, %1445 : vector<16x12xf32>
    %c380 = arith.constant 380 : index
    %1447 = memref.load %arg3[%c380] : memref<400xf32, #tpu.memory_space<smem>>
    %1448 = vector.broadcast %1447 : f32 to vector<16x12xf32>
    %1449 = arith.mulf %1448, %1434 : vector<16x12xf32>
    %1450 = arith.addf %1429, %1449 : vector<16x12xf32>
    %1451 = vector.extract_strided_slice %1433 {offsets = [0, 1], sizes = [16, 12], strides = [1, 1]} : vector<16x16xf32> to vector<16x12xf32>
    %c81 = arith.constant 81 : index
    %1452 = memref.load %arg3[%c81] : memref<400xf32, #tpu.memory_space<smem>>
    %1453 = vector.broadcast %1452 : f32 to vector<16x12xf32>
    %1454 = arith.mulf %1453, %1451 : vector<16x12xf32>
    %1455 = arith.addf %1438, %1454 : vector<16x12xf32>
    %c181 = arith.constant 181 : index
    %1456 = memref.load %arg3[%c181] : memref<400xf32, #tpu.memory_space<smem>>
    %1457 = vector.broadcast %1456 : f32 to vector<16x12xf32>
    %1458 = arith.mulf %1457, %1451 : vector<16x12xf32>
    %1459 = arith.addf %1442, %1458 : vector<16x12xf32>
    %c281 = arith.constant 281 : index
    %1460 = memref.load %arg3[%c281] : memref<400xf32, #tpu.memory_space<smem>>
    %1461 = vector.broadcast %1460 : f32 to vector<16x12xf32>
    %1462 = arith.mulf %1461, %1451 : vector<16x12xf32>
    %1463 = arith.addf %1446, %1462 : vector<16x12xf32>
    %c381 = arith.constant 381 : index
    %1464 = memref.load %arg3[%c381] : memref<400xf32, #tpu.memory_space<smem>>
    %1465 = vector.broadcast %1464 : f32 to vector<16x12xf32>
    %1466 = arith.mulf %1465, %1451 : vector<16x12xf32>
    %1467 = arith.addf %1450, %1466 : vector<16x12xf32>
    %1468 = vector.extract_strided_slice %1433 {offsets = [0, 2], sizes = [16, 12], strides = [1, 1]} : vector<16x16xf32> to vector<16x12xf32>
    %c82 = arith.constant 82 : index
    %1469 = memref.load %arg3[%c82] : memref<400xf32, #tpu.memory_space<smem>>
    %1470 = vector.broadcast %1469 : f32 to vector<16x12xf32>
    %1471 = arith.mulf %1470, %1468 : vector<16x12xf32>
    %1472 = arith.addf %1455, %1471 : vector<16x12xf32>
    %c182 = arith.constant 182 : index
    %1473 = memref.load %arg3[%c182] : memref<400xf32, #tpu.memory_space<smem>>
    %1474 = vector.broadcast %1473 : f32 to vector<16x12xf32>
    %1475 = arith.mulf %1474, %1468 : vector<16x12xf32>
    %1476 = arith.addf %1459, %1475 : vector<16x12xf32>
    %c282 = arith.constant 282 : index
    %1477 = memref.load %arg3[%c282] : memref<400xf32, #tpu.memory_space<smem>>
    %1478 = vector.broadcast %1477 : f32 to vector<16x12xf32>
    %1479 = arith.mulf %1478, %1468 : vector<16x12xf32>
    %1480 = arith.addf %1463, %1479 : vector<16x12xf32>
    %c382 = arith.constant 382 : index
    %1481 = memref.load %arg3[%c382] : memref<400xf32, #tpu.memory_space<smem>>
    %1482 = vector.broadcast %1481 : f32 to vector<16x12xf32>
    %1483 = arith.mulf %1482, %1468 : vector<16x12xf32>
    %1484 = arith.addf %1467, %1483 : vector<16x12xf32>
    %1485 = vector.extract_strided_slice %1433 {offsets = [0, 3], sizes = [16, 12], strides = [1, 1]} : vector<16x16xf32> to vector<16x12xf32>
    %c83 = arith.constant 83 : index
    %1486 = memref.load %arg3[%c83] : memref<400xf32, #tpu.memory_space<smem>>
    %1487 = vector.broadcast %1486 : f32 to vector<16x12xf32>
    %1488 = arith.mulf %1487, %1485 : vector<16x12xf32>
    %1489 = arith.addf %1472, %1488 : vector<16x12xf32>
    %c183 = arith.constant 183 : index
    %1490 = memref.load %arg3[%c183] : memref<400xf32, #tpu.memory_space<smem>>
    %1491 = vector.broadcast %1490 : f32 to vector<16x12xf32>
    %1492 = arith.mulf %1491, %1485 : vector<16x12xf32>
    %1493 = arith.addf %1476, %1492 : vector<16x12xf32>
    %c283 = arith.constant 283 : index
    %1494 = memref.load %arg3[%c283] : memref<400xf32, #tpu.memory_space<smem>>
    %1495 = vector.broadcast %1494 : f32 to vector<16x12xf32>
    %1496 = arith.mulf %1495, %1485 : vector<16x12xf32>
    %1497 = arith.addf %1480, %1496 : vector<16x12xf32>
    %c383 = arith.constant 383 : index
    %1498 = memref.load %arg3[%c383] : memref<400xf32, #tpu.memory_space<smem>>
    %1499 = vector.broadcast %1498 : f32 to vector<16x12xf32>
    %1500 = arith.mulf %1499, %1485 : vector<16x12xf32>
    %1501 = arith.addf %1484, %1500 : vector<16x12xf32>
    %1502 = vector.extract_strided_slice %1433 {offsets = [0, 4], sizes = [16, 12], strides = [1, 1]} : vector<16x16xf32> to vector<16x12xf32>
    %c84 = arith.constant 84 : index
    %1503 = memref.load %arg3[%c84] : memref<400xf32, #tpu.memory_space<smem>>
    %1504 = vector.broadcast %1503 : f32 to vector<16x12xf32>
    %1505 = arith.mulf %1504, %1502 : vector<16x12xf32>
    %1506 = arith.addf %1489, %1505 : vector<16x12xf32>
    %c184 = arith.constant 184 : index
    %1507 = memref.load %arg3[%c184] : memref<400xf32, #tpu.memory_space<smem>>
    %1508 = vector.broadcast %1507 : f32 to vector<16x12xf32>
    %1509 = arith.mulf %1508, %1502 : vector<16x12xf32>
    %1510 = arith.addf %1493, %1509 : vector<16x12xf32>
    %c284 = arith.constant 284 : index
    %1511 = memref.load %arg3[%c284] : memref<400xf32, #tpu.memory_space<smem>>
    %1512 = vector.broadcast %1511 : f32 to vector<16x12xf32>
    %1513 = arith.mulf %1512, %1502 : vector<16x12xf32>
    %1514 = arith.addf %1497, %1513 : vector<16x12xf32>
    %c384 = arith.constant 384 : index
    %1515 = memref.load %arg3[%c384] : memref<400xf32, #tpu.memory_space<smem>>
    %1516 = vector.broadcast %1515 : f32 to vector<16x12xf32>
    %1517 = arith.mulf %1516, %1502 : vector<16x12xf32>
    %1518 = arith.addf %1501, %1517 : vector<16x12xf32>
    %c2_i32_66 = arith.constant 2 : i32
    %1519 = arith.addi %1, %c2_i32_66 : i32
    %c0_67 = arith.constant 0 : index
    %c3_68 = arith.constant 3 : index
    %1520 = arith.index_cast %1519 : i32 to index
    %c0_69 = arith.constant 0 : index
    %1521 = vector.load %arg2[%c0_67, %c3_68, %1520, %c0_69] : memref<1x4x20x16xf32, #tpu.memory_space<vmem>>, vector<1x1x16x16xf32>
    %1522 = vector.shape_cast %1521 : vector<1x1x16x16xf32> to vector<16x16xf32>
    %1523 = vector.extract_strided_slice %1522 {offsets = [0, 0], sizes = [16, 12], strides = [1, 1]} : vector<16x16xf32> to vector<16x12xf32>
    %c85 = arith.constant 85 : index
    %1524 = memref.load %arg3[%c85] : memref<400xf32, #tpu.memory_space<smem>>
    %1525 = vector.broadcast %1524 : f32 to vector<16x12xf32>
    %1526 = arith.mulf %1525, %1523 : vector<16x12xf32>
    %1527 = arith.addf %1506, %1526 : vector<16x12xf32>
    %c185 = arith.constant 185 : index
    %1528 = memref.load %arg3[%c185] : memref<400xf32, #tpu.memory_space<smem>>
    %1529 = vector.broadcast %1528 : f32 to vector<16x12xf32>
    %1530 = arith.mulf %1529, %1523 : vector<16x12xf32>
    %1531 = arith.addf %1510, %1530 : vector<16x12xf32>
    %c285 = arith.constant 285 : index
    %1532 = memref.load %arg3[%c285] : memref<400xf32, #tpu.memory_space<smem>>
    %1533 = vector.broadcast %1532 : f32 to vector<16x12xf32>
    %1534 = arith.mulf %1533, %1523 : vector<16x12xf32>
    %1535 = arith.addf %1514, %1534 : vector<16x12xf32>
    %c385 = arith.constant 385 : index
    %1536 = memref.load %arg3[%c385] : memref<400xf32, #tpu.memory_space<smem>>
    %1537 = vector.broadcast %1536 : f32 to vector<16x12xf32>
    %1538 = arith.mulf %1537, %1523 : vector<16x12xf32>
    %1539 = arith.addf %1518, %1538 : vector<16x12xf32>
    %1540 = vector.extract_strided_slice %1522 {offsets = [0, 1], sizes = [16, 12], strides = [1, 1]} : vector<16x16xf32> to vector<16x12xf32>
    %c86 = arith.constant 86 : index
    %1541 = memref.load %arg3[%c86] : memref<400xf32, #tpu.memory_space<smem>>
    %1542 = vector.broadcast %1541 : f32 to vector<16x12xf32>
    %1543 = arith.mulf %1542, %1540 : vector<16x12xf32>
    %1544 = arith.addf %1527, %1543 : vector<16x12xf32>
    %c186 = arith.constant 186 : index
    %1545 = memref.load %arg3[%c186] : memref<400xf32, #tpu.memory_space<smem>>
    %1546 = vector.broadcast %1545 : f32 to vector<16x12xf32>
    %1547 = arith.mulf %1546, %1540 : vector<16x12xf32>
    %1548 = arith.addf %1531, %1547 : vector<16x12xf32>
    %c286 = arith.constant 286 : index
    %1549 = memref.load %arg3[%c286] : memref<400xf32, #tpu.memory_space<smem>>
    %1550 = vector.broadcast %1549 : f32 to vector<16x12xf32>
    %1551 = arith.mulf %1550, %1540 : vector<16x12xf32>
    %1552 = arith.addf %1535, %1551 : vector<16x12xf32>
    %c386 = arith.constant 386 : index
    %1553 = memref.load %arg3[%c386] : memref<400xf32, #tpu.memory_space<smem>>
    %1554 = vector.broadcast %1553 : f32 to vector<16x12xf32>
    %1555 = arith.mulf %1554, %1540 : vector<16x12xf32>
    %1556 = arith.addf %1539, %1555 : vector<16x12xf32>
    %1557 = vector.extract_strided_slice %1522 {offsets = [0, 2], sizes = [16, 12], strides = [1, 1]} : vector<16x16xf32> to vector<16x12xf32>
    %c87 = arith.constant 87 : index
    %1558 = memref.load %arg3[%c87] : memref<400xf32, #tpu.memory_space<smem>>
    %1559 = vector.broadcast %1558 : f32 to vector<16x12xf32>
    %1560 = arith.mulf %1559, %1557 : vector<16x12xf32>
    %1561 = arith.addf %1544, %1560 : vector<16x12xf32>
    %c187 = arith.constant 187 : index
    %1562 = memref.load %arg3[%c187] : memref<400xf32, #tpu.memory_space<smem>>
    %1563 = vector.broadcast %1562 : f32 to vector<16x12xf32>
    %1564 = arith.mulf %1563, %1557 : vector<16x12xf32>
    %1565 = arith.addf %1548, %1564 : vector<16x12xf32>
    %c287 = arith.constant 287 : index
    %1566 = memref.load %arg3[%c287] : memref<400xf32, #tpu.memory_space<smem>>
    %1567 = vector.broadcast %1566 : f32 to vector<16x12xf32>
    %1568 = arith.mulf %1567, %1557 : vector<16x12xf32>
    %1569 = arith.addf %1552, %1568 : vector<16x12xf32>
    %c387 = arith.constant 387 : index
    %1570 = memref.load %arg3[%c387] : memref<400xf32, #tpu.memory_space<smem>>
    %1571 = vector.broadcast %1570 : f32 to vector<16x12xf32>
    %1572 = arith.mulf %1571, %1557 : vector<16x12xf32>
    %1573 = arith.addf %1556, %1572 : vector<16x12xf32>
    %1574 = vector.extract_strided_slice %1522 {offsets = [0, 3], sizes = [16, 12], strides = [1, 1]} : vector<16x16xf32> to vector<16x12xf32>
    %c88 = arith.constant 88 : index
    %1575 = memref.load %arg3[%c88] : memref<400xf32, #tpu.memory_space<smem>>
    %1576 = vector.broadcast %1575 : f32 to vector<16x12xf32>
    %1577 = arith.mulf %1576, %1574 : vector<16x12xf32>
    %1578 = arith.addf %1561, %1577 : vector<16x12xf32>
    %c188 = arith.constant 188 : index
    %1579 = memref.load %arg3[%c188] : memref<400xf32, #tpu.memory_space<smem>>
    %1580 = vector.broadcast %1579 : f32 to vector<16x12xf32>
    %1581 = arith.mulf %1580, %1574 : vector<16x12xf32>
    %1582 = arith.addf %1565, %1581 : vector<16x12xf32>
    %c288 = arith.constant 288 : index
    %1583 = memref.load %arg3[%c288] : memref<400xf32, #tpu.memory_space<smem>>
    %1584 = vector.broadcast %1583 : f32 to vector<16x12xf32>
    %1585 = arith.mulf %1584, %1574 : vector<16x12xf32>
    %1586 = arith.addf %1569, %1585 : vector<16x12xf32>
    %c388 = arith.constant 388 : index
    %1587 = memref.load %arg3[%c388] : memref<400xf32, #tpu.memory_space<smem>>
    %1588 = vector.broadcast %1587 : f32 to vector<16x12xf32>
    %1589 = arith.mulf %1588, %1574 : vector<16x12xf32>
    %1590 = arith.addf %1573, %1589 : vector<16x12xf32>
    %1591 = vector.extract_strided_slice %1522 {offsets = [0, 4], sizes = [16, 12], strides = [1, 1]} : vector<16x16xf32> to vector<16x12xf32>
    %c89 = arith.constant 89 : index
    %1592 = memref.load %arg3[%c89] : memref<400xf32, #tpu.memory_space<smem>>
    %1593 = vector.broadcast %1592 : f32 to vector<16x12xf32>
    %1594 = arith.mulf %1593, %1591 : vector<16x12xf32>
    %1595 = arith.addf %1578, %1594 : vector<16x12xf32>
    %c189 = arith.constant 189 : index
    %1596 = memref.load %arg3[%c189] : memref<400xf32, #tpu.memory_space<smem>>
    %1597 = vector.broadcast %1596 : f32 to vector<16x12xf32>
    %1598 = arith.mulf %1597, %1591 : vector<16x12xf32>
    %1599 = arith.addf %1582, %1598 : vector<16x12xf32>
    %c289 = arith.constant 289 : index
    %1600 = memref.load %arg3[%c289] : memref<400xf32, #tpu.memory_space<smem>>
    %1601 = vector.broadcast %1600 : f32 to vector<16x12xf32>
    %1602 = arith.mulf %1601, %1591 : vector<16x12xf32>
    %1603 = arith.addf %1586, %1602 : vector<16x12xf32>
    %c389 = arith.constant 389 : index
    %1604 = memref.load %arg3[%c389] : memref<400xf32, #tpu.memory_space<smem>>
    %1605 = vector.broadcast %1604 : f32 to vector<16x12xf32>
    %1606 = arith.mulf %1605, %1591 : vector<16x12xf32>
    %1607 = arith.addf %1590, %1606 : vector<16x12xf32>
    %c3_i32_70 = arith.constant 3 : i32
    %1608 = arith.addi %1, %c3_i32_70 : i32
    %c0_71 = arith.constant 0 : index
    %c3_72 = arith.constant 3 : index
    %1609 = arith.index_cast %1608 : i32 to index
    %c0_73 = arith.constant 0 : index
    %1610 = vector.load %arg2[%c0_71, %c3_72, %1609, %c0_73] : memref<1x4x20x16xf32, #tpu.memory_space<vmem>>, vector<1x1x16x16xf32>
    %1611 = vector.shape_cast %1610 : vector<1x1x16x16xf32> to vector<16x16xf32>
    %1612 = vector.extract_strided_slice %1611 {offsets = [0, 0], sizes = [16, 12], strides = [1, 1]} : vector<16x16xf32> to vector<16x12xf32>
    %c90 = arith.constant 90 : index
    %1613 = memref.load %arg3[%c90] : memref<400xf32, #tpu.memory_space<smem>>
    %1614 = vector.broadcast %1613 : f32 to vector<16x12xf32>
    %1615 = arith.mulf %1614, %1612 : vector<16x12xf32>
    %1616 = arith.addf %1595, %1615 : vector<16x12xf32>
    %c190 = arith.constant 190 : index
    %1617 = memref.load %arg3[%c190] : memref<400xf32, #tpu.memory_space<smem>>
    %1618 = vector.broadcast %1617 : f32 to vector<16x12xf32>
    %1619 = arith.mulf %1618, %1612 : vector<16x12xf32>
    %1620 = arith.addf %1599, %1619 : vector<16x12xf32>
    %c290 = arith.constant 290 : index
    %1621 = memref.load %arg3[%c290] : memref<400xf32, #tpu.memory_space<smem>>
    %1622 = vector.broadcast %1621 : f32 to vector<16x12xf32>
    %1623 = arith.mulf %1622, %1612 : vector<16x12xf32>
    %1624 = arith.addf %1603, %1623 : vector<16x12xf32>
    %c390 = arith.constant 390 : index
    %1625 = memref.load %arg3[%c390] : memref<400xf32, #tpu.memory_space<smem>>
    %1626 = vector.broadcast %1625 : f32 to vector<16x12xf32>
    %1627 = arith.mulf %1626, %1612 : vector<16x12xf32>
    %1628 = arith.addf %1607, %1627 : vector<16x12xf32>
    %1629 = vector.extract_strided_slice %1611 {offsets = [0, 1], sizes = [16, 12], strides = [1, 1]} : vector<16x16xf32> to vector<16x12xf32>
    %c91 = arith.constant 91 : index
    %1630 = memref.load %arg3[%c91] : memref<400xf32, #tpu.memory_space<smem>>
    %1631 = vector.broadcast %1630 : f32 to vector<16x12xf32>
    %1632 = arith.mulf %1631, %1629 : vector<16x12xf32>
    %1633 = arith.addf %1616, %1632 : vector<16x12xf32>
    %c191 = arith.constant 191 : index
    %1634 = memref.load %arg3[%c191] : memref<400xf32, #tpu.memory_space<smem>>
    %1635 = vector.broadcast %1634 : f32 to vector<16x12xf32>
    %1636 = arith.mulf %1635, %1629 : vector<16x12xf32>
    %1637 = arith.addf %1620, %1636 : vector<16x12xf32>
    %c291 = arith.constant 291 : index
    %1638 = memref.load %arg3[%c291] : memref<400xf32, #tpu.memory_space<smem>>
    %1639 = vector.broadcast %1638 : f32 to vector<16x12xf32>
    %1640 = arith.mulf %1639, %1629 : vector<16x12xf32>
    %1641 = arith.addf %1624, %1640 : vector<16x12xf32>
    %c391 = arith.constant 391 : index
    %1642 = memref.load %arg3[%c391] : memref<400xf32, #tpu.memory_space<smem>>
    %1643 = vector.broadcast %1642 : f32 to vector<16x12xf32>
    %1644 = arith.mulf %1643, %1629 : vector<16x12xf32>
    %1645 = arith.addf %1628, %1644 : vector<16x12xf32>
    %1646 = vector.extract_strided_slice %1611 {offsets = [0, 2], sizes = [16, 12], strides = [1, 1]} : vector<16x16xf32> to vector<16x12xf32>
    %c92 = arith.constant 92 : index
    %1647 = memref.load %arg3[%c92] : memref<400xf32, #tpu.memory_space<smem>>
    %1648 = vector.broadcast %1647 : f32 to vector<16x12xf32>
    %1649 = arith.mulf %1648, %1646 : vector<16x12xf32>
    %1650 = arith.addf %1633, %1649 : vector<16x12xf32>
    %c192 = arith.constant 192 : index
    %1651 = memref.load %arg3[%c192] : memref<400xf32, #tpu.memory_space<smem>>
    %1652 = vector.broadcast %1651 : f32 to vector<16x12xf32>
    %1653 = arith.mulf %1652, %1646 : vector<16x12xf32>
    %1654 = arith.addf %1637, %1653 : vector<16x12xf32>
    %c292 = arith.constant 292 : index
    %1655 = memref.load %arg3[%c292] : memref<400xf32, #tpu.memory_space<smem>>
    %1656 = vector.broadcast %1655 : f32 to vector<16x12xf32>
    %1657 = arith.mulf %1656, %1646 : vector<16x12xf32>
    %1658 = arith.addf %1641, %1657 : vector<16x12xf32>
    %c392 = arith.constant 392 : index
    %1659 = memref.load %arg3[%c392] : memref<400xf32, #tpu.memory_space<smem>>
    %1660 = vector.broadcast %1659 : f32 to vector<16x12xf32>
    %1661 = arith.mulf %1660, %1646 : vector<16x12xf32>
    %1662 = arith.addf %1645, %1661 : vector<16x12xf32>
    %1663 = vector.extract_strided_slice %1611 {offsets = [0, 3], sizes = [16, 12], strides = [1, 1]} : vector<16x16xf32> to vector<16x12xf32>
    %c93 = arith.constant 93 : index
    %1664 = memref.load %arg3[%c93] : memref<400xf32, #tpu.memory_space<smem>>
    %1665 = vector.broadcast %1664 : f32 to vector<16x12xf32>
    %1666 = arith.mulf %1665, %1663 : vector<16x12xf32>
    %1667 = arith.addf %1650, %1666 : vector<16x12xf32>
    %c193 = arith.constant 193 : index
    %1668 = memref.load %arg3[%c193] : memref<400xf32, #tpu.memory_space<smem>>
    %1669 = vector.broadcast %1668 : f32 to vector<16x12xf32>
    %1670 = arith.mulf %1669, %1663 : vector<16x12xf32>
    %1671 = arith.addf %1654, %1670 : vector<16x12xf32>
    %c293 = arith.constant 293 : index
    %1672 = memref.load %arg3[%c293] : memref<400xf32, #tpu.memory_space<smem>>
    %1673 = vector.broadcast %1672 : f32 to vector<16x12xf32>
    %1674 = arith.mulf %1673, %1663 : vector<16x12xf32>
    %1675 = arith.addf %1658, %1674 : vector<16x12xf32>
    %c393 = arith.constant 393 : index
    %1676 = memref.load %arg3[%c393] : memref<400xf32, #tpu.memory_space<smem>>
    %1677 = vector.broadcast %1676 : f32 to vector<16x12xf32>
    %1678 = arith.mulf %1677, %1663 : vector<16x12xf32>
    %1679 = arith.addf %1662, %1678 : vector<16x12xf32>
    %1680 = vector.extract_strided_slice %1611 {offsets = [0, 4], sizes = [16, 12], strides = [1, 1]} : vector<16x16xf32> to vector<16x12xf32>
    %c94 = arith.constant 94 : index
    %1681 = memref.load %arg3[%c94] : memref<400xf32, #tpu.memory_space<smem>>
    %1682 = vector.broadcast %1681 : f32 to vector<16x12xf32>
    %1683 = arith.mulf %1682, %1680 : vector<16x12xf32>
    %1684 = arith.addf %1667, %1683 : vector<16x12xf32>
    %c194 = arith.constant 194 : index
    %1685 = memref.load %arg3[%c194] : memref<400xf32, #tpu.memory_space<smem>>
    %1686 = vector.broadcast %1685 : f32 to vector<16x12xf32>
    %1687 = arith.mulf %1686, %1680 : vector<16x12xf32>
    %1688 = arith.addf %1671, %1687 : vector<16x12xf32>
    %c294 = arith.constant 294 : index
    %1689 = memref.load %arg3[%c294] : memref<400xf32, #tpu.memory_space<smem>>
    %1690 = vector.broadcast %1689 : f32 to vector<16x12xf32>
    %1691 = arith.mulf %1690, %1680 : vector<16x12xf32>
    %1692 = arith.addf %1675, %1691 : vector<16x12xf32>
    %c394 = arith.constant 394 : index
    %1693 = memref.load %arg3[%c394] : memref<400xf32, #tpu.memory_space<smem>>
    %1694 = vector.broadcast %1693 : f32 to vector<16x12xf32>
    %1695 = arith.mulf %1694, %1680 : vector<16x12xf32>
    %1696 = arith.addf %1679, %1695 : vector<16x12xf32>
    %c4_i32_74 = arith.constant 4 : i32
    %1697 = arith.addi %1, %c4_i32_74 : i32
    %c0_75 = arith.constant 0 : index
    %c3_76 = arith.constant 3 : index
    %1698 = arith.index_cast %1697 : i32 to index
    %c0_77 = arith.constant 0 : index
    %1699 = vector.load %arg2[%c0_75, %c3_76, %1698, %c0_77] : memref<1x4x20x16xf32, #tpu.memory_space<vmem>>, vector<1x1x16x16xf32>
    %1700 = vector.shape_cast %1699 : vector<1x1x16x16xf32> to vector<16x16xf32>
    %1701 = vector.extract_strided_slice %1700 {offsets = [0, 0], sizes = [16, 12], strides = [1, 1]} : vector<16x16xf32> to vector<16x12xf32>
    %c95 = arith.constant 95 : index
    %1702 = memref.load %arg3[%c95] : memref<400xf32, #tpu.memory_space<smem>>
    %1703 = vector.broadcast %1702 : f32 to vector<16x12xf32>
    %1704 = arith.mulf %1703, %1701 : vector<16x12xf32>
    %1705 = arith.addf %1684, %1704 : vector<16x12xf32>
    %c195 = arith.constant 195 : index
    %1706 = memref.load %arg3[%c195] : memref<400xf32, #tpu.memory_space<smem>>
    %1707 = vector.broadcast %1706 : f32 to vector<16x12xf32>
    %1708 = arith.mulf %1707, %1701 : vector<16x12xf32>
    %1709 = arith.addf %1688, %1708 : vector<16x12xf32>
    %c295 = arith.constant 295 : index
    %1710 = memref.load %arg3[%c295] : memref<400xf32, #tpu.memory_space<smem>>
    %1711 = vector.broadcast %1710 : f32 to vector<16x12xf32>
    %1712 = arith.mulf %1711, %1701 : vector<16x12xf32>
    %1713 = arith.addf %1692, %1712 : vector<16x12xf32>
    %c395 = arith.constant 395 : index
    %1714 = memref.load %arg3[%c395] : memref<400xf32, #tpu.memory_space<smem>>
    %1715 = vector.broadcast %1714 : f32 to vector<16x12xf32>
    %1716 = arith.mulf %1715, %1701 : vector<16x12xf32>
    %1717 = arith.addf %1696, %1716 : vector<16x12xf32>
    %1718 = vector.extract_strided_slice %1700 {offsets = [0, 1], sizes = [16, 12], strides = [1, 1]} : vector<16x16xf32> to vector<16x12xf32>
    %c96 = arith.constant 96 : index
    %1719 = memref.load %arg3[%c96] : memref<400xf32, #tpu.memory_space<smem>>
    %1720 = vector.broadcast %1719 : f32 to vector<16x12xf32>
    %1721 = arith.mulf %1720, %1718 : vector<16x12xf32>
    %1722 = arith.addf %1705, %1721 : vector<16x12xf32>
    %c196 = arith.constant 196 : index
    %1723 = memref.load %arg3[%c196] : memref<400xf32, #tpu.memory_space<smem>>
    %1724 = vector.broadcast %1723 : f32 to vector<16x12xf32>
    %1725 = arith.mulf %1724, %1718 : vector<16x12xf32>
    %1726 = arith.addf %1709, %1725 : vector<16x12xf32>
    %c296 = arith.constant 296 : index
    %1727 = memref.load %arg3[%c296] : memref<400xf32, #tpu.memory_space<smem>>
    %1728 = vector.broadcast %1727 : f32 to vector<16x12xf32>
    %1729 = arith.mulf %1728, %1718 : vector<16x12xf32>
    %1730 = arith.addf %1713, %1729 : vector<16x12xf32>
    %c396 = arith.constant 396 : index
    %1731 = memref.load %arg3[%c396] : memref<400xf32, #tpu.memory_space<smem>>
    %1732 = vector.broadcast %1731 : f32 to vector<16x12xf32>
    %1733 = arith.mulf %1732, %1718 : vector<16x12xf32>
    %1734 = arith.addf %1717, %1733 : vector<16x12xf32>
    %1735 = vector.extract_strided_slice %1700 {offsets = [0, 2], sizes = [16, 12], strides = [1, 1]} : vector<16x16xf32> to vector<16x12xf32>
    %c97 = arith.constant 97 : index
    %1736 = memref.load %arg3[%c97] : memref<400xf32, #tpu.memory_space<smem>>
    %1737 = vector.broadcast %1736 : f32 to vector<16x12xf32>
    %1738 = arith.mulf %1737, %1735 : vector<16x12xf32>
    %1739 = arith.addf %1722, %1738 : vector<16x12xf32>
    %c197 = arith.constant 197 : index
    %1740 = memref.load %arg3[%c197] : memref<400xf32, #tpu.memory_space<smem>>
    %1741 = vector.broadcast %1740 : f32 to vector<16x12xf32>
    %1742 = arith.mulf %1741, %1735 : vector<16x12xf32>
    %1743 = arith.addf %1726, %1742 : vector<16x12xf32>
    %c297 = arith.constant 297 : index
    %1744 = memref.load %arg3[%c297] : memref<400xf32, #tpu.memory_space<smem>>
    %1745 = vector.broadcast %1744 : f32 to vector<16x12xf32>
    %1746 = arith.mulf %1745, %1735 : vector<16x12xf32>
    %1747 = arith.addf %1730, %1746 : vector<16x12xf32>
    %c397 = arith.constant 397 : index
    %1748 = memref.load %arg3[%c397] : memref<400xf32, #tpu.memory_space<smem>>
    %1749 = vector.broadcast %1748 : f32 to vector<16x12xf32>
    %1750 = arith.mulf %1749, %1735 : vector<16x12xf32>
    %1751 = arith.addf %1734, %1750 : vector<16x12xf32>
    %1752 = vector.extract_strided_slice %1700 {offsets = [0, 3], sizes = [16, 12], strides = [1, 1]} : vector<16x16xf32> to vector<16x12xf32>
    %c98 = arith.constant 98 : index
    %1753 = memref.load %arg3[%c98] : memref<400xf32, #tpu.memory_space<smem>>
    %1754 = vector.broadcast %1753 : f32 to vector<16x12xf32>
    %1755 = arith.mulf %1754, %1752 : vector<16x12xf32>
    %1756 = arith.addf %1739, %1755 : vector<16x12xf32>
    %c198 = arith.constant 198 : index
    %1757 = memref.load %arg3[%c198] : memref<400xf32, #tpu.memory_space<smem>>
    %1758 = vector.broadcast %1757 : f32 to vector<16x12xf32>
    %1759 = arith.mulf %1758, %1752 : vector<16x12xf32>
    %1760 = arith.addf %1743, %1759 : vector<16x12xf32>
    %c298 = arith.constant 298 : index
    %1761 = memref.load %arg3[%c298] : memref<400xf32, #tpu.memory_space<smem>>
    %1762 = vector.broadcast %1761 : f32 to vector<16x12xf32>
    %1763 = arith.mulf %1762, %1752 : vector<16x12xf32>
    %1764 = arith.addf %1747, %1763 : vector<16x12xf32>
    %c398 = arith.constant 398 : index
    %1765 = memref.load %arg3[%c398] : memref<400xf32, #tpu.memory_space<smem>>
    %1766 = vector.broadcast %1765 : f32 to vector<16x12xf32>
    %1767 = arith.mulf %1766, %1752 : vector<16x12xf32>
    %1768 = arith.addf %1751, %1767 : vector<16x12xf32>
    %1769 = vector.extract_strided_slice %1700 {offsets = [0, 4], sizes = [16, 12], strides = [1, 1]} : vector<16x16xf32> to vector<16x12xf32>
    %c99 = arith.constant 99 : index
    %1770 = memref.load %arg3[%c99] : memref<400xf32, #tpu.memory_space<smem>>
    %1771 = vector.broadcast %1770 : f32 to vector<16x12xf32>
    %1772 = arith.mulf %1771, %1769 : vector<16x12xf32>
    %1773 = arith.addf %1756, %1772 : vector<16x12xf32>
    %c199 = arith.constant 199 : index
    %1774 = memref.load %arg3[%c199] : memref<400xf32, #tpu.memory_space<smem>>
    %1775 = vector.broadcast %1774 : f32 to vector<16x12xf32>
    %1776 = arith.mulf %1775, %1769 : vector<16x12xf32>
    %1777 = arith.addf %1760, %1776 : vector<16x12xf32>
    %c299 = arith.constant 299 : index
    %1778 = memref.load %arg3[%c299] : memref<400xf32, #tpu.memory_space<smem>>
    %1779 = vector.broadcast %1778 : f32 to vector<16x12xf32>
    %1780 = arith.mulf %1779, %1769 : vector<16x12xf32>
    %1781 = arith.addf %1764, %1780 : vector<16x12xf32>
    %c399 = arith.constant 399 : index
    %1782 = memref.load %arg3[%c399] : memref<400xf32, #tpu.memory_space<smem>>
    %1783 = vector.broadcast %1782 : f32 to vector<16x12xf32>
    %1784 = arith.mulf %1783, %1769 : vector<16x12xf32>
    %1785 = arith.addf %1768, %1784 : vector<16x12xf32>
    %c0_78 = arith.constant 0 : index
    %c0_79 = arith.constant 0 : index
    %c0_80 = arith.constant 0 : index
    %c0_81 = arith.constant 0 : index
    %1786 = vector.load %arg4[%c0_78, %c0_79, %c0_80, %c0_81] : memref<1x4x16x12xf32, #tpu.memory_space<vmem>>, vector<1x1x16x12xf32>
    %1787 = vector.shape_cast %1786 : vector<1x1x16x12xf32> to vector<16x12xf32>
    %1788 = vector.shape_cast %1773 : vector<16x12xf32> to vector<1x1x16x12xf32>
    tpu.vector_store %arg4[%c0_78, %c0_79, %c0_80, %c0_81], %1788 {strides = array<i32>} : memref<1x4x16x12xf32, #tpu.memory_space<vmem>>, vector<1x1x16x12xf32>,
    %c0_82 = arith.constant 0 : index
    %c1_83 = arith.constant 1 : index
    %c0_84 = arith.constant 0 : index
    %c0_85 = arith.constant 0 : index
    %1789 = vector.load %arg4[%c0_82, %c1_83, %c0_84, %c0_85] : memref<1x4x16x12xf32, #tpu.memory_space<vmem>>, vector<1x1x16x12xf32>
    %1790 = vector.shape_cast %1789 : vector<1x1x16x12xf32> to vector<16x12xf32>
    %1791 = vector.shape_cast %1777 : vector<16x12xf32> to vector<1x1x16x12xf32>
    tpu.vector_store %arg4[%c0_82, %c1_83, %c0_84, %c0_85], %1791 {strides = array<i32>} : memref<1x4x16x12xf32, #tpu.memory_space<vmem>>, vector<1x1x16x12xf32>,
    %c0_86 = arith.constant 0 : index
    %c2_87 = arith.constant 2 : index
    %c0_88 = arith.constant 0 : index
    %c0_89 = arith.constant 0 : index
    %1792 = vector.load %arg4[%c0_86, %c2_87, %c0_88, %c0_89] : memref<1x4x16x12xf32, #tpu.memory_space<vmem>>, vector<1x1x16x12xf32>
    %1793 = vector.shape_cast %1792 : vector<1x1x16x12xf32> to vector<16x12xf32>
    %1794 = vector.shape_cast %1781 : vector<16x12xf32> to vector<1x1x16x12xf32>
    tpu.vector_store %arg4[%c0_86, %c2_87, %c0_88, %c0_89], %1794 {strides = array<i32>} : memref<1x4x16x12xf32, #tpu.memory_space<vmem>>, vector<1x1x16x12xf32>,
    %c0_90 = arith.constant 0 : index
    %c3_91 = arith.constant 3 : index
    %c0_92 = arith.constant 0 : index
    %c0_93 = arith.constant 0 : index
    %1795 = vector.load %arg4[%c0_90, %c3_91, %c0_92, %c0_93] : memref<1x4x16x12xf32, #tpu.memory_space<vmem>>, vector<1x1x16x12xf32>
    %1796 = vector.shape_cast %1795 : vector<1x1x16x12xf32> to vector<16x12xf32>
    %1797 = vector.shape_cast %1785 : vector<16x12xf32> to vector<1x1x16x12xf32>
    tpu.vector_store %arg4[%c0_90, %c3_91, %c0_92, %c0_93], %1797 {strides = array<i32>} : memref<1x4x16x12xf32, #tpu.memory_space<vmem>>, vector<1x1x16x12xf32>,
    return
  }
  func.func @transform_0(%arg0: i32, %arg1: i32) -> (i32, i32, i32, i32) {
    %c0_i32 = arith.constant 0 : i32
    %c0_i32_0 = arith.constant 0 : i32
    %c0_i32_1 = arith.constant 0 : i32
    %c0_i32_2 = arith.constant 0 : i32
    return %arg0, %c0_i32, %c0_i32_0, %c0_i32_1 : i32, i32, i32, i32
  }
  func.func @transform_1(%arg0: i32, %arg1: i32) -> i32 {
    %c0_i32 = arith.constant 0 : i32
    %c0_i32_0 = arith.constant 0 : i32
    return %c0_i32 : i32
  }
  func.func @transform_2(%arg0: i32, %arg1: i32) -> (i32, i32, i32, i32) {
    %c0_i32 = arith.constant 0 : i32
    %c0_i32_0 = arith.constant 0 : i32
    %c0_i32_1 = arith.constant 0 : i32
    return %arg0, %c0_i32, %arg1, %c0_i32_0 : i32, i32, i32, i32
  }
}

</mosaic_0001>

<llo_original>
// kernel: bayar_conv2d.1
$region0: #{bayar_conv2d.1}
  #allocation0 [shape = 'u32[]', space=smem, size = 0x4, offset = 0x4, fixed_abs, tag = 'smem constant byte address 0x4 - core index']
  #allocation1 [shape = 'u32[144,128]{1,0:T(1,128)}', space=vmem, size = 0x12000, scoped, tag = 'internal scratch']
  %s0 = inlined_call_operand.vmem [shape: f32[2,4,20,16], index: 0, kind: input, shape index: {}]
  %s1 = inlined_call_operand.vmem [shape: f32[400], index: 1, kind: input, shape index: {}]
  %s2 = inlined_call_operand.vmem [shape: f32[2,4,16,12], index: 2, kind: output, shape index: {}]
  %s3 = sld [smem:[#allocation0]]
  $region45: #{bayar_conv2d.1} parent=0
    _
  %s5 = ssub.s32 1, %s3
  %s6 = scalar_select 0, %s5, %s3
  $region1: #{bayar_conv2d.1} parent=0
    #allocation2 [shape = 'u8[2048]{0}', space=smem, size = 0x800, scoped, tag = 'input window, operand 1, single buffered']
    #allocation3 [shape = 's32[2]{0}', space=sflag, size = 0x8, scoped, tag = 'scoped memory for bayar_conv2d.1']
    %7 = vsyncpa [#allocation3], 0
    loop: start=0, step=1, limit=4
    $region2: #{bayar_conv2d.1} parent=1 // loop_pre_header
      _
    $region3: #{bayar_conv2d.1} parent=1 // loop_header
      %s9 = sphi 0, %s13
      %p10 = scmp.ge.s32.totalorder %s9, 4
      %s16 = sphi 0, %s28
      %s17 = sphi 0, %s24
      %s18 = sphi 0, %s16
      %s19 = sphi 0, %s17
      %s20 = sphi 0, %s18
      %s21 = sphi 0, %s19
      %s31 = sphi 0, %s33
      %s34 = sphi 0, %s31
      %s35 = sphi 0, %s34
      %s51 = sphi 0, %s35
      %s55 = sphi 0, %s55
      %s57 = sphi 0, %s55
      %s58 = sphi 0, %s57
      %s72 = sphi 0, %s58
      %s80 = sphi 0, %s82
      %s83 = sphi 0, %s80
      %s84 = sphi 0, %s83
      %s100 = sphi 0, %s84
    $region4: #{bayar_conv2d.1} parent=1 // loop_header_branch
      %12 = sbr.rel (%p10) target = $region8
    $region5: #{bayar_conv2d.1} parent=1 // loop_body
      %s14 = ssub.s32 %s9, 1
      %s15 = ssub.s32 %s9, 2
      %s22 = sadd.s32 1, %s17
      %p23 = scmp.ge.s32.totalorder %s22, 1
      %s24 = scalar_select %p23, 0, %s22
      %s25 = sadd.s32 1, %s16
      %s26 = scalar_select %p23, %s25, %s16
      %p27 = scmp.ge.s32.totalorder %s26, 2
      %s28 = scalar_select %p27, 0, %s26
      %s29 = ssub.s32 %s16, %s28
      %p30 = scmp.eq.s32.totalorder %s29, 0
      %s32 = sadd.s32 %s31, 1
      %s33 = scalar_select %p30, %s31, %s32
      %p36 = pneg %p30
      %p37 = scmp.eq.s32.totalorder %s9, 1
      %p38 = por %p36, %p37
      %p39 = scmp.ne.s32.totalorder %s31, %s34
      %p40 = scmp.eq.s32.totalorder %s9, 0
      %p41 = por %p39, %p40
      %p42 = scmp.ne.s32.totalorder %s31, %s34
      %p43 = scmp.eq.s32.totalorder %s14, 1
      %p44 = por %p42, %p43
      %p45 = scmp.ne.s32.totalorder %s34, %s35
      %p46 = scmp.eq.s32.totalorder %s14, 0
      %p47 = por %p45, %p46
      %p48 = scmp.ne.s32.totalorder %s34, %s35
      %p49 = scmp.eq.s32.totalorder %s15, 1
      %p50 = por %p48, %p49
      %p52 = scmp.ne.s32.totalorder %s35, %s51
      %p53 = scmp.eq.s32.totalorder %s15, 0
      %p54 = por %p52, %p53
      %s56 = sadd.s32 %s55, 1
      %p59 = scmp.eq.s32.totalorder %s9, 1
      %p60 = scmp.ne.s32.totalorder %s55, %s57
      %p61 = scmp.eq.s32.totalorder %s9, 0
      %p62 = por %p60, %p61
      %p63 = scmp.ne.s32.totalorder %s55, %s57
      %p64 = scmp.eq.s32.totalorder %s14, 1
      %p65 = por %p63, %p64
      %p66 = scmp.ne.s32.totalorder %s57, %s58
      %p67 = scmp.eq.s32.totalorder %s14, 0
      %p68 = por %p66, %p67
      %p69 = scmp.ne.s32.totalorder %s57, %s58
      %p70 = scmp.eq.s32.totalorder %s15, 1
      %p71 = por %p69, %p70
      %p73 = scmp.ne.s32.totalorder %s58, %s72
      %p74 = scmp.eq.s32.totalorder %s15, 0
      %p75 = por %p73, %p74
      %s76 = ssub.s32 %s16, %s28
      %s77 = ssub.s32 %s17, %s24
      %s78 = sor.u32 %s76, %s77
      %p79 = scmp.eq.s32.totalorder %s78, 0
      %s81 = sadd.s32 %s80, 1
      %s82 = scalar_select %p79, %s80, %s81
      %p85 = pneg %p79
      %p86 = scmp.eq.s32.totalorder %s9, 1
      %p87 = por %p85, %p86
      %p88 = scmp.ne.s32.totalorder %s80, %s83
      %p89 = scmp.eq.s32.totalorder %s9, 0
      %p90 = por %p88, %p89
      %p91 = scmp.ne.s32.totalorder %s80, %s83
      %p92 = scmp.eq.s32.totalorder %s14, 1
      %p93 = por %p91, %p92
      %p94 = scmp.ne.s32.totalorder %s83, %s84
      %p95 = scmp.eq.s32.totalorder %s14, 0
      %p96 = por %p94, %p95
      %p97 = scmp.ne.s32.totalorder %s83, %s84
      %p98 = scmp.eq.s32.totalorder %s15, 1
      %p99 = por %p97, %p98
      %p101 = scmp.ne.s32.totalorder %s84, %s100
      %p102 = scmp.eq.s32.totalorder %s15, 0
      %p103 = por %p101, %p102
      %p104 = scmp.le.s32.totalorder 1, %s9
      %p105 = scmp.lt.s32.totalorder %s9, 3
      %p106 = pnand %p104, %p105
      %p107 = pneg %p106
      // Predicated region
      $region9: #{bayar_conv2d.1} parent=5 // pred_check
        _
      $region10: #{bayar_conv2d.1} parent=5 // pred_check_branch
        %109 = sbr.rel (%p106) target = $region12
      $region11: #{bayar_conv2d.1} parent=5 // pred_region
        %s110 = ssub.s32 %s9, 1
        // Predicated region
        $region13: #{bayar_conv2d.1} parent=11 // pred_check
          %p111 = pneg %p68
        $region14: #{bayar_conv2d.1} parent=11 // pred_check_branch
          %113 = sbr.rel (%p111) target = $region16
        $region15: #{bayar_conv2d.1} parent=11 // pred_region
          %s115 = ssub.s32 64, 64
          %116 = vsyncadd [#allocation3], %s115
          %s118 = sshll.u32 %s1, 4
          %s119 = int_to_ptr.vmem [resolvable:$true] %s118
          %121 = dma.vmem_to_smem %s119, 64, [#allocation2], [#allocation3]
        $region16: #{bayar_conv2d.1} parent=11 // pred_fallthru
          _
      $region12: #{bayar_conv2d.1} parent=5 // pred_fallthru
        _
      %p122 = scmp.lt.s32.totalorder %s9, 2
      // Predicated region
      $region17: #{bayar_conv2d.1} parent=5 // pred_check
        %p123 = pneg %p122
      $region18: #{bayar_conv2d.1} parent=5 // pred_check_branch
        %125 = sbr.rel (%p123) target = $region20
      $region19: #{bayar_conv2d.1} parent=5 // pred_region
        // Predicated region
        $region21: #{bayar_conv2d.1} parent=19 // pred_check
          %p126 = pneg %p41
        $region22: #{bayar_conv2d.1} parent=19 // pred_check_branch
          %128 = sbr.rel (%p126) target = $region24
        $region23: #{bayar_conv2d.1} parent=19 // pred_region
          %p129 = scmp.lt.s32.totalorder %s16, 1
          %s130 = scalar_select %p129, %s16, 1
          %s131 = smul.addr %s130, 12
          %s132 = smul.addr %s131, 8
          %s133 = scalar_lea.vmem %s0, %s132
        $region24: #{bayar_conv2d.1} parent=19 // pred_fallthru
          _
      $region20: #{bayar_conv2d.1} parent=5 // pred_fallthru
        _
      %p134 = scmp.le.s32.totalorder 1, %s9
      %p135 = scmp.lt.s32.totalorder %s9, 3
      %p136 = pnand %p134, %p135
      %p137 = pneg %p136
      // Predicated region
      $region25: #{bayar_conv2d.1} parent=5 // pred_check
        _
      $region26: #{bayar_conv2d.1} parent=5 // pred_check_branch
        %139 = sbr.rel (%p136) target = $region28
      $region27: #{bayar_conv2d.1} parent=5 // pred_region
        %s140 = ssub.s32 %s9, 1
        // Predicated region
        $region29: #{bayar_conv2d.1} parent=27 // pred_check
          %p141 = pneg %p68
        $region30: #{bayar_conv2d.1} parent=27 // pred_check_branch
          %143 = sbr.rel (%p141) target = $region32
        $region31: #{bayar_conv2d.1} parent=27 // pred_region
          %144 = dma.done [#allocation3], 64
        $region32: #{bayar_conv2d.1} parent=27 // pred_fallthru
          _
        %145 = sfence
        %p146 = scmp.lt.s32.totalorder %s18, 1
        %s147 = scalar_select %p146, %s18, 1
        %s148 = smul.addr %s147, 12
        %s149 = smul.addr %s148, 8
        %s150 = scalar_lea.vmem %s0, %s149
        %p151 = pneg %p47
        %p152 = pneg %p44
        %p153 = pneg %p68
        %p154 = pneg %p65
        %p155 = pneg %p96
        %p156 = pneg %p93
        %s157 = smul.u32 2, %s19
        %p158 = scmp.lt.s32.totalorder %s18, 1
        %s159 = scalar_select %p158, %s18, 1
        %p160 = scmp.lt.s32.totalorder %s157, 1
        %s161 = scalar_select %p160, %s157, 1
        %s162 = smul.addr %s159, 8
        %s163 = sadd.s32 %s161, %s162
        %s164 = smul.addr %s163, 8
        %s165 = scalar_lea.vmem %s2, %s164
        %p166 = scmp.lt.s32.totalorder %s18, 1
        %s167 = scalar_select %p166, %s18, 1
        %s168 = smul.addr %s167, 12
        %s169 = smul.addr %s168, 8
        %s170 = scalar_lea.vmem %s0, %s169
        %s171 = smul.u32 2, %s19
        %p172 = scmp.lt.s32.totalorder %s18, 1
        %s173 = scalar_select %p172, %s18, 1
        %p174 = scmp.lt.s32.totalorder %s171, 1
        %s175 = scalar_select %p174, %s171, 1
        %s176 = smul.addr %s173, 8
        %s177 = sadd.s32 %s175, %s176
        %s178 = smul.addr %s177, 8
        %s179 = scalar_lea.vmem %s2, %s178
        %s180 = smul.u32 2, %s19
        %s181 = smul.u32 %s19, 16
        %s182 = scalar_lea.vmem %s170, %s181
        %v183 = vld [vmem:[%s182] sm:$0xff]
        %v184 = vld [vmem:[%s182 + $0x8] sm:$0xff]
        %s185 = sld [smem:[#allocation2]]
        %v186 = vstv %s185
        %v187 = vmul.f32 %v186, %v183
        %v188 = vmul.f32 %v186, %v184
        %v189 = vadd.f32 %v187, 0.0
        %v190 = vadd.f32 %v188, 0.0
        %s191 = sld [smem:[#allocation2 + $0x64]]
        %v192 = vstv %s191
        %v193 = vmul.f32 %v192, %v183
        %v194 = vmul.f32 %v192, %v184
        %v195 = vadd.f32 %v193, 0.0
        %v196 = vadd.f32 %v194, 0.0
        %s197 = sld [smem:[#allocation2 + $0xc8]]
        %v198 = vstv %s197
        %v199 = vmul.f32 %v198, %v183
        %v200 = vmul.f32 %v198, %v184
        %v201 = vadd.f32 %v199, 0.0
        %v202 = vadd.f32 %v200, 0.0
        %s203 = sld [smem:[#allocation2 + $0x12c]]
        %v204 = vstv %s203
        %v205 = vmul.f32 %v204, %v183
        %v206 = vmul.f32 %v204, %v184
        %v207 = vadd.f32 %v205, 0.0
        %v208 = vadd.f32 %v206, 0.0
        %s209 = sld [smem:[#allocation2 + $0x1]]
        %v210 = vstv %s209
        %v211 = vmul.f32 %v210, %v183
        %v212 = vmul.f32 %v210, %v184
        %215 = vrot.lane.b32.xlu0 %v211, 127
        %v216 = vpop.permute.xlu0 %215
        %217 = vrot.lane.b32.xlu0 %v212, 127
        %v218 = vpop.permute.xlu0 %217
        %v221 = vadd.f32 %v189, %v216
        %v222 = vadd.f32 %v190, %v218
        %s223 = sld [smem:[#allocation2 + $0x65]]
        %v224 = vstv %s223
        %v225 = vmul.f32 %v224, %v183
        %v226 = vmul.f32 %v224, %v184
        %229 = vrot.lane.b32.xlu0 %v225, 127
        %v230 = vpop.permute.xlu0 %229
        %231 = vrot.lane.b32.xlu0 %v226, 127
        %v232 = vpop.permute.xlu0 %231
        %v235 = vadd.f32 %v195, %v230
        %v236 = vadd.f32 %v196, %v232
        %s237 = sld [smem:[#allocation2 + $0xc9]]
        %v238 = vstv %s237
        %v239 = vmul.f32 %v238, %v183
        %v240 = vmul.f32 %v238, %v184
        %243 = vrot.lane.b32.xlu0 %v239, 127
        %v244 = vpop.permute.xlu0 %243
        %245 = vrot.lane.b32.xlu0 %v240, 127
        %v246 = vpop.permute.xlu0 %245
        %v249 = vadd.f32 %v201, %v244
        %v250 = vadd.f32 %v202, %v246
        %s251 = sld [smem:[#allocation2 + $0x12d]]
        %v252 = vstv %s251
        %v253 = vmul.f32 %v252, %v183
        %v254 = vmul.f32 %v252, %v184
        %257 = vrot.lane.b32.xlu0 %v253, 127
        %v258 = vpop.permute.xlu0 %257
        %259 = vrot.lane.b32.xlu0 %v254, 127
        %v260 = vpop.permute.xlu0 %259
        %v263 = vadd.f32 %v207, %v258
        %v264 = vadd.f32 %v208, %v260
        %s265 = sld [smem:[#allocation2 + $0x2]]
        %v266 = vstv %s265
        %v267 = vmul.f32 %v266, %v183
        %v268 = vmul.f32 %v266, %v184
        %271 = vrot.lane.b32.xlu0 %v267, 126
        %v272 = vpop.permute.xlu0 %271
        %273 = vrot.lane.b32.xlu0 %v268, 126
        %v274 = vpop.permute.xlu0 %273
        %v277 = vadd.f32 %v221, %v272
        %v278 = vadd.f32 %v222, %v274
        %s279 = sld [smem:[#allocation2 + $0x66]]
        %v280 = vstv %s279
        %v281 = vmul.f32 %v280, %v183
        %v282 = vmul.f32 %v280, %v184
        %285 = vrot.lane.b32.xlu0 %v281, 126
        %v286 = vpop.permute.xlu0 %285
        %287 = vrot.lane.b32.xlu0 %v282, 126
        %v288 = vpop.permute.xlu0 %287
        %v291 = vadd.f32 %v235, %v286
        %v292 = vadd.f32 %v236, %v288
        %s293 = sld [smem:[#allocation2 + $0xca]]
        %v294 = vstv %s293
        %v295 = vmul.f32 %v294, %v183
        %v296 = vmul.f32 %v294, %v184
        %299 = vrot.lane.b32.xlu0 %v295, 126
        %v300 = vpop.permute.xlu0 %299
        %301 = vrot.lane.b32.xlu0 %v296, 126
        %v302 = vpop.permute.xlu0 %301
        %v305 = vadd.f32 %v249, %v300
        %v306 = vadd.f32 %v250, %v302
        %s307 = sld [smem:[#allocation2 + $0x12e]]
        %v308 = vstv %s307
        %v309 = vmul.f32 %v308, %v183
        %v310 = vmul.f32 %v308, %v184
        %313 = vrot.lane.b32.xlu0 %v309, 126
        %v314 = vpop.permute.xlu0 %313
        %315 = vrot.lane.b32.xlu0 %v310, 126
        %v316 = vpop.permute.xlu0 %315
        %v319 = vadd.f32 %v263, %v314
        %v320 = vadd.f32 %v264, %v316
        %s321 = sld [smem:[#allocation2 + $0x3]]
        %v322 = vstv %s321
        %v323 = vmul.f32 %v322, %v183
        %v324 = vmul.f32 %v322, %v184
        %327 = vrot.lane.b32.xlu0 %v323, 125
        %v328 = vpop.permute.xlu0 %327
        %329 = vrot.lane.b32.xlu0 %v324, 125
        %v330 = vpop.permute.xlu0 %329
        %v333 = vadd.f32 %v277, %v328
        %v334 = vadd.f32 %v278, %v330
        %s335 = sld [smem:[#allocation2 + $0x67]]
        %v336 = vstv %s335
        %v337 = vmul.f32 %v336, %v183
        %v338 = vmul.f32 %v336, %v184
        %341 = vrot.lane.b32.xlu0 %v337, 125
        %v342 = vpop.permute.xlu0 %341
        %343 = vrot.lane.b32.xlu0 %v338, 125
        %v344 = vpop.permute.xlu0 %343
        %v347 = vadd.f32 %v291, %v342
        %v348 = vadd.f32 %v292, %v344
        %s349 = sld [smem:[#allocation2 + $0xcb]]
        %v350 = vstv %s349
        %v351 = vmul.f32 %v350, %v183
        %v352 = vmul.f32 %v350, %v184
        %355 = vrot.lane.b32.xlu0 %v351, 125
        %v356 = vpop.permute.xlu0 %355
        %357 = vrot.lane.b32.xlu0 %v352, 125
        %v358 = vpop.permute.xlu0 %357
        %v361 = vadd.f32 %v305, %v356
        %v362 = vadd.f32 %v306, %v358
        %s363 = sld [smem:[#allocation2 + $0x12f]]
        %v364 = vstv %s363
        %v365 = vmul.f32 %v364, %v183
        %v366 = vmul.f32 %v364, %v184
        %369 = vrot.lane.b32.xlu0 %v365, 125
        %v370 = vpop.permute.xlu0 %369
        %371 = vrot.lane.b32.xlu0 %v366, 125
        %v372 = vpop.permute.xlu0 %371
        %v375 = vadd.f32 %v319, %v370
        %v376 = vadd.f32 %v320, %v372
        %s377 = sld [smem:[#allocation2 + $0x4]]
        %v378 = vstv %s377
        %v379 = vmul.f32 %v378, %v183
        %v380 = vmul.f32 %v378, %v184
        %383 = vrot.lane.b32.xlu0 %v379, 124
        %v384 = vpop.permute.xlu0 %383
        %385 = vrot.lane.b32.xlu0 %v380, 124
        %v386 = vpop.permute.xlu0 %385
        %v389 = vadd.f32 %v333, %v384
        %v390 = vadd.f32 %v334, %v386
        %s391 = sld [smem:[#allocation2 + $0x68]]
        %v392 = vstv %s391
        %v393 = vmul.f32 %v392, %v183
        %v394 = vmul.f32 %v392, %v184
        %397 = vrot.lane.b32.xlu0 %v393, 124
        %v398 = vpop.permute.xlu0 %397
        %399 = vrot.lane.b32.xlu0 %v394, 124
        %v400 = vpop.permute.xlu0 %399
        %v403 = vadd.f32 %v347, %v398
        %v404 = vadd.f32 %v348, %v400
        %s405 = sld [smem:[#allocation2 + $0xcc]]
        %v406 = vstv %s405
        %v407 = vmul.f32 %v406, %v183
        %v408 = vmul.f32 %v406, %v184
        %411 = vrot.lane.b32.xlu0 %v407, 124
        %v412 = vpop.permute.xlu0 %411
        %413 = vrot.lane.b32.xlu0 %v408, 124
        %v414 = vpop.permute.xlu0 %413
        %v417 = vadd.f32 %v361, %v412
        %v418 = vadd.f32 %v362, %v414
        %s419 = sld [smem:[#allocation2 + $0x130]]
        %v420 = vstv %s419
        %v421 = vmul.f32 %v420, %v183
        %v422 = vmul.f32 %v420, %v184
        %425 = vrot.lane.b32.xlu0 %v421, 124
        %v426 = vpop.permute.xlu0 %425
        %427 = vrot.lane.b32.xlu0 %v422, 124
        %v428 = vpop.permute.xlu0 %427
        %v431 = vadd.f32 %v375, %v426
        %v432 = vadd.f32 %v376, %v428
        %s433 = sadd.s32 %s181, 1
        %s434 = scalar_lea.vmem %s170, %s433
        %v435 = vld [vmem:[%s434] sm:$0xff]
        %v436 = vld [vmem:[%s434 + $0x8] sm:$0xff]
        %s437 = sld [smem:[#allocation2 + $0x5]]
        %v438 = vstv %s437
        %v439 = vmul.f32 %v438, %v435
        %v440 = vmul.f32 %v438, %v436
        %v441 = vadd.f32 %v389, %v439
        %v442 = vadd.f32 %v390, %v440
        %s443 = sld [smem:[#allocation2 + $0x69]]
        %v444 = vstv %s443
        %v445 = vmul.f32 %v444, %v435
        %v446 = vmul.f32 %v444, %v436
        %v447 = vadd.f32 %v403, %v445
        %v448 = vadd.f32 %v404, %v446
        %s449 = sld [smem:[#allocation2 + $0xcd]]
        %v450 = vstv %s449
        %v451 = vmul.f32 %v450, %v435
        %v452 = vmul.f32 %v450, %v436
        %v453 = vadd.f32 %v417, %v451
        %v454 = vadd.f32 %v418, %v452
        %s455 = sld [smem:[#allocation2 + $0x131]]
        %v456 = vstv %s455
        %v457 = vmul.f32 %v456, %v435
        %v458 = vmul.f32 %v456, %v436
        %v459 = vadd.f32 %v431, %v457
        %v460 = vadd.f32 %v432, %v458
        %s461 = sld [smem:[#allocation2 + $0x6]]
        %v462 = vstv %s461
        %v463 = vmul.f32 %v462, %v435
        %v464 = vmul.f32 %v462, %v436
        %467 = vrot.lane.b32.xlu0 %v463, 127
        %v468 = vpop.permute.xlu0 %467
        %469 = vrot.lane.b32.xlu0 %v464, 127
        %v470 = vpop.permute.xlu0 %469
        %v473 = vadd.f32 %v441, %v468
        %v474 = vadd.f32 %v442, %v470
        %s475 = sld [smem:[#allocation2 + $0x6a]]
        %v476 = vstv %s475
        %v477 = vmul.f32 %v476, %v435
        %v478 = vmul.f32 %v476, %v436
        %481 = vrot.lane.b32.xlu0 %v477, 127
        %v482 = vpop.permute.xlu0 %481
        %483 = vrot.lane.b32.xlu0 %v478, 127
        %v484 = vpop.permute.xlu0 %483
        %v487 = vadd.f32 %v447, %v482
        %v488 = vadd.f32 %v448, %v484
        %s489 = sld [smem:[#allocation2 + $0xce]]
        %v490 = vstv %s489
        %v491 = vmul.f32 %v490, %v435
        %v492 = vmul.f32 %v490, %v436
        %495 = vrot.lane.b32.xlu0 %v491, 127
        %v496 = vpop.permute.xlu0 %495
        %497 = vrot.lane.b32.xlu0 %v492, 127
        %v498 = vpop.permute.xlu0 %497
        %v501 = vadd.f32 %v453, %v496
        %v502 = vadd.f32 %v454, %v498
        %s503 = sld [smem:[#allocation2 + $0x132]]
        %v504 = vstv %s503
        %v505 = vmul.f32 %v504, %v435
        %v506 = vmul.f32 %v504, %v436
        %509 = vrot.lane.b32.xlu0 %v505, 127
        %v510 = vpop.permute.xlu0 %509
        %511 = vrot.lane.b32.xlu0 %v506, 127
        %v512 = vpop.permute.xlu0 %511
        %v515 = vadd.f32 %v459, %v510
        %v516 = vadd.f32 %v460, %v512
        %s517 = sld [smem:[#allocation2 + $0x7]]
        %v518 = vstv %s517
        %v519 = vmul.f32 %v518, %v435
        %v520 = vmul.f32 %v518, %v436
        %523 = vrot.lane.b32.xlu0 %v519, 126
        %v524 = vpop.permute.xlu0 %523
        %525 = vrot.lane.b32.xlu0 %v520, 126
        %v526 = vpop.permute.xlu0 %525
        %v529 = vadd.f32 %v473, %v524
        %v530 = vadd.f32 %v474, %v526
        %s531 = sld [smem:[#allocation2 + $0x6b]]
        %v532 = vstv %s531
        %v533 = vmul.f32 %v532, %v435
        %v534 = vmul.f32 %v532, %v436
        %537 = vrot.lane.b32.xlu0 %v533, 126
        %v538 = vpop.permute.xlu0 %537
        %539 = vrot.lane.b32.xlu0 %v534, 126
        %v540 = vpop.permute.xlu0 %539
        %v543 = vadd.f32 %v487, %v538
        %v544 = vadd.f32 %v488, %v540
        %s545 = sld [smem:[#allocation2 + $0xcf]]
        %v546 = vstv %s545
        %v547 = vmul.f32 %v546, %v435
        %v548 = vmul.f32 %v546, %v436
        %551 = vrot.lane.b32.xlu0 %v547, 126
        %v552 = vpop.permute.xlu0 %551
        %553 = vrot.lane.b32.xlu0 %v548, 126
        %v554 = vpop.permute.xlu0 %553
        %v557 = vadd.f32 %v501, %v552
        %v558 = vadd.f32 %v502, %v554
        %s559 = sld [smem:[#allocation2 + $0x133]]
        %v560 = vstv %s559
        %v561 = vmul.f32 %v560, %v435
        %v562 = vmul.f32 %v560, %v436
        %565 = vrot.lane.b32.xlu0 %v561, 126
        %v566 = vpop.permute.xlu0 %565
        %567 = vrot.lane.b32.xlu0 %v562, 126
        %v568 = vpop.permute.xlu0 %567
        %v571 = vadd.f32 %v515, %v566
        %v572 = vadd.f32 %v516, %v568
        %s573 = sld [smem:[#allocation2 + $0x8]]
        %v574 = vstv %s573
        %v575 = vmul.f32 %v574, %v435
        %v576 = vmul.f32 %v574, %v436
        %579 = vrot.lane.b32.xlu0 %v575, 125
        %v580 = vpop.permute.xlu0 %579
        %581 = vrot.lane.b32.xlu0 %v576, 125
        %v582 = vpop.permute.xlu0 %581
        %v585 = vadd.f32 %v529, %v580
        %v586 = vadd.f32 %v530, %v582
        %s587 = sld [smem:[#allocation2 + $0x6c]]
        %v588 = vstv %s587
        %v589 = vmul.f32 %v588, %v435
        %v590 = vmul.f32 %v588, %v436
        %593 = vrot.lane.b32.xlu0 %v589, 125
        %v594 = vpop.permute.xlu0 %593
        %595 = vrot.lane.b32.xlu0 %v590, 125
        %v596 = vpop.permute.xlu0 %595
        %v599 = vadd.f32 %v543, %v594
        %v600 = vadd.f32 %v544, %v596
        %s601 = sld [smem:[#allocation2 + $0xd0]]
        %v602 = vstv %s601
        %v603 = vmul.f32 %v602, %v435
        %v604 = vmul.f32 %v602, %v436
        %607 = vrot.lane.b32.xlu0 %v603, 125
        %v608 = vpop.permute.xlu0 %607
        %609 = vrot.lane.b32.xlu0 %v604, 125
        %v610 = vpop.permute.xlu0 %609
        %v613 = vadd.f32 %v557, %v608
        %v614 = vadd.f32 %v558, %v610
        %s615 = sld [smem:[#allocation2 + $0x134]]
        %v616 = vstv %s615
        %v617 = vmul.f32 %v616, %v435
        %v618 = vmul.f32 %v616, %v436
        %621 = vrot.lane.b32.xlu0 %v617, 125
        %v622 = vpop.permute.xlu0 %621
        %623 = vrot.lane.b32.xlu0 %v618, 125
        %v624 = vpop.permute.xlu0 %623
        %v627 = vadd.f32 %v571, %v622
        %v628 = vadd.f32 %v572, %v624
        %s629 = sld [smem:[#allocation2 + $0x9]]
        %v630 = vstv %s629
        %v631 = vmul.f32 %v630, %v435
        %v632 = vmul.f32 %v630, %v436
        %635 = vrot.lane.b32.xlu0 %v631, 124
        %v636 = vpop.permute.xlu0 %635
        %637 = vrot.lane.b32.xlu0 %v632, 124
        %v638 = vpop.permute.xlu0 %637
        %v641 = vadd.f32 %v585, %v636
        %v642 = vadd.f32 %v586, %v638
        %s643 = sld [smem:[#allocation2 + $0x6d]]
        %v644 = vstv %s643
        %v645 = vmul.f32 %v644, %v435
        %v646 = vmul.f32 %v644, %v436
        %649 = vrot.lane.b32.xlu0 %v645, 124
        %v650 = vpop.permute.xlu0 %649
        %651 = vrot.lane.b32.xlu0 %v646, 124
        %v652 = vpop.permute.xlu0 %651
        %v655 = vadd.f32 %v599, %v650
        %v656 = vadd.f32 %v600, %v652
        %s657 = sld [smem:[#allocation2 + $0xd1]]
        %v658 = vstv %s657
        %v659 = vmul.f32 %v658, %v435
        %v660 = vmul.f32 %v658, %v436
        %663 = vrot.lane.b32.xlu0 %v659, 124
        %v664 = vpop.permute.xlu0 %663
        %665 = vrot.lane.b32.xlu0 %v660, 124
        %v666 = vpop.permute.xlu0 %665
        %v669 = vadd.f32 %v613, %v664
        %v670 = vadd.f32 %v614, %v666
        %s671 = sld [smem:[#allocation2 + $0x135]]
        %v672 = vstv %s671
        %v673 = vmul.f32 %v672, %v435
        %v674 = vmul.f32 %v672, %v436
        %677 = vrot.lane.b32.xlu0 %v673, 124
        %v678 = vpop.permute.xlu0 %677
        %679 = vrot.lane.b32.xlu0 %v674, 124
        %v680 = vpop.permute.xlu0 %679
        %v683 = vadd.f32 %v627, %v678
        %v684 = vadd.f32 %v628, %v680
        %s685 = sadd.s32 %s181, 2
        %s686 = scalar_lea.vmem %s170, %s685
        %v687 = vld [vmem:[%s686] sm:$0xff]
        %v688 = vld [vmem:[%s686 + $0x8] sm:$0xff]
        %s689 = sld [smem:[#allocation2 + $0xa]]
        %v690 = vstv %s689
        %v691 = vmul.f32 %v690, %v687
        %v692 = vmul.f32 %v690, %v688
        %v693 = vadd.f32 %v641, %v691
        %v694 = vadd.f32 %v642, %v692
        %s695 = sld [smem:[#allocation2 + $0x6e]]
        %v696 = vstv %s695
        %v697 = vmul.f32 %v696, %v687
        %v698 = vmul.f32 %v696, %v688
        %v699 = vadd.f32 %v655, %v697
        %v700 = vadd.f32 %v656, %v698
        %s701 = sld [smem:[#allocation2 + $0xd2]]
        %v702 = vstv %s701
        %v703 = vmul.f32 %v702, %v687
        %v704 = vmul.f32 %v702, %v688
        %v705 = vadd.f32 %v669, %v703
        %v706 = vadd.f32 %v670, %v704
        %s707 = sld [smem:[#allocation2 + $0x136]]
        %v708 = vstv %s707
        %v709 = vmul.f32 %v708, %v687
        %v710 = vmul.f32 %v708, %v688
        %v711 = vadd.f32 %v683, %v709
        %v712 = vadd.f32 %v684, %v710
        %s713 = sld [smem:[#allocation2 + $0xb]]
        %v714 = vstv %s713
        %v715 = vmul.f32 %v714, %v687
        %v716 = vmul.f32 %v714, %v688
        %719 = vrot.lane.b32.xlu0 %v715, 127
        %v720 = vpop.permute.xlu0 %719
        %721 = vrot.lane.b32.xlu0 %v716, 127
        %v722 = vpop.permute.xlu0 %721
        %v725 = vadd.f32 %v693, %v720
        %v726 = vadd.f32 %v694, %v722
        %s727 = sld [smem:[#allocation2 + $0x6f]]
        %v728 = vstv %s727
        %v729 = vmul.f32 %v728, %v687
        %v730 = vmul.f32 %v728, %v688
        %733 = vrot.lane.b32.xlu0 %v729, 127
        %v734 = vpop.permute.xlu0 %733
        %735 = vrot.lane.b32.xlu0 %v730, 127
        %v736 = vpop.permute.xlu0 %735
        %v739 = vadd.f32 %v699, %v734
        %v740 = vadd.f32 %v700, %v736
        %s741 = sld [smem:[#allocation2 + $0xd3]]
        %v742 = vstv %s741
        %v743 = vmul.f32 %v742, %v687
        %v744 = vmul.f32 %v742, %v688
        %747 = vrot.lane.b32.xlu0 %v743, 127
        %v748 = vpop.permute.xlu0 %747
        %749 = vrot.lane.b32.xlu0 %v744, 127
        %v750 = vpop.permute.xlu0 %749
        %v753 = vadd.f32 %v705, %v748
        %v754 = vadd.f32 %v706, %v750
        %s755 = sld [smem:[#allocation2 + $0x137]]
        %v756 = vstv %s755
        %v757 = vmul.f32 %v756, %v687
        %v758 = vmul.f32 %v756, %v688
        %761 = vrot.lane.b32.xlu0 %v757, 127
        %v762 = vpop.permute.xlu0 %761
        %763 = vrot.lane.b32.xlu0 %v758, 127
        %v764 = vpop.permute.xlu0 %763
        %v767 = vadd.f32 %v711, %v762
        %v768 = vadd.f32 %v712, %v764
        %s769 = sld [smem:[#allocation2 + $0xc]]
        %v770 = vstv %s769
        %v771 = vmul.f32 %v770, %v687
        %v772 = vmul.f32 %v770, %v688
        %775 = vrot.lane.b32.xlu0 %v771, 126
        %v776 = vpop.permute.xlu0 %775
        %777 = vrot.lane.b32.xlu0 %v772, 126
        %v778 = vpop.permute.xlu0 %777
        %v781 = vadd.f32 %v725, %v776
        %v782 = vadd.f32 %v726, %v778
        %s783 = sld [smem:[#allocation2 + $0x70]]
        %v784 = vstv %s783
        %v785 = vmul.f32 %v784, %v687
        %v786 = vmul.f32 %v784, %v688
        %789 = vrot.lane.b32.xlu0 %v785, 126
        %v790 = vpop.permute.xlu0 %789
        %791 = vrot.lane.b32.xlu0 %v786, 126
        %v792 = vpop.permute.xlu0 %791
        %v795 = vadd.f32 %v739, %v790
        %v796 = vadd.f32 %v740, %v792
        %s797 = sld [smem:[#allocation2 + $0xd4]]
        %v798 = vstv %s797
        %v799 = vmul.f32 %v798, %v687
        %v800 = vmul.f32 %v798, %v688
        %803 = vrot.lane.b32.xlu0 %v799, 126
        %v804 = vpop.permute.xlu0 %803
        %805 = vrot.lane.b32.xlu0 %v800, 126
        %v806 = vpop.permute.xlu0 %805
        %v809 = vadd.f32 %v753, %v804
        %v810 = vadd.f32 %v754, %v806
        %s811 = sld [smem:[#allocation2 + $0x138]]
        %v812 = vstv %s811
        %v813 = vmul.f32 %v812, %v687
        %v814 = vmul.f32 %v812, %v688
        %817 = vrot.lane.b32.xlu0 %v813, 126
        %v818 = vpop.permute.xlu0 %817
        %819 = vrot.lane.b32.xlu0 %v814, 126
        %v820 = vpop.permute.xlu0 %819
        %v823 = vadd.f32 %v767, %v818
        %v824 = vadd.f32 %v768, %v820
        %s825 = sld [smem:[#allocation2 + $0xd]]
        %v826 = vstv %s825
        %v827 = vmul.f32 %v826, %v687
        %v828 = vmul.f32 %v826, %v688
        %831 = vrot.lane.b32.xlu0 %v827, 125
        %v832 = vpop.permute.xlu0 %831
        %833 = vrot.lane.b32.xlu0 %v828, 125
        %v834 = vpop.permute.xlu0 %833
        %v837 = vadd.f32 %v781, %v832
        %v838 = vadd.f32 %v782, %v834
        %s839 = sld [smem:[#allocation2 + $0x71]]
        %v840 = vstv %s839
        %v841 = vmul.f32 %v840, %v687
        %v842 = vmul.f32 %v840, %v688
        %845 = vrot.lane.b32.xlu0 %v841, 125
        %v846 = vpop.permute.xlu0 %845
        %847 = vrot.lane.b32.xlu0 %v842, 125
        %v848 = vpop.permute.xlu0 %847
        %v851 = vadd.f32 %v795, %v846
        %v852 = vadd.f32 %v796, %v848
        %s853 = sld [smem:[#allocation2 + $0xd5]]
        %v854 = vstv %s853
        %v855 = vmul.f32 %v854, %v687
        %v856 = vmul.f32 %v854, %v688
        %859 = vrot.lane.b32.xlu0 %v855, 125
        %v860 = vpop.permute.xlu0 %859
        %861 = vrot.lane.b32.xlu0 %v856, 125
        %v862 = vpop.permute.xlu0 %861
        %v865 = vadd.f32 %v809, %v860
        %v866 = vadd.f32 %v810, %v862
        %s867 = sld [smem:[#allocation2 + $0x139]]
        %v868 = vstv %s867
        %v869 = vmul.f32 %v868, %v687
        %v870 = vmul.f32 %v868, %v688
        %873 = vrot.lane.b32.xlu0 %v869, 125
        %v874 = vpop.permute.xlu0 %873
        %875 = vrot.lane.b32.xlu0 %v870, 125
        %v876 = vpop.permute.xlu0 %875
        %v879 = vadd.f32 %v823, %v874
        %v880 = vadd.f32 %v824, %v876
        %s881 = sld [smem:[#allocation2 + $0xe]]
        %v882 = vstv %s881
        %v883 = vmul.f32 %v882, %v687
        %v884 = vmul.f32 %v882, %v688
        %887 = vrot.lane.b32.xlu0 %v883, 124
        %v888 = vpop.permute.xlu0 %887
        %889 = vrot.lane.b32.xlu0 %v884, 124
        %v890 = vpop.permute.xlu0 %889
        %v893 = vadd.f32 %v837, %v888
        %v894 = vadd.f32 %v838, %v890
        %s895 = sld [smem:[#allocation2 + $0x72]]
        %v896 = vstv %s895
        %v897 = vmul.f32 %v896, %v687
        %v898 = vmul.f32 %v896, %v688
        %901 = vrot.lane.b32.xlu0 %v897, 124
        %v902 = vpop.permute.xlu0 %901
        %903 = vrot.lane.b32.xlu0 %v898, 124
        %v904 = vpop.permute.xlu0 %903
        %v907 = vadd.f32 %v851, %v902
        %v908 = vadd.f32 %v852, %v904
        %s909 = sld [smem:[#allocation2 + $0xd6]]
        %v910 = vstv %s909
        %v911 = vmul.f32 %v910, %v687
        %v912 = vmul.f32 %v910, %v688
        %915 = vrot.lane.b32.xlu0 %v911, 124
        %v916 = vpop.permute.xlu0 %915
        %917 = vrot.lane.b32.xlu0 %v912, 124
        %v918 = vpop.permute.xlu0 %917
        %v921 = vadd.f32 %v865, %v916
        %v922 = vadd.f32 %v866, %v918
        %s923 = sld [smem:[#allocation2 + $0x13a]]
        %v924 = vstv %s923
        %v925 = vmul.f32 %v924, %v687
        %v926 = vmul.f32 %v924, %v688
        %929 = vrot.lane.b32.xlu0 %v925, 124
        %v930 = vpop.permute.xlu0 %929
        %931 = vrot.lane.b32.xlu0 %v926, 124
        %v932 = vpop.permute.xlu0 %931
        %v935 = vadd.f32 %v879, %v930
        %v936 = vadd.f32 %v880, %v932
        %s937 = sadd.s32 %s181, 3
        %s938 = scalar_lea.vmem %s170, %s937
        %v939 = vld [vmem:[%s938] sm:$0xff]
        %v940 = vld [vmem:[%s938 + $0x8] sm:$0xff]
        %s941 = sld [smem:[#allocation2 + $0xf]]
        %v942 = vstv %s941
        %v943 = vmul.f32 %v942, %v939
        %v944 = vmul.f32 %v942, %v940
        %v945 = vadd.f32 %v893, %v943
        %v946 = vadd.f32 %v894, %v944
        %s947 = sld [smem:[#allocation2 + $0x73]]
        %v948 = vstv %s947
        %v949 = vmul.f32 %v948, %v939
        %v950 = vmul.f32 %v948, %v940
        %v951 = vadd.f32 %v907, %v949
        %v952 = vadd.f32 %v908, %v950
        %s953 = sld [smem:[#allocation2 + $0xd7]]
        %v954 = vstv %s953
        %v955 = vmul.f32 %v954, %v939
        %v956 = vmul.f32 %v954, %v940
        %v957 = vadd.f32 %v921, %v955
        %v958 = vadd.f32 %v922, %v956
        %s959 = sld [smem:[#allocation2 + $0x13b]]
        %v960 = vstv %s959
        %v961 = vmul.f32 %v960, %v939
        %v962 = vmul.f32 %v960, %v940
        %v963 = vadd.f32 %v935, %v961
        %v964 = vadd.f32 %v936, %v962
        %s965 = sld [smem:[#allocation2 + $0x10]]
        %v966 = vstv %s965
        %v967 = vmul.f32 %v966, %v939
        %v968 = vmul.f32 %v966, %v940
        %971 = vrot.lane.b32.xlu0 %v967, 127
        %v972 = vpop.permute.xlu0 %971
        %973 = vrot.lane.b32.xlu0 %v968, 127
        %v974 = vpop.permute.xlu0 %973
        %v977 = vadd.f32 %v945, %v972
        %v978 = vadd.f32 %v946, %v974
        %s979 = sld [smem:[#allocation2 + $0x74]]
        %v980 = vstv %s979
        %v981 = vmul.f32 %v980, %v939
        %v982 = vmul.f32 %v980, %v940
        %985 = vrot.lane.b32.xlu0 %v981, 127
        %v986 = vpop.permute.xlu0 %985
        %987 = vrot.lane.b32.xlu0 %v982, 127
        %v988 = vpop.permute.xlu0 %987
        %v991 = vadd.f32 %v951, %v986
        %v992 = vadd.f32 %v952, %v988
        %s993 = sld [smem:[#allocation2 + $0xd8]]
        %v994 = vstv %s993
        %v995 = vmul.f32 %v994, %v939
        %v996 = vmul.f32 %v994, %v940
        %999 = vrot.lane.b32.xlu0 %v995, 127
        %v1000 = vpop.permute.xlu0 %999
        %1001 = vrot.lane.b32.xlu0 %v996, 127
        %v1002 = vpop.permute.xlu0 %1001
        %v1005 = vadd.f32 %v957, %v1000
        %v1006 = vadd.f32 %v958, %v1002
        %s1007 = sld [smem:[#allocation2 + $0x13c]]
        %v1008 = vstv %s1007
        %v1009 = vmul.f32 %v1008, %v939
        %v1010 = vmul.f32 %v1008, %v940
        %1013 = vrot.lane.b32.xlu0 %v1009, 127
        %v1014 = vpop.permute.xlu0 %1013
        %1015 = vrot.lane.b32.xlu0 %v1010, 127
        %v1016 = vpop.permute.xlu0 %1015
        %v1019 = vadd.f32 %v963, %v1014
        %v1020 = vadd.f32 %v964, %v1016
        %s1021 = sld [smem:[#allocation2 + $0x11]]
        %v1022 = vstv %s1021
        %v1023 = vmul.f32 %v1022, %v939
        %v1024 = vmul.f32 %v1022, %v940
        %1027 = vrot.lane.b32.xlu0 %v1023, 126
        %v1028 = vpop.permute.xlu0 %1027
        %1029 = vrot.lane.b32.xlu0 %v1024, 126
        %v1030 = vpop.permute.xlu0 %1029
        %v1033 = vadd.f32 %v977, %v1028
        %v1034 = vadd.f32 %v978, %v1030
        %s1035 = sld [smem:[#allocation2 + $0x75]]
        %v1036 = vstv %s1035
        %v1037 = vmul.f32 %v1036, %v939
        %v1038 = vmul.f32 %v1036, %v940
        %1041 = vrot.lane.b32.xlu0 %v1037, 126
        %v1042 = vpop.permute.xlu0 %1041
        %1043 = vrot.lane.b32.xlu0 %v1038, 126
        %v1044 = vpop.permute.xlu0 %1043
        %v1047 = vadd.f32 %v991, %v1042
        %v1048 = vadd.f32 %v992, %v1044
        %s1049 = sld [smem:[#allocation2 + $0xd9]]
        %v1050 = vstv %s1049
        %v1051 = vmul.f32 %v1050, %v939
        %v1052 = vmul.f32 %v1050, %v940
        %1055 = vrot.lane.b32.xlu0 %v1051, 126
        %v1056 = vpop.permute.xlu0 %1055
        %1057 = vrot.lane.b32.xlu0 %v1052, 126
        %v1058 = vpop.permute.xlu0 %1057
        %v1061 = vadd.f32 %v1005, %v1056
        %v1062 = vadd.f32 %v1006, %v1058
        %s1063 = sld [smem:[#allocation2 + $0x13d]]
        %v1064 = vstv %s1063
        %v1065 = vmul.f32 %v1064, %v939
        %v1066 = vmul.f32 %v1064, %v940
        %1069 = vrot.lane.b32.xlu0 %v1065, 126
        %v1070 = vpop.permute.xlu0 %1069
        %1071 = vrot.lane.b32.xlu0 %v1066, 126
        %v1072 = vpop.permute.xlu0 %1071
        %v1075 = vadd.f32 %v1019, %v1070
        %v1076 = vadd.f32 %v1020, %v1072
        %s1077 = sld [smem:[#allocation2 + $0x12]]
        %v1078 = vstv %s1077
        %v1079 = vmul.f32 %v1078, %v939
        %v1080 = vmul.f32 %v1078, %v940
        %1083 = vrot.lane.b32.xlu0 %v1079, 125
        %v1084 = vpop.permute.xlu0 %1083
        %1085 = vrot.lane.b32.xlu0 %v1080, 125
        %v1086 = vpop.permute.xlu0 %1085
        %v1089 = vadd.f32 %v1033, %v1084
        %v1090 = vadd.f32 %v1034, %v1086
        %s1091 = sld [smem:[#allocation2 + $0x76]]
        %v1092 = vstv %s1091
        %v1093 = vmul.f32 %v1092, %v939
        %v1094 = vmul.f32 %v1092, %v940
        %1097 = vrot.lane.b32.xlu0 %v1093, 125
        %v1098 = vpop.permute.xlu0 %1097
        %1099 = vrot.lane.b32.xlu0 %v1094, 125
        %v1100 = vpop.permute.xlu0 %1099
        %v1103 = vadd.f32 %v1047, %v1098
        %v1104 = vadd.f32 %v1048, %v1100
        %s1105 = sld [smem:[#allocation2 + $0xda]]
        %v1106 = vstv %s1105
        %v1107 = vmul.f32 %v1106, %v939
        %v1108 = vmul.f32 %v1106, %v940
        %1111 = vrot.lane.b32.xlu0 %v1107, 125
        %v1112 = vpop.permute.xlu0 %1111
        %1113 = vrot.lane.b32.xlu0 %v1108, 125
        %v1114 = vpop.permute.xlu0 %1113
        %v1117 = vadd.f32 %v1061, %v1112
        %v1118 = vadd.f32 %v1062, %v1114
        %s1119 = sld [smem:[#allocation2 + $0x13e]]
        %v1120 = vstv %s1119
        %v1121 = vmul.f32 %v1120, %v939
        %v1122 = vmul.f32 %v1120, %v940
        %1125 = vrot.lane.b32.xlu0 %v1121, 125
        %v1126 = vpop.permute.xlu0 %1125
        %1127 = vrot.lane.b32.xlu0 %v1122, 125
        %v1128 = vpop.permute.xlu0 %1127
        %v1131 = vadd.f32 %v1075, %v1126
        %v1132 = vadd.f32 %v1076, %v1128
        %s1133 = sld [smem:[#allocation2 + $0x13]]
        %v1134 = vstv %s1133
        %v1135 = vmul.f32 %v1134, %v939
        %v1136 = vmul.f32 %v1134, %v940
        %1139 = vrot.lane.b32.xlu0 %v1135, 124
        %v1140 = vpop.permute.xlu0 %1139
        %1141 = vrot.lane.b32.xlu0 %v1136, 124
        %v1142 = vpop.permute.xlu0 %1141
        %v1145 = vadd.f32 %v1089, %v1140
        %v1146 = vadd.f32 %v1090, %v1142
        %s1147 = sld [smem:[#allocation2 + $0x77]]
        %v1148 = vstv %s1147
        %v1149 = vmul.f32 %v1148, %v939
        %v1150 = vmul.f32 %v1148, %v940
        %1153 = vrot.lane.b32.xlu0 %v1149, 124
        %v1154 = vpop.permute.xlu0 %1153
        %1155 = vrot.lane.b32.xlu0 %v1150, 124
        %v1156 = vpop.permute.xlu0 %1155
        %v1159 = vadd.f32 %v1103, %v1154
        %v1160 = vadd.f32 %v1104, %v1156
        %s1161 = sld [smem:[#allocation2 + $0xdb]]
        %v1162 = vstv %s1161
        %v1163 = vmul.f32 %v1162, %v939
        %v1164 = vmul.f32 %v1162, %v940
        %1167 = vrot.lane.b32.xlu0 %v1163, 124
        %v1168 = vpop.permute.xlu0 %1167
        %1169 = vrot.lane.b32.xlu0 %v1164, 124
        %v1170 = vpop.permute.xlu0 %1169
        %v1173 = vadd.f32 %v1117, %v1168
        %v1174 = vadd.f32 %v1118, %v1170
        %s1175 = sld [smem:[#allocation2 + $0x13f]]
        %v1176 = vstv %s1175
        %v1177 = vmul.f32 %v1176, %v939
        %v1178 = vmul.f32 %v1176, %v940
        %1181 = vrot.lane.b32.xlu0 %v1177, 124
        %v1182 = vpop.permute.xlu0 %1181
        %1183 = vrot.lane.b32.xlu0 %v1178, 124
        %v1184 = vpop.permute.xlu0 %1183
        %v1187 = vadd.f32 %v1131, %v1182
        %v1188 = vadd.f32 %v1132, %v1184
        %s1189 = sadd.s32 %s181, 4
        %s1190 = scalar_lea.vmem %s170, %s1189
        %v1191 = vld [vmem:[%s1190] sm:$0xff]
        %v1192 = vld [vmem:[%s1190 + $0x8] sm:$0xff]
        %s1193 = sld [smem:[#allocation2 + $0x14]]
        %v1194 = vstv %s1193
        %v1195 = vmul.f32 %v1194, %v1191
        %v1196 = vmul.f32 %v1194, %v1192
        %v1197 = vadd.f32 %v1145, %v1195
        %v1198 = vadd.f32 %v1146, %v1196
        %s1199 = sld [smem:[#allocation2 + $0x78]]
        %v1200 = vstv %s1199
        %v1201 = vmul.f32 %v1200, %v1191
        %v1202 = vmul.f32 %v1200, %v1192
        %v1203 = vadd.f32 %v1159, %v1201
        %v1204 = vadd.f32 %v1160, %v1202
        %s1205 = sld [smem:[#allocation2 + $0xdc]]
        %v1206 = vstv %s1205
        %v1207 = vmul.f32 %v1206, %v1191
        %v1208 = vmul.f32 %v1206, %v1192
        %v1209 = vadd.f32 %v1173, %v1207
        %v1210 = vadd.f32 %v1174, %v1208
        %s1211 = sld [smem:[#allocation2 + $0x140]]
        %v1212 = vstv %s1211
        %v1213 = vmul.f32 %v1212, %v1191
        %v1214 = vmul.f32 %v1212, %v1192
        %v1215 = vadd.f32 %v1187, %v1213
        %v1216 = vadd.f32 %v1188, %v1214
        %s1217 = sld [smem:[#allocation2 + $0x15]]
        %v1218 = vstv %s1217
        %v1219 = vmul.f32 %v1218, %v1191
        %v1220 = vmul.f32 %v1218, %v1192
        %1223 = vrot.lane.b32.xlu0 %v1219, 127
        %v1224 = vpop.permute.xlu0 %1223
        %1225 = vrot.lane.b32.xlu0 %v1220, 127
        %v1226 = vpop.permute.xlu0 %1225
        %v1229 = vadd.f32 %v1197, %v1224
        %v1230 = vadd.f32 %v1198, %v1226
        %s1231 = sld [smem:[#allocation2 + $0x79]]
        %v1232 = vstv %s1231
        %v1233 = vmul.f32 %v1232, %v1191
        %v1234 = vmul.f32 %v1232, %v1192
        %1237 = vrot.lane.b32.xlu0 %v1233, 127
        %v1238 = vpop.permute.xlu0 %1237
        %1239 = vrot.lane.b32.xlu0 %v1234, 127
        %v1240 = vpop.permute.xlu0 %1239
        %v1243 = vadd.f32 %v1203, %v1238
        %v1244 = vadd.f32 %v1204, %v1240
        %s1245 = sld [smem:[#allocation2 + $0xdd]]
        %v1246 = vstv %s1245
        %v1247 = vmul.f32 %v1246, %v1191
        %v1248 = vmul.f32 %v1246, %v1192
        %1251 = vrot.lane.b32.xlu0 %v1247, 127
        %v1252 = vpop.permute.xlu0 %1251
        %1253 = vrot.lane.b32.xlu0 %v1248, 127
        %v1254 = vpop.permute.xlu0 %1253
        %v1257 = vadd.f32 %v1209, %v1252
        %v1258 = vadd.f32 %v1210, %v1254
        %s1259 = sld [smem:[#allocation2 + $0x141]]
        %v1260 = vstv %s1259
        %v1261 = vmul.f32 %v1260, %v1191
        %v1262 = vmul.f32 %v1260, %v1192
        %1265 = vrot.lane.b32.xlu0 %v1261, 127
        %v1266 = vpop.permute.xlu0 %1265
        %1267 = vrot.lane.b32.xlu0 %v1262, 127
        %v1268 = vpop.permute.xlu0 %1267
        %v1271 = vadd.f32 %v1215, %v1266
        %v1272 = vadd.f32 %v1216, %v1268
        %s1273 = sld [smem:[#allocation2 + $0x16]]
        %v1274 = vstv %s1273
        %v1275 = vmul.f32 %v1274, %v1191
        %v1276 = vmul.f32 %v1274, %v1192
        %1279 = vrot.lane.b32.xlu0 %v1275, 126
        %v1280 = vpop.permute.xlu0 %1279
        %1281 = vrot.lane.b32.xlu0 %v1276, 126
        %v1282 = vpop.permute.xlu0 %1281
        %v1285 = vadd.f32 %v1229, %v1280
        %v1286 = vadd.f32 %v1230, %v1282
        %s1287 = sld [smem:[#allocation2 + $0x7a]]
        %v1288 = vstv %s1287
        %v1289 = vmul.f32 %v1288, %v1191
        %v1290 = vmul.f32 %v1288, %v1192
        %1293 = vrot.lane.b32.xlu0 %v1289, 126
        %v1294 = vpop.permute.xlu0 %1293
        %1295 = vrot.lane.b32.xlu0 %v1290, 126
        %v1296 = vpop.permute.xlu0 %1295
        %v1299 = vadd.f32 %v1243, %v1294
        %v1300 = vadd.f32 %v1244, %v1296
        %s1301 = sld [smem:[#allocation2 + $0xde]]
        %v1302 = vstv %s1301
        %v1303 = vmul.f32 %v1302, %v1191
        %v1304 = vmul.f32 %v1302, %v1192
        %1307 = vrot.lane.b32.xlu0 %v1303, 126
        %v1308 = vpop.permute.xlu0 %1307
        %1309 = vrot.lane.b32.xlu0 %v1304, 126
        %v1310 = vpop.permute.xlu0 %1309
        %v1313 = vadd.f32 %v1257, %v1308
        %v1314 = vadd.f32 %v1258, %v1310
        %s1315 = sld [smem:[#allocation2 + $0x142]]
        %v1316 = vstv %s1315
        %v1317 = vmul.f32 %v1316, %v1191
        %v1318 = vmul.f32 %v1316, %v1192
        %1321 = vrot.lane.b32.xlu0 %v1317, 126
        %v1322 = vpop.permute.xlu0 %1321
        %1323 = vrot.lane.b32.xlu0 %v1318, 126
        %v1324 = vpop.permute.xlu0 %1323
        %v1327 = vadd.f32 %v1271, %v1322
        %v1328 = vadd.f32 %v1272, %v1324
        %s1329 = sld [smem:[#allocation2 + $0x17]]
        %v1330 = vstv %s1329
        %v1331 = vmul.f32 %v1330, %v1191
        %v1332 = vmul.f32 %v1330, %v1192
        %1335 = vrot.lane.b32.xlu0 %v1331, 125
        %v1336 = vpop.permute.xlu0 %1335
        %1337 = vrot.lane.b32.xlu0 %v1332, 125
        %v1338 = vpop.permute.xlu0 %1337
        %v1341 = vadd.f32 %v1285, %v1336
        %v1342 = vadd.f32 %v1286, %v1338
        %s1343 = sld [smem:[#allocation2 + $0x7b]]
        %v1344 = vstv %s1343
        %v1345 = vmul.f32 %v1344, %v1191
        %v1346 = vmul.f32 %v1344, %v1192
        %1349 = vrot.lane.b32.xlu0 %v1345, 125
        %v1350 = vpop.permute.xlu0 %1349
        %1351 = vrot.lane.b32.xlu0 %v1346, 125
        %v1352 = vpop.permute.xlu0 %1351
        %v1355 = vadd.f32 %v1299, %v1350
        %v1356 = vadd.f32 %v1300, %v1352
        %s1357 = sld [smem:[#allocation2 + $0xdf]]
        %v1358 = vstv %s1357
        %v1359 = vmul.f32 %v1358, %v1191
        %v1360 = vmul.f32 %v1358, %v1192
        %1363 = vrot.lane.b32.xlu0 %v1359, 125
        %v1364 = vpop.permute.xlu0 %1363
        %1365 = vrot.lane.b32.xlu0 %v1360, 125
        %v1366 = vpop.permute.xlu0 %1365
        %v1369 = vadd.f32 %v1313, %v1364
        %v1370 = vadd.f32 %v1314, %v1366
        %s1371 = sld [smem:[#allocation2 + $0x143]]
        %v1372 = vstv %s1371
        %v1373 = vmul.f32 %v1372, %v1191
        %v1374 = vmul.f32 %v1372, %v1192
        %1377 = vrot.lane.b32.xlu0 %v1373, 125
        %v1378 = vpop.permute.xlu0 %1377
        %1379 = vrot.lane.b32.xlu0 %v1374, 125
        %v1380 = vpop.permute.xlu0 %1379
        %v1383 = vadd.f32 %v1327, %v1378
        %v1384 = vadd.f32 %v1328, %v1380
        %s1385 = sld [smem:[#allocation2 + $0x18]]
        %v1386 = vstv %s1385
        %v1387 = vmul.f32 %v1386, %v1191
        %v1388 = vmul.f32 %v1386, %v1192
        %1391 = vrot.lane.b32.xlu0 %v1387, 124
        %v1392 = vpop.permute.xlu0 %1391
        %1393 = vrot.lane.b32.xlu0 %v1388, 124
        %v1394 = vpop.permute.xlu0 %1393
        %v1397 = vadd.f32 %v1341, %v1392
        %v1398 = vadd.f32 %v1342, %v1394
        %s1399 = sld [smem:[#allocation2 + $0x7c]]
        %v1400 = vstv %s1399
        %v1401 = vmul.f32 %v1400, %v1191
        %v1402 = vmul.f32 %v1400, %v1192
        %1405 = vrot.lane.b32.xlu0 %v1401, 124
        %v1406 = vpop.permute.xlu0 %1405
        %1407 = vrot.lane.b32.xlu0 %v1402, 124
        %v1408 = vpop.permute.xlu0 %1407
        %v1411 = vadd.f32 %v1355, %v1406
        %v1412 = vadd.f32 %v1356, %v1408
        %s1413 = sld [smem:[#allocation2 + $0xe0]]
        %v1414 = vstv %s1413
        %v1415 = vmul.f32 %v1414, %v1191
        %v1416 = vmul.f32 %v1414, %v1192
        %1419 = vrot.lane.b32.xlu0 %v1415, 124
        %v1420 = vpop.permute.xlu0 %1419
        %1421 = vrot.lane.b32.xlu0 %v1416, 124
        %v1422 = vpop.permute.xlu0 %1421
        %v1425 = vadd.f32 %v1369, %v1420
        %v1426 = vadd.f32 %v1370, %v1422
        %s1427 = sld [smem:[#allocation2 + $0x144]]
        %v1428 = vstv %s1427
        %v1429 = vmul.f32 %v1428, %v1191
        %v1430 = vmul.f32 %v1428, %v1192
        %1433 = vrot.lane.b32.xlu0 %v1429, 124
        %v1434 = vpop.permute.xlu0 %1433
        %1435 = vrot.lane.b32.xlu0 %v1430, 124
        %v1436 = vpop.permute.xlu0 %1435
        %v1439 = vadd.f32 %v1383, %v1434
        %v1440 = vadd.f32 %v1384, %v1436
        %s1441 = sadd.s32 %s181, 24
        %s1442 = scalar_lea.vmem %s170, %s1441
        %v1443 = vld [vmem:[%s1442] sm:$0xff]
        %v1444 = vld [vmem:[%s1442 + $0x8] sm:$0xff]
        %s1445 = sld [smem:[#allocation2 + $0x19]]
        %v1446 = vstv %s1445
        %v1447 = vmul.f32 %v1446, %v1443
        %v1448 = vmul.f32 %v1446, %v1444
        %v1449 = vadd.f32 %v1397, %v1447
        %v1450 = vadd.f32 %v1398, %v1448
        %s1451 = sld [smem:[#allocation2 + $0x7d]]
        %v1452 = vstv %s1451
        %v1453 = vmul.f32 %v1452, %v1443
        %v1454 = vmul.f32 %v1452, %v1444
        %v1455 = vadd.f32 %v1411, %v1453
        %v1456 = vadd.f32 %v1412, %v1454
        %s1457 = sld [smem:[#allocation2 + $0xe1]]
        %v1458 = vstv %s1457
        %v1459 = vmul.f32 %v1458, %v1443
        %v1460 = vmul.f32 %v1458, %v1444
        %v1461 = vadd.f32 %v1425, %v1459
        %v1462 = vadd.f32 %v1426, %v1460
        %s1463 = sld [smem:[#allocation2 + $0x145]]
        %v1464 = vstv %s1463
        %v1465 = vmul.f32 %v1464, %v1443
        %v1466 = vmul.f32 %v1464, %v1444
        %v1467 = vadd.f32 %v1439, %v1465
        %v1468 = vadd.f32 %v1440, %v1466
        %s1469 = sld [smem:[#allocation2 + $0x1a]]
        %v1470 = vstv %s1469
        %v1471 = vmul.f32 %v1470, %v1443
        %v1472 = vmul.f32 %v1470, %v1444
        %1475 = vrot.lane.b32.xlu0 %v1471, 127
        %v1476 = vpop.permute.xlu0 %1475
        %1477 = vrot.lane.b32.xlu0 %v1472, 127
        %v1478 = vpop.permute.xlu0 %1477
        %v1481 = vadd.f32 %v1449, %v1476
        %v1482 = vadd.f32 %v1450, %v1478
        %s1483 = sld [smem:[#allocation2 + $0x7e]]
        %v1484 = vstv %s1483
        %v1485 = vmul.f32 %v1484, %v1443
        %v1486 = vmul.f32 %v1484, %v1444
        %1489 = vrot.lane.b32.xlu0 %v1485, 127
        %v1490 = vpop.permute.xlu0 %1489
        %1491 = vrot.lane.b32.xlu0 %v1486, 127
        %v1492 = vpop.permute.xlu0 %1491
        %v1495 = vadd.f32 %v1455, %v1490
        %v1496 = vadd.f32 %v1456, %v1492
        %s1497 = sld [smem:[#allocation2 + $0xe2]]
        %v1498 = vstv %s1497
        %v1499 = vmul.f32 %v1498, %v1443
        %v1500 = vmul.f32 %v1498, %v1444
        %1503 = vrot.lane.b32.xlu0 %v1499, 127
        %v1504 = vpop.permute.xlu0 %1503
        %1505 = vrot.lane.b32.xlu0 %v1500, 127
        %v1506 = vpop.permute.xlu0 %1505
        %v1509 = vadd.f32 %v1461, %v1504
        %v1510 = vadd.f32 %v1462, %v1506
        %s1511 = sld [smem:[#allocation2 + $0x146]]
        %v1512 = vstv %s1511
        %v1513 = vmul.f32 %v1512, %v1443
        %v1514 = vmul.f32 %v1512, %v1444
        %1517 = vrot.lane.b32.xlu0 %v1513, 127
        %v1518 = vpop.permute.xlu0 %1517
        %1519 = vrot.lane.b32.xlu0 %v1514, 127
        %v1520 = vpop.permute.xlu0 %1519
        %v1523 = vadd.f32 %v1467, %v1518
        %v1524 = vadd.f32 %v1468, %v1520
        %s1525 = sld [smem:[#allocation2 + $0x1b]]
        %v1526 = vstv %s1525
        %v1527 = vmul.f32 %v1526, %v1443
        %v1528 = vmul.f32 %v1526, %v1444
        %1531 = vrot.lane.b32.xlu0 %v1527, 126
        %v1532 = vpop.permute.xlu0 %1531
        %1533 = vrot.lane.b32.xlu0 %v1528, 126
        %v1534 = vpop.permute.xlu0 %1533
        %v1537 = vadd.f32 %v1481, %v1532
        %v1538 = vadd.f32 %v1482, %v1534
        %s1539 = sld [smem:[#allocation2 + $0x7f]]
        %v1540 = vstv %s1539
        %v1541 = vmul.f32 %v1540, %v1443
        %v1542 = vmul.f32 %v1540, %v1444
        %1545 = vrot.lane.b32.xlu0 %v1541, 126
        %v1546 = vpop.permute.xlu0 %1545
        %1547 = vrot.lane.b32.xlu0 %v1542, 126
        %v1548 = vpop.permute.xlu0 %1547
        %v1551 = vadd.f32 %v1495, %v1546
        %v1552 = vadd.f32 %v1496, %v1548
        %s1553 = sld [smem:[#allocation2 + $0xe3]]
        %v1554 = vstv %s1553
        %v1555 = vmul.f32 %v1554, %v1443
        %v1556 = vmul.f32 %v1554, %v1444
        %1559 = vrot.lane.b32.xlu0 %v1555, 126
        %v1560 = vpop.permute.xlu0 %1559
        %1561 = vrot.lane.b32.xlu0 %v1556, 126
        %v1562 = vpop.permute.xlu0 %1561
        %v1565 = vadd.f32 %v1509, %v1560
        %v1566 = vadd.f32 %v1510, %v1562
        %s1567 = sld [smem:[#allocation2 + $0x147]]
        %v1568 = vstv %s1567
        %v1569 = vmul.f32 %v1568, %v1443
        %v1570 = vmul.f32 %v1568, %v1444
        %1573 = vrot.lane.b32.xlu0 %v1569, 126
        %v1574 = vpop.permute.xlu0 %1573
        %1575 = vrot.lane.b32.xlu0 %v1570, 126
        %v1576 = vpop.permute.xlu0 %1575
        %v1579 = vadd.f32 %v1523, %v1574
        %v1580 = vadd.f32 %v1524, %v1576
        %s1581 = sld [smem:[#allocation2 + $0x1c]]
        %v1582 = vstv %s1581
        %v1583 = vmul.f32 %v1582, %v1443
        %v1584 = vmul.f32 %v1582, %v1444
        %1587 = vrot.lane.b32.xlu0 %v1583, 125
        %v1588 = vpop.permute.xlu0 %1587
        %1589 = vrot.lane.b32.xlu0 %v1584, 125
        %v1590 = vpop.permute.xlu0 %1589
        %v1593 = vadd.f32 %v1537, %v1588
        %v1594 = vadd.f32 %v1538, %v1590
        %s1595 = sld [smem:[#allocation2 + $0x80]]
        %v1596 = vstv %s1595
        %v1597 = vmul.f32 %v1596, %v1443
        %v1598 = vmul.f32 %v1596, %v1444
        %1601 = vrot.lane.b32.xlu0 %v1597, 125
        %v1602 = vpop.permute.xlu0 %1601
        %1603 = vrot.lane.b32.xlu0 %v1598, 125
        %v1604 = vpop.permute.xlu0 %1603
        %v1607 = vadd.f32 %v1551, %v1602
        %v1608 = vadd.f32 %v1552, %v1604
        %s1609 = sld [smem:[#allocation2 + $0xe4]]
        %v1610 = vstv %s1609
        %v1611 = vmul.f32 %v1610, %v1443
        %v1612 = vmul.f32 %v1610, %v1444
        %1615 = vrot.lane.b32.xlu0 %v1611, 125
        %v1616 = vpop.permute.xlu0 %1615
        %1617 = vrot.lane.b32.xlu0 %v1612, 125
        %v1618 = vpop.permute.xlu0 %1617
        %v1621 = vadd.f32 %v1565, %v1616
        %v1622 = vadd.f32 %v1566, %v1618
        %s1623 = sld [smem:[#allocation2 + $0x148]]
        %v1624 = vstv %s1623
        %v1625 = vmul.f32 %v1624, %v1443
        %v1626 = vmul.f32 %v1624, %v1444
        %1629 = vrot.lane.b32.xlu0 %v1625, 125
        %v1630 = vpop.permute.xlu0 %1629
        %1631 = vrot.lane.b32.xlu0 %v1626, 125
        %v1632 = vpop.permute.xlu0 %1631
        %v1635 = vadd.f32 %v1579, %v1630
        %v1636 = vadd.f32 %v1580, %v1632
        %s1637 = sld [smem:[#allocation2 + $0x1d]]
        %v1638 = vstv %s1637
        %v1639 = vmul.f32 %v1638, %v1443
        %v1640 = vmul.f32 %v1638, %v1444
        %1643 = vrot.lane.b32.xlu0 %v1639, 124
        %v1644 = vpop.permute.xlu0 %1643
        %1645 = vrot.lane.b32.xlu0 %v1640, 124
        %v1646 = vpop.permute.xlu0 %1645
        %v1649 = vadd.f32 %v1593, %v1644
        %v1650 = vadd.f32 %v1594, %v1646
        %s1651 = sld [smem:[#allocation2 + $0x81]]
        %v1652 = vstv %s1651
        %v1653 = vmul.f32 %v1652, %v1443
        %v1654 = vmul.f32 %v1652, %v1444
        %1657 = vrot.lane.b32.xlu0 %v1653, 124
        %v1658 = vpop.permute.xlu0 %1657
        %1659 = vrot.lane.b32.xlu0 %v1654, 124
        %v1660 = vpop.permute.xlu0 %1659
        %v1663 = vadd.f32 %v1607, %v1658
        %v1664 = vadd.f32 %v1608, %v1660
        %s1665 = sld [smem:[#allocation2 + $0xe5]]
        %v1666 = vstv %s1665
        %v1667 = vmul.f32 %v1666, %v1443
        %v1668 = vmul.f32 %v1666, %v1444
        %1671 = vrot.lane.b32.xlu0 %v1667, 124
        %v1672 = vpop.permute.xlu0 %1671
        %1673 = vrot.lane.b32.xlu0 %v1668, 124
        %v1674 = vpop.permute.xlu0 %1673
        %v1677 = vadd.f32 %v1621, %v1672
        %v1678 = vadd.f32 %v1622, %v1674
        %s1679 = sld [smem:[#allocation2 + $0x149]]
        %v1680 = vstv %s1679
        %v1681 = vmul.f32 %v1680, %v1443
        %v1682 = vmul.f32 %v1680, %v1444
        %1685 = vrot.lane.b32.xlu0 %v1681, 124
        %v1686 = vpop.permute.xlu0 %1685
        %1687 = vrot.lane.b32.xlu0 %v1682, 124
        %v1688 = vpop.permute.xlu0 %1687
        %v1691 = vadd.f32 %v1635, %v1686
        %v1692 = vadd.f32 %v1636, %v1688
        %s1693 = sadd.s32 %s433, 24
        %s1694 = scalar_lea.vmem %s170, %s1693
        %v1695 = vld [vmem:[%s1694] sm:$0xff]
        %v1696 = vld [vmem:[%s1694 + $0x8] sm:$0xff]
        %s1697 = sld [smem:[#allocation2 + $0x1e]]
        %v1698 = vstv %s1697
        %v1699 = vmul.f32 %v1698, %v1695
        %v1700 = vmul.f32 %v1698, %v1696
        %v1701 = vadd.f32 %v1649, %v1699
        %v1702 = vadd.f32 %v1650, %v1700
        %s1703 = sld [smem:[#allocation2 + $0x82]]
        %v1704 = vstv %s1703
        %v1705 = vmul.f32 %v1704, %v1695
        %v1706 = vmul.f32 %v1704, %v1696
        %v1707 = vadd.f32 %v1663, %v1705
        %v1708 = vadd.f32 %v1664, %v1706
        %s1709 = sld [smem:[#allocation2 + $0xe6]]
        %v1710 = vstv %s1709
        %v1711 = vmul.f32 %v1710, %v1695
        %v1712 = vmul.f32 %v1710, %v1696
        %v1713 = vadd.f32 %v1677, %v1711
        %v1714 = vadd.f32 %v1678, %v1712
        %s1715 = sld [smem:[#allocation2 + $0x14a]]
        %v1716 = vstv %s1715
        %v1717 = vmul.f32 %v1716, %v1695
        %v1718 = vmul.f32 %v1716, %v1696
        %v1719 = vadd.f32 %v1691, %v1717
        %v1720 = vadd.f32 %v1692, %v1718
        %s1721 = sld [smem:[#allocation2 + $0x1f]]
        %v1722 = vstv %s1721
        %v1723 = vmul.f32 %v1722, %v1695
        %v1724 = vmul.f32 %v1722, %v1696
        %1727 = vrot.lane.b32.xlu0 %v1723, 127
        %v1728 = vpop.permute.xlu0 %1727
        %1729 = vrot.lane.b32.xlu0 %v1724, 127
        %v1730 = vpop.permute.xlu0 %1729
        %v1733 = vadd.f32 %v1701, %v1728
        %v1734 = vadd.f32 %v1702, %v1730
        %s1735 = sld [smem:[#allocation2 + $0x83]]
        %v1736 = vstv %s1735
        %v1737 = vmul.f32 %v1736, %v1695
        %v1738 = vmul.f32 %v1736, %v1696
        %1741 = vrot.lane.b32.xlu0 %v1737, 127
        %v1742 = vpop.permute.xlu0 %1741
        %1743 = vrot.lane.b32.xlu0 %v1738, 127
        %v1744 = vpop.permute.xlu0 %1743
        %v1747 = vadd.f32 %v1707, %v1742
        %v1748 = vadd.f32 %v1708, %v1744
        %s1749 = sld [smem:[#allocation2 + $0xe7]]
        %v1750 = vstv %s1749
        %v1751 = vmul.f32 %v1750, %v1695
        %v1752 = vmul.f32 %v1750, %v1696
        %1755 = vrot.lane.b32.xlu0 %v1751, 127
        %v1756 = vpop.permute.xlu0 %1755
        %1757 = vrot.lane.b32.xlu0 %v1752, 127
        %v1758 = vpop.permute.xlu0 %1757
        %v1761 = vadd.f32 %v1713, %v1756
        %v1762 = vadd.f32 %v1714, %v1758
        %s1763 = sld [smem:[#allocation2 + $0x14b]]
        %v1764 = vstv %s1763
        %v1765 = vmul.f32 %v1764, %v1695
        %v1766 = vmul.f32 %v1764, %v1696
        %1769 = vrot.lane.b32.xlu0 %v1765, 127
        %v1770 = vpop.permute.xlu0 %1769
        %1771 = vrot.lane.b32.xlu0 %v1766, 127
        %v1772 = vpop.permute.xlu0 %1771
        %v1775 = vadd.f32 %v1719, %v1770
        %v1776 = vadd.f32 %v1720, %v1772
        %s1777 = sld [smem:[#allocation2 + $0x20]]
        %v1778 = vstv %s1777
        %v1779 = vmul.f32 %v1778, %v1695
        %v1780 = vmul.f32 %v1778, %v1696
        %1783 = vrot.lane.b32.xlu0 %v1779, 126
        %v1784 = vpop.permute.xlu0 %1783
        %1785 = vrot.lane.b32.xlu0 %v1780, 126
        %v1786 = vpop.permute.xlu0 %1785
        %v1789 = vadd.f32 %v1733, %v1784
        %v1790 = vadd.f32 %v1734, %v1786
        %s1791 = sld [smem:[#allocation2 + $0x84]]
        %v1792 = vstv %s1791
        %v1793 = vmul.f32 %v1792, %v1695
        %v1794 = vmul.f32 %v1792, %v1696
        %1797 = vrot.lane.b32.xlu0 %v1793, 126
        %v1798 = vpop.permute.xlu0 %1797
        %1799 = vrot.lane.b32.xlu0 %v1794, 126
        %v1800 = vpop.permute.xlu0 %1799
        %v1803 = vadd.f32 %v1747, %v1798
        %v1804 = vadd.f32 %v1748, %v1800
        %s1805 = sld [smem:[#allocation2 + $0xe8]]
        %v1806 = vstv %s1805
        %v1807 = vmul.f32 %v1806, %v1695
        %v1808 = vmul.f32 %v1806, %v1696
        %1811 = vrot.lane.b32.xlu0 %v1807, 126
        %v1812 = vpop.permute.xlu0 %1811
        %1813 = vrot.lane.b32.xlu0 %v1808, 126
        %v1814 = vpop.permute.xlu0 %1813
        %v1817 = vadd.f32 %v1761, %v1812
        %v1818 = vadd.f32 %v1762, %v1814
        %s1819 = sld [smem:[#allocation2 + $0x14c]]
        %v1820 = vstv %s1819
        %v1821 = vmul.f32 %v1820, %v1695
        %v1822 = vmul.f32 %v1820, %v1696
        %1825 = vrot.lane.b32.xlu0 %v1821, 126
        %v1826 = vpop.permute.xlu0 %1825
        %1827 = vrot.lane.b32.xlu0 %v1822, 126
        %v1828 = vpop.permute.xlu0 %1827
        %v1831 = vadd.f32 %v1775, %v1826
        %v1832 = vadd.f32 %v1776, %v1828
        %s1833 = sld [smem:[#allocation2 + $0x21]]
        %v1834 = vstv %s1833
        %v1835 = vmul.f32 %v1834, %v1695
        %v1836 = vmul.f32 %v1834, %v1696
        %1839 = vrot.lane.b32.xlu0 %v1835, 125
        %v1840 = vpop.permute.xlu0 %1839
        %1841 = vrot.lane.b32.xlu0 %v1836, 125
        %v1842 = vpop.permute.xlu0 %1841
        %v1845 = vadd.f32 %v1789, %v1840
        %v1846 = vadd.f32 %v1790, %v1842
        %s1847 = sld [smem:[#allocation2 + $0x85]]
        %v1848 = vstv %s1847
        %v1849 = vmul.f32 %v1848, %v1695
        %v1850 = vmul.f32 %v1848, %v1696
        %1853 = vrot.lane.b32.xlu0 %v1849, 125
        %v1854 = vpop.permute.xlu0 %1853
        %1855 = vrot.lane.b32.xlu0 %v1850, 125
        %v1856 = vpop.permute.xlu0 %1855
        %v1859 = vadd.f32 %v1803, %v1854
        %v1860 = vadd.f32 %v1804, %v1856
        %s1861 = sld [smem:[#allocation2 + $0xe9]]
        %v1862 = vstv %s1861
        %v1863 = vmul.f32 %v1862, %v1695
        %v1864 = vmul.f32 %v1862, %v1696
        %1867 = vrot.lane.b32.xlu0 %v1863, 125
        %v1868 = vpop.permute.xlu0 %1867
        %1869 = vrot.lane.b32.xlu0 %v1864, 125
        %v1870 = vpop.permute.xlu0 %1869
        %v1873 = vadd.f32 %v1817, %v1868
        %v1874 = vadd.f32 %v1818, %v1870
        %s1875 = sld [smem:[#allocation2 + $0x14d]]
        %v1876 = vstv %s1875
        %v1877 = vmul.f32 %v1876, %v1695
        %v1878 = vmul.f32 %v1876, %v1696
        %1881 = vrot.lane.b32.xlu0 %v1877, 125
        %v1882 = vpop.permute.xlu0 %1881
        %1883 = vrot.lane.b32.xlu0 %v1878, 125
        %v1884 = vpop.permute.xlu0 %1883
        %v1887 = vadd.f32 %v1831, %v1882
        %v1888 = vadd.f32 %v1832, %v1884
        %s1889 = sld [smem:[#allocation2 + $0x22]]
        %v1890 = vstv %s1889
        %v1891 = vmul.f32 %v1890, %v1695
        %v1892 = vmul.f32 %v1890, %v1696
        %1895 = vrot.lane.b32.xlu0 %v1891, 124
        %v1896 = vpop.permute.xlu0 %1895
        %1897 = vrot.lane.b32.xlu0 %v1892, 124
        %v1898 = vpop.permute.xlu0 %1897
        %v1901 = vadd.f32 %v1845, %v1896
        %v1902 = vadd.f32 %v1846, %v1898
        %s1903 = sld [smem:[#allocation2 + $0x86]]
        %v1904 = vstv %s1903
        %v1905 = vmul.f32 %v1904, %v1695
        %v1906 = vmul.f32 %v1904, %v1696
        %1909 = vrot.lane.b32.xlu0 %v1905, 124
        %v1910 = vpop.permute.xlu0 %1909
        %1911 = vrot.lane.b32.xlu0 %v1906, 124
        %v1912 = vpop.permute.xlu0 %1911
        %v1915 = vadd.f32 %v1859, %v1910
        %v1916 = vadd.f32 %v1860, %v1912
        %s1917 = sld [smem:[#allocation2 + $0xea]]
        %v1918 = vstv %s1917
        %v1919 = vmul.f32 %v1918, %v1695
        %v1920 = vmul.f32 %v1918, %v1696
        %1923 = vrot.lane.b32.xlu0 %v1919, 124
        %v1924 = vpop.permute.xlu0 %1923
        %1925 = vrot.lane.b32.xlu0 %v1920, 124
        %v1926 = vpop.permute.xlu0 %1925
        %v1929 = vadd.f32 %v1873, %v1924
        %v1930 = vadd.f32 %v1874, %v1926
        %s1931 = sld [smem:[#allocation2 + $0x14e]]
        %v1932 = vstv %s1931
        %v1933 = vmul.f32 %v1932, %v1695
        %v1934 = vmul.f32 %v1932, %v1696
        %1937 = vrot.lane.b32.xlu0 %v1933, 124
        %v1938 = vpop.permute.xlu0 %1937
        %1939 = vrot.lane.b32.xlu0 %v1934, 124
        %v1940 = vpop.permute.xlu0 %1939
        %v1943 = vadd.f32 %v1887, %v1938
        %v1944 = vadd.f32 %v1888, %v1940
        %s1945 = sadd.s32 %s685, 24
        %s1946 = scalar_lea.vmem %s170, %s1945
        %v1947 = vld [vmem:[%s1946] sm:$0xff]
        %v1948 = vld [vmem:[%s1946 + $0x8] sm:$0xff]
        %s1949 = sld [smem:[#allocation2 + $0x23]]
        %v1950 = vstv %s1949
        %v1951 = vmul.f32 %v1950, %v1947
        %v1952 = vmul.f32 %v1950, %v1948
        %v1953 = vadd.f32 %v1901, %v1951
        %v1954 = vadd.f32 %v1902, %v1952
        %s1955 = sld [smem:[#allocation2 + $0x87]]
        %v1956 = vstv %s1955
        %v1957 = vmul.f32 %v1956, %v1947
        %v1958 = vmul.f32 %v1956, %v1948
        %v1959 = vadd.f32 %v1915, %v1957
        %v1960 = vadd.f32 %v1916, %v1958
        %s1961 = sld [smem:[#allocation2 + $0xeb]]
        %v1962 = vstv %s1961
        %v1963 = vmul.f32 %v1962, %v1947
        %v1964 = vmul.f32 %v1962, %v1948
        %v1965 = vadd.f32 %v1929, %v1963
        %v1966 = vadd.f32 %v1930, %v1964
        %s1967 = sld [smem:[#allocation2 + $0x14f]]
        %v1968 = vstv %s1967
        %v1969 = vmul.f32 %v1968, %v1947
        %v1970 = vmul.f32 %v1968, %v1948
        %v1971 = vadd.f32 %v1943, %v1969
        %v1972 = vadd.f32 %v1944, %v1970
        %s1973 = sld [smem:[#allocation2 + $0x24]]
        %v1974 = vstv %s1973
        %v1975 = vmul.f32 %v1974, %v1947
        %v1976 = vmul.f32 %v1974, %v1948
        %1979 = vrot.lane.b32.xlu0 %v1975, 127
        %v1980 = vpop.permute.xlu0 %1979
        %1981 = vrot.lane.b32.xlu0 %v1976, 127
        %v1982 = vpop.permute.xlu0 %1981
        %v1985 = vadd.f32 %v1953, %v1980
        %v1986 = vadd.f32 %v1954, %v1982
        %s1987 = sld [smem:[#allocation2 + $0x88]]
        %v1988 = vstv %s1987
        %v1989 = vmul.f32 %v1988, %v1947
        %v1990 = vmul.f32 %v1988, %v1948
        %1993 = vrot.lane.b32.xlu0 %v1989, 127
        %v1994 = vpop.permute.xlu0 %1993
        %1995 = vrot.lane.b32.xlu0 %v1990, 127
        %v1996 = vpop.permute.xlu0 %1995
        %v1999 = vadd.f32 %v1959, %v1994
        %v2000 = vadd.f32 %v1960, %v1996
        %s2001 = sld [smem:[#allocation2 + $0xec]]
        %v2002 = vstv %s2001
        %v2003 = vmul.f32 %v2002, %v1947
        %v2004 = vmul.f32 %v2002, %v1948
        %2007 = vrot.lane.b32.xlu0 %v2003, 127
        %v2008 = vpop.permute.xlu0 %2007
        %2009 = vrot.lane.b32.xlu0 %v2004, 127
        %v2010 = vpop.permute.xlu0 %2009
        %v2013 = vadd.f32 %v1965, %v2008
        %v2014 = vadd.f32 %v1966, %v2010
        %s2015 = sld [smem:[#allocation2 + $0x150]]
        %v2016 = vstv %s2015
        %v2017 = vmul.f32 %v2016, %v1947
        %v2018 = vmul.f32 %v2016, %v1948
        %2021 = vrot.lane.b32.xlu0 %v2017, 127
        %v2022 = vpop.permute.xlu0 %2021
        %2023 = vrot.lane.b32.xlu0 %v2018, 127
        %v2024 = vpop.permute.xlu0 %2023
        %v2027 = vadd.f32 %v1971, %v2022
        %v2028 = vadd.f32 %v1972, %v2024
        %s2029 = sld [smem:[#allocation2 + $0x25]]
        %v2030 = vstv %s2029
        %v2031 = vmul.f32 %v2030, %v1947
        %v2032 = vmul.f32 %v2030, %v1948
        %2035 = vrot.lane.b32.xlu0 %v2031, 126
        %v2036 = vpop.permute.xlu0 %2035
        %2037 = vrot.lane.b32.xlu0 %v2032, 126
        %v2038 = vpop.permute.xlu0 %2037
        %v2041 = vadd.f32 %v1985, %v2036
        %v2042 = vadd.f32 %v1986, %v2038
        %s2043 = sld [smem:[#allocation2 + $0x89]]
        %v2044 = vstv %s2043
        %v2045 = vmul.f32 %v2044, %v1947
        %v2046 = vmul.f32 %v2044, %v1948
        %2049 = vrot.lane.b32.xlu0 %v2045, 126
        %v2050 = vpop.permute.xlu0 %2049
        %2051 = vrot.lane.b32.xlu0 %v2046, 126
        %v2052 = vpop.permute.xlu0 %2051
        %v2055 = vadd.f32 %v1999, %v2050
        %v2056 = vadd.f32 %v2000, %v2052
        %s2057 = sld [smem:[#allocation2 + $0xed]]
        %v2058 = vstv %s2057
        %v2059 = vmul.f32 %v2058, %v1947
        %v2060 = vmul.f32 %v2058, %v1948
        %2063 = vrot.lane.b32.xlu0 %v2059, 126
        %v2064 = vpop.permute.xlu0 %2063
        %2065 = vrot.lane.b32.xlu0 %v2060, 126
        %v2066 = vpop.permute.xlu0 %2065
        %v2069 = vadd.f32 %v2013, %v2064
        %v2070 = vadd.f32 %v2014, %v2066
        %s2071 = sld [smem:[#allocation2 + $0x151]]
        %v2072 = vstv %s2071
        %v2073 = vmul.f32 %v2072, %v1947
        %v2074 = vmul.f32 %v2072, %v1948
        %2077 = vrot.lane.b32.xlu0 %v2073, 126
        %v2078 = vpop.permute.xlu0 %2077
        %2079 = vrot.lane.b32.xlu0 %v2074, 126
        %v2080 = vpop.permute.xlu0 %2079
        %v2083 = vadd.f32 %v2027, %v2078
        %v2084 = vadd.f32 %v2028, %v2080
        %s2085 = sld [smem:[#allocation2 + $0x26]]
        %v2086 = vstv %s2085
        %v2087 = vmul.f32 %v2086, %v1947
        %v2088 = vmul.f32 %v2086, %v1948
        %2091 = vrot.lane.b32.xlu0 %v2087, 125
        %v2092 = vpop.permute.xlu0 %2091
        %2093 = vrot.lane.b32.xlu0 %v2088, 125
        %v2094 = vpop.permute.xlu0 %2093
        %v2097 = vadd.f32 %v2041, %v2092
        %v2098 = vadd.f32 %v2042, %v2094
        %s2099 = sld [smem:[#allocation2 + $0x8a]]
        %v2100 = vstv %s2099
        %v2101 = vmul.f32 %v2100, %v1947
        %v2102 = vmul.f32 %v2100, %v1948
        %2105 = vrot.lane.b32.xlu0 %v2101, 125
        %v2106 = vpop.permute.xlu0 %2105
        %2107 = vrot.lane.b32.xlu0 %v2102, 125
        %v2108 = vpop.permute.xlu0 %2107
        %v2111 = vadd.f32 %v2055, %v2106
        %v2112 = vadd.f32 %v2056, %v2108
        %s2113 = sld [smem:[#allocation2 + $0xee]]
        %v2114 = vstv %s2113
        %v2115 = vmul.f32 %v2114, %v1947
        %v2116 = vmul.f32 %v2114, %v1948
        %2119 = vrot.lane.b32.xlu0 %v2115, 125
        %v2120 = vpop.permute.xlu0 %2119
        %2121 = vrot.lane.b32.xlu0 %v2116, 125
        %v2122 = vpop.permute.xlu0 %2121
        %v2125 = vadd.f32 %v2069, %v2120
        %v2126 = vadd.f32 %v2070, %v2122
        %s2127 = sld [smem:[#allocation2 + $0x152]]
        %v2128 = vstv %s2127
        %v2129 = vmul.f32 %v2128, %v1947
        %v2130 = vmul.f32 %v2128, %v1948
        %2133 = vrot.lane.b32.xlu0 %v2129, 125
        %v2134 = vpop.permute.xlu0 %2133
        %2135 = vrot.lane.b32.xlu0 %v2130, 125
        %v2136 = vpop.permute.xlu0 %2135
        %v2139 = vadd.f32 %v2083, %v2134
        %v2140 = vadd.f32 %v2084, %v2136
        %s2141 = sld [smem:[#allocation2 + $0x27]]
        %v2142 = vstv %s2141
        %v2143 = vmul.f32 %v2142, %v1947
        %v2144 = vmul.f32 %v2142, %v1948
        %2147 = vrot.lane.b32.xlu0 %v2143, 124
        %v2148 = vpop.permute.xlu0 %2147
        %2149 = vrot.lane.b32.xlu0 %v2144, 124
        %v2150 = vpop.permute.xlu0 %2149
        %v2153 = vadd.f32 %v2097, %v2148
        %v2154 = vadd.f32 %v2098, %v2150
        %s2155 = sld [smem:[#allocation2 + $0x8b]]
        %v2156 = vstv %s2155
        %v2157 = vmul.f32 %v2156, %v1947
        %v2158 = vmul.f32 %v2156, %v1948
        %2161 = vrot.lane.b32.xlu0 %v2157, 124
        %v2162 = vpop.permute.xlu0 %2161
        %2163 = vrot.lane.b32.xlu0 %v2158, 124
        %v2164 = vpop.permute.xlu0 %2163
        %v2167 = vadd.f32 %v2111, %v2162
        %v2168 = vadd.f32 %v2112, %v2164
        %s2169 = sld [smem:[#allocation2 + $0xef]]
        %v2170 = vstv %s2169
        %v2171 = vmul.f32 %v2170, %v1947
        %v2172 = vmul.f32 %v2170, %v1948
        %2175 = vrot.lane.b32.xlu0 %v2171, 124
        %v2176 = vpop.permute.xlu0 %2175
        %2177 = vrot.lane.b32.xlu0 %v2172, 124
        %v2178 = vpop.permute.xlu0 %2177
        %v2181 = vadd.f32 %v2125, %v2176
        %v2182 = vadd.f32 %v2126, %v2178
        %s2183 = sld [smem:[#allocation2 + $0x153]]
        %v2184 = vstv %s2183
        %v2185 = vmul.f32 %v2184, %v1947
        %v2186 = vmul.f32 %v2184, %v1948
        %2189 = vrot.lane.b32.xlu0 %v2185, 124
        %v2190 = vpop.permute.xlu0 %2189
        %2191 = vrot.lane.b32.xlu0 %v2186, 124
        %v2192 = vpop.permute.xlu0 %2191
        %v2195 = vadd.f32 %v2139, %v2190
        %v2196 = vadd.f32 %v2140, %v2192
        %s2197 = sadd.s32 %s937, 24
        %s2198 = scalar_lea.vmem %s170, %s2197
        %v2199 = vld [vmem:[%s2198] sm:$0xff]
        %v2200 = vld [vmem:[%s2198 + $0x8] sm:$0xff]
        %s2201 = sld [smem:[#allocation2 + $0x28]]
        %v2202 = vstv %s2201
        %v2203 = vmul.f32 %v2202, %v2199
        %v2204 = vmul.f32 %v2202, %v2200
        %v2205 = vadd.f32 %v2153, %v2203
        %v2206 = vadd.f32 %v2154, %v2204
        %s2207 = sld [smem:[#allocation2 + $0x8c]]
        %v2208 = vstv %s2207
        %v2209 = vmul.f32 %v2208, %v2199
        %v2210 = vmul.f32 %v2208, %v2200
        %v2211 = vadd.f32 %v2167, %v2209
        %v2212 = vadd.f32 %v2168, %v2210
        %s2213 = sld [smem:[#allocation2 + $0xf0]]
        %v2214 = vstv %s2213
        %v2215 = vmul.f32 %v2214, %v2199
        %v2216 = vmul.f32 %v2214, %v2200
        %v2217 = vadd.f32 %v2181, %v2215
        %v2218 = vadd.f32 %v2182, %v2216
        %s2219 = sld [smem:[#allocation2 + $0x154]]
        %v2220 = vstv %s2219
        %v2221 = vmul.f32 %v2220, %v2199
        %v2222 = vmul.f32 %v2220, %v2200
        %v2223 = vadd.f32 %v2195, %v2221
        %v2224 = vadd.f32 %v2196, %v2222
        %s2225 = sld [smem:[#allocation2 + $0x29]]
        %v2226 = vstv %s2225
        %v2227 = vmul.f32 %v2226, %v2199
        %v2228 = vmul.f32 %v2226, %v2200
        %2231 = vrot.lane.b32.xlu0 %v2227, 127
        %v2232 = vpop.permute.xlu0 %2231
        %2233 = vrot.lane.b32.xlu0 %v2228, 127
        %v2234 = vpop.permute.xlu0 %2233
        %v2237 = vadd.f32 %v2205, %v2232
        %v2238 = vadd.f32 %v2206, %v2234
        %s2239 = sld [smem:[#allocation2 + $0x8d]]
        %v2240 = vstv %s2239
        %v2241 = vmul.f32 %v2240, %v2199
        %v2242 = vmul.f32 %v2240, %v2200
        %2245 = vrot.lane.b32.xlu0 %v2241, 127
        %v2246 = vpop.permute.xlu0 %2245
        %2247 = vrot.lane.b32.xlu0 %v2242, 127
        %v2248 = vpop.permute.xlu0 %2247
        %v2251 = vadd.f32 %v2211, %v2246
        %v2252 = vadd.f32 %v2212, %v2248
        %s2253 = sld [smem:[#allocation2 + $0xf1]]
        %v2254 = vstv %s2253
        %v2255 = vmul.f32 %v2254, %v2199
        %v2256 = vmul.f32 %v2254, %v2200
        %2259 = vrot.lane.b32.xlu0 %v2255, 127
        %v2260 = vpop.permute.xlu0 %2259
        %2261 = vrot.lane.b32.xlu0 %v2256, 127
        %v2262 = vpop.permute.xlu0 %2261
        %v2265 = vadd.f32 %v2217, %v2260
        %v2266 = vadd.f32 %v2218, %v2262
        %s2267 = sld [smem:[#allocation2 + $0x155]]
        %v2268 = vstv %s2267
        %v2269 = vmul.f32 %v2268, %v2199
        %v2270 = vmul.f32 %v2268, %v2200
        %2273 = vrot.lane.b32.xlu0 %v2269, 127
        %v2274 = vpop.permute.xlu0 %2273
        %2275 = vrot.lane.b32.xlu0 %v2270, 127
        %v2276 = vpop.permute.xlu0 %2275
        %v2279 = vadd.f32 %v2223, %v2274
        %v2280 = vadd.f32 %v2224, %v2276
        %s2281 = sld [smem:[#allocation2 + $0x2a]]
        %v2282 = vstv %s2281
        %v2283 = vmul.f32 %v2282, %v2199
        %v2284 = vmul.f32 %v2282, %v2200
        %2287 = vrot.lane.b32.xlu0 %v2283, 126
        %v2288 = vpop.permute.xlu0 %2287
        %2289 = vrot.lane.b32.xlu0 %v2284, 126
        %v2290 = vpop.permute.xlu0 %2289
        %v2293 = vadd.f32 %v2237, %v2288
        %v2294 = vadd.f32 %v2238, %v2290
        %s2295 = sld [smem:[#allocation2 + $0x8e]]
        %v2296 = vstv %s2295
        %v2297 = vmul.f32 %v2296, %v2199
        %v2298 = vmul.f32 %v2296, %v2200
        %2301 = vrot.lane.b32.xlu0 %v2297, 126
        %v2302 = vpop.permute.xlu0 %2301
        %2303 = vrot.lane.b32.xlu0 %v2298, 126
        %v2304 = vpop.permute.xlu0 %2303
        %v2307 = vadd.f32 %v2251, %v2302
        %v2308 = vadd.f32 %v2252, %v2304
        %s2309 = sld [smem:[#allocation2 + $0xf2]]
        %v2310 = vstv %s2309
        %v2311 = vmul.f32 %v2310, %v2199
        %v2312 = vmul.f32 %v2310, %v2200
        %2315 = vrot.lane.b32.xlu0 %v2311, 126
        %v2316 = vpop.permute.xlu0 %2315
        %2317 = vrot.lane.b32.xlu0 %v2312, 126
        %v2318 = vpop.permute.xlu0 %2317
        %v2321 = vadd.f32 %v2265, %v2316
        %v2322 = vadd.f32 %v2266, %v2318
        %s2323 = sld [smem:[#allocation2 + $0x156]]
        %v2324 = vstv %s2323
        %v2325 = vmul.f32 %v2324, %v2199
        %v2326 = vmul.f32 %v2324, %v2200
        %2329 = vrot.lane.b32.xlu0 %v2325, 126
        %v2330 = vpop.permute.xlu0 %2329
        %2331 = vrot.lane.b32.xlu0 %v2326, 126
        %v2332 = vpop.permute.xlu0 %2331
        %v2335 = vadd.f32 %v2279, %v2330
        %v2336 = vadd.f32 %v2280, %v2332
        %s2337 = sld [smem:[#allocation2 + $0x2b]]
        %v2338 = vstv %s2337
        %v2339 = vmul.f32 %v2338, %v2199
        %v2340 = vmul.f32 %v2338, %v2200
        %2343 = vrot.lane.b32.xlu0 %v2339, 125
        %v2344 = vpop.permute.xlu0 %2343
        %2345 = vrot.lane.b32.xlu0 %v2340, 125
        %v2346 = vpop.permute.xlu0 %2345
        %v2349 = vadd.f32 %v2293, %v2344
        %v2350 = vadd.f32 %v2294, %v2346
        %s2351 = sld [smem:[#allocation2 + $0x8f]]
        %v2352 = vstv %s2351
        %v2353 = vmul.f32 %v2352, %v2199
        %v2354 = vmul.f32 %v2352, %v2200
        %2357 = vrot.lane.b32.xlu0 %v2353, 125
        %v2358 = vpop.permute.xlu0 %2357
        %2359 = vrot.lane.b32.xlu0 %v2354, 125
        %v2360 = vpop.permute.xlu0 %2359
        %v2363 = vadd.f32 %v2307, %v2358
        %v2364 = vadd.f32 %v2308, %v2360
        %s2365 = sld [smem:[#allocation2 + $0xf3]]
        %v2366 = vstv %s2365
        %v2367 = vmul.f32 %v2366, %v2199
        %v2368 = vmul.f32 %v2366, %v2200
        %2371 = vrot.lane.b32.xlu0 %v2367, 125
        %v2372 = vpop.permute.xlu0 %2371
        %2373 = vrot.lane.b32.xlu0 %v2368, 125
        %v2374 = vpop.permute.xlu0 %2373
        %v2377 = vadd.f32 %v2321, %v2372
        %v2378 = vadd.f32 %v2322, %v2374
        %s2379 = sld [smem:[#allocation2 + $0x157]]
        %v2380 = vstv %s2379
        %v2381 = vmul.f32 %v2380, %v2199
        %v2382 = vmul.f32 %v2380, %v2200
        %2385 = vrot.lane.b32.xlu0 %v2381, 125
        %v2386 = vpop.permute.xlu0 %2385
        %2387 = vrot.lane.b32.xlu0 %v2382, 125
        %v2388 = vpop.permute.xlu0 %2387
        %v2391 = vadd.f32 %v2335, %v2386
        %v2392 = vadd.f32 %v2336, %v2388
        %s2393 = sld [smem:[#allocation2 + $0x2c]]
        %v2394 = vstv %s2393
        %v2395 = vmul.f32 %v2394, %v2199
        %v2396 = vmul.f32 %v2394, %v2200
        %2399 = vrot.lane.b32.xlu0 %v2395, 124
        %v2400 = vpop.permute.xlu0 %2399
        %2401 = vrot.lane.b32.xlu0 %v2396, 124
        %v2402 = vpop.permute.xlu0 %2401
        %v2405 = vadd.f32 %v2349, %v2400
        %v2406 = vadd.f32 %v2350, %v2402
        %s2407 = sld [smem:[#allocation2 + $0x90]]
        %v2408 = vstv %s2407
        %v2409 = vmul.f32 %v2408, %v2199
        %v2410 = vmul.f32 %v2408, %v2200
        %2413 = vrot.lane.b32.xlu0 %v2409, 124
        %v2414 = vpop.permute.xlu0 %2413
        %2415 = vrot.lane.b32.xlu0 %v2410, 124
        %v2416 = vpop.permute.xlu0 %2415
        %v2419 = vadd.f32 %v2363, %v2414
        %v2420 = vadd.f32 %v2364, %v2416
        %s2421 = sld [smem:[#allocation2 + $0xf4]]
        %v2422 = vstv %s2421
        %v2423 = vmul.f32 %v2422, %v2199
        %v2424 = vmul.f32 %v2422, %v2200
        %2427 = vrot.lane.b32.xlu0 %v2423, 124
        %v2428 = vpop.permute.xlu0 %2427
        %2429 = vrot.lane.b32.xlu0 %v2424, 124
        %v2430 = vpop.permute.xlu0 %2429
        %v2433 = vadd.f32 %v2377, %v2428
        %v2434 = vadd.f32 %v2378, %v2430
        %s2435 = sld [smem:[#allocation2 + $0x158]]
        %v2436 = vstv %s2435
        %v2437 = vmul.f32 %v2436, %v2199
        %v2438 = vmul.f32 %v2436, %v2200
        %2441 = vrot.lane.b32.xlu0 %v2437, 124
        %v2442 = vpop.permute.xlu0 %2441
        %2443 = vrot.lane.b32.xlu0 %v2438, 124
        %v2444 = vpop.permute.xlu0 %2443
        %v2447 = vadd.f32 %v2391, %v2442
        %v2448 = vadd.f32 %v2392, %v2444
        %s2449 = sadd.s32 %s1189, 24
        %s2450 = scalar_lea.vmem %s170, %s2449
        %v2451 = vld [vmem:[%s2450] sm:$0xff]
        %v2452 = vld [vmem:[%s2450 + $0x8] sm:$0xff]
        %s2453 = sld [smem:[#allocation2 + $0x2d]]
        %v2454 = vstv %s2453
        %v2455 = vmul.f32 %v2454, %v2451
        %v2456 = vmul.f32 %v2454, %v2452
        %v2457 = vadd.f32 %v2405, %v2455
        %v2458 = vadd.f32 %v2406, %v2456
        %s2459 = sld [smem:[#allocation2 + $0x91]]
        %v2460 = vstv %s2459
        %v2461 = vmul.f32 %v2460, %v2451
        %v2462 = vmul.f32 %v2460, %v2452
        %v2463 = vadd.f32 %v2419, %v2461
        %v2464 = vadd.f32 %v2420, %v2462
        %s2465 = sld [smem:[#allocation2 + $0xf5]]
        %v2466 = vstv %s2465
        %v2467 = vmul.f32 %v2466, %v2451
        %v2468 = vmul.f32 %v2466, %v2452
        %v2469 = vadd.f32 %v2433, %v2467
        %v2470 = vadd.f32 %v2434, %v2468
        %s2471 = sld [smem:[#allocation2 + $0x159]]
        %v2472 = vstv %s2471
        %v2473 = vmul.f32 %v2472, %v2451
        %v2474 = vmul.f32 %v2472, %v2452
        %v2475 = vadd.f32 %v2447, %v2473
        %v2476 = vadd.f32 %v2448, %v2474
        %s2477 = sld [smem:[#allocation2 + $0x2e]]
        %v2478 = vstv %s2477
        %v2479 = vmul.f32 %v2478, %v2451
        %v2480 = vmul.f32 %v2478, %v2452
        %2483 = vrot.lane.b32.xlu0 %v2479, 127
        %v2484 = vpop.permute.xlu0 %2483
        %2485 = vrot.lane.b32.xlu0 %v2480, 127
        %v2486 = vpop.permute.xlu0 %2485
        %v2489 = vadd.f32 %v2457, %v2484
        %v2490 = vadd.f32 %v2458, %v2486
        %s2491 = sld [smem:[#allocation2 + $0x92]]
        %v2492 = vstv %s2491
        %v2493 = vmul.f32 %v2492, %v2451
        %v2494 = vmul.f32 %v2492, %v2452
        %2497 = vrot.lane.b32.xlu0 %v2493, 127
        %v2498 = vpop.permute.xlu0 %2497
        %2499 = vrot.lane.b32.xlu0 %v2494, 127
        %v2500 = vpop.permute.xlu0 %2499
        %v2503 = vadd.f32 %v2463, %v2498
        %v2504 = vadd.f32 %v2464, %v2500
        %s2505 = sld [smem:[#allocation2 + $0xf6]]
        %v2506 = vstv %s2505
        %v2507 = vmul.f32 %v2506, %v2451
        %v2508 = vmul.f32 %v2506, %v2452
        %2511 = vrot.lane.b32.xlu0 %v2507, 127
        %v2512 = vpop.permute.xlu0 %2511
        %2513 = vrot.lane.b32.xlu0 %v2508, 127
        %v2514 = vpop.permute.xlu0 %2513
        %v2517 = vadd.f32 %v2469, %v2512
        %v2518 = vadd.f32 %v2470, %v2514
        %s2519 = sld [smem:[#allocation2 + $0x15a]]
        %v2520 = vstv %s2519
        %v2521 = vmul.f32 %v2520, %v2451
        %v2522 = vmul.f32 %v2520, %v2452
        %2525 = vrot.lane.b32.xlu0 %v2521, 127
        %v2526 = vpop.permute.xlu0 %2525
        %2527 = vrot.lane.b32.xlu0 %v2522, 127
        %v2528 = vpop.permute.xlu0 %2527
        %v2531 = vadd.f32 %v2475, %v2526
        %v2532 = vadd.f32 %v2476, %v2528
        %s2533 = sld [smem:[#allocation2 + $0x2f]]
        %v2534 = vstv %s2533
        %v2535 = vmul.f32 %v2534, %v2451
        %v2536 = vmul.f32 %v2534, %v2452
        %2539 = vrot.lane.b32.xlu0 %v2535, 126
        %v2540 = vpop.permute.xlu0 %2539
        %2541 = vrot.lane.b32.xlu0 %v2536, 126
        %v2542 = vpop.permute.xlu0 %2541
        %v2545 = vadd.f32 %v2489, %v2540
        %v2546 = vadd.f32 %v2490, %v2542
        %s2547 = sld [smem:[#allocation2 + $0x93]]
        %v2548 = vstv %s2547
        %v2549 = vmul.f32 %v2548, %v2451
        %v2550 = vmul.f32 %v2548, %v2452
        %2553 = vrot.lane.b32.xlu0 %v2549, 126
        %v2554 = vpop.permute.xlu0 %2553
        %2555 = vrot.lane.b32.xlu0 %v2550, 126
        %v2556 = vpop.permute.xlu0 %2555
        %v2559 = vadd.f32 %v2503, %v2554
        %v2560 = vadd.f32 %v2504, %v2556
        %s2561 = sld [smem:[#allocation2 + $0xf7]]
        %v2562 = vstv %s2561
        %v2563 = vmul.f32 %v2562, %v2451
        %v2564 = vmul.f32 %v2562, %v2452
        %2567 = vrot.lane.b32.xlu0 %v2563, 126
        %v2568 = vpop.permute.xlu0 %2567
        %2569 = vrot.lane.b32.xlu0 %v2564, 126
        %v2570 = vpop.permute.xlu0 %2569
        %v2573 = vadd.f32 %v2517, %v2568
        %v2574 = vadd.f32 %v2518, %v2570
        %s2575 = sld [smem:[#allocation2 + $0x15b]]
        %v2576 = vstv %s2575
        %v2577 = vmul.f32 %v2576, %v2451
        %v2578 = vmul.f32 %v2576, %v2452
        %2581 = vrot.lane.b32.xlu0 %v2577, 126
        %v2582 = vpop.permute.xlu0 %2581
        %2583 = vrot.lane.b32.xlu0 %v2578, 126
        %v2584 = vpop.permute.xlu0 %2583
        %v2587 = vadd.f32 %v2531, %v2582
        %v2588 = vadd.f32 %v2532, %v2584
        %s2589 = sld [smem:[#allocation2 + $0x30]]
        %v2590 = vstv %s2589
        %v2591 = vmul.f32 %v2590, %v2451
        %v2592 = vmul.f32 %v2590, %v2452
        %2595 = vrot.lane.b32.xlu0 %v2591, 125
        %v2596 = vpop.permute.xlu0 %2595
        %2597 = vrot.lane.b32.xlu0 %v2592, 125
        %v2598 = vpop.permute.xlu0 %2597
        %v2601 = vadd.f32 %v2545, %v2596
        %v2602 = vadd.f32 %v2546, %v2598
        %s2603 = sld [smem:[#allocation2 + $0x94]]
        %v2604 = vstv %s2603
        %v2605 = vmul.f32 %v2604, %v2451
        %v2606 = vmul.f32 %v2604, %v2452
        %2609 = vrot.lane.b32.xlu0 %v2605, 125
        %v2610 = vpop.permute.xlu0 %2609
        %2611 = vrot.lane.b32.xlu0 %v2606, 125
        %v2612 = vpop.permute.xlu0 %2611
        %v2615 = vadd.f32 %v2559, %v2610
        %v2616 = vadd.f32 %v2560, %v2612
        %s2617 = sld [smem:[#allocation2 + $0xf8]]
        %v2618 = vstv %s2617
        %v2619 = vmul.f32 %v2618, %v2451
        %v2620 = vmul.f32 %v2618, %v2452
        %2623 = vrot.lane.b32.xlu0 %v2619, 125
        %v2624 = vpop.permute.xlu0 %2623
        %2625 = vrot.lane.b32.xlu0 %v2620, 125
        %v2626 = vpop.permute.xlu0 %2625
        %v2629 = vadd.f32 %v2573, %v2624
        %v2630 = vadd.f32 %v2574, %v2626
        %s2631 = sld [smem:[#allocation2 + $0x15c]]
        %v2632 = vstv %s2631
        %v2633 = vmul.f32 %v2632, %v2451
        %v2634 = vmul.f32 %v2632, %v2452
        %2637 = vrot.lane.b32.xlu0 %v2633, 125
        %v2638 = vpop.permute.xlu0 %2637
        %2639 = vrot.lane.b32.xlu0 %v2634, 125
        %v2640 = vpop.permute.xlu0 %2639
        %v2643 = vadd.f32 %v2587, %v2638
        %v2644 = vadd.f32 %v2588, %v2640
        %s2645 = sld [smem:[#allocation2 + $0x31]]
        %v2646 = vstv %s2645
        %v2647 = vmul.f32 %v2646, %v2451
        %v2648 = vmul.f32 %v2646, %v2452
        %2651 = vrot.lane.b32.xlu0 %v2647, 124
        %v2652 = vpop.permute.xlu0 %2651
        %2653 = vrot.lane.b32.xlu0 %v2648, 124
        %v2654 = vpop.permute.xlu0 %2653
        %v2657 = vadd.f32 %v2601, %v2652
        %v2658 = vadd.f32 %v2602, %v2654
        %s2659 = sld [smem:[#allocation2 + $0x95]]
        %v2660 = vstv %s2659
        %v2661 = vmul.f32 %v2660, %v2451
        %v2662 = vmul.f32 %v2660, %v2452
        %2665 = vrot.lane.b32.xlu0 %v2661, 124
        %v2666 = vpop.permute.xlu0 %2665
        %2667 = vrot.lane.b32.xlu0 %v2662, 124
        %v2668 = vpop.permute.xlu0 %2667
        %v2671 = vadd.f32 %v2615, %v2666
        %v2672 = vadd.f32 %v2616, %v2668
        %s2673 = sld [smem:[#allocation2 + $0xf9]]
        %v2674 = vstv %s2673
        %v2675 = vmul.f32 %v2674, %v2451
        %v2676 = vmul.f32 %v2674, %v2452
        %2679 = vrot.lane.b32.xlu0 %v2675, 124
        %v2680 = vpop.permute.xlu0 %2679
        %2681 = vrot.lane.b32.xlu0 %v2676, 124
        %v2682 = vpop.permute.xlu0 %2681
        %v2685 = vadd.f32 %v2629, %v2680
        %v2686 = vadd.f32 %v2630, %v2682
        %s2687 = sld [smem:[#allocation2 + $0x15d]]
        %v2688 = vstv %s2687
        %v2689 = vmul.f32 %v2688, %v2451
        %v2690 = vmul.f32 %v2688, %v2452
        %2693 = vrot.lane.b32.xlu0 %v2689, 124
        %v2694 = vpop.permute.xlu0 %2693
        %2695 = vrot.lane.b32.xlu0 %v2690, 124
        %v2696 = vpop.permute.xlu0 %2695
        %v2699 = vadd.f32 %v2643, %v2694
        %v2700 = vadd.f32 %v2644, %v2696
        %s2701 = sadd.s32 %s181, 48
        %s2702 = scalar_lea.vmem %s170, %s2701
        %v2703 = vld [vmem:[%s2702] sm:$0xff]
        %v2704 = vld [vmem:[%s2702 + $0x8] sm:$0xff]
        %s2705 = sld [smem:[#allocation2 + $0x32]]
        %v2706 = vstv %s2705
        %v2707 = vmul.f32 %v2706, %v2703
        %v2708 = vmul.f32 %v2706, %v2704
        %v2709 = vadd.f32 %v2657, %v2707
        %v2710 = vadd.f32 %v2658, %v2708
        %s2711 = sld [smem:[#allocation2 + $0x96]]
        %v2712 = vstv %s2711
        %v2713 = vmul.f32 %v2712, %v2703
        %v2714 = vmul.f32 %v2712, %v2704
        %v2715 = vadd.f32 %v2671, %v2713
        %v2716 = vadd.f32 %v2672, %v2714
        %s2717 = sld [smem:[#allocation2 + $0xfa]]
        %v2718 = vstv %s2717
        %v2719 = vmul.f32 %v2718, %v2703
        %v2720 = vmul.f32 %v2718, %v2704
        %v2721 = vadd.f32 %v2685, %v2719
        %v2722 = vadd.f32 %v2686, %v2720
        %s2723 = sld [smem:[#allocation2 + $0x15e]]
        %v2724 = vstv %s2723
        %v2725 = vmul.f32 %v2724, %v2703
        %v2726 = vmul.f32 %v2724, %v2704
        %v2727 = vadd.f32 %v2699, %v2725
        %v2728 = vadd.f32 %v2700, %v2726
        %s2729 = sld [smem:[#allocation2 + $0x33]]
        %v2730 = vstv %s2729
        %v2731 = vmul.f32 %v2730, %v2703
        %v2732 = vmul.f32 %v2730, %v2704
        %2735 = vrot.lane.b32.xlu0 %v2731, 127
        %v2736 = vpop.permute.xlu0 %2735
        %2737 = vrot.lane.b32.xlu0 %v2732, 127
        %v2738 = vpop.permute.xlu0 %2737
        %v2741 = vadd.f32 %v2709, %v2736
        %v2742 = vadd.f32 %v2710, %v2738
        %s2743 = sld [smem:[#allocation2 + $0x97]]
        %v2744 = vstv %s2743
        %v2745 = vmul.f32 %v2744, %v2703
        %v2746 = vmul.f32 %v2744, %v2704
        %2749 = vrot.lane.b32.xlu0 %v2745, 127
        %v2750 = vpop.permute.xlu0 %2749
        %2751 = vrot.lane.b32.xlu0 %v2746, 127
        %v2752 = vpop.permute.xlu0 %2751
        %v2755 = vadd.f32 %v2715, %v2750
        %v2756 = vadd.f32 %v2716, %v2752
        %s2757 = sld [smem:[#allocation2 + $0xfb]]
        %v2758 = vstv %s2757
        %v2759 = vmul.f32 %v2758, %v2703
        %v2760 = vmul.f32 %v2758, %v2704
        %2763 = vrot.lane.b32.xlu0 %v2759, 127
        %v2764 = vpop.permute.xlu0 %2763
        %2765 = vrot.lane.b32.xlu0 %v2760, 127
        %v2766 = vpop.permute.xlu0 %2765
        %v2769 = vadd.f32 %v2721, %v2764
        %v2770 = vadd.f32 %v2722, %v2766
        %s2771 = sld [smem:[#allocation2 + $0x15f]]
        %v2772 = vstv %s2771
        %v2773 = vmul.f32 %v2772, %v2703
        %v2774 = vmul.f32 %v2772, %v2704
        %2777 = vrot.lane.b32.xlu0 %v2773, 127
        %v2778 = vpop.permute.xlu0 %2777
        %2779 = vrot.lane.b32.xlu0 %v2774, 127
        %v2780 = vpop.permute.xlu0 %2779
        %v2783 = vadd.f32 %v2727, %v2778
        %v2784 = vadd.f32 %v2728, %v2780
        %s2785 = sld [smem:[#allocation2 + $0x34]]
        %v2786 = vstv %s2785
        %v2787 = vmul.f32 %v2786, %v2703
        %v2788 = vmul.f32 %v2786, %v2704
        %2791 = vrot.lane.b32.xlu0 %v2787, 126
        %v2792 = vpop.permute.xlu0 %2791
        %2793 = vrot.lane.b32.xlu0 %v2788, 126
        %v2794 = vpop.permute.xlu0 %2793
        %v2797 = vadd.f32 %v2741, %v2792
        %v2798 = vadd.f32 %v2742, %v2794
        %s2799 = sld [smem:[#allocation2 + $0x98]]
        %v2800 = vstv %s2799
        %v2801 = vmul.f32 %v2800, %v2703
        %v2802 = vmul.f32 %v2800, %v2704
        %2805 = vrot.lane.b32.xlu0 %v2801, 126
        %v2806 = vpop.permute.xlu0 %2805
        %2807 = vrot.lane.b32.xlu0 %v2802, 126
        %v2808 = vpop.permute.xlu0 %2807
        %v2811 = vadd.f32 %v2755, %v2806
        %v2812 = vadd.f32 %v2756, %v2808
        %s2813 = sld [smem:[#allocation2 + $0xfc]]
        %v2814 = vstv %s2813
        %v2815 = vmul.f32 %v2814, %v2703
        %v2816 = vmul.f32 %v2814, %v2704
        %2819 = vrot.lane.b32.xlu0 %v2815, 126
        %v2820 = vpop.permute.xlu0 %2819
        %2821 = vrot.lane.b32.xlu0 %v2816, 126
        %v2822 = vpop.permute.xlu0 %2821
        %v2825 = vadd.f32 %v2769, %v2820
        %v2826 = vadd.f32 %v2770, %v2822
        %s2827 = sld [smem:[#allocation2 + $0x160]]
        %v2828 = vstv %s2827
        %v2829 = vmul.f32 %v2828, %v2703
        %v2830 = vmul.f32 %v2828, %v2704
        %2833 = vrot.lane.b32.xlu0 %v2829, 126
        %v2834 = vpop.permute.xlu0 %2833
        %2835 = vrot.lane.b32.xlu0 %v2830, 126
        %v2836 = vpop.permute.xlu0 %2835
        %v2839 = vadd.f32 %v2783, %v2834
        %v2840 = vadd.f32 %v2784, %v2836
        %s2841 = sld [smem:[#allocation2 + $0x35]]
        %v2842 = vstv %s2841
        %v2843 = vmul.f32 %v2842, %v2703
        %v2844 = vmul.f32 %v2842, %v2704
        %2847 = vrot.lane.b32.xlu0 %v2843, 125
        %v2848 = vpop.permute.xlu0 %2847
        %2849 = vrot.lane.b32.xlu0 %v2844, 125
        %v2850 = vpop.permute.xlu0 %2849
        %v2853 = vadd.f32 %v2797, %v2848
        %v2854 = vadd.f32 %v2798, %v2850
        %s2855 = sld [smem:[#allocation2 + $0x99]]
        %v2856 = vstv %s2855
        %v2857 = vmul.f32 %v2856, %v2703
        %v2858 = vmul.f32 %v2856, %v2704
        %2861 = vrot.lane.b32.xlu0 %v2857, 125
        %v2862 = vpop.permute.xlu0 %2861
        %2863 = vrot.lane.b32.xlu0 %v2858, 125
        %v2864 = vpop.permute.xlu0 %2863
        %v2867 = vadd.f32 %v2811, %v2862
        %v2868 = vadd.f32 %v2812, %v2864
        %s2869 = sld [smem:[#allocation2 + $0xfd]]
        %v2870 = vstv %s2869
        %v2871 = vmul.f32 %v2870, %v2703
        %v2872 = vmul.f32 %v2870, %v2704
        %2875 = vrot.lane.b32.xlu0 %v2871, 125
        %v2876 = vpop.permute.xlu0 %2875
        %2877 = vrot.lane.b32.xlu0 %v2872, 125
        %v2878 = vpop.permute.xlu0 %2877
        %v2881 = vadd.f32 %v2825, %v2876
        %v2882 = vadd.f32 %v2826, %v2878
        %s2883 = sld [smem:[#allocation2 + $0x161]]
        %v2884 = vstv %s2883
        %v2885 = vmul.f32 %v2884, %v2703
        %v2886 = vmul.f32 %v2884, %v2704
        %2889 = vrot.lane.b32.xlu0 %v2885, 125
        %v2890 = vpop.permute.xlu0 %2889
        %2891 = vrot.lane.b32.xlu0 %v2886, 125
        %v2892 = vpop.permute.xlu0 %2891
        %v2895 = vadd.f32 %v2839, %v2890
        %v2896 = vadd.f32 %v2840, %v2892
        %s2897 = sld [smem:[#allocation2 + $0x36]]
        %v2898 = vstv %s2897
        %v2899 = vmul.f32 %v2898, %v2703
        %v2900 = vmul.f32 %v2898, %v2704
        %2903 = vrot.lane.b32.xlu0 %v2899, 124
        %v2904 = vpop.permute.xlu0 %2903
        %2905 = vrot.lane.b32.xlu0 %v2900, 124
        %v2906 = vpop.permute.xlu0 %2905
        %v2909 = vadd.f32 %v2853, %v2904
        %v2910 = vadd.f32 %v2854, %v2906
        %s2911 = sld [smem:[#allocation2 + $0x9a]]
        %v2912 = vstv %s2911
        %v2913 = vmul.f32 %v2912, %v2703
        %v2914 = vmul.f32 %v2912, %v2704
        %2917 = vrot.lane.b32.xlu0 %v2913, 124
        %v2918 = vpop.permute.xlu0 %2917
        %2919 = vrot.lane.b32.xlu0 %v2914, 124
        %v2920 = vpop.permute.xlu0 %2919
        %v2923 = vadd.f32 %v2867, %v2918
        %v2924 = vadd.f32 %v2868, %v2920
        %s2925 = sld [smem:[#allocation2 + $0xfe]]
        %v2926 = vstv %s2925
        %v2927 = vmul.f32 %v2926, %v2703
        %v2928 = vmul.f32 %v2926, %v2704
        %2931 = vrot.lane.b32.xlu0 %v2927, 124
        %v2932 = vpop.permute.xlu0 %2931
        %2933 = vrot.lane.b32.xlu0 %v2928, 124
        %v2934 = vpop.permute.xlu0 %2933
        %v2937 = vadd.f32 %v2881, %v2932
        %v2938 = vadd.f32 %v2882, %v2934
        %s2939 = sld [smem:[#allocation2 + $0x162]]
        %v2940 = vstv %s2939
        %v2941 = vmul.f32 %v2940, %v2703
        %v2942 = vmul.f32 %v2940, %v2704
        %2945 = vrot.lane.b32.xlu0 %v2941, 124
        %v2946 = vpop.permute.xlu0 %2945
        %2947 = vrot.lane.b32.xlu0 %v2942, 124
        %v2948 = vpop.permute.xlu0 %2947
        %v2951 = vadd.f32 %v2895, %v2946
        %v2952 = vadd.f32 %v2896, %v2948
        %s2953 = sadd.s32 %s433, 48
        %s2954 = scalar_lea.vmem %s170, %s2953
        %v2955 = vld [vmem:[%s2954] sm:$0xff]
        %v2956 = vld [vmem:[%s2954 + $0x8] sm:$0xff]
        %s2957 = sld [smem:[#allocation2 + $0x37]]
        %v2958 = vstv %s2957
        %v2959 = vmul.f32 %v2958, %v2955
        %v2960 = vmul.f32 %v2958, %v2956
        %v2961 = vadd.f32 %v2909, %v2959
        %v2962 = vadd.f32 %v2910, %v2960
        %s2963 = sld [smem:[#allocation2 + $0x9b]]
        %v2964 = vstv %s2963
        %v2965 = vmul.f32 %v2964, %v2955
        %v2966 = vmul.f32 %v2964, %v2956
        %v2967 = vadd.f32 %v2923, %v2965
        %v2968 = vadd.f32 %v2924, %v2966
        %s2969 = sld [smem:[#allocation2 + $0xff]]
        %v2970 = vstv %s2969
        %v2971 = vmul.f32 %v2970, %v2955
        %v2972 = vmul.f32 %v2970, %v2956
        %v2973 = vadd.f32 %v2937, %v2971
        %v2974 = vadd.f32 %v2938, %v2972
        %s2975 = sld [smem:[#allocation2 + $0x163]]
        %v2976 = vstv %s2975
        %v2977 = vmul.f32 %v2976, %v2955
        %v2978 = vmul.f32 %v2976, %v2956
        %v2979 = vadd.f32 %v2951, %v2977
        %v2980 = vadd.f32 %v2952, %v2978
        %s2981 = sld [smem:[#allocation2 + $0x38]]
        %v2982 = vstv %s2981
        %v2983 = vmul.f32 %v2982, %v2955
        %v2984 = vmul.f32 %v2982, %v2956
        %2987 = vrot.lane.b32.xlu0 %v2983, 127
        %v2988 = vpop.permute.xlu0 %2987
        %2989 = vrot.lane.b32.xlu0 %v2984, 127
        %v2990 = vpop.permute.xlu0 %2989
        %v2993 = vadd.f32 %v2961, %v2988
        %v2994 = vadd.f32 %v2962, %v2990
        %s2995 = sld [smem:[#allocation2 + $0x9c]]
        %v2996 = vstv %s2995
        %v2997 = vmul.f32 %v2996, %v2955
        %v2998 = vmul.f32 %v2996, %v2956
        %3001 = vrot.lane.b32.xlu0 %v2997, 127
        %v3002 = vpop.permute.xlu0 %3001
        %3003 = vrot.lane.b32.xlu0 %v2998, 127
        %v3004 = vpop.permute.xlu0 %3003
        %v3007 = vadd.f32 %v2967, %v3002
        %v3008 = vadd.f32 %v2968, %v3004
        %s3009 = sld [smem:[#allocation2 + $0x100]]
        %v3010 = vstv %s3009
        %v3011 = vmul.f32 %v3010, %v2955
        %v3012 = vmul.f32 %v3010, %v2956
        %3015 = vrot.lane.b32.xlu0 %v3011, 127
        %v3016 = vpop.permute.xlu0 %3015
        %3017 = vrot.lane.b32.xlu0 %v3012, 127
        %v3018 = vpop.permute.xlu0 %3017
        %v3021 = vadd.f32 %v2973, %v3016
        %v3022 = vadd.f32 %v2974, %v3018
        %s3023 = sld [smem:[#allocation2 + $0x164]]
        %v3024 = vstv %s3023
        %v3025 = vmul.f32 %v3024, %v2955
        %v3026 = vmul.f32 %v3024, %v2956
        %3029 = vrot.lane.b32.xlu0 %v3025, 127
        %v3030 = vpop.permute.xlu0 %3029
        %3031 = vrot.lane.b32.xlu0 %v3026, 127
        %v3032 = vpop.permute.xlu0 %3031
        %v3035 = vadd.f32 %v2979, %v3030
        %v3036 = vadd.f32 %v2980, %v3032
        %s3037 = sld [smem:[#allocation2 + $0x39]]
        %v3038 = vstv %s3037
        %v3039 = vmul.f32 %v3038, %v2955
        %v3040 = vmul.f32 %v3038, %v2956
        %3043 = vrot.lane.b32.xlu0 %v3039, 126
        %v3044 = vpop.permute.xlu0 %3043
        %3045 = vrot.lane.b32.xlu0 %v3040, 126
        %v3046 = vpop.permute.xlu0 %3045
        %v3049 = vadd.f32 %v2993, %v3044
        %v3050 = vadd.f32 %v2994, %v3046
        %s3051 = sld [smem:[#allocation2 + $0x9d]]
        %v3052 = vstv %s3051
        %v3053 = vmul.f32 %v3052, %v2955
        %v3054 = vmul.f32 %v3052, %v2956
        %3057 = vrot.lane.b32.xlu0 %v3053, 126
        %v3058 = vpop.permute.xlu0 %3057
        %3059 = vrot.lane.b32.xlu0 %v3054, 126
        %v3060 = vpop.permute.xlu0 %3059
        %v3063 = vadd.f32 %v3007, %v3058
        %v3064 = vadd.f32 %v3008, %v3060
        %s3065 = sld [smem:[#allocation2 + $0x101]]
        %v3066 = vstv %s3065
        %v3067 = vmul.f32 %v3066, %v2955
        %v3068 = vmul.f32 %v3066, %v2956
        %3071 = vrot.lane.b32.xlu0 %v3067, 126
        %v3072 = vpop.permute.xlu0 %3071
        %3073 = vrot.lane.b32.xlu0 %v3068, 126
        %v3074 = vpop.permute.xlu0 %3073
        %v3077 = vadd.f32 %v3021, %v3072
        %v3078 = vadd.f32 %v3022, %v3074
        %s3079 = sld [smem:[#allocation2 + $0x165]]
        %v3080 = vstv %s3079
        %v3081 = vmul.f32 %v3080, %v2955
        %v3082 = vmul.f32 %v3080, %v2956
        %3085 = vrot.lane.b32.xlu0 %v3081, 126
        %v3086 = vpop.permute.xlu0 %3085
        %3087 = vrot.lane.b32.xlu0 %v3082, 126
        %v3088 = vpop.permute.xlu0 %3087
        %v3091 = vadd.f32 %v3035, %v3086
        %v3092 = vadd.f32 %v3036, %v3088
        %s3093 = sld [smem:[#allocation2 + $0x3a]]
        %v3094 = vstv %s3093
        %v3095 = vmul.f32 %v3094, %v2955
        %v3096 = vmul.f32 %v3094, %v2956
        %3099 = vrot.lane.b32.xlu0 %v3095, 125
        %v3100 = vpop.permute.xlu0 %3099
        %3101 = vrot.lane.b32.xlu0 %v3096, 125
        %v3102 = vpop.permute.xlu0 %3101
        %v3105 = vadd.f32 %v3049, %v3100
        %v3106 = vadd.f32 %v3050, %v3102
        %s3107 = sld [smem:[#allocation2 + $0x9e]]
        %v3108 = vstv %s3107
        %v3109 = vmul.f32 %v3108, %v2955
        %v3110 = vmul.f32 %v3108, %v2956
        %3113 = vrot.lane.b32.xlu0 %v3109, 125
        %v3114 = vpop.permute.xlu0 %3113
        %3115 = vrot.lane.b32.xlu0 %v3110, 125
        %v3116 = vpop.permute.xlu0 %3115
        %v3119 = vadd.f32 %v3063, %v3114
        %v3120 = vadd.f32 %v3064, %v3116
        %s3121 = sld [smem:[#allocation2 + $0x102]]
        %v3122 = vstv %s3121
        %v3123 = vmul.f32 %v3122, %v2955
        %v3124 = vmul.f32 %v3122, %v2956
        %3127 = vrot.lane.b32.xlu0 %v3123, 125
        %v3128 = vpop.permute.xlu0 %3127
        %3129 = vrot.lane.b32.xlu0 %v3124, 125
        %v3130 = vpop.permute.xlu0 %3129
        %v3133 = vadd.f32 %v3077, %v3128
        %v3134 = vadd.f32 %v3078, %v3130
        %s3135 = sld [smem:[#allocation2 + $0x166]]
        %v3136 = vstv %s3135
        %v3137 = vmul.f32 %v3136, %v2955
        %v3138 = vmul.f32 %v3136, %v2956
        %3141 = vrot.lane.b32.xlu0 %v3137, 125
        %v3142 = vpop.permute.xlu0 %3141
        %3143 = vrot.lane.b32.xlu0 %v3138, 125
        %v3144 = vpop.permute.xlu0 %3143
        %v3147 = vadd.f32 %v3091, %v3142
        %v3148 = vadd.f32 %v3092, %v3144
        %s3149 = sld [smem:[#allocation2 + $0x3b]]
        %v3150 = vstv %s3149
        %v3151 = vmul.f32 %v3150, %v2955
        %v3152 = vmul.f32 %v3150, %v2956
        %3155 = vrot.lane.b32.xlu0 %v3151, 124
        %v3156 = vpop.permute.xlu0 %3155
        %3157 = vrot.lane.b32.xlu0 %v3152, 124
        %v3158 = vpop.permute.xlu0 %3157
        %v3161 = vadd.f32 %v3105, %v3156
        %v3162 = vadd.f32 %v3106, %v3158
        %s3163 = sld [smem:[#allocation2 + $0x9f]]
        %v3164 = vstv %s3163
        %v3165 = vmul.f32 %v3164, %v2955
        %v3166 = vmul.f32 %v3164, %v2956
        %3169 = vrot.lane.b32.xlu0 %v3165, 124
        %v3170 = vpop.permute.xlu0 %3169
        %3171 = vrot.lane.b32.xlu0 %v3166, 124
        %v3172 = vpop.permute.xlu0 %3171
        %v3175 = vadd.f32 %v3119, %v3170
        %v3176 = vadd.f32 %v3120, %v3172
        %s3177 = sld [smem:[#allocation2 + $0x103]]
        %v3178 = vstv %s3177
        %v3179 = vmul.f32 %v3178, %v2955
        %v3180 = vmul.f32 %v3178, %v2956
        %3183 = vrot.lane.b32.xlu0 %v3179, 124
        %v3184 = vpop.permute.xlu0 %3183
        %3185 = vrot.lane.b32.xlu0 %v3180, 124
        %v3186 = vpop.permute.xlu0 %3185
        %v3189 = vadd.f32 %v3133, %v3184
        %v3190 = vadd.f32 %v3134, %v3186
        %s3191 = sld [smem:[#allocation2 + $0x167]]
        %v3192 = vstv %s3191
        %v3193 = vmul.f32 %v3192, %v2955
        %v3194 = vmul.f32 %v3192, %v2956
        %3197 = vrot.lane.b32.xlu0 %v3193, 124
        %v3198 = vpop.permute.xlu0 %3197
        %3199 = vrot.lane.b32.xlu0 %v3194, 124
        %v3200 = vpop.permute.xlu0 %3199
        %v3203 = vadd.f32 %v3147, %v3198
        %v3204 = vadd.f32 %v3148, %v3200
        %s3205 = sadd.s32 %s685, 48
        %s3206 = scalar_lea.vmem %s170, %s3205
        %v3207 = vld [vmem:[%s3206] sm:$0xff]
        %v3208 = vld [vmem:[%s3206 + $0x8] sm:$0xff]
        %s3209 = sld [smem:[#allocation2 + $0x3c]]
        %v3210 = vstv %s3209
        %v3211 = vmul.f32 %v3210, %v3207
        %v3212 = vmul.f32 %v3210, %v3208
        %v3213 = vadd.f32 %v3161, %v3211
        %v3214 = vadd.f32 %v3162, %v3212
        %s3215 = sld [smem:[#allocation2 + $0xa0]]
        %v3216 = vstv %s3215
        %v3217 = vmul.f32 %v3216, %v3207
        %v3218 = vmul.f32 %v3216, %v3208
        %v3219 = vadd.f32 %v3175, %v3217
        %v3220 = vadd.f32 %v3176, %v3218
        %s3221 = sld [smem:[#allocation2 + $0x104]]
        %v3222 = vstv %s3221
        %v3223 = vmul.f32 %v3222, %v3207
        %v3224 = vmul.f32 %v3222, %v3208
        %v3225 = vadd.f32 %v3189, %v3223
        %v3226 = vadd.f32 %v3190, %v3224
        %s3227 = sld [smem:[#allocation2 + $0x168]]
        %v3228 = vstv %s3227
        %v3229 = vmul.f32 %v3228, %v3207
        %v3230 = vmul.f32 %v3228, %v3208
        %v3231 = vadd.f32 %v3203, %v3229
        %v3232 = vadd.f32 %v3204, %v3230
        %s3233 = sld [smem:[#allocation2 + $0x3d]]
        %v3234 = vstv %s3233
        %v3235 = vmul.f32 %v3234, %v3207
        %v3236 = vmul.f32 %v3234, %v3208
        %3239 = vrot.lane.b32.xlu0 %v3235, 127
        %v3240 = vpop.permute.xlu0 %3239
        %3241 = vrot.lane.b32.xlu0 %v3236, 127
        %v3242 = vpop.permute.xlu0 %3241
        %v3245 = vadd.f32 %v3213, %v3240
        %v3246 = vadd.f32 %v3214, %v3242
        %s3247 = sld [smem:[#allocation2 + $0xa1]]
        %v3248 = vstv %s3247
        %v3249 = vmul.f32 %v3248, %v3207
        %v3250 = vmul.f32 %v3248, %v3208
        %3253 = vrot.lane.b32.xlu0 %v3249, 127
        %v3254 = vpop.permute.xlu0 %3253
        %3255 = vrot.lane.b32.xlu0 %v3250, 127
        %v3256 = vpop.permute.xlu0 %3255
        %v3259 = vadd.f32 %v3219, %v3254
        %v3260 = vadd.f32 %v3220, %v3256
        %s3261 = sld [smem:[#allocation2 + $0x105]]
        %v3262 = vstv %s3261
        %v3263 = vmul.f32 %v3262, %v3207
        %v3264 = vmul.f32 %v3262, %v3208
        %3267 = vrot.lane.b32.xlu0 %v3263, 127
        %v3268 = vpop.permute.xlu0 %3267
        %3269 = vrot.lane.b32.xlu0 %v3264, 127
        %v3270 = vpop.permute.xlu0 %3269
        %v3273 = vadd.f32 %v3225, %v3268
        %v3274 = vadd.f32 %v3226, %v3270
        %s3275 = sld [smem:[#allocation2 + $0x169]]
        %v3276 = vstv %s3275
        %v3277 = vmul.f32 %v3276, %v3207
        %v3278 = vmul.f32 %v3276, %v3208
        %3281 = vrot.lane.b32.xlu0 %v3277, 127
        %v3282 = vpop.permute.xlu0 %3281
        %3283 = vrot.lane.b32.xlu0 %v3278, 127
        %v3284 = vpop.permute.xlu0 %3283
        %v3287 = vadd.f32 %v3231, %v3282
        %v3288 = vadd.f32 %v3232, %v3284
        %s3289 = sld [smem:[#allocation2 + $0x3e]]
        %v3290 = vstv %s3289
        %v3291 = vmul.f32 %v3290, %v3207
        %v3292 = vmul.f32 %v3290, %v3208
        %3295 = vrot.lane.b32.xlu0 %v3291, 126
        %v3296 = vpop.permute.xlu0 %3295
        %3297 = vrot.lane.b32.xlu0 %v3292, 126
        %v3298 = vpop.permute.xlu0 %3297
        %v3301 = vadd.f32 %v3245, %v3296
        %v3302 = vadd.f32 %v3246, %v3298
        %s3303 = sld [smem:[#allocation2 + $0xa2]]
        %v3304 = vstv %s3303
        %v3305 = vmul.f32 %v3304, %v3207
        %v3306 = vmul.f32 %v3304, %v3208
        %3309 = vrot.lane.b32.xlu0 %v3305, 126
        %v3310 = vpop.permute.xlu0 %3309
        %3311 = vrot.lane.b32.xlu0 %v3306, 126
        %v3312 = vpop.permute.xlu0 %3311
        %v3315 = vadd.f32 %v3259, %v3310
        %v3316 = vadd.f32 %v3260, %v3312
        %s3317 = sld [smem:[#allocation2 + $0x106]]
        %v3318 = vstv %s3317
        %v3319 = vmul.f32 %v3318, %v3207
        %v3320 = vmul.f32 %v3318, %v3208
        %3323 = vrot.lane.b32.xlu0 %v3319, 126
        %v3324 = vpop.permute.xlu0 %3323
        %3325 = vrot.lane.b32.xlu0 %v3320, 126
        %v3326 = vpop.permute.xlu0 %3325
        %v3329 = vadd.f32 %v3273, %v3324
        %v3330 = vadd.f32 %v3274, %v3326
        %s3331 = sld [smem:[#allocation2 + $0x16a]]
        %v3332 = vstv %s3331
        %v3333 = vmul.f32 %v3332, %v3207
        %v3334 = vmul.f32 %v3332, %v3208
        %3337 = vrot.lane.b32.xlu0 %v3333, 126
        %v3338 = vpop.permute.xlu0 %3337
        %3339 = vrot.lane.b32.xlu0 %v3334, 126
        %v3340 = vpop.permute.xlu0 %3339
        %v3343 = vadd.f32 %v3287, %v3338
        %v3344 = vadd.f32 %v3288, %v3340
        %s3345 = sld [smem:[#allocation2 + $0x3f]]
        %v3346 = vstv %s3345
        %v3347 = vmul.f32 %v3346, %v3207
        %v3348 = vmul.f32 %v3346, %v3208
        %3351 = vrot.lane.b32.xlu0 %v3347, 125
        %v3352 = vpop.permute.xlu0 %3351
        %3353 = vrot.lane.b32.xlu0 %v3348, 125
        %v3354 = vpop.permute.xlu0 %3353
        %v3357 = vadd.f32 %v3301, %v3352
        %v3358 = vadd.f32 %v3302, %v3354
        %s3359 = sld [smem:[#allocation2 + $0xa3]]
        %v3360 = vstv %s3359
        %v3361 = vmul.f32 %v3360, %v3207
        %v3362 = vmul.f32 %v3360, %v3208
        %3365 = vrot.lane.b32.xlu0 %v3361, 125
        %v3366 = vpop.permute.xlu0 %3365
        %3367 = vrot.lane.b32.xlu0 %v3362, 125
        %v3368 = vpop.permute.xlu0 %3367
        %v3371 = vadd.f32 %v3315, %v3366
        %v3372 = vadd.f32 %v3316, %v3368
        %s3373 = sld [smem:[#allocation2 + $0x107]]
        %v3374 = vstv %s3373
        %v3375 = vmul.f32 %v3374, %v3207
        %v3376 = vmul.f32 %v3374, %v3208
        %3379 = vrot.lane.b32.xlu0 %v3375, 125
        %v3380 = vpop.permute.xlu0 %3379
        %3381 = vrot.lane.b32.xlu0 %v3376, 125
        %v3382 = vpop.permute.xlu0 %3381
        %v3385 = vadd.f32 %v3329, %v3380
        %v3386 = vadd.f32 %v3330, %v3382
        %s3387 = sld [smem:[#allocation2 + $0x16b]]
        %v3388 = vstv %s3387
        %v3389 = vmul.f32 %v3388, %v3207
        %v3390 = vmul.f32 %v3388, %v3208
        %3393 = vrot.lane.b32.xlu0 %v3389, 125
        %v3394 = vpop.permute.xlu0 %3393
        %3395 = vrot.lane.b32.xlu0 %v3390, 125
        %v3396 = vpop.permute.xlu0 %3395
        %v3399 = vadd.f32 %v3343, %v3394
        %v3400 = vadd.f32 %v3344, %v3396
        %s3401 = sld [smem:[#allocation2 + $0x40]]
        %v3402 = vstv %s3401
        %v3403 = vmul.f32 %v3402, %v3207
        %v3404 = vmul.f32 %v3402, %v3208
        %3407 = vrot.lane.b32.xlu0 %v3403, 124
        %v3408 = vpop.permute.xlu0 %3407
        %3409 = vrot.lane.b32.xlu0 %v3404, 124
        %v3410 = vpop.permute.xlu0 %3409
        %v3413 = vadd.f32 %v3357, %v3408
        %v3414 = vadd.f32 %v3358, %v3410
        %s3415 = sld [smem:[#allocation2 + $0xa4]]
        %v3416 = vstv %s3415
        %v3417 = vmul.f32 %v3416, %v3207
        %v3418 = vmul.f32 %v3416, %v3208
        %3421 = vrot.lane.b32.xlu0 %v3417, 124
        %v3422 = vpop.permute.xlu0 %3421
        %3423 = vrot.lane.b32.xlu0 %v3418, 124
        %v3424 = vpop.permute.xlu0 %3423
        %v3427 = vadd.f32 %v3371, %v3422
        %v3428 = vadd.f32 %v3372, %v3424
        %s3429 = sld [smem:[#allocation2 + $0x108]]
        %v3430 = vstv %s3429
        %v3431 = vmul.f32 %v3430, %v3207
        %v3432 = vmul.f32 %v3430, %v3208
        %3435 = vrot.lane.b32.xlu0 %v3431, 124
        %v3436 = vpop.permute.xlu0 %3435
        %3437 = vrot.lane.b32.xlu0 %v3432, 124
        %v3438 = vpop.permute.xlu0 %3437
        %v3441 = vadd.f32 %v3385, %v3436
        %v3442 = vadd.f32 %v3386, %v3438
        %s3443 = sld [smem:[#allocation2 + $0x16c]]
        %v3444 = vstv %s3443
        %v3445 = vmul.f32 %v3444, %v3207
        %v3446 = vmul.f32 %v3444, %v3208
        %3449 = vrot.lane.b32.xlu0 %v3445, 124
        %v3450 = vpop.permute.xlu0 %3449
        %3451 = vrot.lane.b32.xlu0 %v3446, 124
        %v3452 = vpop.permute.xlu0 %3451
        %v3455 = vadd.f32 %v3399, %v3450
        %v3456 = vadd.f32 %v3400, %v3452
        %s3457 = sadd.s32 %s937, 48
        %s3458 = scalar_lea.vmem %s170, %s3457
        %v3459 = vld [vmem:[%s3458] sm:$0xff]
        %v3460 = vld [vmem:[%s3458 + $0x8] sm:$0xff]
        %s3461 = sld [smem:[#allocation2 + $0x41]]
        %v3462 = vstv %s3461
        %v3463 = vmul.f32 %v3462, %v3459
        %v3464 = vmul.f32 %v3462, %v3460
        %v3465 = vadd.f32 %v3413, %v3463
        %v3466 = vadd.f32 %v3414, %v3464
        %s3467 = sld [smem:[#allocation2 + $0xa5]]
        %v3468 = vstv %s3467
        %v3469 = vmul.f32 %v3468, %v3459
        %v3470 = vmul.f32 %v3468, %v3460
        %v3471 = vadd.f32 %v3427, %v3469
        %v3472 = vadd.f32 %v3428, %v3470
        %s3473 = sld [smem:[#allocation2 + $0x109]]
        %v3474 = vstv %s3473
        %v3475 = vmul.f32 %v3474, %v3459
        %v3476 = vmul.f32 %v3474, %v3460
        %v3477 = vadd.f32 %v3441, %v3475
        %v3478 = vadd.f32 %v3442, %v3476
        %s3479 = sld [smem:[#allocation2 + $0x16d]]
        %v3480 = vstv %s3479
        %v3481 = vmul.f32 %v3480, %v3459
        %v3482 = vmul.f32 %v3480, %v3460
        %v3483 = vadd.f32 %v3455, %v3481
        %v3484 = vadd.f32 %v3456, %v3482
        %s3485 = sld [smem:[#allocation2 + $0x42]]
        %v3486 = vstv %s3485
        %v3487 = vmul.f32 %v3486, %v3459
        %v3488 = vmul.f32 %v3486, %v3460
        %3491 = vrot.lane.b32.xlu0 %v3487, 127
        %v3492 = vpop.permute.xlu0 %3491
        %3493 = vrot.lane.b32.xlu0 %v3488, 127
        %v3494 = vpop.permute.xlu0 %3493
        %v3497 = vadd.f32 %v3465, %v3492
        %v3498 = vadd.f32 %v3466, %v3494
        %s3499 = sld [smem:[#allocation2 + $0xa6]]
        %v3500 = vstv %s3499
        %v3501 = vmul.f32 %v3500, %v3459
        %v3502 = vmul.f32 %v3500, %v3460
        %3505 = vrot.lane.b32.xlu0 %v3501, 127
        %v3506 = vpop.permute.xlu0 %3505
        %3507 = vrot.lane.b32.xlu0 %v3502, 127
        %v3508 = vpop.permute.xlu0 %3507
        %v3511 = vadd.f32 %v3471, %v3506
        %v3512 = vadd.f32 %v3472, %v3508
        %s3513 = sld [smem:[#allocation2 + $0x10a]]
        %v3514 = vstv %s3513
        %v3515 = vmul.f32 %v3514, %v3459
        %v3516 = vmul.f32 %v3514, %v3460
        %3519 = vrot.lane.b32.xlu0 %v3515, 127
        %v3520 = vpop.permute.xlu0 %3519
        %3521 = vrot.lane.b32.xlu0 %v3516, 127
        %v3522 = vpop.permute.xlu0 %3521
        %v3525 = vadd.f32 %v3477, %v3520
        %v3526 = vadd.f32 %v3478, %v3522
        %s3527 = sld [smem:[#allocation2 + $0x16e]]
        %v3528 = vstv %s3527
        %v3529 = vmul.f32 %v3528, %v3459
        %v3530 = vmul.f32 %v3528, %v3460
        %3533 = vrot.lane.b32.xlu0 %v3529, 127
        %v3534 = vpop.permute.xlu0 %3533
        %3535 = vrot.lane.b32.xlu0 %v3530, 127
        %v3536 = vpop.permute.xlu0 %3535
        %v3539 = vadd.f32 %v3483, %v3534
        %v3540 = vadd.f32 %v3484, %v3536
        %s3541 = sld [smem:[#allocation2 + $0x43]]
        %v3542 = vstv %s3541
        %v3543 = vmul.f32 %v3542, %v3459
        %v3544 = vmul.f32 %v3542, %v3460
        %3547 = vrot.lane.b32.xlu0 %v3543, 126
        %v3548 = vpop.permute.xlu0 %3547
        %3549 = vrot.lane.b32.xlu0 %v3544, 126
        %v3550 = vpop.permute.xlu0 %3549
        %v3553 = vadd.f32 %v3497, %v3548
        %v3554 = vadd.f32 %v3498, %v3550
        %s3555 = sld [smem:[#allocation2 + $0xa7]]
        %v3556 = vstv %s3555
        %v3557 = vmul.f32 %v3556, %v3459
        %v3558 = vmul.f32 %v3556, %v3460
        %3561 = vrot.lane.b32.xlu0 %v3557, 126
        %v3562 = vpop.permute.xlu0 %3561
        %3563 = vrot.lane.b32.xlu0 %v3558, 126
        %v3564 = vpop.permute.xlu0 %3563
        %v3567 = vadd.f32 %v3511, %v3562
        %v3568 = vadd.f32 %v3512, %v3564
        %s3569 = sld [smem:[#allocation2 + $0x10b]]
        %v3570 = vstv %s3569
        %v3571 = vmul.f32 %v3570, %v3459
        %v3572 = vmul.f32 %v3570, %v3460
        %3575 = vrot.lane.b32.xlu0 %v3571, 126
        %v3576 = vpop.permute.xlu0 %3575
        %3577 = vrot.lane.b32.xlu0 %v3572, 126
        %v3578 = vpop.permute.xlu0 %3577
        %v3581 = vadd.f32 %v3525, %v3576
        %v3582 = vadd.f32 %v3526, %v3578
        %s3583 = sld [smem:[#allocation2 + $0x16f]]
        %v3584 = vstv %s3583
        %v3585 = vmul.f32 %v3584, %v3459
        %v3586 = vmul.f32 %v3584, %v3460
        %3589 = vrot.lane.b32.xlu0 %v3585, 126
        %v3590 = vpop.permute.xlu0 %3589
        %3591 = vrot.lane.b32.xlu0 %v3586, 126
        %v3592 = vpop.permute.xlu0 %3591
        %v3595 = vadd.f32 %v3539, %v3590
        %v3596 = vadd.f32 %v3540, %v3592
        %s3597 = sld [smem:[#allocation2 + $0x44]]
        %v3598 = vstv %s3597
        %v3599 = vmul.f32 %v3598, %v3459
        %v3600 = vmul.f32 %v3598, %v3460
        %3603 = vrot.lane.b32.xlu0 %v3599, 125
        %v3604 = vpop.permute.xlu0 %3603
        %3605 = vrot.lane.b32.xlu0 %v3600, 125
        %v3606 = vpop.permute.xlu0 %3605
        %v3609 = vadd.f32 %v3553, %v3604
        %v3610 = vadd.f32 %v3554, %v3606
        %s3611 = sld [smem:[#allocation2 + $0xa8]]
        %v3612 = vstv %s3611
        %v3613 = vmul.f32 %v3612, %v3459
        %v3614 = vmul.f32 %v3612, %v3460
        %3617 = vrot.lane.b32.xlu0 %v3613, 125
        %v3618 = vpop.permute.xlu0 %3617
        %3619 = vrot.lane.b32.xlu0 %v3614, 125
        %v3620 = vpop.permute.xlu0 %3619
        %v3623 = vadd.f32 %v3567, %v3618
        %v3624 = vadd.f32 %v3568, %v3620
        %s3625 = sld [smem:[#allocation2 + $0x10c]]
        %v3626 = vstv %s3625
        %v3627 = vmul.f32 %v3626, %v3459
        %v3628 = vmul.f32 %v3626, %v3460
        %3631 = vrot.lane.b32.xlu0 %v3627, 125
        %v3632 = vpop.permute.xlu0 %3631
        %3633 = vrot.lane.b32.xlu0 %v3628, 125
        %v3634 = vpop.permute.xlu0 %3633
        %v3637 = vadd.f32 %v3581, %v3632
        %v3638 = vadd.f32 %v3582, %v3634
        %s3639 = sld [smem:[#allocation2 + $0x170]]
        %v3640 = vstv %s3639
        %v3641 = vmul.f32 %v3640, %v3459
        %v3642 = vmul.f32 %v3640, %v3460
        %3645 = vrot.lane.b32.xlu0 %v3641, 125
        %v3646 = vpop.permute.xlu0 %3645
        %3647 = vrot.lane.b32.xlu0 %v3642, 125
        %v3648 = vpop.permute.xlu0 %3647
        %v3651 = vadd.f32 %v3595, %v3646
        %v3652 = vadd.f32 %v3596, %v3648
        %s3653 = sld [smem:[#allocation2 + $0x45]]
        %v3654 = vstv %s3653
        %v3655 = vmul.f32 %v3654, %v3459
        %v3656 = vmul.f32 %v3654, %v3460
        %3659 = vrot.lane.b32.xlu0 %v3655, 124
        %v3660 = vpop.permute.xlu0 %3659
        %3661 = vrot.lane.b32.xlu0 %v3656, 124
        %v3662 = vpop.permute.xlu0 %3661
        %v3665 = vadd.f32 %v3609, %v3660
        %v3666 = vadd.f32 %v3610, %v3662
        %s3667 = sld [smem:[#allocation2 + $0xa9]]
        %v3668 = vstv %s3667
        %v3669 = vmul.f32 %v3668, %v3459
        %v3670 = vmul.f32 %v3668, %v3460
        %3673 = vrot.lane.b32.xlu0 %v3669, 124
        %v3674 = vpop.permute.xlu0 %3673
        %3675 = vrot.lane.b32.xlu0 %v3670, 124
        %v3676 = vpop.permute.xlu0 %3675
        %v3679 = vadd.f32 %v3623, %v3674
        %v3680 = vadd.f32 %v3624, %v3676
        %s3681 = sld [smem:[#allocation2 + $0x10d]]
        %v3682 = vstv %s3681
        %v3683 = vmul.f32 %v3682, %v3459
        %v3684 = vmul.f32 %v3682, %v3460
        %3687 = vrot.lane.b32.xlu0 %v3683, 124
        %v3688 = vpop.permute.xlu0 %3687
        %3689 = vrot.lane.b32.xlu0 %v3684, 124
        %v3690 = vpop.permute.xlu0 %3689
        %v3693 = vadd.f32 %v3637, %v3688
        %v3694 = vadd.f32 %v3638, %v3690
        %s3695 = sld [smem:[#allocation2 + $0x171]]
        %v3696 = vstv %s3695
        %v3697 = vmul.f32 %v3696, %v3459
        %v3698 = vmul.f32 %v3696, %v3460
        %3701 = vrot.lane.b32.xlu0 %v3697, 124
        %v3702 = vpop.permute.xlu0 %3701
        %3703 = vrot.lane.b32.xlu0 %v3698, 124
        %v3704 = vpop.permute.xlu0 %3703
        %v3707 = vadd.f32 %v3651, %v3702
        %v3708 = vadd.f32 %v3652, %v3704
        %s3709 = sadd.s32 %s1189, 48
        %s3710 = scalar_lea.vmem %s170, %s3709
        %v3711 = vld [vmem:[%s3710] sm:$0xff]
        %v3712 = vld [vmem:[%s3710 + $0x8] sm:$0xff]
        %s3713 = sld [smem:[#allocation2 + $0x46]]
        %v3714 = vstv %s3713
        %v3715 = vmul.f32 %v3714, %v3711
        %v3716 = vmul.f32 %v3714, %v3712
        %v3717 = vadd.f32 %v3665, %v3715
        %v3718 = vadd.f32 %v3666, %v3716
        %s3719 = sld [smem:[#allocation2 + $0xaa]]
        %v3720 = vstv %s3719
        %v3721 = vmul.f32 %v3720, %v3711
        %v3722 = vmul.f32 %v3720, %v3712
        %v3723 = vadd.f32 %v3679, %v3721
        %v3724 = vadd.f32 %v3680, %v3722
        %s3725 = sld [smem:[#allocation2 + $0x10e]]
        %v3726 = vstv %s3725
        %v3727 = vmul.f32 %v3726, %v3711
        %v3728 = vmul.f32 %v3726, %v3712
        %v3729 = vadd.f32 %v3693, %v3727
        %v3730 = vadd.f32 %v3694, %v3728
        %s3731 = sld [smem:[#allocation2 + $0x172]]
        %v3732 = vstv %s3731
        %v3733 = vmul.f32 %v3732, %v3711
        %v3734 = vmul.f32 %v3732, %v3712
        %v3735 = vadd.f32 %v3707, %v3733
        %v3736 = vadd.f32 %v3708, %v3734
        %s3737 = sld [smem:[#allocation2 + $0x47]]
        %v3738 = vstv %s3737
        %v3739 = vmul.f32 %v3738, %v3711
        %v3740 = vmul.f32 %v3738, %v3712
        %3743 = vrot.lane.b32.xlu0 %v3739, 127
        %v3744 = vpop.permute.xlu0 %3743
        %3745 = vrot.lane.b32.xlu0 %v3740, 127
        %v3746 = vpop.permute.xlu0 %3745
        %v3749 = vadd.f32 %v3717, %v3744
        %v3750 = vadd.f32 %v3718, %v3746
        %s3751 = sld [smem:[#allocation2 + $0xab]]
        %v3752 = vstv %s3751
        %v3753 = vmul.f32 %v3752, %v3711
        %v3754 = vmul.f32 %v3752, %v3712
        %3757 = vrot.lane.b32.xlu0 %v3753, 127
        %v3758 = vpop.permute.xlu0 %3757
        %3759 = vrot.lane.b32.xlu0 %v3754, 127
        %v3760 = vpop.permute.xlu0 %3759
        %v3763 = vadd.f32 %v3723, %v3758
        %v3764 = vadd.f32 %v3724, %v3760
        %s3765 = sld [smem:[#allocation2 + $0x10f]]
        %v3766 = vstv %s3765
        %v3767 = vmul.f32 %v3766, %v3711
        %v3768 = vmul.f32 %v3766, %v3712
        %3771 = vrot.lane.b32.xlu0 %v3767, 127
        %v3772 = vpop.permute.xlu0 %3771
        %3773 = vrot.lane.b32.xlu0 %v3768, 127
        %v3774 = vpop.permute.xlu0 %3773
        %v3777 = vadd.f32 %v3729, %v3772
        %v3778 = vadd.f32 %v3730, %v3774
        %s3779 = sld [smem:[#allocation2 + $0x173]]
        %v3780 = vstv %s3779
        %v3781 = vmul.f32 %v3780, %v3711
        %v3782 = vmul.f32 %v3780, %v3712
        %3785 = vrot.lane.b32.xlu0 %v3781, 127
        %v3786 = vpop.permute.xlu0 %3785
        %3787 = vrot.lane.b32.xlu0 %v3782, 127
        %v3788 = vpop.permute.xlu0 %3787
        %v3791 = vadd.f32 %v3735, %v3786
        %v3792 = vadd.f32 %v3736, %v3788
        %s3793 = sld [smem:[#allocation2 + $0x48]]
        %v3794 = vstv %s3793
        %v3795 = vmul.f32 %v3794, %v3711
        %v3796 = vmul.f32 %v3794, %v3712
        %3799 = vrot.lane.b32.xlu0 %v3795, 126
        %v3800 = vpop.permute.xlu0 %3799
        %3801 = vrot.lane.b32.xlu0 %v3796, 126
        %v3802 = vpop.permute.xlu0 %3801
        %v3805 = vadd.f32 %v3749, %v3800
        %v3806 = vadd.f32 %v3750, %v3802
        %s3807 = sld [smem:[#allocation2 + $0xac]]
        %v3808 = vstv %s3807
        %v3809 = vmul.f32 %v3808, %v3711
        %v3810 = vmul.f32 %v3808, %v3712
        %3813 = vrot.lane.b32.xlu0 %v3809, 126
        %v3814 = vpop.permute.xlu0 %3813
        %3815 = vrot.lane.b32.xlu0 %v3810, 126
        %v3816 = vpop.permute.xlu0 %3815
        %v3819 = vadd.f32 %v3763, %v3814
        %v3820 = vadd.f32 %v3764, %v3816
        %s3821 = sld [smem:[#allocation2 + $0x110]]
        %v3822 = vstv %s3821
        %v3823 = vmul.f32 %v3822, %v3711
        %v3824 = vmul.f32 %v3822, %v3712
        %3827 = vrot.lane.b32.xlu0 %v3823, 126
        %v3828 = vpop.permute.xlu0 %3827
        %3829 = vrot.lane.b32.xlu0 %v3824, 126
        %v3830 = vpop.permute.xlu0 %3829
        %v3833 = vadd.f32 %v3777, %v3828
        %v3834 = vadd.f32 %v3778, %v3830
        %s3835 = sld [smem:[#allocation2 + $0x174]]
        %v3836 = vstv %s3835
        %v3837 = vmul.f32 %v3836, %v3711
        %v3838 = vmul.f32 %v3836, %v3712
        %3841 = vrot.lane.b32.xlu0 %v3837, 126
        %v3842 = vpop.permute.xlu0 %3841
        %3843 = vrot.lane.b32.xlu0 %v3838, 126
        %v3844 = vpop.permute.xlu0 %3843
        %v3847 = vadd.f32 %v3791, %v3842
        %v3848 = vadd.f32 %v3792, %v3844
        %s3849 = sld [smem:[#allocation2 + $0x49]]
        %v3850 = vstv %s3849
        %v3851 = vmul.f32 %v3850, %v3711
        %v3852 = vmul.f32 %v3850, %v3712
        %3855 = vrot.lane.b32.xlu0 %v3851, 125
        %v3856 = vpop.permute.xlu0 %3855
        %3857 = vrot.lane.b32.xlu0 %v3852, 125
        %v3858 = vpop.permute.xlu0 %3857
        %v3861 = vadd.f32 %v3805, %v3856
        %v3862 = vadd.f32 %v3806, %v3858
        %s3863 = sld [smem:[#allocation2 + $0xad]]
        %v3864 = vstv %s3863
        %v3865 = vmul.f32 %v3864, %v3711
        %v3866 = vmul.f32 %v3864, %v3712
        %3869 = vrot.lane.b32.xlu0 %v3865, 125
        %v3870 = vpop.permute.xlu0 %3869
        %3871 = vrot.lane.b32.xlu0 %v3866, 125
        %v3872 = vpop.permute.xlu0 %3871
        %v3875 = vadd.f32 %v3819, %v3870
        %v3876 = vadd.f32 %v3820, %v3872
        %s3877 = sld [smem:[#allocation2 + $0x111]]
        %v3878 = vstv %s3877
        %v3879 = vmul.f32 %v3878, %v3711
        %v3880 = vmul.f32 %v3878, %v3712
        %3883 = vrot.lane.b32.xlu0 %v3879, 125
        %v3884 = vpop.permute.xlu0 %3883
        %3885 = vrot.lane.b32.xlu0 %v3880, 125
        %v3886 = vpop.permute.xlu0 %3885
        %v3889 = vadd.f32 %v3833, %v3884
        %v3890 = vadd.f32 %v3834, %v3886
        %s3891 = sld [smem:[#allocation2 + $0x175]]
        %v3892 = vstv %s3891
        %v3893 = vmul.f32 %v3892, %v3711
        %v3894 = vmul.f32 %v3892, %v3712
        %3897 = vrot.lane.b32.xlu0 %v3893, 125
        %v3898 = vpop.permute.xlu0 %3897
        %3899 = vrot.lane.b32.xlu0 %v3894, 125
        %v3900 = vpop.permute.xlu0 %3899
        %v3903 = vadd.f32 %v3847, %v3898
        %v3904 = vadd.f32 %v3848, %v3900
        %s3905 = sld [smem:[#allocation2 + $0x4a]]
        %v3906 = vstv %s3905
        %v3907 = vmul.f32 %v3906, %v3711
        %v3908 = vmul.f32 %v3906, %v3712
        %3911 = vrot.lane.b32.xlu0 %v3907, 124
        %v3912 = vpop.permute.xlu0 %3911
        %3913 = vrot.lane.b32.xlu0 %v3908, 124
        %v3914 = vpop.permute.xlu0 %3913
        %v3917 = vadd.f32 %v3861, %v3912
        %v3918 = vadd.f32 %v3862, %v3914
        %s3919 = sld [smem:[#allocation2 + $0xae]]
        %v3920 = vstv %s3919
        %v3921 = vmul.f32 %v3920, %v3711
        %v3922 = vmul.f32 %v3920, %v3712
        %3925 = vrot.lane.b32.xlu0 %v3921, 124
        %v3926 = vpop.permute.xlu0 %3925
        %3927 = vrot.lane.b32.xlu0 %v3922, 124
        %v3928 = vpop.permute.xlu0 %3927
        %v3931 = vadd.f32 %v3875, %v3926
        %v3932 = vadd.f32 %v3876, %v3928
        %s3933 = sld [smem:[#allocation2 + $0x112]]
        %v3934 = vstv %s3933
        %v3935 = vmul.f32 %v3934, %v3711
        %v3936 = vmul.f32 %v3934, %v3712
        %3939 = vrot.lane.b32.xlu0 %v3935, 124
        %v3940 = vpop.permute.xlu0 %3939
        %3941 = vrot.lane.b32.xlu0 %v3936, 124
        %v3942 = vpop.permute.xlu0 %3941
        %v3945 = vadd.f32 %v3889, %v3940
        %v3946 = vadd.f32 %v3890, %v3942
        %s3947 = sld [smem:[#allocation2 + $0x176]]
        %v3948 = vstv %s3947
        %v3949 = vmul.f32 %v3948, %v3711
        %v3950 = vmul.f32 %v3948, %v3712
        %3953 = vrot.lane.b32.xlu0 %v3949, 124
        %v3954 = vpop.permute.xlu0 %3953
        %3955 = vrot.lane.b32.xlu0 %v3950, 124
        %v3956 = vpop.permute.xlu0 %3955
        %v3959 = vadd.f32 %v3903, %v3954
        %v3960 = vadd.f32 %v3904, %v3956
        %s3961 = sadd.s32 %s181, 72
        %s3962 = scalar_lea.vmem %s170, %s3961
        %v3963 = vld [vmem:[%s3962] sm:$0xff]
        %v3964 = vld [vmem:[%s3962 + $0x8] sm:$0xff]
        %s3965 = sld [smem:[#allocation2 + $0x4b]]
        %v3966 = vstv %s3965
        %v3967 = vmul.f32 %v3966, %v3963
        %v3968 = vmul.f32 %v3966, %v3964
        %v3969 = vadd.f32 %v3917, %v3967
        %v3970 = vadd.f32 %v3918, %v3968
        %s3971 = sld [smem:[#allocation2 + $0xaf]]
        %v3972 = vstv %s3971
        %v3973 = vmul.f32 %v3972, %v3963
        %v3974 = vmul.f32 %v3972, %v3964
        %v3975 = vadd.f32 %v3931, %v3973
        %v3976 = vadd.f32 %v3932, %v3974
        %s3977 = sld [smem:[#allocation2 + $0x113]]
        %v3978 = vstv %s3977
        %v3979 = vmul.f32 %v3978, %v3963
        %v3980 = vmul.f32 %v3978, %v3964
        %v3981 = vadd.f32 %v3945, %v3979
        %v3982 = vadd.f32 %v3946, %v3980
        %s3983 = sld [smem:[#allocation2 + $0x177]]
        %v3984 = vstv %s3983
        %v3985 = vmul.f32 %v3984, %v3963
        %v3986 = vmul.f32 %v3984, %v3964
        %v3987 = vadd.f32 %v3959, %v3985
        %v3988 = vadd.f32 %v3960, %v3986
        %s3989 = sld [smem:[#allocation2 + $0x4c]]
        %v3990 = vstv %s3989
        %v3991 = vmul.f32 %v3990, %v3963
        %v3992 = vmul.f32 %v3990, %v3964
        %3995 = vrot.lane.b32.xlu0 %v3991, 127
        %v3996 = vpop.permute.xlu0 %3995
        %3997 = vrot.lane.b32.xlu0 %v3992, 127
        %v3998 = vpop.permute.xlu0 %3997
        %v4001 = vadd.f32 %v3969, %v3996
        %v4002 = vadd.f32 %v3970, %v3998
        %s4003 = sld [smem:[#allocation2 + $0xb0]]
        %v4004 = vstv %s4003
        %v4005 = vmul.f32 %v4004, %v3963
        %v4006 = vmul.f32 %v4004, %v3964
        %4009 = vrot.lane.b32.xlu0 %v4005, 127
        %v4010 = vpop.permute.xlu0 %4009
        %4011 = vrot.lane.b32.xlu0 %v4006, 127
        %v4012 = vpop.permute.xlu0 %4011
        %v4015 = vadd.f32 %v3975, %v4010
        %v4016 = vadd.f32 %v3976, %v4012
        %s4017 = sld [smem:[#allocation2 + $0x114]]
        %v4018 = vstv %s4017
        %v4019 = vmul.f32 %v4018, %v3963
        %v4020 = vmul.f32 %v4018, %v3964
        %4023 = vrot.lane.b32.xlu0 %v4019, 127
        %v4024 = vpop.permute.xlu0 %4023
        %4025 = vrot.lane.b32.xlu0 %v4020, 127
        %v4026 = vpop.permute.xlu0 %4025
        %v4029 = vadd.f32 %v3981, %v4024
        %v4030 = vadd.f32 %v3982, %v4026
        %s4031 = sld [smem:[#allocation2 + $0x178]]
        %v4032 = vstv %s4031
        %v4033 = vmul.f32 %v4032, %v3963
        %v4034 = vmul.f32 %v4032, %v3964
        %4037 = vrot.lane.b32.xlu0 %v4033, 127
        %v4038 = vpop.permute.xlu0 %4037
        %4039 = vrot.lane.b32.xlu0 %v4034, 127
        %v4040 = vpop.permute.xlu0 %4039
        %v4043 = vadd.f32 %v3987, %v4038
        %v4044 = vadd.f32 %v3988, %v4040
        %s4045 = sld [smem:[#allocation2 + $0x4d]]
        %v4046 = vstv %s4045
        %v4047 = vmul.f32 %v4046, %v3963
        %v4048 = vmul.f32 %v4046, %v3964
        %4051 = vrot.lane.b32.xlu0 %v4047, 126
        %v4052 = vpop.permute.xlu0 %4051
        %4053 = vrot.lane.b32.xlu0 %v4048, 126
        %v4054 = vpop.permute.xlu0 %4053
        %v4057 = vadd.f32 %v4001, %v4052
        %v4058 = vadd.f32 %v4002, %v4054
        %s4059 = sld [smem:[#allocation2 + $0xb1]]
        %v4060 = vstv %s4059
        %v4061 = vmul.f32 %v4060, %v3963
        %v4062 = vmul.f32 %v4060, %v3964
        %4065 = vrot.lane.b32.xlu0 %v4061, 126
        %v4066 = vpop.permute.xlu0 %4065
        %4067 = vrot.lane.b32.xlu0 %v4062, 126
        %v4068 = vpop.permute.xlu0 %4067
        %v4071 = vadd.f32 %v4015, %v4066
        %v4072 = vadd.f32 %v4016, %v4068
        %s4073 = sld [smem:[#allocation2 + $0x115]]
        %v4074 = vstv %s4073
        %v4075 = vmul.f32 %v4074, %v3963
        %v4076 = vmul.f32 %v4074, %v3964
        %4079 = vrot.lane.b32.xlu0 %v4075, 126
        %v4080 = vpop.permute.xlu0 %4079
        %4081 = vrot.lane.b32.xlu0 %v4076, 126
        %v4082 = vpop.permute.xlu0 %4081
        %v4085 = vadd.f32 %v4029, %v4080
        %v4086 = vadd.f32 %v4030, %v4082
        %s4087 = sld [smem:[#allocation2 + $0x179]]
        %v4088 = vstv %s4087
        %v4089 = vmul.f32 %v4088, %v3963
        %v4090 = vmul.f32 %v4088, %v3964
        %4093 = vrot.lane.b32.xlu0 %v4089, 126
        %v4094 = vpop.permute.xlu0 %4093
        %4095 = vrot.lane.b32.xlu0 %v4090, 126
        %v4096 = vpop.permute.xlu0 %4095
        %v4099 = vadd.f32 %v4043, %v4094
        %v4100 = vadd.f32 %v4044, %v4096
        %s4101 = sld [smem:[#allocation2 + $0x4e]]
        %v4102 = vstv %s4101
        %v4103 = vmul.f32 %v4102, %v3963
        %v4104 = vmul.f32 %v4102, %v3964
        %4107 = vrot.lane.b32.xlu0 %v4103, 125
        %v4108 = vpop.permute.xlu0 %4107
        %4109 = vrot.lane.b32.xlu0 %v4104, 125
        %v4110 = vpop.permute.xlu0 %4109
        %v4113 = vadd.f32 %v4057, %v4108
        %v4114 = vadd.f32 %v4058, %v4110
        %s4115 = sld [smem:[#allocation2 + $0xb2]]
        %v4116 = vstv %s4115
        %v4117 = vmul.f32 %v4116, %v3963
        %v4118 = vmul.f32 %v4116, %v3964
        %4121 = vrot.lane.b32.xlu0 %v4117, 125
        %v4122 = vpop.permute.xlu0 %4121
        %4123 = vrot.lane.b32.xlu0 %v4118, 125
        %v4124 = vpop.permute.xlu0 %4123
        %v4127 = vadd.f32 %v4071, %v4122
        %v4128 = vadd.f32 %v4072, %v4124
        %s4129 = sld [smem:[#allocation2 + $0x116]]
        %v4130 = vstv %s4129
        %v4131 = vmul.f32 %v4130, %v3963
        %v4132 = vmul.f32 %v4130, %v3964
        %4135 = vrot.lane.b32.xlu0 %v4131, 125
        %v4136 = vpop.permute.xlu0 %4135
        %4137 = vrot.lane.b32.xlu0 %v4132, 125
        %v4138 = vpop.permute.xlu0 %4137
        %v4141 = vadd.f32 %v4085, %v4136
        %v4142 = vadd.f32 %v4086, %v4138
        %s4143 = sld [smem:[#allocation2 + $0x17a]]
        %v4144 = vstv %s4143
        %v4145 = vmul.f32 %v4144, %v3963
        %v4146 = vmul.f32 %v4144, %v3964
        %4149 = vrot.lane.b32.xlu0 %v4145, 125
        %v4150 = vpop.permute.xlu0 %4149
        %4151 = vrot.lane.b32.xlu0 %v4146, 125
        %v4152 = vpop.permute.xlu0 %4151
        %v4155 = vadd.f32 %v4099, %v4150
        %v4156 = vadd.f32 %v4100, %v4152
        %s4157 = sld [smem:[#allocation2 + $0x4f]]
        %v4158 = vstv %s4157
        %v4159 = vmul.f32 %v4158, %v3963
        %v4160 = vmul.f32 %v4158, %v3964
        %4163 = vrot.lane.b32.xlu0 %v4159, 124
        %v4164 = vpop.permute.xlu0 %4163
        %4165 = vrot.lane.b32.xlu0 %v4160, 124
        %v4166 = vpop.permute.xlu0 %4165
        %v4169 = vadd.f32 %v4113, %v4164
        %v4170 = vadd.f32 %v4114, %v4166
        %s4171 = sld [smem:[#allocation2 + $0xb3]]
        %v4172 = vstv %s4171
        %v4173 = vmul.f32 %v4172, %v3963
        %v4174 = vmul.f32 %v4172, %v3964
        %4177 = vrot.lane.b32.xlu0 %v4173, 124
        %v4178 = vpop.permute.xlu0 %4177
        %4179 = vrot.lane.b32.xlu0 %v4174, 124
        %v4180 = vpop.permute.xlu0 %4179
        %v4183 = vadd.f32 %v4127, %v4178
        %v4184 = vadd.f32 %v4128, %v4180
        %s4185 = sld [smem:[#allocation2 + $0x117]]
        %v4186 = vstv %s4185
        %v4187 = vmul.f32 %v4186, %v3963
        %v4188 = vmul.f32 %v4186, %v3964
        %4191 = vrot.lane.b32.xlu0 %v4187, 124
        %v4192 = vpop.permute.xlu0 %4191
        %4193 = vrot.lane.b32.xlu0 %v4188, 124
        %v4194 = vpop.permute.xlu0 %4193
        %v4197 = vadd.f32 %v4141, %v4192
        %v4198 = vadd.f32 %v4142, %v4194
        %s4199 = sld [smem:[#allocation2 + $0x17b]]
        %v4200 = vstv %s4199
        %v4201 = vmul.f32 %v4200, %v3963
        %v4202 = vmul.f32 %v4200, %v3964
        %4205 = vrot.lane.b32.xlu0 %v4201, 124
        %v4206 = vpop.permute.xlu0 %4205
        %4207 = vrot.lane.b32.xlu0 %v4202, 124
        %v4208 = vpop.permute.xlu0 %4207
        %v4211 = vadd.f32 %v4155, %v4206
        %v4212 = vadd.f32 %v4156, %v4208
        %s4213 = sadd.s32 %s433, 72
        %s4214 = scalar_lea.vmem %s170, %s4213
        %v4215 = vld [vmem:[%s4214] sm:$0xff]
        %v4216 = vld [vmem:[%s4214 + $0x8] sm:$0xff]
        %s4217 = sld [smem:[#allocation2 + $0x50]]
        %v4218 = vstv %s4217
        %v4219 = vmul.f32 %v4218, %v4215
        %v4220 = vmul.f32 %v4218, %v4216
        %v4221 = vadd.f32 %v4169, %v4219
        %v4222 = vadd.f32 %v4170, %v4220
        %s4223 = sld [smem:[#allocation2 + $0xb4]]
        %v4224 = vstv %s4223
        %v4225 = vmul.f32 %v4224, %v4215
        %v4226 = vmul.f32 %v4224, %v4216
        %v4227 = vadd.f32 %v4183, %v4225
        %v4228 = vadd.f32 %v4184, %v4226
        %s4229 = sld [smem:[#allocation2 + $0x118]]
        %v4230 = vstv %s4229
        %v4231 = vmul.f32 %v4230, %v4215
        %v4232 = vmul.f32 %v4230, %v4216
        %v4233 = vadd.f32 %v4197, %v4231
        %v4234 = vadd.f32 %v4198, %v4232
        %s4235 = sld [smem:[#allocation2 + $0x17c]]
        %v4236 = vstv %s4235
        %v4237 = vmul.f32 %v4236, %v4215
        %v4238 = vmul.f32 %v4236, %v4216
        %v4239 = vadd.f32 %v4211, %v4237
        %v4240 = vadd.f32 %v4212, %v4238
        %s4241 = sld [smem:[#allocation2 + $0x51]]
        %v4242 = vstv %s4241
        %v4243 = vmul.f32 %v4242, %v4215
        %v4244 = vmul.f32 %v4242, %v4216
        %4247 = vrot.lane.b32.xlu0 %v4243, 127
        %v4248 = vpop.permute.xlu0 %4247
        %4249 = vrot.lane.b32.xlu0 %v4244, 127
        %v4250 = vpop.permute.xlu0 %4249
        %v4253 = vadd.f32 %v4221, %v4248
        %v4254 = vadd.f32 %v4222, %v4250
        %s4255 = sld [smem:[#allocation2 + $0xb5]]
        %v4256 = vstv %s4255
        %v4257 = vmul.f32 %v4256, %v4215
        %v4258 = vmul.f32 %v4256, %v4216
        %4261 = vrot.lane.b32.xlu0 %v4257, 127
        %v4262 = vpop.permute.xlu0 %4261
        %4263 = vrot.lane.b32.xlu0 %v4258, 127
        %v4264 = vpop.permute.xlu0 %4263
        %v4267 = vadd.f32 %v4227, %v4262
        %v4268 = vadd.f32 %v4228, %v4264
        %s4269 = sld [smem:[#allocation2 + $0x119]]
        %v4270 = vstv %s4269
        %v4271 = vmul.f32 %v4270, %v4215
        %v4272 = vmul.f32 %v4270, %v4216
        %4275 = vrot.lane.b32.xlu0 %v4271, 127
        %v4276 = vpop.permute.xlu0 %4275
        %4277 = vrot.lane.b32.xlu0 %v4272, 127
        %v4278 = vpop.permute.xlu0 %4277
        %v4281 = vadd.f32 %v4233, %v4276
        %v4282 = vadd.f32 %v4234, %v4278
        %s4283 = sld [smem:[#allocation2 + $0x17d]]
        %v4284 = vstv %s4283
        %v4285 = vmul.f32 %v4284, %v4215
        %v4286 = vmul.f32 %v4284, %v4216
        %4289 = vrot.lane.b32.xlu0 %v4285, 127
        %v4290 = vpop.permute.xlu0 %4289
        %4291 = vrot.lane.b32.xlu0 %v4286, 127
        %v4292 = vpop.permute.xlu0 %4291
        %v4295 = vadd.f32 %v4239, %v4290
        %v4296 = vadd.f32 %v4240, %v4292
        %s4297 = sld [smem:[#allocation2 + $0x52]]
        %v4298 = vstv %s4297
        %v4299 = vmul.f32 %v4298, %v4215
        %v4300 = vmul.f32 %v4298, %v4216
        %4303 = vrot.lane.b32.xlu0 %v4299, 126
        %v4304 = vpop.permute.xlu0 %4303
        %4305 = vrot.lane.b32.xlu0 %v4300, 126
        %v4306 = vpop.permute.xlu0 %4305
        %v4309 = vadd.f32 %v4253, %v4304
        %v4310 = vadd.f32 %v4254, %v4306
        %s4311 = sld [smem:[#allocation2 + $0xb6]]
        %v4312 = vstv %s4311
        %v4313 = vmul.f32 %v4312, %v4215
        %v4314 = vmul.f32 %v4312, %v4216
        %4317 = vrot.lane.b32.xlu0 %v4313, 126
        %v4318 = vpop.permute.xlu0 %4317
        %4319 = vrot.lane.b32.xlu0 %v4314, 126
        %v4320 = vpop.permute.xlu0 %4319
        %v4323 = vadd.f32 %v4267, %v4318
        %v4324 = vadd.f32 %v4268, %v4320
        %s4325 = sld [smem:[#allocation2 + $0x11a]]
        %v4326 = vstv %s4325
        %v4327 = vmul.f32 %v4326, %v4215
        %v4328 = vmul.f32 %v4326, %v4216
        %4331 = vrot.lane.b32.xlu0 %v4327, 126
        %v4332 = vpop.permute.xlu0 %4331
        %4333 = vrot.lane.b32.xlu0 %v4328, 126
        %v4334 = vpop.permute.xlu0 %4333
        %v4337 = vadd.f32 %v4281, %v4332
        %v4338 = vadd.f32 %v4282, %v4334
        %s4339 = sld [smem:[#allocation2 + $0x17e]]
        %v4340 = vstv %s4339
        %v4341 = vmul.f32 %v4340, %v4215
        %v4342 = vmul.f32 %v4340, %v4216
        %4345 = vrot.lane.b32.xlu0 %v4341, 126
        %v4346 = vpop.permute.xlu0 %4345
        %4347 = vrot.lane.b32.xlu0 %v4342, 126
        %v4348 = vpop.permute.xlu0 %4347
        %v4351 = vadd.f32 %v4295, %v4346
        %v4352 = vadd.f32 %v4296, %v4348
        %s4353 = sld [smem:[#allocation2 + $0x53]]
        %v4354 = vstv %s4353
        %v4355 = vmul.f32 %v4354, %v4215
        %v4356 = vmul.f32 %v4354, %v4216
        %4359 = vrot.lane.b32.xlu0 %v4355, 125
        %v4360 = vpop.permute.xlu0 %4359
        %4361 = vrot.lane.b32.xlu0 %v4356, 125
        %v4362 = vpop.permute.xlu0 %4361
        %v4365 = vadd.f32 %v4309, %v4360
        %v4366 = vadd.f32 %v4310, %v4362
        %s4367 = sld [smem:[#allocation2 + $0xb7]]
        %v4368 = vstv %s4367
        %v4369 = vmul.f32 %v4368, %v4215
        %v4370 = vmul.f32 %v4368, %v4216
        %4373 = vrot.lane.b32.xlu0 %v4369, 125
        %v4374 = vpop.permute.xlu0 %4373
        %4375 = vrot.lane.b32.xlu0 %v4370, 125
        %v4376 = vpop.permute.xlu0 %4375
        %v4379 = vadd.f32 %v4323, %v4374
        %v4380 = vadd.f32 %v4324, %v4376
        %s4381 = sld [smem:[#allocation2 + $0x11b]]
        %v4382 = vstv %s4381
        %v4383 = vmul.f32 %v4382, %v4215
        %v4384 = vmul.f32 %v4382, %v4216
        %4387 = vrot.lane.b32.xlu0 %v4383, 125
        %v4388 = vpop.permute.xlu0 %4387
        %4389 = vrot.lane.b32.xlu0 %v4384, 125
        %v4390 = vpop.permute.xlu0 %4389
        %v4393 = vadd.f32 %v4337, %v4388
        %v4394 = vadd.f32 %v4338, %v4390
        %s4395 = sld [smem:[#allocation2 + $0x17f]]
        %v4396 = vstv %s4395
        %v4397 = vmul.f32 %v4396, %v4215
        %v4398 = vmul.f32 %v4396, %v4216
        %4401 = vrot.lane.b32.xlu0 %v4397, 125
        %v4402 = vpop.permute.xlu0 %4401
        %4403 = vrot.lane.b32.xlu0 %v4398, 125
        %v4404 = vpop.permute.xlu0 %4403
        %v4407 = vadd.f32 %v4351, %v4402
        %v4408 = vadd.f32 %v4352, %v4404
        %s4409 = sld [smem:[#allocation2 + $0x54]]
        %v4410 = vstv %s4409
        %v4411 = vmul.f32 %v4410, %v4215
        %v4412 = vmul.f32 %v4410, %v4216
        %4415 = vrot.lane.b32.xlu0 %v4411, 124
        %v4416 = vpop.permute.xlu0 %4415
        %4417 = vrot.lane.b32.xlu0 %v4412, 124
        %v4418 = vpop.permute.xlu0 %4417
        %v4421 = vadd.f32 %v4365, %v4416
        %v4422 = vadd.f32 %v4366, %v4418
        %s4423 = sld [smem:[#allocation2 + $0xb8]]
        %v4424 = vstv %s4423
        %v4425 = vmul.f32 %v4424, %v4215
        %v4426 = vmul.f32 %v4424, %v4216
        %4429 = vrot.lane.b32.xlu0 %v4425, 124
        %v4430 = vpop.permute.xlu0 %4429
        %4431 = vrot.lane.b32.xlu0 %v4426, 124
        %v4432 = vpop.permute.xlu0 %4431
        %v4435 = vadd.f32 %v4379, %v4430
        %v4436 = vadd.f32 %v4380, %v4432
        %s4437 = sld [smem:[#allocation2 + $0x11c]]
        %v4438 = vstv %s4437
        %v4439 = vmul.f32 %v4438, %v4215
        %v4440 = vmul.f32 %v4438, %v4216
        %4443 = vrot.lane.b32.xlu0 %v4439, 124
        %v4444 = vpop.permute.xlu0 %4443
        %4445 = vrot.lane.b32.xlu0 %v4440, 124
        %v4446 = vpop.permute.xlu0 %4445
        %v4449 = vadd.f32 %v4393, %v4444
        %v4450 = vadd.f32 %v4394, %v4446
        %s4451 = sld [smem:[#allocation2 + $0x180]]
        %v4452 = vstv %s4451
        %v4453 = vmul.f32 %v4452, %v4215
        %v4454 = vmul.f32 %v4452, %v4216
        %4457 = vrot.lane.b32.xlu0 %v4453, 124
        %v4458 = vpop.permute.xlu0 %4457
        %4459 = vrot.lane.b32.xlu0 %v4454, 124
        %v4460 = vpop.permute.xlu0 %4459
        %v4463 = vadd.f32 %v4407, %v4458
        %v4464 = vadd.f32 %v4408, %v4460
        %s4465 = sadd.s32 %s685, 72
        %s4466 = scalar_lea.vmem %s170, %s4465
        %v4467 = vld [vmem:[%s4466] sm:$0xff]
        %v4468 = vld [vmem:[%s4466 + $0x8] sm:$0xff]
        %s4469 = sld [smem:[#allocation2 + $0x55]]
        %v4470 = vstv %s4469
        %v4471 = vmul.f32 %v4470, %v4467
        %v4472 = vmul.f32 %v4470, %v4468
        %v4473 = vadd.f32 %v4421, %v4471
        %v4474 = vadd.f32 %v4422, %v4472
        %s4475 = sld [smem:[#allocation2 + $0xb9]]
        %v4476 = vstv %s4475
        %v4477 = vmul.f32 %v4476, %v4467
        %v4478 = vmul.f32 %v4476, %v4468
        %v4479 = vadd.f32 %v4435, %v4477
        %v4480 = vadd.f32 %v4436, %v4478
        %s4481 = sld [smem:[#allocation2 + $0x11d]]
        %v4482 = vstv %s4481
        %v4483 = vmul.f32 %v4482, %v4467
        %v4484 = vmul.f32 %v4482, %v4468
        %v4485 = vadd.f32 %v4449, %v4483
        %v4486 = vadd.f32 %v4450, %v4484
        %s4487 = sld [smem:[#allocation2 + $0x181]]
        %v4488 = vstv %s4487
        %v4489 = vmul.f32 %v4488, %v4467
        %v4490 = vmul.f32 %v4488, %v4468
        %v4491 = vadd.f32 %v4463, %v4489
        %v4492 = vadd.f32 %v4464, %v4490
        %s4493 = sld [smem:[#allocation2 + $0x56]]
        %v4494 = vstv %s4493
        %v4495 = vmul.f32 %v4494, %v4467
        %v4496 = vmul.f32 %v4494, %v4468
        %4499 = vrot.lane.b32.xlu0 %v4495, 127
        %v4500 = vpop.permute.xlu0 %4499
        %4501 = vrot.lane.b32.xlu0 %v4496, 127
        %v4502 = vpop.permute.xlu0 %4501
        %v4505 = vadd.f32 %v4473, %v4500
        %v4506 = vadd.f32 %v4474, %v4502
        %s4507 = sld [smem:[#allocation2 + $0xba]]
        %v4508 = vstv %s4507
        %v4509 = vmul.f32 %v4508, %v4467
        %v4510 = vmul.f32 %v4508, %v4468
        %4513 = vrot.lane.b32.xlu0 %v4509, 127
        %v4514 = vpop.permute.xlu0 %4513
        %4515 = vrot.lane.b32.xlu0 %v4510, 127
        %v4516 = vpop.permute.xlu0 %4515
        %v4519 = vadd.f32 %v4479, %v4514
        %v4520 = vadd.f32 %v4480, %v4516
        %s4521 = sld [smem:[#allocation2 + $0x11e]]
        %v4522 = vstv %s4521
        %v4523 = vmul.f32 %v4522, %v4467
        %v4524 = vmul.f32 %v4522, %v4468
        %4527 = vrot.lane.b32.xlu0 %v4523, 127
        %v4528 = vpop.permute.xlu0 %4527
        %4529 = vrot.lane.b32.xlu0 %v4524, 127
        %v4530 = vpop.permute.xlu0 %4529
        %v4533 = vadd.f32 %v4485, %v4528
        %v4534 = vadd.f32 %v4486, %v4530
        %s4535 = sld [smem:[#allocation2 + $0x182]]
        %v4536 = vstv %s4535
        %v4537 = vmul.f32 %v4536, %v4467
        %v4538 = vmul.f32 %v4536, %v4468
        %4541 = vrot.lane.b32.xlu0 %v4537, 127
        %v4542 = vpop.permute.xlu0 %4541
        %4543 = vrot.lane.b32.xlu0 %v4538, 127
        %v4544 = vpop.permute.xlu0 %4543
        %v4547 = vadd.f32 %v4491, %v4542
        %v4548 = vadd.f32 %v4492, %v4544
        %s4549 = sld [smem:[#allocation2 + $0x57]]
        %v4550 = vstv %s4549
        %v4551 = vmul.f32 %v4550, %v4467
        %v4552 = vmul.f32 %v4550, %v4468
        %4555 = vrot.lane.b32.xlu0 %v4551, 126
        %v4556 = vpop.permute.xlu0 %4555
        %4557 = vrot.lane.b32.xlu0 %v4552, 126
        %v4558 = vpop.permute.xlu0 %4557
        %v4561 = vadd.f32 %v4505, %v4556
        %v4562 = vadd.f32 %v4506, %v4558
        %s4563 = sld [smem:[#allocation2 + $0xbb]]
        %v4564 = vstv %s4563
        %v4565 = vmul.f32 %v4564, %v4467
        %v4566 = vmul.f32 %v4564, %v4468
        %4569 = vrot.lane.b32.xlu0 %v4565, 126
        %v4570 = vpop.permute.xlu0 %4569
        %4571 = vrot.lane.b32.xlu0 %v4566, 126
        %v4572 = vpop.permute.xlu0 %4571
        %v4575 = vadd.f32 %v4519, %v4570
        %v4576 = vadd.f32 %v4520, %v4572
        %s4577 = sld [smem:[#allocation2 + $0x11f]]
        %v4578 = vstv %s4577
        %v4579 = vmul.f32 %v4578, %v4467
        %v4580 = vmul.f32 %v4578, %v4468
        %4583 = vrot.lane.b32.xlu0 %v4579, 126
        %v4584 = vpop.permute.xlu0 %4583
        %4585 = vrot.lane.b32.xlu0 %v4580, 126
        %v4586 = vpop.permute.xlu0 %4585
        %v4589 = vadd.f32 %v4533, %v4584
        %v4590 = vadd.f32 %v4534, %v4586
        %s4591 = sld [smem:[#allocation2 + $0x183]]
        %v4592 = vstv %s4591
        %v4593 = vmul.f32 %v4592, %v4467
        %v4594 = vmul.f32 %v4592, %v4468
        %4597 = vrot.lane.b32.xlu0 %v4593, 126
        %v4598 = vpop.permute.xlu0 %4597
        %4599 = vrot.lane.b32.xlu0 %v4594, 126
        %v4600 = vpop.permute.xlu0 %4599
        %v4603 = vadd.f32 %v4547, %v4598
        %v4604 = vadd.f32 %v4548, %v4600
        %s4605 = sld [smem:[#allocation2 + $0x58]]
        %v4606 = vstv %s4605
        %v4607 = vmul.f32 %v4606, %v4467
        %v4608 = vmul.f32 %v4606, %v4468
        %4611 = vrot.lane.b32.xlu0 %v4607, 125
        %v4612 = vpop.permute.xlu0 %4611
        %4613 = vrot.lane.b32.xlu0 %v4608, 125
        %v4614 = vpop.permute.xlu0 %4613
        %v4617 = vadd.f32 %v4561, %v4612
        %v4618 = vadd.f32 %v4562, %v4614
        %s4619 = sld [smem:[#allocation2 + $0xbc]]
        %v4620 = vstv %s4619
        %v4621 = vmul.f32 %v4620, %v4467
        %v4622 = vmul.f32 %v4620, %v4468
        %4625 = vrot.lane.b32.xlu0 %v4621, 125
        %v4626 = vpop.permute.xlu0 %4625
        %4627 = vrot.lane.b32.xlu0 %v4622, 125
        %v4628 = vpop.permute.xlu0 %4627
        %v4631 = vadd.f32 %v4575, %v4626
        %v4632 = vadd.f32 %v4576, %v4628
        %s4633 = sld [smem:[#allocation2 + $0x120]]
        %v4634 = vstv %s4633
        %v4635 = vmul.f32 %v4634, %v4467
        %v4636 = vmul.f32 %v4634, %v4468
        %4639 = vrot.lane.b32.xlu0 %v4635, 125
        %v4640 = vpop.permute.xlu0 %4639
        %4641 = vrot.lane.b32.xlu0 %v4636, 125
        %v4642 = vpop.permute.xlu0 %4641
        %v4645 = vadd.f32 %v4589, %v4640
        %v4646 = vadd.f32 %v4590, %v4642
        %s4647 = sld [smem:[#allocation2 + $0x184]]
        %v4648 = vstv %s4647
        %v4649 = vmul.f32 %v4648, %v4467
        %v4650 = vmul.f32 %v4648, %v4468
        %4653 = vrot.lane.b32.xlu0 %v4649, 125
        %v4654 = vpop.permute.xlu0 %4653
        %4655 = vrot.lane.b32.xlu0 %v4650, 125
        %v4656 = vpop.permute.xlu0 %4655
        %v4659 = vadd.f32 %v4603, %v4654
        %v4660 = vadd.f32 %v4604, %v4656
        %s4661 = sld [smem:[#allocation2 + $0x59]]
        %v4662 = vstv %s4661
        %v4663 = vmul.f32 %v4662, %v4467
        %v4664 = vmul.f32 %v4662, %v4468
        %4667 = vrot.lane.b32.xlu0 %v4663, 124
        %v4668 = vpop.permute.xlu0 %4667
        %4669 = vrot.lane.b32.xlu0 %v4664, 124
        %v4670 = vpop.permute.xlu0 %4669
        %v4673 = vadd.f32 %v4617, %v4668
        %v4674 = vadd.f32 %v4618, %v4670
        %s4675 = sld [smem:[#allocation2 + $0xbd]]
        %v4676 = vstv %s4675
        %v4677 = vmul.f32 %v4676, %v4467
        %v4678 = vmul.f32 %v4676, %v4468
        %4681 = vrot.lane.b32.xlu0 %v4677, 124
        %v4682 = vpop.permute.xlu0 %4681
        %4683 = vrot.lane.b32.xlu0 %v4678, 124
        %v4684 = vpop.permute.xlu0 %4683
        %v4687 = vadd.f32 %v4631, %v4682
        %v4688 = vadd.f32 %v4632, %v4684
        %s4689 = sld [smem:[#allocation2 + $0x121]]
        %v4690 = vstv %s4689
        %v4691 = vmul.f32 %v4690, %v4467
        %v4692 = vmul.f32 %v4690, %v4468
        %4695 = vrot.lane.b32.xlu0 %v4691, 124
        %v4696 = vpop.permute.xlu0 %4695
        %4697 = vrot.lane.b32.xlu0 %v4692, 124
        %v4698 = vpop.permute.xlu0 %4697
        %v4701 = vadd.f32 %v4645, %v4696
        %v4702 = vadd.f32 %v4646, %v4698
        %s4703 = sld [smem:[#allocation2 + $0x185]]
        %v4704 = vstv %s4703
        %v4705 = vmul.f32 %v4704, %v4467
        %v4706 = vmul.f32 %v4704, %v4468
        %4709 = vrot.lane.b32.xlu0 %v4705, 124
        %v4710 = vpop.permute.xlu0 %4709
        %4711 = vrot.lane.b32.xlu0 %v4706, 124
        %v4712 = vpop.permute.xlu0 %4711
        %v4715 = vadd.f32 %v4659, %v4710
        %v4716 = vadd.f32 %v4660, %v4712
        %s4717 = sadd.s32 %s937, 72
        %s4718 = scalar_lea.vmem %s170, %s4717
        %v4719 = vld [vmem:[%s4718] sm:$0xff]
        %v4720 = vld [vmem:[%s4718 + $0x8] sm:$0xff]
        %s4721 = sld [smem:[#allocation2 + $0x5a]]
        %v4722 = vstv %s4721
        %v4723 = vmul.f32 %v4722, %v4719
        %v4724 = vmul.f32 %v4722, %v4720
        %v4725 = vadd.f32 %v4673, %v4723
        %v4726 = vadd.f32 %v4674, %v4724
        %s4727 = sld [smem:[#allocation2 + $0xbe]]
        %v4728 = vstv %s4727
        %v4729 = vmul.f32 %v4728, %v4719
        %v4730 = vmul.f32 %v4728, %v4720
        %v4731 = vadd.f32 %v4687, %v4729
        %v4732 = vadd.f32 %v4688, %v4730
        %s4733 = sld [smem:[#allocation2 + $0x122]]
        %v4734 = vstv %s4733
        %v4735 = vmul.f32 %v4734, %v4719
        %v4736 = vmul.f32 %v4734, %v4720
        %v4737 = vadd.f32 %v4701, %v4735
        %v4738 = vadd.f32 %v4702, %v4736
        %s4739 = sld [smem:[#allocation2 + $0x186]]
        %v4740 = vstv %s4739
        %v4741 = vmul.f32 %v4740, %v4719
        %v4742 = vmul.f32 %v4740, %v4720
        %v4743 = vadd.f32 %v4715, %v4741
        %v4744 = vadd.f32 %v4716, %v4742
        %s4745 = sld [smem:[#allocation2 + $0x5b]]
        %v4746 = vstv %s4745
        %v4747 = vmul.f32 %v4746, %v4719
        %v4748 = vmul.f32 %v4746, %v4720
        %4751 = vrot.lane.b32.xlu0 %v4747, 127
        %v4752 = vpop.permute.xlu0 %4751
        %4753 = vrot.lane.b32.xlu0 %v4748, 127
        %v4754 = vpop.permute.xlu0 %4753
        %v4757 = vadd.f32 %v4725, %v4752
        %v4758 = vadd.f32 %v4726, %v4754
        %s4759 = sld [smem:[#allocation2 + $0xbf]]
        %v4760 = vstv %s4759
        %v4761 = vmul.f32 %v4760, %v4719
        %v4762 = vmul.f32 %v4760, %v4720
        %4765 = vrot.lane.b32.xlu0 %v4761, 127
        %v4766 = vpop.permute.xlu0 %4765
        %4767 = vrot.lane.b32.xlu0 %v4762, 127
        %v4768 = vpop.permute.xlu0 %4767
        %v4771 = vadd.f32 %v4731, %v4766
        %v4772 = vadd.f32 %v4732, %v4768
        %s4773 = sld [smem:[#allocation2 + $0x123]]
        %v4774 = vstv %s4773
        %v4775 = vmul.f32 %v4774, %v4719
        %v4776 = vmul.f32 %v4774, %v4720
        %4779 = vrot.lane.b32.xlu0 %v4775, 127
        %v4780 = vpop.permute.xlu0 %4779
        %4781 = vrot.lane.b32.xlu0 %v4776, 127
        %v4782 = vpop.permute.xlu0 %4781
        %v4785 = vadd.f32 %v4737, %v4780
        %v4786 = vadd.f32 %v4738, %v4782
        %s4787 = sld [smem:[#allocation2 + $0x187]]
        %v4788 = vstv %s4787
        %v4789 = vmul.f32 %v4788, %v4719
        %v4790 = vmul.f32 %v4788, %v4720
        %4793 = vrot.lane.b32.xlu0 %v4789, 127
        %v4794 = vpop.permute.xlu0 %4793
        %4795 = vrot.lane.b32.xlu0 %v4790, 127
        %v4796 = vpop.permute.xlu0 %4795
        %v4799 = vadd.f32 %v4743, %v4794
        %v4800 = vadd.f32 %v4744, %v4796
        %s4801 = sld [smem:[#allocation2 + $0x5c]]
        %v4802 = vstv %s4801
        %v4803 = vmul.f32 %v4802, %v4719
        %v4804 = vmul.f32 %v4802, %v4720
        %4807 = vrot.lane.b32.xlu0 %v4803, 126
        %v4808 = vpop.permute.xlu0 %4807
        %4809 = vrot.lane.b32.xlu0 %v4804, 126
        %v4810 = vpop.permute.xlu0 %4809
        %v4813 = vadd.f32 %v4757, %v4808
        %v4814 = vadd.f32 %v4758, %v4810
        %s4815 = sld [smem:[#allocation2 + $0xc0]]
        %v4816 = vstv %s4815
        %v4817 = vmul.f32 %v4816, %v4719
        %v4818 = vmul.f32 %v4816, %v4720
        %4821 = vrot.lane.b32.xlu0 %v4817, 126
        %v4822 = vpop.permute.xlu0 %4821
        %4823 = vrot.lane.b32.xlu0 %v4818, 126
        %v4824 = vpop.permute.xlu0 %4823
        %v4827 = vadd.f32 %v4771, %v4822
        %v4828 = vadd.f32 %v4772, %v4824
        %s4829 = sld [smem:[#allocation2 + $0x124]]
        %v4830 = vstv %s4829
        %v4831 = vmul.f32 %v4830, %v4719
        %v4832 = vmul.f32 %v4830, %v4720
        %4835 = vrot.lane.b32.xlu0 %v4831, 126
        %v4836 = vpop.permute.xlu0 %4835
        %4837 = vrot.lane.b32.xlu0 %v4832, 126
        %v4838 = vpop.permute.xlu0 %4837
        %v4841 = vadd.f32 %v4785, %v4836
        %v4842 = vadd.f32 %v4786, %v4838
        %s4843 = sld [smem:[#allocation2 + $0x188]]
        %v4844 = vstv %s4843
        %v4845 = vmul.f32 %v4844, %v4719
        %v4846 = vmul.f32 %v4844, %v4720
        %4849 = vrot.lane.b32.xlu0 %v4845, 126
        %v4850 = vpop.permute.xlu0 %4849
        %4851 = vrot.lane.b32.xlu0 %v4846, 126
        %v4852 = vpop.permute.xlu0 %4851
        %v4855 = vadd.f32 %v4799, %v4850
        %v4856 = vadd.f32 %v4800, %v4852
        %s4857 = sld [smem:[#allocation2 + $0x5d]]
        %v4858 = vstv %s4857
        %v4859 = vmul.f32 %v4858, %v4719
        %v4860 = vmul.f32 %v4858, %v4720
        %4863 = vrot.lane.b32.xlu0 %v4859, 125
        %v4864 = vpop.permute.xlu0 %4863
        %4865 = vrot.lane.b32.xlu0 %v4860, 125
        %v4866 = vpop.permute.xlu0 %4865
        %v4869 = vadd.f32 %v4813, %v4864
        %v4870 = vadd.f32 %v4814, %v4866
        %s4871 = sld [smem:[#allocation2 + $0xc1]]
        %v4872 = vstv %s4871
        %v4873 = vmul.f32 %v4872, %v4719
        %v4874 = vmul.f32 %v4872, %v4720
        %4877 = vrot.lane.b32.xlu0 %v4873, 125
        %v4878 = vpop.permute.xlu0 %4877
        %4879 = vrot.lane.b32.xlu0 %v4874, 125
        %v4880 = vpop.permute.xlu0 %4879
        %v4883 = vadd.f32 %v4827, %v4878
        %v4884 = vadd.f32 %v4828, %v4880
        %s4885 = sld [smem:[#allocation2 + $0x125]]
        %v4886 = vstv %s4885
        %v4887 = vmul.f32 %v4886, %v4719
        %v4888 = vmul.f32 %v4886, %v4720
        %4891 = vrot.lane.b32.xlu0 %v4887, 125
        %v4892 = vpop.permute.xlu0 %4891
        %4893 = vrot.lane.b32.xlu0 %v4888, 125
        %v4894 = vpop.permute.xlu0 %4893
        %v4897 = vadd.f32 %v4841, %v4892
        %v4898 = vadd.f32 %v4842, %v4894
        %s4899 = sld [smem:[#allocation2 + $0x189]]
        %v4900 = vstv %s4899
        %v4901 = vmul.f32 %v4900, %v4719
        %v4902 = vmul.f32 %v4900, %v4720
        %4905 = vrot.lane.b32.xlu0 %v4901, 125
        %v4906 = vpop.permute.xlu0 %4905
        %4907 = vrot.lane.b32.xlu0 %v4902, 125
        %v4908 = vpop.permute.xlu0 %4907
        %v4911 = vadd.f32 %v4855, %v4906
        %v4912 = vadd.f32 %v4856, %v4908
        %s4913 = sld [smem:[#allocation2 + $0x5e]]
        %v4914 = vstv %s4913
        %v4915 = vmul.f32 %v4914, %v4719
        %v4916 = vmul.f32 %v4914, %v4720
        %4919 = vrot.lane.b32.xlu0 %v4915, 124
        %v4920 = vpop.permute.xlu0 %4919
        %4921 = vrot.lane.b32.xlu0 %v4916, 124
        %v4922 = vpop.permute.xlu0 %4921
        %v4925 = vadd.f32 %v4869, %v4920
        %v4926 = vadd.f32 %v4870, %v4922
        %s4927 = sld [smem:[#allocation2 + $0xc2]]
        %v4928 = vstv %s4927
        %v4929 = vmul.f32 %v4928, %v4719
        %v4930 = vmul.f32 %v4928, %v4720
        %4933 = vrot.lane.b32.xlu0 %v4929, 124
        %v4934 = vpop.permute.xlu0 %4933
        %4935 = vrot.lane.b32.xlu0 %v4930, 124
        %v4936 = vpop.permute.xlu0 %4935
        %v4939 = vadd.f32 %v4883, %v4934
        %v4940 = vadd.f32 %v4884, %v4936
        %s4941 = sld [smem:[#allocation2 + $0x126]]
        %v4942 = vstv %s4941
        %v4943 = vmul.f32 %v4942, %v4719
        %v4944 = vmul.f32 %v4942, %v4720
        %4947 = vrot.lane.b32.xlu0 %v4943, 124
        %v4948 = vpop.permute.xlu0 %4947
        %4949 = vrot.lane.b32.xlu0 %v4944, 124
        %v4950 = vpop.permute.xlu0 %4949
        %v4953 = vadd.f32 %v4897, %v4948
        %v4954 = vadd.f32 %v4898, %v4950
        %s4955 = sld [smem:[#allocation2 + $0x18a]]
        %v4956 = vstv %s4955
        %v4957 = vmul.f32 %v4956, %v4719
        %v4958 = vmul.f32 %v4956, %v4720
        %4961 = vrot.lane.b32.xlu0 %v4957, 124
        %v4962 = vpop.permute.xlu0 %4961
        %4963 = vrot.lane.b32.xlu0 %v4958, 124
        %v4964 = vpop.permute.xlu0 %4963
        %v4967 = vadd.f32 %v4911, %v4962
        %v4968 = vadd.f32 %v4912, %v4964
        %s4969 = sadd.s32 %s1189, 72
        %s4970 = scalar_lea.vmem %s170, %s4969
        %v4971 = vld [vmem:[%s4970] sm:$0xff]
        %v4972 = vld [vmem:[%s4970 + $0x8] sm:$0xff]
        %s4973 = sld [smem:[#allocation2 + $0x5f]]
        %v4974 = vstv %s4973
        %v4975 = vmul.f32 %v4974, %v4971
        %v4976 = vmul.f32 %v4974, %v4972
        %v4977 = vadd.f32 %v4925, %v4975
        %v4978 = vadd.f32 %v4926, %v4976
        %s4979 = sld [smem:[#allocation2 + $0xc3]]
        %v4980 = vstv %s4979
        %v4981 = vmul.f32 %v4980, %v4971
        %v4982 = vmul.f32 %v4980, %v4972
        %v4983 = vadd.f32 %v4939, %v4981
        %v4984 = vadd.f32 %v4940, %v4982
        %s4985 = sld [smem:[#allocation2 + $0x127]]
        %v4986 = vstv %s4985
        %v4987 = vmul.f32 %v4986, %v4971
        %v4988 = vmul.f32 %v4986, %v4972
        %v4989 = vadd.f32 %v4953, %v4987
        %v4990 = vadd.f32 %v4954, %v4988
        %s4991 = sld [smem:[#allocation2 + $0x18b]]
        %v4992 = vstv %s4991
        %v4993 = vmul.f32 %v4992, %v4971
        %v4994 = vmul.f32 %v4992, %v4972
        %v4995 = vadd.f32 %v4967, %v4993
        %v4996 = vadd.f32 %v4968, %v4994
        %s4997 = sld [smem:[#allocation2 + $0x60]]
        %v4998 = vstv %s4997
        %v4999 = vmul.f32 %v4998, %v4971
        %v5000 = vmul.f32 %v4998, %v4972
        %5003 = vrot.lane.b32.xlu0 %v4999, 127
        %v5004 = vpop.permute.xlu0 %5003
        %5005 = vrot.lane.b32.xlu0 %v5000, 127
        %v5006 = vpop.permute.xlu0 %5005
        %v5009 = vadd.f32 %v4977, %v5004
        %v5010 = vadd.f32 %v4978, %v5006
        %s5011 = sld [smem:[#allocation2 + $0xc4]]
        %v5012 = vstv %s5011
        %v5013 = vmul.f32 %v5012, %v4971
        %v5014 = vmul.f32 %v5012, %v4972
        %5017 = vrot.lane.b32.xlu0 %v5013, 127
        %v5018 = vpop.permute.xlu0 %5017
        %5019 = vrot.lane.b32.xlu0 %v5014, 127
        %v5020 = vpop.permute.xlu0 %5019
        %v5023 = vadd.f32 %v4983, %v5018
        %v5024 = vadd.f32 %v4984, %v5020
        %s5025 = sld [smem:[#allocation2 + $0x128]]
        %v5026 = vstv %s5025
        %v5027 = vmul.f32 %v5026, %v4971
        %v5028 = vmul.f32 %v5026, %v4972
        %5031 = vrot.lane.b32.xlu0 %v5027, 127
        %v5032 = vpop.permute.xlu0 %5031
        %5033 = vrot.lane.b32.xlu0 %v5028, 127
        %v5034 = vpop.permute.xlu0 %5033
        %v5037 = vadd.f32 %v4989, %v5032
        %v5038 = vadd.f32 %v4990, %v5034
        %s5039 = sld [smem:[#allocation2 + $0x18c]]
        %v5040 = vstv %s5039
        %v5041 = vmul.f32 %v5040, %v4971
        %v5042 = vmul.f32 %v5040, %v4972
        %5045 = vrot.lane.b32.xlu0 %v5041, 127
        %v5046 = vpop.permute.xlu0 %5045
        %5047 = vrot.lane.b32.xlu0 %v5042, 127
        %v5048 = vpop.permute.xlu0 %5047
        %v5051 = vadd.f32 %v4995, %v5046
        %v5052 = vadd.f32 %v4996, %v5048
        %s5053 = sld [smem:[#allocation2 + $0x61]]
        %v5054 = vstv %s5053
        %v5055 = vmul.f32 %v5054, %v4971
        %v5056 = vmul.f32 %v5054, %v4972
        %5059 = vrot.lane.b32.xlu0 %v5055, 126
        %v5060 = vpop.permute.xlu0 %5059
        %5061 = vrot.lane.b32.xlu0 %v5056, 126
        %v5062 = vpop.permute.xlu0 %5061
        %v5065 = vadd.f32 %v5009, %v5060
        %v5066 = vadd.f32 %v5010, %v5062
        %s5067 = sld [smem:[#allocation2 + $0xc5]]
        %v5068 = vstv %s5067
        %v5069 = vmul.f32 %v5068, %v4971
        %v5070 = vmul.f32 %v5068, %v4972
        %5073 = vrot.lane.b32.xlu0 %v5069, 126
        %v5074 = vpop.permute.xlu0 %5073
        %5075 = vrot.lane.b32.xlu0 %v5070, 126
        %v5076 = vpop.permute.xlu0 %5075
        %v5079 = vadd.f32 %v5023, %v5074
        %v5080 = vadd.f32 %v5024, %v5076
        %s5081 = sld [smem:[#allocation2 + $0x129]]
        %v5082 = vstv %s5081
        %v5083 = vmul.f32 %v5082, %v4971
        %v5084 = vmul.f32 %v5082, %v4972
        %5087 = vrot.lane.b32.xlu0 %v5083, 126
        %v5088 = vpop.permute.xlu0 %5087
        %5089 = vrot.lane.b32.xlu0 %v5084, 126
        %v5090 = vpop.permute.xlu0 %5089
        %v5093 = vadd.f32 %v5037, %v5088
        %v5094 = vadd.f32 %v5038, %v5090
        %s5095 = sld [smem:[#allocation2 + $0x18d]]
        %v5096 = vstv %s5095
        %v5097 = vmul.f32 %v5096, %v4971
        %v5098 = vmul.f32 %v5096, %v4972
        %5101 = vrot.lane.b32.xlu0 %v5097, 126
        %v5102 = vpop.permute.xlu0 %5101
        %5103 = vrot.lane.b32.xlu0 %v5098, 126
        %v5104 = vpop.permute.xlu0 %5103
        %v5107 = vadd.f32 %v5051, %v5102
        %v5108 = vadd.f32 %v5052, %v5104
        %s5109 = sld [smem:[#allocation2 + $0x62]]
        %v5110 = vstv %s5109
        %v5111 = vmul.f32 %v5110, %v4971
        %v5112 = vmul.f32 %v5110, %v4972
        %5115 = vrot.lane.b32.xlu0 %v5111, 125
        %v5116 = vpop.permute.xlu0 %5115
        %5117 = vrot.lane.b32.xlu0 %v5112, 125
        %v5118 = vpop.permute.xlu0 %5117
        %v5121 = vadd.f32 %v5065, %v5116
        %v5122 = vadd.f32 %v5066, %v5118
        %s5123 = sld [smem:[#allocation2 + $0xc6]]
        %v5124 = vstv %s5123
        %v5125 = vmul.f32 %v5124, %v4971
        %v5126 = vmul.f32 %v5124, %v4972
        %5129 = vrot.lane.b32.xlu0 %v5125, 125
        %v5130 = vpop.permute.xlu0 %5129
        %5131 = vrot.lane.b32.xlu0 %v5126, 125
        %v5132 = vpop.permute.xlu0 %5131
        %v5135 = vadd.f32 %v5079, %v5130
        %v5136 = vadd.f32 %v5080, %v5132
        %s5137 = sld [smem:[#allocation2 + $0x12a]]
        %v5138 = vstv %s5137
        %v5139 = vmul.f32 %v5138, %v4971
        %v5140 = vmul.f32 %v5138, %v4972
        %5143 = vrot.lane.b32.xlu0 %v5139, 125
        %v5144 = vpop.permute.xlu0 %5143
        %5145 = vrot.lane.b32.xlu0 %v5140, 125
        %v5146 = vpop.permute.xlu0 %5145
        %v5149 = vadd.f32 %v5093, %v5144
        %v5150 = vadd.f32 %v5094, %v5146
        %s5151 = sld [smem:[#allocation2 + $0x18e]]
        %v5152 = vstv %s5151
        %v5153 = vmul.f32 %v5152, %v4971
        %v5154 = vmul.f32 %v5152, %v4972
        %5157 = vrot.lane.b32.xlu0 %v5153, 125
        %v5158 = vpop.permute.xlu0 %5157
        %5159 = vrot.lane.b32.xlu0 %v5154, 125
        %v5160 = vpop.permute.xlu0 %5159
        %v5163 = vadd.f32 %v5107, %v5158
        %v5164 = vadd.f32 %v5108, %v5160
        %s5165 = sld [smem:[#allocation2 + $0x63]]
        %v5166 = vstv %s5165
        %v5167 = vmul.f32 %v5166, %v4971
        %v5168 = vmul.f32 %v5166, %v4972
        %5171 = vrot.lane.b32.xlu0 %v5167, 124
        %v5172 = vpop.permute.xlu0 %5171
        %5173 = vrot.lane.b32.xlu0 %v5168, 124
        %v5174 = vpop.permute.xlu0 %5173
        %v5177 = vadd.f32 %v5121, %v5172
        %v5178 = vadd.f32 %v5122, %v5174
        %s5179 = sld [smem:[#allocation2 + $0xc7]]
        %v5180 = vstv %s5179
        %v5181 = vmul.f32 %v5180, %v4971
        %v5182 = vmul.f32 %v5180, %v4972
        %5185 = vrot.lane.b32.xlu0 %v5181, 124
        %v5186 = vpop.permute.xlu0 %5185
        %5187 = vrot.lane.b32.xlu0 %v5182, 124
        %v5188 = vpop.permute.xlu0 %5187
        %v5191 = vadd.f32 %v5135, %v5186
        %v5192 = vadd.f32 %v5136, %v5188
        %s5193 = sld [smem:[#allocation2 + $0x12b]]
        %v5194 = vstv %s5193
        %v5195 = vmul.f32 %v5194, %v4971
        %v5196 = vmul.f32 %v5194, %v4972
        %5199 = vrot.lane.b32.xlu0 %v5195, 124
        %v5200 = vpop.permute.xlu0 %5199
        %5201 = vrot.lane.b32.xlu0 %v5196, 124
        %v5202 = vpop.permute.xlu0 %5201
        %v5205 = vadd.f32 %v5149, %v5200
        %v5206 = vadd.f32 %v5150, %v5202
        %s5207 = sld [smem:[#allocation2 + $0x18f]]
        %v5208 = vstv %s5207
        %v5209 = vmul.f32 %v5208, %v4971
        %v5210 = vmul.f32 %v5208, %v4972
        %5213 = vrot.lane.b32.xlu0 %v5209, 124
        %v5214 = vpop.permute.xlu0 %5213
        %5215 = vrot.lane.b32.xlu0 %v5210, 124
        %v5216 = vpop.permute.xlu0 %5215
        %v5219 = vadd.f32 %v5163, %v5214
        %v5220 = vadd.f32 %v5164, %v5216
        %vm5221 = vcmask 97280
        %5222 = vst.msk [vmem:[%s179] sm:$0xff] %vm5221, %v5177
        %5223 = vst.msk [vmem:[%s179 + $0x8] sm:$0xff] %vm5221, %v5178
        %s5224 = scalar_lea.vmem %s179, 16
        %5225 = vst.msk [vmem:[%s5224] sm:$0xff] %vm5221, %v5191
        %5226 = vst.msk [vmem:[%s5224 + $0x8] sm:$0xff] %vm5221, %v5192
        %s5227 = scalar_lea.vmem %s179, 32
        %5228 = vst.msk [vmem:[%s5227] sm:$0xff] %vm5221, %v5205
        %5229 = vst.msk [vmem:[%s5227 + $0x8] sm:$0xff] %vm5221, %v5206
        %s5230 = scalar_lea.vmem %s179, 48
        %5231 = vst.msk [vmem:[%s5230] sm:$0xff] %vm5221, %v5219
        %5232 = vst.msk [vmem:[%s5230 + $0x8] sm:$0xff] %vm5221, %v5220
        %s5233 = smul.u32 2, %s19
        %p5234 = scmp.lt.s32.totalorder %s18, 1
        %s5235 = scalar_select %p5234, %s18, 1
        %p5236 = scmp.lt.s32.totalorder %s5233, 1
        %s5237 = scalar_select %p5236, %s5233, 1
        %s5238 = smul.addr %s5235, 8
        %s5239 = sadd.s32 %s5237, %s5238
        %s5240 = smul.addr %s5239, 8
        %s5241 = scalar_lea.vmem %s2, %s5240
        // Predicated region
        $region33: #{bayar_conv2d.1} parent=27 // pred_check
          %p5242 = pneg %p93
        $region34: #{bayar_conv2d.1} parent=27 // pred_check_branch
          %5244 = sbr.rel (%p5242) target = $region36
        $region35: #{bayar_conv2d.1} parent=27 // pred_region
          %s5245 = smul.u32 2, %s19
        $region36: #{bayar_conv2d.1} parent=27 // pred_fallthru
          _
      $region28: #{bayar_conv2d.1} parent=5 // pred_fallthru
        _
      %p5246 = scmp.le.s32.totalorder 2, %s9
      // Predicated region
      $region37: #{bayar_conv2d.1} parent=5 // pred_check
        %p5247 = pneg %p5246
      $region38: #{bayar_conv2d.1} parent=5 // pred_check_branch
        %5249 = sbr.rel (%p5247) target = $region40
      $region39: #{bayar_conv2d.1} parent=5 // pred_region
        %s5250 = ssub.s32 %s9, 2
        // Predicated region
        $region41: #{bayar_conv2d.1} parent=39 // pred_check
          %p5251 = pneg %p99
        $region42: #{bayar_conv2d.1} parent=39 // pred_check_branch
          %5253 = sbr.rel (%p5251) target = $region44
        $region43: #{bayar_conv2d.1} parent=39 // pred_region
          %s5254 = smul.u32 2, %s21
          %p5255 = scmp.lt.s32.totalorder %s20, 1
          %s5256 = scalar_select %p5255, %s20, 1
          %p5257 = scmp.lt.s32.totalorder %s5254, 1
          %s5258 = scalar_select %p5257, %s5254, 1
          %s5259 = smul.addr %s5256, 8
          %s5260 = sadd.s32 %s5258, %s5259
          %s5261 = smul.addr %s5260, 8
          %s5262 = scalar_lea.vmem %s2, %s5261
        $region44: #{bayar_conv2d.1} parent=39 // pred_fallthru
          _
      $region40: #{bayar_conv2d.1} parent=5 // pred_fallthru
        _
    $region6: #{bayar_conv2d.1} parent=1 // loop_footer
      %s13 = sadd.s32 1, %s9
    $region7: #{bayar_conv2d.1} parent=1 // loop_footer_branch
      %8 = sbr.rel target = $region3
    $region8: #{bayar_conv2d.1} parent=1 // loop_exit
      _
    %5263 = vsyncpa [#allocation3], 1
    %s5264 = scalar_lea.sflag [#allocation3], 1
    %5265 = vsyncpa %s5264, 1

</llo_original>
